<compile_context>
chip_gen: v7x
topology: tpu7x:2x2x1
jax: 0.10.0
libtpu: 0.0.40
codegen_flags: <defaults>
</compile_context>

<pallas_src>
import jax
import jax.numpy as jnp
from jax.experimental import pallas as pl
from jax.experimental.pallas import tpu as pltpu


# ----------------------------- fused kernel -----------------------------
def _up_doubleconv_kernel(x2u_ref, x1_ref, w1_ref, s1_ref, t1_ref,
                          w2_ref, s2_ref, t2_ref, o_ref, pad1_ref, pad2_ref):
    # x2u_ref: (1, H, W, C2) bf16   upsampled+padded x2 (NHWC)
    # x1_ref : (1, H, W, C1) bf16   skip connection (NHWC)
    # w1_ref : (9, C1+C2, Cmid) bf16   conv1 weights, k = 3*dy + dx
    # w2_ref : (9, Cmid,  Cmid) bf16   conv2 weights
    # s*_ref/t*_ref: (1, Cmid) f32     folded BatchNorm (eval) scale / shift
    # o_ref  : (1, Cmid, H*W) f32      lane-dense output (reshaped to NCHW outside)
    # pad1_ref/pad2_ref: VMEM scratch, zero-padded conv inputs
    _, H, W, C1 = x1_ref.shape
    C2 = x2u_ref.shape[3]
    Cin = C1 + C2
    Cmid = w1_ref.shape[2]
    P = H * W

    # Zero borders (3x3 conv zero padding) and splice cat([x2_up, x1], dim=channel)
    # directly into the interior -- the concatenated tensor never touches HBM.
    pad1_ref[...] = jnp.zeros_like(pad1_ref)
    pad2_ref[...] = jnp.zeros_like(pad2_ref)
    pad1_ref[1:H + 1, 1:W + 1, :] = jnp.concatenate(
        [x2u_ref[0], x1_ref[0]], axis=-1)

    def conv3x3(src_ref, w_ref, cin):
        # 9 shifted matmuls accumulated in f32 (no im2col materialization).
        acc = jnp.zeros((P, w_ref.shape[2]), jnp.float32)
        for k in range(9):
            dy, dx = k // 3, k % 3
            xs = src_ref[dy:dy + H, dx:dx + W, :].reshape(P, cin)
            acc = acc + jnp.dot(xs, w_ref[k],
                                preferred_element_type=jnp.float32)
        return acc

    # conv1 (c_in -> c_mid) + folded BatchNorm(eval) + ReLU, result stays in VMEM.
    y = conv3x3(pad1_ref, w1_ref, Cin)
    y = jnp.maximum(y * s1_ref[...] + t1_ref[...], 0.0)
    pad2_ref[1:H + 1, 1:W + 1, :] = y.reshape(H, W, Cmid).astype(pad2_ref.dtype)

    # conv2 (c_mid -> c_mid) + folded BatchNorm(eval) + ReLU.
    y = conv3x3(pad2_ref, w2_ref, Cmid)
    y = jnp.maximum(y * s2_ref[...] + t2_ref[...], 0.0)

    # Lane-dense store: (c_mid, H*W) puts H*W (multiple of 128) on the lane axis.
    o_ref[0] = y.T.astype(o_ref.dtype)


# ----------------------------- glue helpers -----------------------------
def _interp_matrix(n_in, n_out):
    """1-D interpolation matrix for Upsample(mode='bilinear', align_corners=True)."""
    if n_in == 1 or n_out == 1:
        return jnp.zeros((n_out, n_in), jnp.float32).at[:, 0].set(1.0)
    src = jnp.arange(n_out, dtype=jnp.float32) * (n_in - 1) / (n_out - 1)
    lo = jnp.clip(jnp.floor(src).astype(jnp.int32), 0, n_in - 2)
    frac = src - lo.astype(jnp.float32)
    rows = jnp.arange(n_out)
    m = jnp.zeros((n_out, n_in), jnp.float32)
    m = m.at[rows, lo].set(1.0 - frac)
    m = m.at[rows, lo + 1].add(frac)
    return m


def _upsample2x_nhwc(x_nchw):
    """Bilinear x2 upsample (align_corners=True) as two tiny separable matmuls -> NHWC."""
    _, _, H, W = x_nchw.shape
    uh = _interp_matrix(H, 2 * H)
    uw = _interp_matrix(W, 2 * W)
    return jnp.einsum("ah,bw,nchw->nabc", uh, uw, x_nchw,
                      precision=jax.lax.Precision.HIGHEST)


def _fold_bn(gamma, beta, mean, var, eps=1e-5):
    """BatchNorm2d (eval mode, running stats) -> per-channel scale/shift."""
    s = gamma / jnp.sqrt(var + eps)
    t = beta - mean * s
    return s.reshape(1, -1).astype(jnp.float32), t.reshape(1, -1).astype(jnp.float32)


# ----------------------------- forward wrapper -----------------------------
@jax.jit
def up_forward(x1_nchw, x2_nchw, params):
    """Up(c_in, c_out, bilinear=True).forward(x1, x2) with BatchNorm in eval mode."""
    N, C1, H, W = x1_nchw.shape
    _, C2, _, _ = x2_nchw.shape
    Cin = C1 + C2
    Cmid = params["w1"].shape[0]
    P = H * W

    # Glue (pure data movement / tiny lerp): bilinear upsample of x2, F.pad placement,
    # NHWC layout, and bf16 cast (halves the kernel's HBM read bytes).
    x2u = _upsample2x_nhwc(x2_nchw)                       # (N, 2H2, 2W2, C2) f32
    dX = H - x2u.shape[1]
    dY = W - x2u.shape[2]
    x2u = jnp.pad(x2u, ((0, 0), (dX // 2, dX - dX // 2),
                        (dY // 2, dY - dY // 2), (0, 0)))
    x2u = x2u.astype(jnp.bfloat16)
    x1h = jnp.transpose(x1_nchw, (0, 2, 3, 1)).astype(jnp.bfloat16)

    # Weights -> (9, Cin, Cout) with k = 3*kh + kw; BN folded to scale/shift.
    w1 = jnp.transpose(params["w1"], (2, 3, 1, 0)).reshape(9, Cin, Cmid).astype(jnp.bfloat16)
    w2 = jnp.transpose(params["w2"], (2, 3, 1, 0)).reshape(9, Cmid, Cmid).astype(jnp.bfloat16)
    s1, t1 = _fold_bn(params["g1"], params["b1"], params["m1"], params["v1"])
    s2, t2 = _fold_bn(params["g2"], params["b2"], params["m2"], params["v2"])

    out = pl.pallas_call(
        _up_doubleconv_kernel,
        out_shape=jax.ShapeDtypeStruct((N, Cmid, P), jnp.float32),
        grid=(N,),
        in_specs=[
            pl.BlockSpec((1, H, W, C2), lambda n: (n, 0, 0, 0)),
            pl.BlockSpec((1, H, W, C1), lambda n: (n, 0, 0, 0)),
            pl.BlockSpec((9, Cin, Cmid), lambda n: (0, 0, 0)),
            pl.BlockSpec((1, Cmid), lambda n: (0, 0)),
            pl.BlockSpec((1, Cmid), lambda n: (0, 0)),
            pl.BlockSpec((9, Cmid, Cmid), lambda n: (0, 0, 0)),
            pl.BlockSpec((1, Cmid), lambda n: (0, 0)),
            pl.BlockSpec((1, Cmid), lambda n: (0, 0)),
        ],
        out_specs=pl.BlockSpec((1, Cmid, P), lambda n: (n, 0, 0)),
        scratch_shapes=[
            pltpu.VMEM((H + 2, W + 2, Cin), jnp.bfloat16),   # padded conv1 input
            pltpu.VMEM((H + 2, W + 2, Cmid), jnp.bfloat16),  # padded conv2 input
        ],
        compiler_params=pltpu.CompilerParams(
            dimension_semantics=("parallel",),
            vmem_limit_bytes=32 * 1024 * 1024,
        ),
    )(x2u, x1h, w1, s1, t1, w2, s2, t2)

    return out.reshape(N, Cmid, H, W)   # free reshape -> NCHW


# -------------------- pure-JAX references (correctness check) --------------------
def _ref_forward(x1, x2, params, emulate_bf16):
    """f32 reference; with emulate_bf16=True it mirrors the kernel's bf16 operand casts."""
    x2u = jnp.transpose(_upsample2x_nhwc(x2), (0, 3, 1, 2))        # NCHW
    _, _, H, W = x1.shape
    dX = H - x2u.shape[2]
    dY = W - x2u.shape[3]
    x2u = jnp.pad(x2u, ((0, 0), (0, 0), (dX // 2, dX - dX // 2),
                        (dY // 2, dY - dY // 2)))
    x = jnp.concatenate([x2u, x1], axis=1)

    def q(a):
        return a.astype(jnp.bfloat16).astype(jnp.float32) if emulate_bf16 else a

    def conv(a, w):
        return jax.lax.conv_general_dilated(
            q(a), q(w), (1, 1), ((1, 1), (1, 1)),
            dimension_numbers=("NCHW", "OIHW", "NCHW"),
            precision=jax.lax.Precision.HIGHEST)

    def bn_relu(h, g, b, m, v):
        s, t = _fold_bn(g, b, m, v)
        return jnp.maximum(h * s[0][None, :, None, None] + t[0][None, :, None, None], 0.0)

    h = bn_relu(conv(x, params["w1"]), params["g1"], params["b1"], params["m1"], params["v1"])
    h = bn_relu(conv(h, params["w2"]), params["g2"], params["b2"], params["m2"], params["v2"])
    return h


if __name__ == "__main__":
    key = jax.random.PRNGKey(0)
    N = 2
    c_in, c_out = 8, 8                  # Up(8, 8, bilinear=True) -> DoubleConv(8, 8, c_mid=4)
    c_mid = c_in // 2
    C1 = C2 = c_in // 2                 # skip (x1) and decoder (x2) each carry c_in//2 channels
    H1 = W1 = 16
    H2 = W2 = 8

    ks = jax.random.split(key, 12)
    params = {
        "w1": 0.1 * jax.random.normal(ks[0], (c_mid, c_in, 3, 3), jnp.float32),
        "g1": 1.0 + 0.1 * jax.random.normal(ks[1], (c_mid,), jnp.float32),
        "b1": 0.1 * jax.random.normal(ks[2], (c_mid,), jnp.float32),
        "m1": 0.1 * jax.random.normal(ks[3], (c_mid,), jnp.float32),
        "v1": 1.0 + 0.1 * jax.random.uniform(ks[4], (c_mid,), jnp.float32),
        "w2": 0.1 * jax.random.normal(ks[5], (c_mid, c_mid, 3, 3), jnp.float32),
        "g2": 1.0 + 0.1 * jax.random.normal(ks[6], (c_mid,), jnp.float32),
        "b2": 0.1 * jax.random.normal(ks[7], (c_mid,), jnp.float32),
        "m2": 0.1 * jax.random.normal(ks[8], (c_mid,), jnp.float32),
        "v2": 1.0 + 0.1 * jax.random.uniform(ks[9], (c_mid,), jnp.float32),
    }
    x1 = jax.random.normal(ks[10], (N, C1, H1, W1), jnp.float32)
    x2 = jax.random.normal(ks[11], (N, C2, H2, W2), jnp.float32)

    out = jax.block_until_ready(up_forward(x1, x2, params))
    assert out.shape == (N, c_mid, H1, W1), out.shape

    # Tight check against a reference that mirrors the kernel's bf16 matmul operands,
    # plus a looser check against the pure-f32 module semantics.
    ref_bf16 = jax.block_until_ready(_ref_forward(x1, x2, params, emulate_bf16=True))
    ref_f32 = jax.block_until_ready(_ref_forward(x1, x2, params, emulate_bf16=False))
    err_bf16 = float(jnp.max(jnp.abs(out - ref_bf16)))
    err_f32 = float(jnp.max(jnp.abs(out - ref_f32)))
    assert err_bf16 < 3e-3, f"kernel vs bf16-operand reference diff too large: {err_bf16}"
    assert err_f32 < 5e-2, f"kernel vs f32 reference diff too large: {err_f32}"
    print("KERNEL_OK")
</pallas_src>

<mosaic_0001>
module attributes {stable_mosaic.version = 11 : i64} {
  func.func private @main(%arg0: i32) attributes {dimension_semantics = [#tpu.dimension_semantics<core_parallel>], iteration_bounds = array<i64: 2>, tpu.core_type = #tpu.core_type<sc_scalar_subcore>, window_params = []} {
    return
  }
}

module attributes {stable_mosaic.version = 11 : i64} {
  func.func private @main(%arg0: i32) attributes {dimension_semantics = [#tpu.dimension_semantics<core_parallel>], iteration_bounds = array<i64: 2>, tpu.core_type = #tpu.core_type<sc_scalar_subcore>, window_params = []} {
    return
  }
}

module attributes {stable_mosaic.version = 11 : i64} {
  func.func @_up_doubleconv_kernel(%arg0: i32, %arg1: memref<1x16x16x4xbf16, #tpu.memory_space<vmem>>, %arg2: memref<1x16x16x4xbf16, #tpu.memory_space<vmem>>, %arg3: memref<9x8x4xbf16, #tpu.memory_space<vmem>>, %arg4: memref<1x4xf32, #tpu.memory_space<vmem>>, %arg5: memref<1x4xf32, #tpu.memory_space<vmem>>, %arg6: memref<9x4x4xbf16, #tpu.memory_space<vmem>>, %arg7: memref<1x4xf32, #tpu.memory_space<vmem>>, %arg8: memref<1x4xf32, #tpu.memory_space<vmem>>, %arg9: memref<1x4x256xf32, #tpu.memory_space<vmem>>, %arg10: memref<18x18x8xbf16, #tpu.memory_space<vmem>>, %arg11: memref<18x18x4xbf16, #tpu.memory_space<vmem>>) attributes {dimension_semantics = [#tpu.dimension_semantics<parallel>], iteration_bounds = array<i64: 2>, scalar_prefetch = 0 : i64, scratch_operands = 2 : i64, tpu.core_type = #tpu.core_type<tc>, window_params = [{transform_indices = @transform_0, window_bounds = array<i64: 1, 16, 16, 4>}, {transform_indices = @transform_1, window_bounds = array<i64: 1, 16, 16, 4>}, {pipeline_mode = #tpu.pipeline_mode<synchronous>, transform_indices = @transform_2, window_bounds = array<i64: 9, 8, 4>}, {pipeline_mode = #tpu.pipeline_mode<synchronous>, transform_indices = @transform_3, window_bounds = array<i64: 1, 4>}, {pipeline_mode = #tpu.pipeline_mode<synchronous>, transform_indices = @transform_4, window_bounds = array<i64: 1, 4>}, {pipeline_mode = #tpu.pipeline_mode<synchronous>, transform_indices = @transform_5, window_bounds = array<i64: 9, 4, 4>}, {pipeline_mode = #tpu.pipeline_mode<synchronous>, transform_indices = @transform_6, window_bounds = array<i64: 1, 4>}, {pipeline_mode = #tpu.pipeline_mode<synchronous>, transform_indices = @transform_7, window_bounds = array<i64: 1, 4>}, {transform_indices = @transform_8, window_bounds = array<i64: 1, 4, 256>}]} {
    %cst = arith.constant 0.000000e+00 : bf16
    %0 = vector.broadcast %cst : bf16 to vector<18x18x8xbf16>
    %c0 = arith.constant 0 : index
    %c0_0 = arith.constant 0 : index
    %c0_1 = arith.constant 0 : index
    %1 = vector.load %arg10[%c0, %c0_0, %c0_1] : memref<18x18x8xbf16, #tpu.memory_space<vmem>>, vector<18x18x8xbf16>
    tpu.vector_store %arg10[%c0, %c0_0, %c0_1], %0 {strides = array<i32>} : memref<18x18x8xbf16, #tpu.memory_space<vmem>>, vector<18x18x8xbf16>,
    %cst_2 = arith.constant 0.000000e+00 : bf16
    %2 = vector.broadcast %cst_2 : bf16 to vector<18x18x4xbf16>
    %c0_3 = arith.constant 0 : index
    %c0_4 = arith.constant 0 : index
    %c0_5 = arith.constant 0 : index
    %3 = vector.load %arg11[%c0_3, %c0_4, %c0_5] : memref<18x18x4xbf16, #tpu.memory_space<vmem>>, vector<18x18x4xbf16>
    tpu.vector_store %arg11[%c0_3, %c0_4, %c0_5], %2 {strides = array<i32>} : memref<18x18x4xbf16, #tpu.memory_space<vmem>>, vector<18x18x4xbf16>,
    %c0_6 = arith.constant 0 : index
    %c0_7 = arith.constant 0 : index
    %c0_8 = arith.constant 0 : index
    %c0_9 = arith.constant 0 : index
    %4 = vector.load %arg1[%c0_6, %c0_7, %c0_8, %c0_9] : memref<1x16x16x4xbf16, #tpu.memory_space<vmem>>, vector<1x16x16x4xbf16>
    %5 = vector.shape_cast %4 : vector<1x16x16x4xbf16> to vector<16x16x4xbf16>
    %c0_10 = arith.constant 0 : index
    %c0_11 = arith.constant 0 : index
    %c0_12 = arith.constant 0 : index
    %c0_13 = arith.constant 0 : index
    %6 = vector.load %arg2[%c0_10, %c0_11, %c0_12, %c0_13] : memref<1x16x16x4xbf16, #tpu.memory_space<vmem>>, vector<1x16x16x4xbf16>
    %7 = vector.shape_cast %6 : vector<1x16x16x4xbf16> to vector<16x16x4xbf16>
    %8 = tpu.concatenate %5, %7 in 2 : vector<16x16x4xbf16>, vector<16x16x4xbf16> -> vector<16x16x8xbf16>
    %c1 = arith.constant 1 : index
    %c1_14 = arith.constant 1 : index
    %c0_15 = arith.constant 0 : index
    %9 = vector.load %arg10[%c1, %c1_14, %c0_15] : memref<18x18x8xbf16, #tpu.memory_space<vmem>>, vector<16x16x8xbf16>
    tpu.vector_store %arg10[%c1, %c1_14, %c0_15], %8 {strides = array<i32>} : memref<18x18x8xbf16, #tpu.memory_space<vmem>>, vector<16x16x8xbf16>,
    %cst_16 = arith.constant 0.000000e+00 : f32
    %10 = vector.broadcast %cst_16 : f32 to vector<256x4xf32>
    %c0_17 = arith.constant 0 : index
    %c0_18 = arith.constant 0 : index
    %c0_19 = arith.constant 0 : index
    %11 = vector.load %arg10[%c0_17, %c0_18, %c0_19] : memref<18x18x8xbf16, #tpu.memory_space<vmem>>, vector<16x16x8xbf16>
    %12 = vector.shape_cast %11 : vector<16x16x8xbf16> to vector<256x8xbf16>
    %c0_20 = arith.constant 0 : index
    %c0_21 = arith.constant 0 : index
    %c0_22 = arith.constant 0 : index
    %13 = vector.load %arg3[%c0_20, %c0_21, %c0_22] : memref<9x8x4xbf16, #tpu.memory_space<vmem>>, vector<1x8x4xbf16>
    %14 = vector.shape_cast %13 : vector<1x8x4xbf16> to vector<8x4xbf16>
    %cst_23 = arith.constant dense<0.000000e+00> : vector<256x4xf32>
    %15 = tpu.matmul %12, %14, %cst_23 {dimension_numbers = #tpu.dot_dimension_numbers<[1], [0], [0], [1], [0, 0, 1, 1], [], []>} : vector<256x8xbf16>, vector<8x4xbf16>, vector<256x4xf32> -> vector<256x4xf32>
    %16 = arith.addf %10, %15 : vector<256x4xf32>
    %c0_24 = arith.constant 0 : index
    %c1_25 = arith.constant 1 : index
    %c0_26 = arith.constant 0 : index
    %17 = vector.load %arg10[%c0_24, %c1_25, %c0_26] : memref<18x18x8xbf16, #tpu.memory_space<vmem>>, vector<16x16x8xbf16>
    %18 = vector.shape_cast %17 : vector<16x16x8xbf16> to vector<256x8xbf16>
    %c1_27 = arith.constant 1 : index
    %c0_28 = arith.constant 0 : index
    %c0_29 = arith.constant 0 : index
    %19 = vector.load %arg3[%c1_27, %c0_28, %c0_29] : memref<9x8x4xbf16, #tpu.memory_space<vmem>>, vector<1x8x4xbf16>
    %20 = vector.shape_cast %19 : vector<1x8x4xbf16> to vector<8x4xbf16>
    %cst_30 = arith.constant dense<0.000000e+00> : vector<256x4xf32>
    %21 = tpu.matmul %18, %20, %cst_30 {dimension_numbers = #tpu.dot_dimension_numbers<[1], [0], [0], [1], [0, 0, 1, 1], [], []>} : vector<256x8xbf16>, vector<8x4xbf16>, vector<256x4xf32> -> vector<256x4xf32>
    %22 = arith.addf %16, %21 : vector<256x4xf32>
    %c0_31 = arith.constant 0 : index
    %c2 = arith.constant 2 : index
    %c0_32 = arith.constant 0 : index
    %23 = vector.load %arg10[%c0_31, %c2, %c0_32] : memref<18x18x8xbf16, #tpu.memory_space<vmem>>, vector<16x16x8xbf16>
    %24 = vector.shape_cast %23 : vector<16x16x8xbf16> to vector<256x8xbf16>
    %c2_33 = arith.constant 2 : index
    %c0_34 = arith.constant 0 : index
    %c0_35 = arith.constant 0 : index
    %25 = vector.load %arg3[%c2_33, %c0_34, %c0_35] : memref<9x8x4xbf16, #tpu.memory_space<vmem>>, vector<1x8x4xbf16>
    %26 = vector.shape_cast %25 : vector<1x8x4xbf16> to vector<8x4xbf16>
    %cst_36 = arith.constant dense<0.000000e+00> : vector<256x4xf32>
    %27 = tpu.matmul %24, %26, %cst_36 {dimension_numbers = #tpu.dot_dimension_numbers<[1], [0], [0], [1], [0, 0, 1, 1], [], []>} : vector<256x8xbf16>, vector<8x4xbf16>, vector<256x4xf32> -> vector<256x4xf32>
    %28 = arith.addf %22, %27 : vector<256x4xf32>
    %c1_37 = arith.constant 1 : index
    %c0_38 = arith.constant 0 : index
    %c0_39 = arith.constant 0 : index
    %29 = vector.load %arg10[%c1_37, %c0_38, %c0_39] : memref<18x18x8xbf16, #tpu.memory_space<vmem>>, vector<16x16x8xbf16>
    %30 = vector.shape_cast %29 : vector<16x16x8xbf16> to vector<256x8xbf16>
    %c3 = arith.constant 3 : index
    %c0_40 = arith.constant 0 : index
    %c0_41 = arith.constant 0 : index
    %31 = vector.load %arg3[%c3, %c0_40, %c0_41] : memref<9x8x4xbf16, #tpu.memory_space<vmem>>, vector<1x8x4xbf16>
    %32 = vector.shape_cast %31 : vector<1x8x4xbf16> to vector<8x4xbf16>
    %cst_42 = arith.constant dense<0.000000e+00> : vector<256x4xf32>
    %33 = tpu.matmul %30, %32, %cst_42 {dimension_numbers = #tpu.dot_dimension_numbers<[1], [0], [0], [1], [0, 0, 1, 1], [], []>} : vector<256x8xbf16>, vector<8x4xbf16>, vector<256x4xf32> -> vector<256x4xf32>
    %34 = arith.addf %28, %33 : vector<256x4xf32>
    %c1_43 = arith.constant 1 : index
    %c1_44 = arith.constant 1 : index
    %c0_45 = arith.constant 0 : index
    %35 = vector.load %arg10[%c1_43, %c1_44, %c0_45] : memref<18x18x8xbf16, #tpu.memory_space<vmem>>, vector<16x16x8xbf16>
    %36 = vector.shape_cast %35 : vector<16x16x8xbf16> to vector<256x8xbf16>
    %c4 = arith.constant 4 : index
    %c0_46 = arith.constant 0 : index
    %c0_47 = arith.constant 0 : index
    %37 = vector.load %arg3[%c4, %c0_46, %c0_47] : memref<9x8x4xbf16, #tpu.memory_space<vmem>>, vector<1x8x4xbf16>
    %38 = vector.shape_cast %37 : vector<1x8x4xbf16> to vector<8x4xbf16>
    %cst_48 = arith.constant dense<0.000000e+00> : vector<256x4xf32>
    %39 = tpu.matmul %36, %38, %cst_48 {dimension_numbers = #tpu.dot_dimension_numbers<[1], [0], [0], [1], [0, 0, 1, 1], [], []>} : vector<256x8xbf16>, vector<8x4xbf16>, vector<256x4xf32> -> vector<256x4xf32>
    %40 = arith.addf %34, %39 : vector<256x4xf32>
    %c1_49 = arith.constant 1 : index
    %c2_50 = arith.constant 2 : index
    %c0_51 = arith.constant 0 : index
    %41 = vector.load %arg10[%c1_49, %c2_50, %c0_51] : memref<18x18x8xbf16, #tpu.memory_space<vmem>>, vector<16x16x8xbf16>
    %42 = vector.shape_cast %41 : vector<16x16x8xbf16> to vector<256x8xbf16>
    %c5 = arith.constant 5 : index
    %c0_52 = arith.constant 0 : index
    %c0_53 = arith.constant 0 : index
    %43 = vector.load %arg3[%c5, %c0_52, %c0_53] : memref<9x8x4xbf16, #tpu.memory_space<vmem>>, vector<1x8x4xbf16>
    %44 = vector.shape_cast %43 : vector<1x8x4xbf16> to vector<8x4xbf16>
    %cst_54 = arith.constant dense<0.000000e+00> : vector<256x4xf32>
    %45 = tpu.matmul %42, %44, %cst_54 {dimension_numbers = #tpu.dot_dimension_numbers<[1], [0], [0], [1], [0, 0, 1, 1], [], []>} : vector<256x8xbf16>, vector<8x4xbf16>, vector<256x4xf32> -> vector<256x4xf32>
    %46 = arith.addf %40, %45 : vector<256x4xf32>
    %c2_55 = arith.constant 2 : index
    %c0_56 = arith.constant 0 : index
    %c0_57 = arith.constant 0 : index
    %47 = vector.load %arg10[%c2_55, %c0_56, %c0_57] : memref<18x18x8xbf16, #tpu.memory_space<vmem>>, vector<16x16x8xbf16>
    %48 = vector.shape_cast %47 : vector<16x16x8xbf16> to vector<256x8xbf16>
    %c6 = arith.constant 6 : index
    %c0_58 = arith.constant 0 : index
    %c0_59 = arith.constant 0 : index
    %49 = vector.load %arg3[%c6, %c0_58, %c0_59] : memref<9x8x4xbf16, #tpu.memory_space<vmem>>, vector<1x8x4xbf16>
    %50 = vector.shape_cast %49 : vector<1x8x4xbf16> to vector<8x4xbf16>
    %cst_60 = arith.constant dense<0.000000e+00> : vector<256x4xf32>
    %51 = tpu.matmul %48, %50, %cst_60 {dimension_numbers = #tpu.dot_dimension_numbers<[1], [0], [0], [1], [0, 0, 1, 1], [], []>} : vector<256x8xbf16>, vector<8x4xbf16>, vector<256x4xf32> -> vector<256x4xf32>
    %52 = arith.addf %46, %51 : vector<256x4xf32>
    %c2_61 = arith.constant 2 : index
    %c1_62 = arith.constant 1 : index
    %c0_63 = arith.constant 0 : index
    %53 = vector.load %arg10[%c2_61, %c1_62, %c0_63] : memref<18x18x8xbf16, #tpu.memory_space<vmem>>, vector<16x16x8xbf16>
    %54 = vector.shape_cast %53 : vector<16x16x8xbf16> to vector<256x8xbf16>
    %c7 = arith.constant 7 : index
    %c0_64 = arith.constant 0 : index
    %c0_65 = arith.constant 0 : index
    %55 = vector.load %arg3[%c7, %c0_64, %c0_65] : memref<9x8x4xbf16, #tpu.memory_space<vmem>>, vector<1x8x4xbf16>
    %56 = vector.shape_cast %55 : vector<1x8x4xbf16> to vector<8x4xbf16>
    %cst_66 = arith.constant dense<0.000000e+00> : vector<256x4xf32>
    %57 = tpu.matmul %54, %56, %cst_66 {dimension_numbers = #tpu.dot_dimension_numbers<[1], [0], [0], [1], [0, 0, 1, 1], [], []>} : vector<256x8xbf16>, vector<8x4xbf16>, vector<256x4xf32> -> vector<256x4xf32>
    %58 = arith.addf %52, %57 : vector<256x4xf32>
    %c2_67 = arith.constant 2 : index
    %c2_68 = arith.constant 2 : index
    %c0_69 = arith.constant 0 : index
    %59 = vector.load %arg10[%c2_67, %c2_68, %c0_69] : memref<18x18x8xbf16, #tpu.memory_space<vmem>>, vector<16x16x8xbf16>
    %60 = vector.shape_cast %59 : vector<16x16x8xbf16> to vector<256x8xbf16>
    %c8 = arith.constant 8 : index
    %c0_70 = arith.constant 0 : index
    %c0_71 = arith.constant 0 : index
    %61 = vector.load %arg3[%c8, %c0_70, %c0_71] : memref<9x8x4xbf16, #tpu.memory_space<vmem>>, vector<1x8x4xbf16>
    %62 = vector.shape_cast %61 : vector<1x8x4xbf16> to vector<8x4xbf16>
    %cst_72 = arith.constant dense<0.000000e+00> : vector<256x4xf32>
    %63 = tpu.matmul %60, %62, %cst_72 {dimension_numbers = #tpu.dot_dimension_numbers<[1], [0], [0], [1], [0, 0, 1, 1], [], []>} : vector<256x8xbf16>, vector<8x4xbf16>, vector<256x4xf32> -> vector<256x4xf32>
    %64 = arith.addf %58, %63 : vector<256x4xf32>
    %c0_73 = arith.constant 0 : index
    %c0_74 = arith.constant 0 : index
    %65 = vector.load %arg4[%c0_73, %c0_74] : memref<1x4xf32, #tpu.memory_space<vmem>>, vector<1x4xf32>
    %66 = vector.broadcast %65 : vector<1x4xf32> to vector<256x4xf32>
    %67 = arith.mulf %64, %66 : vector<256x4xf32>
    %c0_75 = arith.constant 0 : index
    %c0_76 = arith.constant 0 : index
    %68 = vector.load %arg5[%c0_75, %c0_76] : memref<1x4xf32, #tpu.memory_space<vmem>>, vector<1x4xf32>
    %69 = vector.broadcast %68 : vector<1x4xf32> to vector<256x4xf32>
    %70 = arith.addf %67, %69 : vector<256x4xf32>
    %cst_77 = arith.constant 0.000000e+00 : f32
    %71 = vector.broadcast %cst_77 : f32 to vector<256x4xf32>
    %72 = arith.maximumf %70, %71 : vector<256x4xf32>
    %73 = vector.shape_cast %72 : vector<256x4xf32> to vector<16x16x4xf32>
    %74 = arith.truncf %73 : vector<16x16x4xf32> to vector<16x16x4xbf16>
    %c1_78 = arith.constant 1 : index
    %c1_79 = arith.constant 1 : index
    %c0_80 = arith.constant 0 : index
    %75 = vector.load %arg11[%c1_78, %c1_79, %c0_80] : memref<18x18x4xbf16, #tpu.memory_space<vmem>>, vector<16x16x4xbf16>
    tpu.vector_store %arg11[%c1_78, %c1_79, %c0_80], %74 {strides = array<i32>} : memref<18x18x4xbf16, #tpu.memory_space<vmem>>, vector<16x16x4xbf16>,
    %cst_81 = arith.constant 0.000000e+00 : f32
    %76 = vector.broadcast %cst_81 : f32 to vector<256x4xf32>
    %c0_82 = arith.constant 0 : index
    %c0_83 = arith.constant 0 : index
    %c0_84 = arith.constant 0 : index
    %77 = vector.load %arg11[%c0_82, %c0_83, %c0_84] : memref<18x18x4xbf16, #tpu.memory_space<vmem>>, vector<16x16x4xbf16>
    %78 = vector.shape_cast %77 : vector<16x16x4xbf16> to vector<256x4xbf16>
    %c0_85 = arith.constant 0 : index
    %c0_86 = arith.constant 0 : index
    %c0_87 = arith.constant 0 : index
    %79 = vector.load %arg6[%c0_85, %c0_86, %c0_87] : memref<9x4x4xbf16, #tpu.memory_space<vmem>>, vector<1x4x4xbf16>
    %80 = vector.shape_cast %79 : vector<1x4x4xbf16> to vector<4x4xbf16>
    %cst_88 = arith.constant dense<0.000000e+00> : vector<256x4xf32>
    %81 = tpu.matmul %78, %80, %cst_88 {dimension_numbers = #tpu.dot_dimension_numbers<[1], [0], [0], [1], [0, 0, 1, 1], [], []>} : vector<256x4xbf16>, vector<4x4xbf16>, vector<256x4xf32> -> vector<256x4xf32>
    %82 = arith.addf %76, %81 : vector<256x4xf32>
    %c0_89 = arith.constant 0 : index
    %c1_90 = arith.constant 1 : index
    %c0_91 = arith.constant 0 : index
    %83 = vector.load %arg11[%c0_89, %c1_90, %c0_91] : memref<18x18x4xbf16, #tpu.memory_space<vmem>>, vector<16x16x4xbf16>
    %84 = vector.shape_cast %83 : vector<16x16x4xbf16> to vector<256x4xbf16>
    %c1_92 = arith.constant 1 : index
    %c0_93 = arith.constant 0 : index
    %c0_94 = arith.constant 0 : index
    %85 = vector.load %arg6[%c1_92, %c0_93, %c0_94] : memref<9x4x4xbf16, #tpu.memory_space<vmem>>, vector<1x4x4xbf16>
    %86 = vector.shape_cast %85 : vector<1x4x4xbf16> to vector<4x4xbf16>
    %cst_95 = arith.constant dense<0.000000e+00> : vector<256x4xf32>
    %87 = tpu.matmul %84, %86, %cst_95 {dimension_numbers = #tpu.dot_dimension_numbers<[1], [0], [0], [1], [0, 0, 1, 1], [], []>} : vector<256x4xbf16>, vector<4x4xbf16>, vector<256x4xf32> -> vector<256x4xf32>
    %88 = arith.addf %82, %87 : vector<256x4xf32>
    %c0_96 = arith.constant 0 : index
    %c2_97 = arith.constant 2 : index
    %c0_98 = arith.constant 0 : index
    %89 = vector.load %arg11[%c0_96, %c2_97, %c0_98] : memref<18x18x4xbf16, #tpu.memory_space<vmem>>, vector<16x16x4xbf16>
    %90 = vector.shape_cast %89 : vector<16x16x4xbf16> to vector<256x4xbf16>
    %c2_99 = arith.constant 2 : index
    %c0_100 = arith.constant 0 : index
    %c0_101 = arith.constant 0 : index
    %91 = vector.load %arg6[%c2_99, %c0_100, %c0_101] : memref<9x4x4xbf16, #tpu.memory_space<vmem>>, vector<1x4x4xbf16>
    %92 = vector.shape_cast %91 : vector<1x4x4xbf16> to vector<4x4xbf16>
    %cst_102 = arith.constant dense<0.000000e+00> : vector<256x4xf32>
    %93 = tpu.matmul %90, %92, %cst_102 {dimension_numbers = #tpu.dot_dimension_numbers<[1], [0], [0], [1], [0, 0, 1, 1], [], []>} : vector<256x4xbf16>, vector<4x4xbf16>, vector<256x4xf32> -> vector<256x4xf32>
    %94 = arith.addf %88, %93 : vector<256x4xf32>
    %c1_103 = arith.constant 1 : index
    %c0_104 = arith.constant 0 : index
    %c0_105 = arith.constant 0 : index
    %95 = vector.load %arg11[%c1_103, %c0_104, %c0_105] : memref<18x18x4xbf16, #tpu.memory_space<vmem>>, vector<16x16x4xbf16>
    %96 = vector.shape_cast %95 : vector<16x16x4xbf16> to vector<256x4xbf16>
    %c3_106 = arith.constant 3 : index
    %c0_107 = arith.constant 0 : index
    %c0_108 = arith.constant 0 : index
    %97 = vector.load %arg6[%c3_106, %c0_107, %c0_108] : memref<9x4x4xbf16, #tpu.memory_space<vmem>>, vector<1x4x4xbf16>
    %98 = vector.shape_cast %97 : vector<1x4x4xbf16> to vector<4x4xbf16>
    %cst_109 = arith.constant dense<0.000000e+00> : vector<256x4xf32>
    %99 = tpu.matmul %96, %98, %cst_109 {dimension_numbers = #tpu.dot_dimension_numbers<[1], [0], [0], [1], [0, 0, 1, 1], [], []>} : vector<256x4xbf16>, vector<4x4xbf16>, vector<256x4xf32> -> vector<256x4xf32>
    %100 = arith.addf %94, %99 : vector<256x4xf32>
    %c1_110 = arith.constant 1 : index
    %c1_111 = arith.constant 1 : index
    %c0_112 = arith.constant 0 : index
    %101 = vector.load %arg11[%c1_110, %c1_111, %c0_112] : memref<18x18x4xbf16, #tpu.memory_space<vmem>>, vector<16x16x4xbf16>
    %102 = vector.shape_cast %101 : vector<16x16x4xbf16> to vector<256x4xbf16>
    %c4_113 = arith.constant 4 : index
    %c0_114 = arith.constant 0 : index
    %c0_115 = arith.constant 0 : index
    %103 = vector.load %arg6[%c4_113, %c0_114, %c0_115] : memref<9x4x4xbf16, #tpu.memory_space<vmem>>, vector<1x4x4xbf16>
    %104 = vector.shape_cast %103 : vector<1x4x4xbf16> to vector<4x4xbf16>
    %cst_116 = arith.constant dense<0.000000e+00> : vector<256x4xf32>
    %105 = tpu.matmul %102, %104, %cst_116 {dimension_numbers = #tpu.dot_dimension_numbers<[1], [0], [0], [1], [0, 0, 1, 1], [], []>} : vector<256x4xbf16>, vector<4x4xbf16>, vector<256x4xf32> -> vector<256x4xf32>
    %106 = arith.addf %100, %105 : vector<256x4xf32>
    %c1_117 = arith.constant 1 : index
    %c2_118 = arith.constant 2 : index
    %c0_119 = arith.constant 0 : index
    %107 = vector.load %arg11[%c1_117, %c2_118, %c0_119] : memref<18x18x4xbf16, #tpu.memory_space<vmem>>, vector<16x16x4xbf16>
    %108 = vector.shape_cast %107 : vector<16x16x4xbf16> to vector<256x4xbf16>
    %c5_120 = arith.constant 5 : index
    %c0_121 = arith.constant 0 : index
    %c0_122 = arith.constant 0 : index
    %109 = vector.load %arg6[%c5_120, %c0_121, %c0_122] : memref<9x4x4xbf16, #tpu.memory_space<vmem>>, vector<1x4x4xbf16>
    %110 = vector.shape_cast %109 : vector<1x4x4xbf16> to vector<4x4xbf16>
    %cst_123 = arith.constant dense<0.000000e+00> : vector<256x4xf32>
    %111 = tpu.matmul %108, %110, %cst_123 {dimension_numbers = #tpu.dot_dimension_numbers<[1], [0], [0], [1], [0, 0, 1, 1], [], []>} : vector<256x4xbf16>, vector<4x4xbf16>, vector<256x4xf32> -> vector<256x4xf32>
    %112 = arith.addf %106, %111 : vector<256x4xf32>
    %c2_124 = arith.constant 2 : index
    %c0_125 = arith.constant 0 : index
    %c0_126 = arith.constant 0 : index
    %113 = vector.load %arg11[%c2_124, %c0_125, %c0_126] : memref<18x18x4xbf16, #tpu.memory_space<vmem>>, vector<16x16x4xbf16>
    %114 = vector.shape_cast %113 : vector<16x16x4xbf16> to vector<256x4xbf16>
    %c6_127 = arith.constant 6 : index
    %c0_128 = arith.constant 0 : index
    %c0_129 = arith.constant 0 : index
    %115 = vector.load %arg6[%c6_127, %c0_128, %c0_129] : memref<9x4x4xbf16, #tpu.memory_space<vmem>>, vector<1x4x4xbf16>
    %116 = vector.shape_cast %115 : vector<1x4x4xbf16> to vector<4x4xbf16>
    %cst_130 = arith.constant dense<0.000000e+00> : vector<256x4xf32>
    %117 = tpu.matmul %114, %116, %cst_130 {dimension_numbers = #tpu.dot_dimension_numbers<[1], [0], [0], [1], [0, 0, 1, 1], [], []>} : vector<256x4xbf16>, vector<4x4xbf16>, vector<256x4xf32> -> vector<256x4xf32>
    %118 = arith.addf %112, %117 : vector<256x4xf32>
    %c2_131 = arith.constant 2 : index
    %c1_132 = arith.constant 1 : index
    %c0_133 = arith.constant 0 : index
    %119 = vector.load %arg11[%c2_131, %c1_132, %c0_133] : memref<18x18x4xbf16, #tpu.memory_space<vmem>>, vector<16x16x4xbf16>
    %120 = vector.shape_cast %119 : vector<16x16x4xbf16> to vector<256x4xbf16>
    %c7_134 = arith.constant 7 : index
    %c0_135 = arith.constant 0 : index
    %c0_136 = arith.constant 0 : index
    %121 = vector.load %arg6[%c7_134, %c0_135, %c0_136] : memref<9x4x4xbf16, #tpu.memory_space<vmem>>, vector<1x4x4xbf16>
    %122 = vector.shape_cast %121 : vector<1x4x4xbf16> to vector<4x4xbf16>
    %cst_137 = arith.constant dense<0.000000e+00> : vector<256x4xf32>
    %123 = tpu.matmul %120, %122, %cst_137 {dimension_numbers = #tpu.dot_dimension_numbers<[1], [0], [0], [1], [0, 0, 1, 1], [], []>} : vector<256x4xbf16>, vector<4x4xbf16>, vector<256x4xf32> -> vector<256x4xf32>
    %124 = arith.addf %118, %123 : vector<256x4xf32>
    %c2_138 = arith.constant 2 : index
    %c2_139 = arith.constant 2 : index
    %c0_140 = arith.constant 0 : index
    %125 = vector.load %arg11[%c2_138, %c2_139, %c0_140] : memref<18x18x4xbf16, #tpu.memory_space<vmem>>, vector<16x16x4xbf16>
    %126 = vector.shape_cast %125 : vector<16x16x4xbf16> to vector<256x4xbf16>
    %c8_141 = arith.constant 8 : index
    %c0_142 = arith.constant 0 : index
    %c0_143 = arith.constant 0 : index
    %127 = vector.load %arg6[%c8_141, %c0_142, %c0_143] : memref<9x4x4xbf16, #tpu.memory_space<vmem>>, vector<1x4x4xbf16>
    %128 = vector.shape_cast %127 : vector<1x4x4xbf16> to vector<4x4xbf16>
    %cst_144 = arith.constant dense<0.000000e+00> : vector<256x4xf32>
    %129 = tpu.matmul %126, %128, %cst_144 {dimension_numbers = #tpu.dot_dimension_numbers<[1], [0], [0], [1], [0, 0, 1, 1], [], []>} : vector<256x4xbf16>, vector<4x4xbf16>, vector<256x4xf32> -> vector<256x4xf32>
    %130 = arith.addf %124, %129 : vector<256x4xf32>
    %c0_145 = arith.constant 0 : index
    %c0_146 = arith.constant 0 : index
    %131 = vector.load %arg7[%c0_145, %c0_146] : memref<1x4xf32, #tpu.memory_space<vmem>>, vector<1x4xf32>
    %132 = vector.broadcast %131 : vector<1x4xf32> to vector<256x4xf32>
    %133 = arith.mulf %130, %132 : vector<256x4xf32>
    %c0_147 = arith.constant 0 : index
    %c0_148 = arith.constant 0 : index
    %134 = vector.load %arg8[%c0_147, %c0_148] : memref<1x4xf32, #tpu.memory_space<vmem>>, vector<1x4xf32>
    %135 = vector.broadcast %134 : vector<1x4xf32> to vector<256x4xf32>
    %136 = arith.addf %133, %135 : vector<256x4xf32>
    %cst_149 = arith.constant 0.000000e+00 : f32
    %137 = vector.broadcast %cst_149 : f32 to vector<256x4xf32>
    %138 = arith.maximumf %136, %137 : vector<256x4xf32>
    %139 = tpu.transpose %138, [1, 0] : vector<256x4xf32> -> vector<4x256xf32>
    %c0_150 = arith.constant 0 : index
    %c0_151 = arith.constant 0 : index
    %c0_152 = arith.constant 0 : index
    %140 = vector.load %arg9[%c0_150, %c0_151, %c0_152] : memref<1x4x256xf32, #tpu.memory_space<vmem>>, vector<1x4x256xf32>
    %141 = vector.shape_cast %140 : vector<1x4x256xf32> to vector<4x256xf32>
    %142 = vector.shape_cast %139 : vector<4x256xf32> to vector<1x4x256xf32>
    tpu.vector_store %arg9[%c0_150, %c0_151, %c0_152], %142 {strides = array<i32>} : memref<1x4x256xf32, #tpu.memory_space<vmem>>, vector<1x4x256xf32>,
    return
  }
  func.func @transform_0(%arg0: i32) -> (i32, i32, i32, i32) {
    %c0_i32 = arith.constant 0 : i32
    %c0_i32_0 = arith.constant 0 : i32
    %c0_i32_1 = arith.constant 0 : i32
    %c0_i32_2 = arith.constant 0 : i32
    return %arg0, %c0_i32, %c0_i32_0, %c0_i32_1 : i32, i32, i32, i32
  }
  func.func @transform_1(%arg0: i32) -> (i32, i32, i32, i32) {
    %c0_i32 = arith.constant 0 : i32
    %c0_i32_0 = arith.constant 0 : i32
    %c0_i32_1 = arith.constant 0 : i32
    %c0_i32_2 = arith.constant 0 : i32
    return %arg0, %c0_i32, %c0_i32_0, %c0_i32_1 : i32, i32, i32, i32
  }
  func.func @transform_2(%arg0: i32) -> (i32, i32, i32) {
    %c0_i32 = arith.constant 0 : i32
    %c0_i32_0 = arith.constant 0 : i32
    %c0_i32_1 = arith.constant 0 : i32
    %c0_i32_2 = arith.constant 0 : i32
    return %c0_i32, %c0_i32_0, %c0_i32_1 : i32, i32, i32
  }
  func.func @transform_3(%arg0: i32) -> (i32, i32) {
    %c0_i32 = arith.constant 0 : i32
    %c0_i32_0 = arith.constant 0 : i32
    %c0_i32_1 = arith.constant 0 : i32
    return %c0_i32, %c0_i32_0 : i32, i32
  }
  func.func @transform_4(%arg0: i32) -> (i32, i32) {
    %c0_i32 = arith.constant 0 : i32
    %c0_i32_0 = arith.constant 0 : i32
    %c0_i32_1 = arith.constant 0 : i32
    return %c0_i32, %c0_i32_0 : i32, i32
  }
  func.func @transform_5(%arg0: i32) -> (i32, i32, i32) {
    %c0_i32 = arith.constant 0 : i32
    %c0_i32_0 = arith.constant 0 : i32
    %c0_i32_1 = arith.constant 0 : i32
    %c0_i32_2 = arith.constant 0 : i32
    return %c0_i32, %c0_i32_0, %c0_i32_1 : i32, i32, i32
  }
  func.func @transform_6(%arg0: i32) -> (i32, i32) {
    %c0_i32 = arith.constant 0 : i32
    %c0_i32_0 = arith.constant 0 : i32
    %c0_i32_1 = arith.constant 0 : i32
    return %c0_i32, %c0_i32_0 : i32, i32
  }
  func.func @transform_7(%arg0: i32) -> (i32, i32) {
    %c0_i32 = arith.constant 0 : i32
    %c0_i32_0 = arith.constant 0 : i32
    %c0_i32_1 = arith.constant 0 : i32
    return %c0_i32, %c0_i32_0 : i32, i32
  }
  func.func @transform_8(%arg0: i32) -> (i32, i32, i32) {
    %c0_i32 = arith.constant 0 : i32
    %c0_i32_0 = arith.constant 0 : i32
    %c0_i32_1 = arith.constant 0 : i32
    return %arg0, %c0_i32, %c0_i32_0 : i32, i32, i32
  }
}

</mosaic_0001>

<llo_original>
// kernel: up_forward.1
$region0: #{up_forward.1}
  #allocation0 [shape = 'u32[]', space=smem, size = 0x4, offset = 0x4, fixed_abs, tag = 'smem constant byte address 0x4 - core index']
  #allocation1 [shape = 'u32[144,128]{1,0:T(1,128)}', space=vmem, size = 0x12000, scoped, tag = 'internal scratch']
  #allocation2 [shape = 'bf16[18,18,8]{2,1,0:T(8,128)(2,1)}', space=vmem, size = 0x1b000, scoped, tag = 'scratch operand']
  #allocation3 [shape = 'bf16[18,18,4]{2,1,0:T(8,128)(2,1)}', space=vmem, size = 0x1b000, scoped, tag = 'scratch operand']
  %s0 = inlined_call_operand.vmem [shape: bf16[2,16,16,4], index: 0, kind: input, shape index: {}]
  %s1 = inlined_call_operand.vmem [shape: bf16[2,16,16,4], index: 1, kind: input, shape index: {}]
  %s2 = inlined_call_operand.vmem [shape: bf16[9,8,4], index: 2, kind: input, shape index: {}]
  %s3 = inlined_call_operand.vmem [shape: f32[1,4], index: 3, kind: input, shape index: {}]
  %s4 = inlined_call_operand.vmem [shape: f32[1,4], index: 4, kind: input, shape index: {}]
  %s5 = inlined_call_operand.vmem [shape: bf16[9,4,4], index: 5, kind: input, shape index: {}]
  %s6 = inlined_call_operand.vmem [shape: f32[1,4], index: 6, kind: input, shape index: {}]
  %s7 = inlined_call_operand.vmem [shape: f32[1,4], index: 7, kind: input, shape index: {}]
  %s8 = inlined_call_operand.vmem [shape: f32[2,4,256], index: 8, kind: output, shape index: {}]
  %s9 = sld [smem:[#allocation0]]
  $region65: #{up_forward.1} parent=0
    _
  %s11 = ssub.s32 1, %s9
  %s12 = scalar_select 0, %s11, %s9
  loop: start=0, step=1, limit=4
  $region2: #{up_forward.1} parent=0 // loop_pre_header
    _
  $region3: #{up_forward.1} parent=0 // loop_header
    %s14 = sphi 0, %s18
    %p15 = scmp.ge.s32.totalorder %s14, 4
    %s24 = sphi 0, %s26
    %s27 = sphi 0, %s24
    %s28 = sphi 0, %s27
    %s44 = sphi 0, %s28
    %s50 = sphi 0, %s52
    %s53 = sphi 0, %s50
    %s54 = sphi 0, %s53
    %s70 = sphi 0, %s54
    %s74 = sphi 0, %s74
    %s76 = sphi 0, %s74
    %s77 = sphi 0, %s76
    %s91 = sphi 0, %s77
    %s95 = sphi 0, %s95
    %s97 = sphi 0, %s95
    %s98 = sphi 0, %s97
    %s112 = sphi 0, %s98
    %s116 = sphi 0, %s116
    %s118 = sphi 0, %s116
    %s119 = sphi 0, %s118
    %s133 = sphi 0, %s119
    %s137 = sphi 0, %s137
    %s139 = sphi 0, %s137
    %s140 = sphi 0, %s139
    %s154 = sphi 0, %s140
    %s158 = sphi 0, %s158
    %s160 = sphi 0, %s158
    %s161 = sphi 0, %s160
    %s175 = sphi 0, %s161
    %s179 = sphi 0, %s179
    %s181 = sphi 0, %s179
    %s182 = sphi 0, %s181
    %s196 = sphi 0, %s182
    %s202 = sphi 0, %s204
    %s205 = sphi 0, %s202
    %s206 = sphi 0, %s205
    %s222 = sphi 0, %s206
  $region4: #{up_forward.1} parent=0 // loop_header_branch
    %17 = sbr.rel (%p15) target = $region8
  $region5: #{up_forward.1} parent=0 // loop_body
    %s19 = ssub.s32 %s14, 1
    %s20 = ssub.s32 %s14, 2
    %s21 = sadd.s32 %s14, 1
    %s22 = ssub.s32 %s14, %s21
    %p23 = scmp.eq.s32.totalorder %s22, 0
    %s25 = sadd.s32 %s24, 1
    %s26 = scalar_select %p23, %s24, %s25
    %p29 = pneg %p23
    %p30 = scmp.eq.s32.totalorder %s14, 1
    %p31 = por %p29, %p30
    %p32 = scmp.ne.s32.totalorder %s24, %s27
    %p33 = scmp.eq.s32.totalorder %s14, 0
    %p34 = por %p32, %p33
    %p35 = scmp.ne.s32.totalorder %s24, %s27
    %p36 = scmp.eq.s32.totalorder %s19, 1
    %p37 = por %p35, %p36
    %p38 = scmp.ne.s32.totalorder %s27, %s28
    %p39 = scmp.eq.s32.totalorder %s19, 0
    %p40 = por %p38, %p39
    %p41 = scmp.ne.s32.totalorder %s27, %s28
    %p42 = scmp.eq.s32.totalorder %s20, 1
    %p43 = por %p41, %p42
    %p45 = scmp.ne.s32.totalorder %s28, %s44
    %p46 = scmp.eq.s32.totalorder %s20, 0
    %p47 = por %p45, %p46
    %s48 = ssub.s32 %s14, %s21
    %p49 = scmp.eq.s32.totalorder %s48, 0
    %s51 = sadd.s32 %s50, 1
    %s52 = scalar_select %p49, %s50, %s51
    %p55 = pneg %p49
    %p56 = scmp.eq.s32.totalorder %s14, 1
    %p57 = por %p55, %p56
    %p58 = scmp.ne.s32.totalorder %s50, %s53
    %p59 = scmp.eq.s32.totalorder %s14, 0
    %p60 = por %p58, %p59
    %p61 = scmp.ne.s32.totalorder %s50, %s53
    %p62 = scmp.eq.s32.totalorder %s19, 1
    %p63 = por %p61, %p62
    %p64 = scmp.ne.s32.totalorder %s53, %s54
    %p65 = scmp.eq.s32.totalorder %s19, 0
    %p66 = por %p64, %p65
    %p67 = scmp.ne.s32.totalorder %s53, %s54
    %p68 = scmp.eq.s32.totalorder %s20, 1
    %p69 = por %p67, %p68
    %p71 = scmp.ne.s32.totalorder %s54, %s70
    %p72 = scmp.eq.s32.totalorder %s20, 0
    %p73 = por %p71, %p72
    %s75 = sadd.s32 %s74, 1
    %p78 = scmp.eq.s32.totalorder %s14, 1
    %p79 = scmp.ne.s32.totalorder %s74, %s76
    %p80 = scmp.eq.s32.totalorder %s14, 0
    %p81 = por %p79, %p80
    %p82 = scmp.ne.s32.totalorder %s74, %s76
    %p83 = scmp.eq.s32.totalorder %s19, 1
    %p84 = por %p82, %p83
    %p85 = scmp.ne.s32.totalorder %s76, %s77
    %p86 = scmp.eq.s32.totalorder %s19, 0
    %p87 = por %p85, %p86
    %p88 = scmp.ne.s32.totalorder %s76, %s77
    %p89 = scmp.eq.s32.totalorder %s20, 1
    %p90 = por %p88, %p89
    %p92 = scmp.ne.s32.totalorder %s77, %s91
    %p93 = scmp.eq.s32.totalorder %s20, 0
    %p94 = por %p92, %p93
    %s96 = sadd.s32 %s95, 1
    %p99 = scmp.eq.s32.totalorder %s14, 1
    %p100 = scmp.ne.s32.totalorder %s95, %s97
    %p101 = scmp.eq.s32.totalorder %s14, 0
    %p102 = por %p100, %p101
    %p103 = scmp.ne.s32.totalorder %s95, %s97
    %p104 = scmp.eq.s32.totalorder %s19, 1
    %p105 = por %p103, %p104
    %p106 = scmp.ne.s32.totalorder %s97, %s98
    %p107 = scmp.eq.s32.totalorder %s19, 0
    %p108 = por %p106, %p107
    %p109 = scmp.ne.s32.totalorder %s97, %s98
    %p110 = scmp.eq.s32.totalorder %s20, 1
    %p111 = por %p109, %p110
    %p113 = scmp.ne.s32.totalorder %s98, %s112
    %p114 = scmp.eq.s32.totalorder %s20, 0
    %p115 = por %p113, %p114
    %s117 = sadd.s32 %s116, 1
    %p120 = scmp.eq.s32.totalorder %s14, 1
    %p121 = scmp.ne.s32.totalorder %s116, %s118
    %p122 = scmp.eq.s32.totalorder %s14, 0
    %p123 = por %p121, %p122
    %p124 = scmp.ne.s32.totalorder %s116, %s118
    %p125 = scmp.eq.s32.totalorder %s19, 1
    %p126 = por %p124, %p125
    %p127 = scmp.ne.s32.totalorder %s118, %s119
    %p128 = scmp.eq.s32.totalorder %s19, 0
    %p129 = por %p127, %p128
    %p130 = scmp.ne.s32.totalorder %s118, %s119
    %p131 = scmp.eq.s32.totalorder %s20, 1
    %p132 = por %p130, %p131
    %p134 = scmp.ne.s32.totalorder %s119, %s133
    %p135 = scmp.eq.s32.totalorder %s20, 0
    %p136 = por %p134, %p135
    %s138 = sadd.s32 %s137, 1
    %p141 = scmp.eq.s32.totalorder %s14, 1
    %p142 = scmp.ne.s32.totalorder %s137, %s139
    %p143 = scmp.eq.s32.totalorder %s14, 0
    %p144 = por %p142, %p143
    %p145 = scmp.ne.s32.totalorder %s137, %s139
    %p146 = scmp.eq.s32.totalorder %s19, 1
    %p147 = por %p145, %p146
    %p148 = scmp.ne.s32.totalorder %s139, %s140
    %p149 = scmp.eq.s32.totalorder %s19, 0
    %p150 = por %p148, %p149
    %p151 = scmp.ne.s32.totalorder %s139, %s140
    %p152 = scmp.eq.s32.totalorder %s20, 1
    %p153 = por %p151, %p152
    %p155 = scmp.ne.s32.totalorder %s140, %s154
    %p156 = scmp.eq.s32.totalorder %s20, 0
    %p157 = por %p155, %p156
    %s159 = sadd.s32 %s158, 1
    %p162 = scmp.eq.s32.totalorder %s14, 1
    %p163 = scmp.ne.s32.totalorder %s158, %s160
    %p164 = scmp.eq.s32.totalorder %s14, 0
    %p165 = por %p163, %p164
    %p166 = scmp.ne.s32.totalorder %s158, %s160
    %p167 = scmp.eq.s32.totalorder %s19, 1
    %p168 = por %p166, %p167
    %p169 = scmp.ne.s32.totalorder %s160, %s161
    %p170 = scmp.eq.s32.totalorder %s19, 0
    %p171 = por %p169, %p170
    %p172 = scmp.ne.s32.totalorder %s160, %s161
    %p173 = scmp.eq.s32.totalorder %s20, 1
    %p174 = por %p172, %p173
    %p176 = scmp.ne.s32.totalorder %s161, %s175
    %p177 = scmp.eq.s32.totalorder %s20, 0
    %p178 = por %p176, %p177
    %s180 = sadd.s32 %s179, 1
    %p183 = scmp.eq.s32.totalorder %s14, 1
    %p184 = scmp.ne.s32.totalorder %s179, %s181
    %p185 = scmp.eq.s32.totalorder %s14, 0
    %p186 = por %p184, %p185
    %p187 = scmp.ne.s32.totalorder %s179, %s181
    %p188 = scmp.eq.s32.totalorder %s19, 1
    %p189 = por %p187, %p188
    %p190 = scmp.ne.s32.totalorder %s181, %s182
    %p191 = scmp.eq.s32.totalorder %s19, 0
    %p192 = por %p190, %p191
    %p193 = scmp.ne.s32.totalorder %s181, %s182
    %p194 = scmp.eq.s32.totalorder %s20, 1
    %p195 = por %p193, %p194
    %p197 = scmp.ne.s32.totalorder %s182, %s196
    %p198 = scmp.eq.s32.totalorder %s20, 0
    %p199 = por %p197, %p198
    %s200 = ssub.s32 %s14, %s21
    %p201 = scmp.eq.s32.totalorder %s200, 0
    %s203 = sadd.s32 %s202, 1
    %s204 = scalar_select %p201, %s202, %s203
    %p207 = pneg %p201
    %p208 = scmp.eq.s32.totalorder %s14, 1
    %p209 = por %p207, %p208
    %p210 = scmp.ne.s32.totalorder %s202, %s205
    %p211 = scmp.eq.s32.totalorder %s14, 0
    %p212 = por %p210, %p211
    %p213 = scmp.ne.s32.totalorder %s202, %s205
    %p214 = scmp.eq.s32.totalorder %s19, 1
    %p215 = por %p213, %p214
    %p216 = scmp.ne.s32.totalorder %s205, %s206
    %p217 = scmp.eq.s32.totalorder %s19, 0
    %p218 = por %p216, %p217
    %p219 = scmp.ne.s32.totalorder %s205, %s206
    %p220 = scmp.eq.s32.totalorder %s20, 1
    %p221 = por %p219, %p220
    %p223 = scmp.ne.s32.totalorder %s206, %s222
    %p224 = scmp.eq.s32.totalorder %s20, 0
    %p225 = por %p223, %p224
    %p226 = scmp.le.s32.totalorder 1, %s14
    %p227 = scmp.lt.s32.totalorder %s14, 3
    %p228 = pnand %p226, %p227
    %p229 = pneg %p228
    // Predicated region
    $region9: #{up_forward.1} parent=5 // pred_check
      _
    $region10: #{up_forward.1} parent=5 // pred_check_branch
      %231 = sbr.rel (%p228) target = $region12
    $region11: #{up_forward.1} parent=5 // pred_region
      %s232 = ssub.s32 %s14, 1
      // Predicated region
      $region13: #{up_forward.1} parent=11 // pred_check
        %p233 = pneg %p87
      $region14: #{up_forward.1} parent=11 // pred_check_branch
        %235 = sbr.rel (%p233) target = $region16
      $region15: #{up_forward.1} parent=11 // pred_region
        _
      $region16: #{up_forward.1} parent=11 // pred_fallthru
        _
      // Predicated region
      $region17: #{up_forward.1} parent=11 // pred_check
        %p236 = pneg %p108
      $region18: #{up_forward.1} parent=11 // pred_check_branch
        %238 = sbr.rel (%p236) target = $region20
      $region19: #{up_forward.1} parent=11 // pred_region
        _
      $region20: #{up_forward.1} parent=11 // pred_fallthru
        _
      // Predicated region
      $region21: #{up_forward.1} parent=11 // pred_check
        %p239 = pneg %p129
      $region22: #{up_forward.1} parent=11 // pred_check_branch
        %241 = sbr.rel (%p239) target = $region24
      $region23: #{up_forward.1} parent=11 // pred_region
        _
      $region24: #{up_forward.1} parent=11 // pred_fallthru
        _
      // Predicated region
      $region25: #{up_forward.1} parent=11 // pred_check
        %p242 = pneg %p150
      $region26: #{up_forward.1} parent=11 // pred_check_branch
        %244 = sbr.rel (%p242) target = $region28
      $region27: #{up_forward.1} parent=11 // pred_region
        _
      $region28: #{up_forward.1} parent=11 // pred_fallthru
        _
      // Predicated region
      $region29: #{up_forward.1} parent=11 // pred_check
        %p245 = pneg %p171
      $region30: #{up_forward.1} parent=11 // pred_check_branch
        %247 = sbr.rel (%p245) target = $region32
      $region31: #{up_forward.1} parent=11 // pred_region
        _
      $region32: #{up_forward.1} parent=11 // pred_fallthru
        _
      // Predicated region
      $region33: #{up_forward.1} parent=11 // pred_check
        %p248 = pneg %p192
      $region34: #{up_forward.1} parent=11 // pred_check_branch
        %250 = sbr.rel (%p248) target = $region36
      $region35: #{up_forward.1} parent=11 // pred_region
        _
      $region36: #{up_forward.1} parent=11 // pred_fallthru
        _
    $region12: #{up_forward.1} parent=5 // pred_fallthru
      _
    %p251 = scmp.lt.s32.totalorder %s14, 2
    // Predicated region
    $region37: #{up_forward.1} parent=5 // pred_check
      %p252 = pneg %p251
    $region38: #{up_forward.1} parent=5 // pred_check_branch
      %254 = sbr.rel (%p252) target = $region40
    $region39: #{up_forward.1} parent=5 // pred_region
      // Predicated region
      $region41: #{up_forward.1} parent=39 // pred_check
        %p255 = pneg %p34
      $region42: #{up_forward.1} parent=39 // pred_check_branch
        %257 = sbr.rel (%p255) target = $region44
      $region43: #{up_forward.1} parent=39 // pred_region
        %p258 = scmp.lt.s32.totalorder %s14, 1
        %s259 = scalar_select %p258, %s14, 1
        %s260 = smul.addr %s259, 32
        %s261 = smul.addr %s260, 4
        %s262 = scalar_lea.vmem %s0, %s261
      $region44: #{up_forward.1} parent=39 // pred_fallthru
        _
      // Predicated region
      $region45: #{up_forward.1} parent=39 // pred_check
        %p263 = pneg %p60
      $region46: #{up_forward.1} parent=39 // pred_check_branch
        %265 = sbr.rel (%p263) target = $region48
      $region47: #{up_forward.1} parent=39 // pred_region
        %p266 = scmp.lt.s32.totalorder %s14, 1
        %s267 = scalar_select %p266, %s14, 1
        %s268 = smul.addr %s267, 32
        %s269 = smul.addr %s268, 4
        %s270 = scalar_lea.vmem %s1, %s269
      $region48: #{up_forward.1} parent=39 // pred_fallthru
        _
    $region40: #{up_forward.1} parent=5 // pred_fallthru
      _
    %p271 = scmp.le.s32.totalorder 1, %s14
    %p272 = scmp.lt.s32.totalorder %s14, 3
    %p273 = pnand %p271, %p272
    %p274 = pneg %p273
    // Predicated region
    $region49: #{up_forward.1} parent=5 // pred_check
      _
    $region50: #{up_forward.1} parent=5 // pred_check_branch
      %276 = sbr.rel (%p273) target = $region52
    $region51: #{up_forward.1} parent=5 // pred_region
      %s277 = ssub.s32 %s14, 1
      %p278 = scmp.lt.s32.totalorder %s19, 1
      %s279 = scalar_select %p278, %s19, 1
      %s280 = smul.addr %s279, 32
      %s281 = smul.addr %s280, 4
      %s282 = scalar_lea.vmem %s0, %s281
      %p283 = pneg %p40
      %p284 = pneg %p37
      %p285 = scmp.lt.s32.totalorder %s19, 1
      %s286 = scalar_select %p285, %s19, 1
      %s287 = smul.addr %s286, 32
      %s288 = smul.addr %s287, 4
      %s289 = scalar_lea.vmem %s1, %s288
      %p290 = pneg %p66
      %p291 = pneg %p63
      %p292 = pneg %p87
      %p293 = pneg %p84
      %p294 = pneg %p108
      %p295 = pneg %p105
      %p296 = pneg %p129
      %p297 = pneg %p126
      %p298 = pneg %p150
      %p299 = pneg %p147
      %p300 = pneg %p171
      %p301 = pneg %p168
      %p302 = pneg %p192
      %p303 = pneg %p189
      %p304 = pneg %p218
      %p305 = pneg %p215
      %p306 = scmp.lt.s32.totalorder %s19, 1
      %s307 = scalar_select %p306, %s19, 1
      %s308 = smul.addr %s307, 2
      %s309 = smul.addr %s308, 4
      %s310 = scalar_lea.vmem %s8, %s309
      %p311 = scmp.lt.s32.totalorder %s19, 1
      %s312 = scalar_select %p311, %s19, 1
      %s313 = smul.addr %s312, 32
      %s314 = smul.addr %s313, 4
      %s315 = scalar_lea.vmem %s0, %s314
      %p316 = scmp.lt.s32.totalorder %s19, 1
      %s317 = scalar_select %p316, %s19, 1
      %s318 = smul.addr %s317, 32
      %s319 = smul.addr %s318, 4
      %s320 = scalar_lea.vmem %s1, %s319
      %p321 = scmp.lt.s32.totalorder %s19, 1
      %s322 = scalar_select %p321, %s19, 1
      %s323 = smul.addr %s322, 2
      %s324 = smul.addr %s323, 4
      %s325 = scalar_lea.vmem %s8, %s324
      %vm327 = vcmask 60416
      %328 = vst.msk [vmem:[#allocation2] sm:$0xf] %vm327, 0
      %329 = vst.msk [vmem:[#allocation2 + $0x4] sm:$0xf] %vm327, 0
      %vm330 = vcmask 57344
      %331 = vst.msk [vmem:[#allocation2 + $0x8] sm:$0x1] %vm330, 0
      %332 = vst.msk [vmem:[#allocation2 + $0xc] sm:$0xf] %vm327, 0
      %333 = vst.msk [vmem:[#allocation2 + $0x10] sm:$0xf] %vm327, 0
      %334 = vst.msk [vmem:[#allocation2 + $0x14] sm:$0x1] %vm330, 0
      %335 = vst.msk [vmem:[#allocation2 + $0x18] sm:$0xf] %vm327, 0
      %336 = vst.msk [vmem:[#allocation2 + $0x1c] sm:$0xf] %vm327, 0
      %337 = vst.msk [vmem:[#allocation2 + $0x20] sm:$0x1] %vm330, 0
      %338 = vst.msk [vmem:[#allocation2 + $0x24] sm:$0xf] %vm327, 0
      %339 = vst.msk [vmem:[#allocation2 + $0x28] sm:$0xf] %vm327, 0
      %340 = vst.msk [vmem:[#allocation2 + $0x2c] sm:$0x1] %vm330, 0
      %341 = vst.msk [vmem:[#allocation2 + $0x30] sm:$0xf] %vm327, 0
      %342 = vst.msk [vmem:[#allocation2 + $0x34] sm:$0xf] %vm327, 0
      %343 = vst.msk [vmem:[#allocation2 + $0x38] sm:$0x1] %vm330, 0
      %344 = vst.msk [vmem:[#allocation2 + $0x3c] sm:$0xf] %vm327, 0
      %345 = vst.msk [vmem:[#allocation2 + $0x40] sm:$0xf] %vm327, 0
      %346 = vst.msk [vmem:[#allocation2 + $0x44] sm:$0x1] %vm330, 0
      %347 = vst.msk [vmem:[#allocation2 + $0x48] sm:$0xf] %vm327, 0
      %348 = vst.msk [vmem:[#allocation2 + $0x4c] sm:$0xf] %vm327, 0
      %349 = vst.msk [vmem:[#allocation2 + $0x50] sm:$0x1] %vm330, 0
      %350 = vst.msk [vmem:[#allocation2 + $0x54] sm:$0xf] %vm327, 0
      %351 = vst.msk [vmem:[#allocation2 + $0x58] sm:$0xf] %vm327, 0
      %352 = vst.msk [vmem:[#allocation2 + $0x5c] sm:$0x1] %vm330, 0
      %353 = vst.msk [vmem:[#allocation2 + $0x60] sm:$0xf] %vm327, 0
      %354 = vst.msk [vmem:[#allocation2 + $0x64] sm:$0xf] %vm327, 0
      %355 = vst.msk [vmem:[#allocation2 + $0x68] sm:$0x1] %vm330, 0
      %356 = vst.msk [vmem:[#allocation2 + $0x6c] sm:$0xf] %vm327, 0
      %357 = vst.msk [vmem:[#allocation2 + $0x70] sm:$0xf] %vm327, 0
      %358 = vst.msk [vmem:[#allocation2 + $0x74] sm:$0x1] %vm330, 0
      %359 = vst.msk [vmem:[#allocation2 + $0x78] sm:$0xf] %vm327, 0
      %360 = vst.msk [vmem:[#allocation2 + $0x7c] sm:$0xf] %vm327, 0
      %361 = vst.msk [vmem:[#allocation2 + $0x80] sm:$0x1] %vm330, 0
      %362 = vst.msk [vmem:[#allocation2 + $0x84] sm:$0xf] %vm327, 0
      %363 = vst.msk [vmem:[#allocation2 + $0x88] sm:$0xf] %vm327, 0
      %364 = vst.msk [vmem:[#allocation2 + $0x8c] sm:$0x1] %vm330, 0
      %365 = vst.msk [vmem:[#allocation2 + $0x90] sm:$0xf] %vm327, 0
      %366 = vst.msk [vmem:[#allocation2 + $0x94] sm:$0xf] %vm327, 0
      %367 = vst.msk [vmem:[#allocation2 + $0x98] sm:$0x1] %vm330, 0
      %368 = vst.msk [vmem:[#allocation2 + $0x9c] sm:$0xf] %vm327, 0
      %369 = vst.msk [vmem:[#allocation2 + $0xa0] sm:$0xf] %vm327, 0
      %370 = vst.msk [vmem:[#allocation2 + $0xa4] sm:$0x1] %vm330, 0
      %371 = vst.msk [vmem:[#allocation2 + $0xa8] sm:$0xf] %vm327, 0
      %372 = vst.msk [vmem:[#allocation2 + $0xac] sm:$0xf] %vm327, 0
      %373 = vst.msk [vmem:[#allocation2 + $0xb0] sm:$0x1] %vm330, 0
      %374 = vst.msk [vmem:[#allocation2 + $0xb4] sm:$0xf] %vm327, 0
      %375 = vst.msk [vmem:[#allocation2 + $0xb8] sm:$0xf] %vm327, 0
      %376 = vst.msk [vmem:[#allocation2 + $0xbc] sm:$0x1] %vm330, 0
      %377 = vst.msk [vmem:[#allocation2 + $0xc0] sm:$0xf] %vm327, 0
      %378 = vst.msk [vmem:[#allocation2 + $0xc4] sm:$0xf] %vm327, 0
      %379 = vst.msk [vmem:[#allocation2 + $0xc8] sm:$0x1] %vm330, 0
      %380 = vst.msk [vmem:[#allocation2 + $0xcc] sm:$0xf] %vm327, 0
      %381 = vst.msk [vmem:[#allocation2 + $0xd0] sm:$0xf] %vm327, 0
      %382 = vst.msk [vmem:[#allocation2 + $0xd4] sm:$0x1] %vm330, 0
      %vm383 = vcmask 27648
      %384 = vst.msk [vmem:[#allocation3] sm:$0xf] %vm383, 0
      %385 = vst.msk [vmem:[#allocation3 + $0x4] sm:$0xf] %vm383, 0
      %vm386 = vcmask 24576
      %387 = vst.msk [vmem:[#allocation3 + $0x8] sm:$0x1] %vm386, 0
      %388 = vst.msk [vmem:[#allocation3 + $0xc] sm:$0xf] %vm383, 0
      %389 = vst.msk [vmem:[#allocation3 + $0x10] sm:$0xf] %vm383, 0
      %390 = vst.msk [vmem:[#allocation3 + $0x14] sm:$0x1] %vm386, 0
      %391 = vst.msk [vmem:[#allocation3 + $0x18] sm:$0xf] %vm383, 0
      %392 = vst.msk [vmem:[#allocation3 + $0x1c] sm:$0xf] %vm383, 0
      %393 = vst.msk [vmem:[#allocation3 + $0x20] sm:$0x1] %vm386, 0
      %394 = vst.msk [vmem:[#allocation3 + $0x24] sm:$0xf] %vm383, 0
      %395 = vst.msk [vmem:[#allocation3 + $0x28] sm:$0xf] %vm383, 0
      %396 = vst.msk [vmem:[#allocation3 + $0x2c] sm:$0x1] %vm386, 0
      %397 = vst.msk [vmem:[#allocation3 + $0x30] sm:$0xf] %vm383, 0
      %398 = vst.msk [vmem:[#allocation3 + $0x34] sm:$0xf] %vm383, 0
      %399 = vst.msk [vmem:[#allocation3 + $0x38] sm:$0x1] %vm386, 0
      %400 = vst.msk [vmem:[#allocation3 + $0x3c] sm:$0xf] %vm383, 0
      %401 = vst.msk [vmem:[#allocation3 + $0x40] sm:$0xf] %vm383, 0
      %402 = vst.msk [vmem:[#allocation3 + $0x44] sm:$0x1] %vm386, 0
      %403 = vst.msk [vmem:[#allocation3 + $0x48] sm:$0xf] %vm383, 0
      %404 = vst.msk [vmem:[#allocation3 + $0x4c] sm:$0xf] %vm383, 0
      %405 = vst.msk [vmem:[#allocation3 + $0x50] sm:$0x1] %vm386, 0
      %406 = vst.msk [vmem:[#allocation3 + $0x54] sm:$0xf] %vm383, 0
      %407 = vst.msk [vmem:[#allocation3 + $0x58] sm:$0xf] %vm383, 0
      %408 = vst.msk [vmem:[#allocation3 + $0x5c] sm:$0x1] %vm386, 0
      %409 = vst.msk [vmem:[#allocation3 + $0x60] sm:$0xf] %vm383, 0
      %410 = vst.msk [vmem:[#allocation3 + $0x64] sm:$0xf] %vm383, 0
      %411 = vst.msk [vmem:[#allocation3 + $0x68] sm:$0x1] %vm386, 0
      %412 = vst.msk [vmem:[#allocation3 + $0x6c] sm:$0xf] %vm383, 0
      %413 = vst.msk [vmem:[#allocation3 + $0x70] sm:$0xf] %vm383, 0
      %414 = vst.msk [vmem:[#allocation3 + $0x74] sm:$0x1] %vm386, 0
      %415 = vst.msk [vmem:[#allocation3 + $0x78] sm:$0xf] %vm383, 0
      %416 = vst.msk [vmem:[#allocation3 + $0x7c] sm:$0xf] %vm383, 0
      %417 = vst.msk [vmem:[#allocation3 + $0x80] sm:$0x1] %vm386, 0
      %418 = vst.msk [vmem:[#allocation3 + $0x84] sm:$0xf] %vm383, 0
      %419 = vst.msk [vmem:[#allocation3 + $0x88] sm:$0xf] %vm383, 0
      %420 = vst.msk [vmem:[#allocation3 + $0x8c] sm:$0x1] %vm386, 0
      %421 = vst.msk [vmem:[#allocation3 + $0x90] sm:$0xf] %vm383, 0
      %422 = vst.msk [vmem:[#allocation3 + $0x94] sm:$0xf] %vm383, 0
      %423 = vst.msk [vmem:[#allocation3 + $0x98] sm:$0x1] %vm386, 0
      %424 = vst.msk [vmem:[#allocation3 + $0x9c] sm:$0xf] %vm383, 0
      %425 = vst.msk [vmem:[#allocation3 + $0xa0] sm:$0xf] %vm383, 0
      %426 = vst.msk [vmem:[#allocation3 + $0xa4] sm:$0x1] %vm386, 0
      %427 = vst.msk [vmem:[#allocation3 + $0xa8] sm:$0xf] %vm383, 0
      %428 = vst.msk [vmem:[#allocation3 + $0xac] sm:$0xf] %vm383, 0
      %429 = vst.msk [vmem:[#allocation3 + $0xb0] sm:$0x1] %vm386, 0
      %430 = vst.msk [vmem:[#allocation3 + $0xb4] sm:$0xf] %vm383, 0
      %431 = vst.msk [vmem:[#allocation3 + $0xb8] sm:$0xf] %vm383, 0
      %432 = vst.msk [vmem:[#allocation3 + $0xbc] sm:$0x1] %vm386, 0
      %433 = vst.msk [vmem:[#allocation3 + $0xc0] sm:$0xf] %vm383, 0
      %434 = vst.msk [vmem:[#allocation3 + $0xc4] sm:$0xf] %vm383, 0
      %435 = vst.msk [vmem:[#allocation3 + $0xc8] sm:$0x1] %vm386, 0
      %436 = vst.msk [vmem:[#allocation3 + $0xcc] sm:$0xf] %vm383, 0
      %437 = vst.msk [vmem:[#allocation3 + $0xd0] sm:$0xf] %vm383, 0
      %438 = vst.msk [vmem:[#allocation3 + $0xd4] sm:$0x1] %vm386, 0
      %v439 = vld [vmem:[%s315] sm:$0xf]
      %v440 = vld [vmem:[%s315 + $0x4] sm:$0xf]
      %v441 = vld [vmem:[%s315 + $0x8] sm:$0xf]
      %v442 = vld [vmem:[%s315 + $0xc] sm:$0xf]
      %v443 = vld [vmem:[%s315 + $0x10] sm:$0xf]
      %v444 = vld [vmem:[%s315 + $0x14] sm:$0xf]
      %v445 = vld [vmem:[%s315 + $0x18] sm:$0xf]
      %v446 = vld [vmem:[%s315 + $0x1c] sm:$0xf]
      %v447 = vld [vmem:[%s315 + $0x20] sm:$0xf]
      %v448 = vld [vmem:[%s315 + $0x24] sm:$0xf]
      %v449 = vld [vmem:[%s315 + $0x28] sm:$0xf]
      %v450 = vld [vmem:[%s315 + $0x2c] sm:$0xf]
      %v451 = vld [vmem:[%s315 + $0x30] sm:$0xf]
      %v452 = vld [vmem:[%s315 + $0x34] sm:$0xf]
      %v453 = vld [vmem:[%s315 + $0x38] sm:$0xf]
      %v454 = vld [vmem:[%s315 + $0x3c] sm:$0xf]
      %v455 = vld [vmem:[%s315 + $0x40] sm:$0xf]
      %v456 = vld [vmem:[%s315 + $0x44] sm:$0xf]
      %v457 = vld [vmem:[%s315 + $0x48] sm:$0xf]
      %v458 = vld [vmem:[%s315 + $0x4c] sm:$0xf]
      %v459 = vld [vmem:[%s315 + $0x50] sm:$0xf]
      %v460 = vld [vmem:[%s315 + $0x54] sm:$0xf]
      %v461 = vld [vmem:[%s315 + $0x58] sm:$0xf]
      %v462 = vld [vmem:[%s315 + $0x5c] sm:$0xf]
      %v463 = vld [vmem:[%s315 + $0x60] sm:$0xf]
      %v464 = vld [vmem:[%s315 + $0x64] sm:$0xf]
      %v465 = vld [vmem:[%s315 + $0x68] sm:$0xf]
      %v466 = vld [vmem:[%s315 + $0x6c] sm:$0xf]
      %v467 = vld [vmem:[%s315 + $0x70] sm:$0xf]
      %v468 = vld [vmem:[%s315 + $0x74] sm:$0xf]
      %v469 = vld [vmem:[%s315 + $0x78] sm:$0xf]
      %v470 = vld [vmem:[%s315 + $0x7c] sm:$0xf]
      %v471 = vld [vmem:[%s320] sm:$0xf]
      %v472 = vld [vmem:[%s320 + $0x4] sm:$0xf]
      %v473 = vld [vmem:[%s320 + $0x8] sm:$0xf]
      %v474 = vld [vmem:[%s320 + $0xc] sm:$0xf]
      %v475 = vld [vmem:[%s320 + $0x10] sm:$0xf]
      %v476 = vld [vmem:[%s320 + $0x14] sm:$0xf]
      %v477 = vld [vmem:[%s320 + $0x18] sm:$0xf]
      %v478 = vld [vmem:[%s320 + $0x1c] sm:$0xf]
      %v479 = vld [vmem:[%s320 + $0x20] sm:$0xf]
      %v480 = vld [vmem:[%s320 + $0x24] sm:$0xf]
      %v481 = vld [vmem:[%s320 + $0x28] sm:$0xf]
      %v482 = vld [vmem:[%s320 + $0x2c] sm:$0xf]
      %v483 = vld [vmem:[%s320 + $0x30] sm:$0xf]
      %v484 = vld [vmem:[%s320 + $0x34] sm:$0xf]
      %v485 = vld [vmem:[%s320 + $0x38] sm:$0xf]
      %v486 = vld [vmem:[%s320 + $0x3c] sm:$0xf]
      %v487 = vld [vmem:[%s320 + $0x40] sm:$0xf]
      %v488 = vld [vmem:[%s320 + $0x44] sm:$0xf]
      %v489 = vld [vmem:[%s320 + $0x48] sm:$0xf]
      %v490 = vld [vmem:[%s320 + $0x4c] sm:$0xf]
      %v491 = vld [vmem:[%s320 + $0x50] sm:$0xf]
      %v492 = vld [vmem:[%s320 + $0x54] sm:$0xf]
      %v493 = vld [vmem:[%s320 + $0x58] sm:$0xf]
      %v494 = vld [vmem:[%s320 + $0x5c] sm:$0xf]
      %v495 = vld [vmem:[%s320 + $0x60] sm:$0xf]
      %v496 = vld [vmem:[%s320 + $0x64] sm:$0xf]
      %v497 = vld [vmem:[%s320 + $0x68] sm:$0xf]
      %v498 = vld [vmem:[%s320 + $0x6c] sm:$0xf]
      %v499 = vld [vmem:[%s320 + $0x70] sm:$0xf]
      %v500 = vld [vmem:[%s320 + $0x74] sm:$0xf]
      %v501 = vld [vmem:[%s320 + $0x78] sm:$0xf]
      %v502 = vld [vmem:[%s320 + $0x7c] sm:$0xf]
      %v535 = vunpack.c.l.b16 %v439
      %v536 = vunpack.c.l.b16 %v440
      %v537 = vunpack.c.l.b16 %v441
      %v538 = vunpack.c.l.b16 %v442
      %v539 = vunpack.c.l.b16 %v443
      %v540 = vunpack.c.l.b16 %v444
      %v541 = vunpack.c.l.b16 %v445
      %v542 = vunpack.c.l.b16 %v446
      %v543 = vunpack.c.l.b16 %v447
      %v544 = vunpack.c.l.b16 %v448
      %v545 = vunpack.c.l.b16 %v449
      %v546 = vunpack.c.l.b16 %v450
      %v547 = vunpack.c.l.b16 %v451
      %v548 = vunpack.c.l.b16 %v452
      %v549 = vunpack.c.l.b16 %v453
      %v550 = vunpack.c.l.b16 %v454
      %v551 = vunpack.c.l.b16 %v455
      %v552 = vunpack.c.l.b16 %v456
      %v553 = vunpack.c.l.b16 %v457
      %v554 = vunpack.c.l.b16 %v458
      %v555 = vunpack.c.l.b16 %v459
      %v556 = vunpack.c.l.b16 %v460
      %v557 = vunpack.c.l.b16 %v461
      %v558 = vunpack.c.l.b16 %v462
      %v559 = vunpack.c.l.b16 %v463
      %v560 = vunpack.c.l.b16 %v464
      %v561 = vunpack.c.l.b16 %v465
      %v562 = vunpack.c.l.b16 %v466
      %v563 = vunpack.c.l.b16 %v467
      %v564 = vunpack.c.l.b16 %v468
      %v565 = vunpack.c.l.b16 %v469
      %v566 = vunpack.c.l.b16 %v470
      %v567 = vpack.c.b16 %v536, %v535
      %v568 = vpack.c.b16 %v538, %v537
      %v569 = vpack.c.b16 %v540, %v539
      %v570 = vpack.c.b16 %v542, %v541
      %v571 = vpack.c.b16 %v544, %v543
      %v572 = vpack.c.b16 %v546, %v545
      %v573 = vpack.c.b16 %v548, %v547
      %v574 = vpack.c.b16 %v550, %v549
      %v575 = vpack.c.b16 %v552, %v551
      %v576 = vpack.c.b16 %v554, %v553
      %v577 = vpack.c.b16 %v556, %v555
      %v578 = vpack.c.b16 %v558, %v557
      %v579 = vpack.c.b16 %v560, %v559
      %v580 = vpack.c.b16 %v562, %v561
      %v581 = vpack.c.b16 %v564, %v563
      %v582 = vpack.c.b16 %v566, %v565
      %v615 = vunpack.c.l.b16 %v471
      %v616 = vunpack.c.l.b16 %v472
      %v617 = vunpack.c.l.b16 %v473
      %v618 = vunpack.c.l.b16 %v474
      %v619 = vunpack.c.l.b16 %v475
      %v620 = vunpack.c.l.b16 %v476
      %v621 = vunpack.c.l.b16 %v477
      %v622 = vunpack.c.l.b16 %v478
      %v623 = vunpack.c.l.b16 %v479
      %v624 = vunpack.c.l.b16 %v480
      %v625 = vunpack.c.l.b16 %v481
      %v626 = vunpack.c.l.b16 %v482
      %v627 = vunpack.c.l.b16 %v483
      %v628 = vunpack.c.l.b16 %v484
      %v629 = vunpack.c.l.b16 %v485
      %v630 = vunpack.c.l.b16 %v486
      %v631 = vunpack.c.l.b16 %v487
      %v632 = vunpack.c.l.b16 %v488
      %v633 = vunpack.c.l.b16 %v489
      %v634 = vunpack.c.l.b16 %v490
      %v635 = vunpack.c.l.b16 %v491
      %v636 = vunpack.c.l.b16 %v492
      %v637 = vunpack.c.l.b16 %v493
      %v638 = vunpack.c.l.b16 %v494
      %v639 = vunpack.c.l.b16 %v495
      %v640 = vunpack.c.l.b16 %v496
      %v641 = vunpack.c.l.b16 %v497
      %v642 = vunpack.c.l.b16 %v498
      %v643 = vunpack.c.l.b16 %v499
      %v644 = vunpack.c.l.b16 %v500
      %v645 = vunpack.c.l.b16 %v501
      %v646 = vunpack.c.l.b16 %v502
      %v647 = vpack.c.b16 %v616, %v615
      %v648 = vpack.c.b16 %v618, %v617
      %v649 = vpack.c.b16 %v620, %v619
      %v650 = vpack.c.b16 %v622, %v621
      %v651 = vpack.c.b16 %v624, %v623
      %v652 = vpack.c.b16 %v626, %v625
      %v653 = vpack.c.b16 %v628, %v627
      %v654 = vpack.c.b16 %v630, %v629
      %v655 = vpack.c.b16 %v632, %v631
      %v656 = vpack.c.b16 %v634, %v633
      %v657 = vpack.c.b16 %v636, %v635
      %v658 = vpack.c.b16 %v638, %v637
      %v659 = vpack.c.b16 %v640, %v639
      %v660 = vpack.c.b16 %v642, %v641
      %v661 = vpack.c.b16 %v644, %v643
      %v662 = vpack.c.b16 %v646, %v645
      %663 = vrot.lane.b32.xlu0 %v647, 4
      %v664 = vpop.permute.xlu0 %663
      %665 = vrot.lane.b32.xlu0 %v648, 4
      %v666 = vpop.permute.xlu0 %665
      %667 = vrot.lane.b32.xlu0 %v649, 4
      %v668 = vpop.permute.xlu0 %667
      %669 = vrot.lane.b32.xlu0 %v650, 4
      %v670 = vpop.permute.xlu0 %669
      %671 = vrot.lane.b32.xlu0 %v651, 4
      %v672 = vpop.permute.xlu0 %671
      %673 = vrot.lane.b32.xlu0 %v652, 4
      %v674 = vpop.permute.xlu0 %673
      %675 = vrot.lane.b32.xlu0 %v653, 4
      %v676 = vpop.permute.xlu0 %675
      %677 = vrot.lane.b32.xlu0 %v654, 4
      %v678 = vpop.permute.xlu0 %677
      %679 = vrot.lane.b32.xlu0 %v655, 4
      %v680 = vpop.permute.xlu0 %679
      %681 = vrot.lane.b32.xlu0 %v656, 4
      %v682 = vpop.permute.xlu0 %681
      %683 = vrot.lane.b32.xlu0 %v657, 4
      %v684 = vpop.permute.xlu0 %683
      %685 = vrot.lane.b32.xlu0 %v658, 4
      %v686 = vpop.permute.xlu0 %685
      %687 = vrot.lane.b32.xlu0 %v659, 4
      %v688 = vpop.permute.xlu0 %687
      %689 = vrot.lane.b32.xlu0 %v660, 4
      %v690 = vpop.permute.xlu0 %689
      %691 = vrot.lane.b32.xlu0 %v661, 4
      %v692 = vpop.permute.xlu0 %691
      %693 = vrot.lane.b32.xlu0 %v662, 4
      %v694 = vpop.permute.xlu0 %693
      %vm695 = vcmask 31744
      %v698 = vsel %vm695, %v567, %v664
      %v701 = vsel %vm695, %v568, %v666
      %v704 = vsel %vm695, %v569, %v668
      %v707 = vsel %vm695, %v570, %v670
      %v710 = vsel %vm695, %v571, %v672
      %v713 = vsel %vm695, %v572, %v674
      %v716 = vsel %vm695, %v573, %v676
      %v719 = vsel %vm695, %v574, %v678
      %v722 = vsel %vm695, %v575, %v680
      %v725 = vsel %vm695, %v576, %v682
      %v728 = vsel %vm695, %v577, %v684
      %v731 = vsel %vm695, %v578, %v686
      %v734 = vsel %vm695, %v579, %v688
      %v737 = vsel %vm695, %v580, %v690
      %v740 = vsel %vm695, %v581, %v692
      %v743 = vsel %vm695, %v582, %v694
      %v760 = vunpack.c.l.b16 %v698
      %v761 = vunpack.c.h.b16 %v698
      %v762 = vunpack.c.l.b16 %v701
      %v763 = vunpack.c.h.b16 %v701
      %v764 = vunpack.c.l.b16 %v704
      %v765 = vunpack.c.h.b16 %v704
      %v766 = vunpack.c.l.b16 %v707
      %v767 = vunpack.c.h.b16 %v707
      %v768 = vunpack.c.l.b16 %v710
      %v769 = vunpack.c.h.b16 %v710
      %v770 = vunpack.c.l.b16 %v713
      %v771 = vunpack.c.h.b16 %v713
      %v772 = vunpack.c.l.b16 %v716
      %v773 = vunpack.c.h.b16 %v716
      %v774 = vunpack.c.l.b16 %v719
      %v775 = vunpack.c.h.b16 %v719
      %v776 = vunpack.c.l.b16 %v722
      %v777 = vunpack.c.h.b16 %v722
      %v778 = vunpack.c.l.b16 %v725
      %v779 = vunpack.c.h.b16 %v725
      %v780 = vunpack.c.l.b16 %v728
      %v781 = vunpack.c.h.b16 %v728
      %v782 = vunpack.c.l.b16 %v731
      %v783 = vunpack.c.h.b16 %v731
      %v784 = vunpack.c.l.b16 %v734
      %v785 = vunpack.c.h.b16 %v734
      %v786 = vunpack.c.l.b16 %v737
      %v787 = vunpack.c.h.b16 %v737
      %v788 = vunpack.c.l.b16 %v740
      %v789 = vunpack.c.h.b16 %v740
      %v790 = vunpack.c.l.b16 %v743
      %v791 = vunpack.c.h.b16 %v743
      %v792 = vpack.c.b16 %v760, %v760
      %v793 = vpack.c.b16 %v761, %v761
      %v794 = vpack.c.b16 %v762, %v762
      %v795 = vpack.c.b16 %v763, %v763
      %v796 = vpack.c.b16 %v764, %v764
      %v797 = vpack.c.b16 %v765, %v765
      %v798 = vpack.c.b16 %v766, %v766
      %v799 = vpack.c.b16 %v767, %v767
      %v800 = vpack.c.b16 %v768, %v768
      %v801 = vpack.c.b16 %v769, %v769
      %v802 = vpack.c.b16 %v770, %v770
      %v803 = vpack.c.b16 %v771, %v771
      %v804 = vpack.c.b16 %v772, %v772
      %v805 = vpack.c.b16 %v773, %v773
      %v806 = vpack.c.b16 %v774, %v774
      %v807 = vpack.c.b16 %v775, %v775
      %v808 = vpack.c.b16 %v776, %v776
      %v809 = vpack.c.b16 %v777, %v777
      %v810 = vpack.c.b16 %v778, %v778
      %v811 = vpack.c.b16 %v779, %v779
      %v812 = vpack.c.b16 %v780, %v780
      %v813 = vpack.c.b16 %v781, %v781
      %v814 = vpack.c.b16 %v782, %v782
      %v815 = vpack.c.b16 %v783, %v783
      %v816 = vpack.c.b16 %v784, %v784
      %v817 = vpack.c.b16 %v785, %v785
      %v818 = vpack.c.b16 %v786, %v786
      %v819 = vpack.c.b16 %v787, %v787
      %v820 = vpack.c.b16 %v788, %v788
      %v821 = vpack.c.b16 %v789, %v789
      %v822 = vpack.c.b16 %v790, %v790
      %v823 = vpack.c.b16 %v791, %v791
      %vm824 = vsmask.f32 256
      %vm825 = vsmask.f32 4368
      %vm826 = vmor %vm824, %vm825
      %v828 = vshrl.u32 %v792, 16
      %v830 = vrot.slane %v828, 7
      %v831 = vshll.u32 %v792, 16
      %v833 = vor.u32 %v830, %v831
      %v834 = vrot.slane %v830, 4
      %v836 = vshrl.u32 %v793, 16
      %v838 = vrot.slane %v836, 7
      %v839 = vshll.u32 %v793, 16
      %v841 = vor.u32 %v838, %v839
      %v842 = vsel %vm826, %v834, %v841
      %v843 = vrot.slane %v838, 4
      %v845 = vshrl.u32 %v794, 16
      %v847 = vrot.slane %v845, 7
      %v848 = vshll.u32 %v794, 16
      %v850 = vor.u32 %v847, %v848
      %v851 = vrot.slane %v847, 4
      %v853 = vshrl.u32 %v795, 16
      %v855 = vrot.slane %v853, 7
      %v856 = vshll.u32 %v795, 16
      %v858 = vor.u32 %v855, %v856
      %v859 = vsel %vm826, %v851, %v858
      %v860 = vrot.slane %v855, 4
      %v862 = vshrl.u32 %v796, 16
      %v864 = vrot.slane %v862, 7
      %v865 = vshll.u32 %v796, 16
      %v867 = vor.u32 %v864, %v865
      %v868 = vrot.slane %v864, 4
      %v870 = vshrl.u32 %v797, 16
      %v872 = vrot.slane %v870, 7
      %v873 = vshll.u32 %v797, 16
      %v875 = vor.u32 %v872, %v873
      %v876 = vsel %vm826, %v868, %v875
      %v877 = vrot.slane %v872, 4
      %v879 = vshrl.u32 %v798, 16
      %v881 = vrot.slane %v879, 7
      %v882 = vshll.u32 %v798, 16
      %v884 = vor.u32 %v881, %v882
      %v885 = vrot.slane %v881, 4
      %v887 = vshrl.u32 %v799, 16
      %v889 = vrot.slane %v887, 7
      %v890 = vshll.u32 %v799, 16
      %v892 = vor.u32 %v889, %v890
      %v893 = vsel %vm826, %v885, %v892
      %v894 = vrot.slane %v889, 4
      %v896 = vshrl.u32 %v800, 16
      %v898 = vrot.slane %v896, 7
      %v899 = vshll.u32 %v800, 16
      %v901 = vor.u32 %v898, %v899
      %v902 = vrot.slane %v898, 4
      %v904 = vshrl.u32 %v801, 16
      %v906 = vrot.slane %v904, 7
      %v907 = vshll.u32 %v801, 16
      %v909 = vor.u32 %v906, %v907
      %v910 = vsel %vm826, %v902, %v909
      %v911 = vrot.slane %v906, 4
      %v913 = vshrl.u32 %v802, 16
      %v915 = vrot.slane %v913, 7
      %v916 = vshll.u32 %v802, 16
      %v918 = vor.u32 %v915, %v916
      %v919 = vrot.slane %v915, 4
      %v921 = vshrl.u32 %v803, 16
      %v923 = vrot.slane %v921, 7
      %v924 = vshll.u32 %v803, 16
      %v926 = vor.u32 %v923, %v924
      %v927 = vsel %vm826, %v919, %v926
      %v928 = vrot.slane %v923, 4
      %v930 = vshrl.u32 %v804, 16
      %v932 = vrot.slane %v930, 7
      %v933 = vshll.u32 %v804, 16
      %v935 = vor.u32 %v932, %v933
      %v936 = vrot.slane %v932, 4
      %v938 = vshrl.u32 %v805, 16
      %v940 = vrot.slane %v938, 7
      %v941 = vshll.u32 %v805, 16
      %v943 = vor.u32 %v940, %v941
      %v944 = vsel %vm826, %v936, %v943
      %v945 = vrot.slane %v940, 4
      %v947 = vshrl.u32 %v806, 16
      %v949 = vrot.slane %v947, 7
      %v950 = vshll.u32 %v806, 16
      %v952 = vor.u32 %v949, %v950
      %v953 = vrot.slane %v949, 4
      %v955 = vshrl.u32 %v807, 16
      %v957 = vrot.slane %v955, 7
      %v958 = vshll.u32 %v807, 16
      %v960 = vor.u32 %v957, %v958
      %v961 = vsel %vm826, %v953, %v960
      %v962 = vrot.slane %v957, 4
      %v964 = vshrl.u32 %v808, 16
      %v966 = vrot.slane %v964, 7
      %v967 = vshll.u32 %v808, 16
      %v969 = vor.u32 %v966, %v967
      %v970 = vrot.slane %v966, 4
      %v972 = vshrl.u32 %v809, 16
      %v974 = vrot.slane %v972, 7
      %v975 = vshll.u32 %v809, 16
      %v977 = vor.u32 %v974, %v975
      %v978 = vsel %vm826, %v970, %v977
      %v979 = vrot.slane %v974, 4
      %v981 = vshrl.u32 %v810, 16
      %v983 = vrot.slane %v981, 7
      %v984 = vshll.u32 %v810, 16
      %v986 = vor.u32 %v983, %v984
      %v987 = vrot.slane %v983, 4
      %v989 = vshrl.u32 %v811, 16
      %v991 = vrot.slane %v989, 7
      %v992 = vshll.u32 %v811, 16
      %v994 = vor.u32 %v991, %v992
      %v995 = vsel %vm826, %v987, %v994
      %v996 = vrot.slane %v991, 4
      %v998 = vshrl.u32 %v812, 16
      %v1000 = vrot.slane %v998, 7
      %v1001 = vshll.u32 %v812, 16
      %v1003 = vor.u32 %v1000, %v1001
      %v1004 = vrot.slane %v1000, 4
      %v1006 = vshrl.u32 %v813, 16
      %v1008 = vrot.slane %v1006, 7
      %v1009 = vshll.u32 %v813, 16
      %v1011 = vor.u32 %v1008, %v1009
      %v1012 = vsel %vm826, %v1004, %v1011
      %v1013 = vrot.slane %v1008, 4
      %v1015 = vshrl.u32 %v814, 16
      %v1017 = vrot.slane %v1015, 7
      %v1018 = vshll.u32 %v814, 16
      %v1020 = vor.u32 %v1017, %v1018
      %v1021 = vrot.slane %v1017, 4
      %v1023 = vshrl.u32 %v815, 16
      %v1025 = vrot.slane %v1023, 7
      %v1026 = vshll.u32 %v815, 16
      %v1028 = vor.u32 %v1025, %v1026
      %v1029 = vsel %vm826, %v1021, %v1028
      %v1030 = vrot.slane %v1025, 4
      %v1032 = vshrl.u32 %v816, 16
      %v1034 = vrot.slane %v1032, 7
      %v1035 = vshll.u32 %v816, 16
      %v1037 = vor.u32 %v1034, %v1035
      %v1038 = vrot.slane %v1034, 4
      %v1040 = vshrl.u32 %v817, 16
      %v1042 = vrot.slane %v1040, 7
      %v1043 = vshll.u32 %v817, 16
      %v1045 = vor.u32 %v1042, %v1043
      %v1046 = vsel %vm826, %v1038, %v1045
      %v1047 = vrot.slane %v1042, 4
      %v1049 = vshrl.u32 %v818, 16
      %v1051 = vrot.slane %v1049, 7
      %v1052 = vshll.u32 %v818, 16
      %v1054 = vor.u32 %v1051, %v1052
      %v1055 = vrot.slane %v1051, 4
      %v1057 = vshrl.u32 %v819, 16
      %v1059 = vrot.slane %v1057, 7
      %v1060 = vshll.u32 %v819, 16
      %v1062 = vor.u32 %v1059, %v1060
      %v1063 = vsel %vm826, %v1055, %v1062
      %v1064 = vrot.slane %v1059, 4
      %v1066 = vshrl.u32 %v820, 16
      %v1068 = vrot.slane %v1066, 7
      %v1069 = vshll.u32 %v820, 16
      %v1071 = vor.u32 %v1068, %v1069
      %v1072 = vrot.slane %v1068, 4
      %v1074 = vshrl.u32 %v821, 16
      %v1076 = vrot.slane %v1074, 7
      %v1077 = vshll.u32 %v821, 16
      %v1079 = vor.u32 %v1076, %v1077
      %v1080 = vsel %vm826, %v1072, %v1079
      %v1081 = vrot.slane %v1076, 4
      %v1083 = vshrl.u32 %v822, 16
      %v1085 = vrot.slane %v1083, 7
      %v1086 = vshll.u32 %v822, 16
      %v1088 = vor.u32 %v1085, %v1086
      %v1089 = vrot.slane %v1085, 4
      %v1091 = vshrl.u32 %v823, 16
      %v1093 = vrot.slane %v1091, 7
      %v1094 = vshll.u32 %v823, 16
      %v1096 = vor.u32 %v1093, %v1094
      %v1097 = vsel %vm826, %v1089, %v1096
      %v1098 = vrot.slane %v1093, 4
      %s1147 = scalar_lea.vmem [#allocation2], 12
      %vm1148 = vcmask 60416
      %vm1149 = vsmask.f32 7938
      %vm1150 = vmand %vm1148, %vm1149
      %v1151 = vld [vmem:[%s1147] sm:$0xf]
      %v1152 = vsel %vm1150, %v833, %v1151
      %1153 = vst [vmem:[%s1147] sm:$0xf] %v1152
      %1154 = vst.msk [vmem:[%s1147 + $0x4] sm:$0xf] %vm327, %v842
      %vm1155 = vcmask 57344
      %vm1156 = vmand %vm1155, %vm824
      %v1157 = vld [vmem:[%s1147 + $0x8] sm:$0x1]
      %v1158 = vsel %vm1156, %v843, %v1157
      %1159 = vst [vmem:[%s1147 + $0x8] sm:$0x1] %v1158
      %v1160 = vld [vmem:[%s1147 + $0xc] sm:$0xf]
      %v1161 = vsel %vm1150, %v850, %v1160
      %1162 = vst [vmem:[%s1147 + $0xc] sm:$0xf] %v1161
      %1163 = vst.msk [vmem:[%s1147 + $0x10] sm:$0xf] %vm327, %v859
      %v1164 = vld [vmem:[%s1147 + $0x14] sm:$0x1]
      %v1165 = vsel %vm1156, %v860, %v1164
      %1166 = vst [vmem:[%s1147 + $0x14] sm:$0x1] %v1165
      %v1167 = vld [vmem:[%s1147 + $0x18] sm:$0xf]
      %v1168 = vsel %vm1150, %v867, %v1167
      %1169 = vst [vmem:[%s1147 + $0x18] sm:$0xf] %v1168
      %1170 = vst.msk [vmem:[%s1147 + $0x1c] sm:$0xf] %vm327, %v876
      %v1171 = vld [vmem:[%s1147 + $0x20] sm:$0x1]
      %v1172 = vsel %vm1156, %v877, %v1171
      %1173 = vst [vmem:[%s1147 + $0x20] sm:$0x1] %v1172
      %v1174 = vld [vmem:[%s1147 + $0x24] sm:$0xf]
      %v1175 = vsel %vm1150, %v884, %v1174
      %1176 = vst [vmem:[%s1147 + $0x24] sm:$0xf] %v1175
      %1177 = vst.msk [vmem:[%s1147 + $0x28] sm:$0xf] %vm327, %v893
      %v1178 = vld [vmem:[%s1147 + $0x2c] sm:$0x1]
      %v1179 = vsel %vm1156, %v894, %v1178
      %1180 = vst [vmem:[%s1147 + $0x2c] sm:$0x1] %v1179
      %v1181 = vld [vmem:[%s1147 + $0x30] sm:$0xf]
      %v1182 = vsel %vm1150, %v901, %v1181
      %1183 = vst [vmem:[%s1147 + $0x30] sm:$0xf] %v1182
      %1184 = vst.msk [vmem:[%s1147 + $0x34] sm:$0xf] %vm327, %v910
      %v1185 = vld [vmem:[%s1147 + $0x38] sm:$0x1]
      %v1186 = vsel %vm1156, %v911, %v1185
      %1187 = vst [vmem:[%s1147 + $0x38] sm:$0x1] %v1186
      %v1188 = vld [vmem:[%s1147 + $0x3c] sm:$0xf]
      %v1189 = vsel %vm1150, %v918, %v1188
      %1190 = vst [vmem:[%s1147 + $0x3c] sm:$0xf] %v1189
      %1191 = vst.msk [vmem:[%s1147 + $0x40] sm:$0xf] %vm327, %v927
      %v1192 = vld [vmem:[%s1147 + $0x44] sm:$0x1]
      %v1193 = vsel %vm1156, %v928, %v1192
      %1194 = vst [vmem:[%s1147 + $0x44] sm:$0x1] %v1193
      %v1195 = vld [vmem:[%s1147 + $0x48] sm:$0xf]
      %v1196 = vsel %vm1150, %v935, %v1195
      %1197 = vst [vmem:[%s1147 + $0x48] sm:$0xf] %v1196
      %1198 = vst.msk [vmem:[%s1147 + $0x4c] sm:$0xf] %vm327, %v944
      %v1199 = vld [vmem:[%s1147 + $0x50] sm:$0x1]
      %v1200 = vsel %vm1156, %v945, %v1199
      %1201 = vst [vmem:[%s1147 + $0x50] sm:$0x1] %v1200
      %v1202 = vld [vmem:[%s1147 + $0x54] sm:$0xf]
      %v1203 = vsel %vm1150, %v952, %v1202
      %1204 = vst [vmem:[%s1147 + $0x54] sm:$0xf] %v1203
      %1205 = vst.msk [vmem:[%s1147 + $0x58] sm:$0xf] %vm327, %v961
      %v1206 = vld [vmem:[%s1147 + $0x5c] sm:$0x1]
      %v1207 = vsel %vm1156, %v962, %v1206
      %1208 = vst [vmem:[%s1147 + $0x5c] sm:$0x1] %v1207
      %v1209 = vld [vmem:[%s1147 + $0x60] sm:$0xf]
      %v1210 = vsel %vm1150, %v969, %v1209
      %1211 = vst [vmem:[%s1147 + $0x60] sm:$0xf] %v1210
      %1212 = vst.msk [vmem:[%s1147 + $0x64] sm:$0xf] %vm327, %v978
      %v1213 = vld [vmem:[%s1147 + $0x68] sm:$0x1]
      %v1214 = vsel %vm1156, %v979, %v1213
      %1215 = vst [vmem:[%s1147 + $0x68] sm:$0x1] %v1214
      %v1216 = vld [vmem:[%s1147 + $0x6c] sm:$0xf]
      %v1217 = vsel %vm1150, %v986, %v1216
      %1218 = vst [vmem:[%s1147 + $0x6c] sm:$0xf] %v1217
      %1219 = vst.msk [vmem:[%s1147 + $0x70] sm:$0xf] %vm327, %v995
      %v1220 = vld [vmem:[%s1147 + $0x74] sm:$0x1]
      %v1221 = vsel %vm1156, %v996, %v1220
      %1222 = vst [vmem:[%s1147 + $0x74] sm:$0x1] %v1221
      %v1223 = vld [vmem:[%s1147 + $0x78] sm:$0xf]
      %v1224 = vsel %vm1150, %v1003, %v1223
      %1225 = vst [vmem:[%s1147 + $0x78] sm:$0xf] %v1224
      %1226 = vst.msk [vmem:[%s1147 + $0x7c] sm:$0xf] %vm327, %v1012
      %v1227 = vld [vmem:[%s1147 + $0x80] sm:$0x1]
      %v1228 = vsel %vm1156, %v1013, %v1227
      %1229 = vst [vmem:[%s1147 + $0x80] sm:$0x1] %v1228
      %v1230 = vld [vmem:[%s1147 + $0x84] sm:$0xf]
      %v1231 = vsel %vm1150, %v1020, %v1230
      %1232 = vst [vmem:[%s1147 + $0x84] sm:$0xf] %v1231
      %1233 = vst.msk [vmem:[%s1147 + $0x88] sm:$0xf] %vm327, %v1029
      %v1234 = vld [vmem:[%s1147 + $0x8c] sm:$0x1]
      %v1235 = vsel %vm1156, %v1030, %v1234
      %1236 = vst [vmem:[%s1147 + $0x8c] sm:$0x1] %v1235
      %v1237 = vld [vmem:[%s1147 + $0x90] sm:$0xf]
      %v1238 = vsel %vm1150, %v1037, %v1237
      %1239 = vst [vmem:[%s1147 + $0x90] sm:$0xf] %v1238
      %1240 = vst.msk [vmem:[%s1147 + $0x94] sm:$0xf] %vm327, %v1046
      %v1241 = vld [vmem:[%s1147 + $0x98] sm:$0x1]
      %v1242 = vsel %vm1156, %v1047, %v1241
      %1243 = vst [vmem:[%s1147 + $0x98] sm:$0x1] %v1242
      %v1244 = vld [vmem:[%s1147 + $0x9c] sm:$0xf]
      %v1245 = vsel %vm1150, %v1054, %v1244
      %1246 = vst [vmem:[%s1147 + $0x9c] sm:$0xf] %v1245
      %1247 = vst.msk [vmem:[%s1147 + $0xa0] sm:$0xf] %vm327, %v1063
      %v1248 = vld [vmem:[%s1147 + $0xa4] sm:$0x1]
      %v1249 = vsel %vm1156, %v1064, %v1248
      %1250 = vst [vmem:[%s1147 + $0xa4] sm:$0x1] %v1249
      %v1251 = vld [vmem:[%s1147 + $0xa8] sm:$0xf]
      %v1252 = vsel %vm1150, %v1071, %v1251
      %1253 = vst [vmem:[%s1147 + $0xa8] sm:$0xf] %v1252
      %1254 = vst.msk [vmem:[%s1147 + $0xac] sm:$0xf] %vm327, %v1080
      %v1255 = vld [vmem:[%s1147 + $0xb0] sm:$0x1]
      %v1256 = vsel %vm1156, %v1081, %v1255
      %1257 = vst [vmem:[%s1147 + $0xb0] sm:$0x1] %v1256
      %v1258 = vld [vmem:[%s1147 + $0xb4] sm:$0xf]
      %v1259 = vsel %vm1150, %v1088, %v1258
      %1260 = vst [vmem:[%s1147 + $0xb4] sm:$0xf] %v1259
      %1261 = vst.msk [vmem:[%s1147 + $0xb8] sm:$0xf] %vm327, %v1097
      %v1262 = vld [vmem:[%s1147 + $0xbc] sm:$0x1]
      %v1263 = vsel %vm1156, %v1098, %v1262
      %1264 = vst [vmem:[%s1147 + $0xbc] sm:$0x1] %v1263
      %v1265 = vld [vmem:[#allocation2] sm:$0xf]
      %v1266 = vld [vmem:[#allocation2 + $0x4] sm:$0xf]
      %v1267 = vld [vmem:[#allocation2 + $0xc] sm:$0xf]
      %v1268 = vld [vmem:[#allocation2 + $0x10] sm:$0xf]
      %v1269 = vld [vmem:[#allocation2 + $0x18] sm:$0xf]
      %v1270 = vld [vmem:[#allocation2 + $0x1c] sm:$0xf]
      %v1271 = vld [vmem:[#allocation2 + $0x24] sm:$0xf]
      %v1272 = vld [vmem:[#allocation2 + $0x28] sm:$0xf]
      %v1273 = vld [vmem:[#allocation2 + $0x30] sm:$0xf]
      %v1274 = vld [vmem:[#allocation2 + $0x34] sm:$0xf]
      %v1275 = vld [vmem:[#allocation2 + $0x3c] sm:$0xf]
      %v1276 = vld [vmem:[#allocation2 + $0x40] sm:$0xf]
      %v1277 = vld [vmem:[#allocation2 + $0x48] sm:$0xf]
      %v1278 = vld [vmem:[#allocation2 + $0x4c] sm:$0xf]
      %v1279 = vld [vmem:[#allocation2 + $0x54] sm:$0xf]
      %v1280 = vld [vmem:[#allocation2 + $0x58] sm:$0xf]
      %v1281 = vld [vmem:[#allocation2 + $0x60] sm:$0xf]
      %v1282 = vld [vmem:[#allocation2 + $0x64] sm:$0xf]
      %v1283 = vld [vmem:[#allocation2 + $0x6c] sm:$0xf]
      %v1284 = vld [vmem:[#allocation2 + $0x70] sm:$0xf]
      %v1285 = vld [vmem:[#allocation2 + $0x78] sm:$0xf]
      %v1286 = vld [vmem:[#allocation2 + $0x7c] sm:$0xf]
      %v1287 = vld [vmem:[#allocation2 + $0x84] sm:$0xf]
      %v1288 = vld [vmem:[#allocation2 + $0x88] sm:$0xf]
      %v1289 = vld [vmem:[#allocation2 + $0x90] sm:$0xf]
      %v1290 = vld [vmem:[#allocation2 + $0x94] sm:$0xf]
      %v1291 = vld [vmem:[#allocation2 + $0x9c] sm:$0xf]
      %v1292 = vld [vmem:[#allocation2 + $0xa0] sm:$0xf]
      %v1293 = vld [vmem:[#allocation2 + $0xa8] sm:$0xf]
      %v1294 = vld [vmem:[#allocation2 + $0xac] sm:$0xf]
      %v1295 = vld [vmem:[#allocation2 + $0xb4] sm:$0xf]
      %v1296 = vld [vmem:[#allocation2 + $0xb8] sm:$0xf]
      %v1297 = vld [vmem:[%s2] sm:$0xf]
      %v1298 = vld [vmem:[#allocation2 + $0x8] sm:$0x1]
      %v1299 = vld [vmem:[#allocation2 + $0x14] sm:$0x1]
      %v1300 = vld [vmem:[#allocation2 + $0x20] sm:$0x1]
      %v1301 = vld [vmem:[#allocation2 + $0x2c] sm:$0x1]
      %v1302 = vld [vmem:[#allocation2 + $0x38] sm:$0x1]
      %v1303 = vld [vmem:[#allocation2 + $0x44] sm:$0x1]
      %v1304 = vld [vmem:[#allocation2 + $0x50] sm:$0x1]
      %v1305 = vld [vmem:[#allocation2 + $0x5c] sm:$0x1]
      %v1306 = vld [vmem:[#allocation2 + $0x68] sm:$0x1]
      %v1307 = vld [vmem:[#allocation2 + $0x74] sm:$0x1]
      %v1308 = vld [vmem:[#allocation2 + $0x80] sm:$0x1]
      %v1309 = vld [vmem:[#allocation2 + $0x8c] sm:$0x1]
      %v1310 = vld [vmem:[#allocation2 + $0x98] sm:$0x1]
      %v1311 = vld [vmem:[#allocation2 + $0xa4] sm:$0x1]
      %v1312 = vld [vmem:[#allocation2 + $0xb0] sm:$0x1]
      %v1313 = vld [vmem:[#allocation2 + $0xbc] sm:$0x1]
      %vm1314 = vsmask.f32 3328
      %vm1315 = vsmask.f32 7440
      %vm1316 = vmor %vm1314, %vm1315
      %v1318 = vshrl.u32 %v1265, 16
      %v1320 = vrot.slane %v1318, 4
      %v1321 = vshll.u32 %v1265, 16
      %v1323 = vrot.slane %v1321, 5
      %v1324 = vor.u32 %v1320, %v1323
      %v1325 = vrot.slane %v1324, 4
      %v1327 = vshll.u32 %v1266, 16
      %v1329 = vrot.slane %v1327, 5
      %v1330 = vsel %vm1316, %v1325, %v1329
      %v1331 = vshrl.u32 %v1266, 16
      %v1333 = vrot.slane %v1331, 4
      %v1334 = vor.u32 %v1333, %v1329
      %v1335 = vrot.slane %v1334, 4
      %v1337 = vshll.u32 %v1298, 16
      %v1339 = vrot.slane %v1337, 5
      %v1340 = vsel %vm1316, %v1335, %v1339
      %v1342 = vshrl.u32 %v1267, 16
      %v1344 = vrot.slane %v1342, 4
      %v1345 = vshll.u32 %v1267, 16
      %v1347 = vrot.slane %v1345, 5
      %v1348 = vor.u32 %v1344, %v1347
      %v1349 = vrot.slane %v1348, 4
      %v1351 = vshll.u32 %v1268, 16
      %v1353 = vrot.slane %v1351, 5
      %v1354 = vsel %vm1316, %v1349, %v1353
      %v1355 = vshrl.u32 %v1268, 16
      %v1357 = vrot.slane %v1355, 4
      %v1358 = vor.u32 %v1357, %v1353
      %v1359 = vrot.slane %v1358, 4
      %v1361 = vshll.u32 %v1299, 16
      %v1363 = vrot.slane %v1361, 5
      %v1364 = vsel %vm1316, %v1359, %v1363
      %v1366 = vshrl.u32 %v1269, 16
      %v1368 = vrot.slane %v1366, 4
      %v1369 = vshll.u32 %v1269, 16
      %v1371 = vrot.slane %v1369, 5
      %v1372 = vor.u32 %v1368, %v1371
      %v1373 = vrot.slane %v1372, 4
      %v1375 = vshll.u32 %v1270, 16
      %v1377 = vrot.slane %v1375, 5
      %v1378 = vsel %vm1316, %v1373, %v1377
      %v1379 = vshrl.u32 %v1270, 16
      %v1381 = vrot.slane %v1379, 4
      %v1382 = vor.u32 %v1381, %v1377
      %v1383 = vrot.slane %v1382, 4
      %v1385 = vshll.u32 %v1300, 16
      %v1387 = vrot.slane %v1385, 5
      %v1388 = vsel %vm1316, %v1383, %v1387
      %v1390 = vshrl.u32 %v1271, 16
      %v1392 = vrot.slane %v1390, 4
      %v1393 = vshll.u32 %v1271, 16
      %v1395 = vrot.slane %v1393, 5
      %v1396 = vor.u32 %v1392, %v1395
      %v1397 = vrot.slane %v1396, 4
      %v1399 = vshll.u32 %v1272, 16
      %v1401 = vrot.slane %v1399, 5
      %v1402 = vsel %vm1316, %v1397, %v1401
      %v1403 = vshrl.u32 %v1272, 16
      %v1405 = vrot.slane %v1403, 4
      %v1406 = vor.u32 %v1405, %v1401
      %v1407 = vrot.slane %v1406, 4
      %v1409 = vshll.u32 %v1301, 16
      %v1411 = vrot.slane %v1409, 5
      %v1412 = vsel %vm1316, %v1407, %v1411
      %v1414 = vshrl.u32 %v1273, 16
      %v1416 = vrot.slane %v1414, 4
      %v1417 = vshll.u32 %v1273, 16
      %v1419 = vrot.slane %v1417, 5
      %v1420 = vor.u32 %v1416, %v1419
      %v1421 = vrot.slane %v1420, 4
      %v1423 = vshll.u32 %v1274, 16
      %v1425 = vrot.slane %v1423, 5
      %v1426 = vsel %vm1316, %v1421, %v1425
      %v1427 = vshrl.u32 %v1274, 16
      %v1429 = vrot.slane %v1427, 4
      %v1430 = vor.u32 %v1429, %v1425
      %v1431 = vrot.slane %v1430, 4
      %v1433 = vshll.u32 %v1302, 16
      %v1435 = vrot.slane %v1433, 5
      %v1436 = vsel %vm1316, %v1431, %v1435
      %v1438 = vshrl.u32 %v1275, 16
      %v1440 = vrot.slane %v1438, 4
      %v1441 = vshll.u32 %v1275, 16
      %v1443 = vrot.slane %v1441, 5
      %v1444 = vor.u32 %v1440, %v1443
      %v1445 = vrot.slane %v1444, 4
      %v1447 = vshll.u32 %v1276, 16
      %v1449 = vrot.slane %v1447, 5
      %v1450 = vsel %vm1316, %v1445, %v1449
      %v1451 = vshrl.u32 %v1276, 16
      %v1453 = vrot.slane %v1451, 4
      %v1454 = vor.u32 %v1453, %v1449
      %v1455 = vrot.slane %v1454, 4
      %v1457 = vshll.u32 %v1303, 16
      %v1459 = vrot.slane %v1457, 5
      %v1460 = vsel %vm1316, %v1455, %v1459
      %v1462 = vshrl.u32 %v1277, 16
      %v1464 = vrot.slane %v1462, 4
      %v1465 = vshll.u32 %v1277, 16
      %v1467 = vrot.slane %v1465, 5
      %v1468 = vor.u32 %v1464, %v1467
      %v1469 = vrot.slane %v1468, 4
      %v1471 = vshll.u32 %v1278, 16
      %v1473 = vrot.slane %v1471, 5
      %v1474 = vsel %vm1316, %v1469, %v1473
      %v1475 = vshrl.u32 %v1278, 16
      %v1477 = vrot.slane %v1475, 4
      %v1478 = vor.u32 %v1477, %v1473
      %v1479 = vrot.slane %v1478, 4
      %v1481 = vshll.u32 %v1304, 16
      %v1483 = vrot.slane %v1481, 5
      %v1484 = vsel %vm1316, %v1479, %v1483
      %v1486 = vshrl.u32 %v1279, 16
      %v1488 = vrot.slane %v1486, 4
      %v1489 = vshll.u32 %v1279, 16
      %v1491 = vrot.slane %v1489, 5
      %v1492 = vor.u32 %v1488, %v1491
      %v1493 = vrot.slane %v1492, 4
      %v1495 = vshll.u32 %v1280, 16
      %v1497 = vrot.slane %v1495, 5
      %v1498 = vsel %vm1316, %v1493, %v1497
      %v1499 = vshrl.u32 %v1280, 16
      %v1501 = vrot.slane %v1499, 4
      %v1502 = vor.u32 %v1501, %v1497
      %v1503 = vrot.slane %v1502, 4
      %v1505 = vshll.u32 %v1305, 16
      %v1507 = vrot.slane %v1505, 5
      %v1508 = vsel %vm1316, %v1503, %v1507
      %v1510 = vshrl.u32 %v1281, 16
      %v1512 = vrot.slane %v1510, 4
      %v1513 = vshll.u32 %v1281, 16
      %v1515 = vrot.slane %v1513, 5
      %v1516 = vor.u32 %v1512, %v1515
      %v1517 = vrot.slane %v1516, 4
      %v1519 = vshll.u32 %v1282, 16
      %v1521 = vrot.slane %v1519, 5
      %v1522 = vsel %vm1316, %v1517, %v1521
      %v1523 = vshrl.u32 %v1282, 16
      %v1525 = vrot.slane %v1523, 4
      %v1526 = vor.u32 %v1525, %v1521
      %v1527 = vrot.slane %v1526, 4
      %v1529 = vshll.u32 %v1306, 16
      %v1531 = vrot.slane %v1529, 5
      %v1532 = vsel %vm1316, %v1527, %v1531
      %v1534 = vshrl.u32 %v1283, 16
      %v1536 = vrot.slane %v1534, 4
      %v1537 = vshll.u32 %v1283, 16
      %v1539 = vrot.slane %v1537, 5
      %v1540 = vor.u32 %v1536, %v1539
      %v1541 = vrot.slane %v1540, 4
      %v1543 = vshll.u32 %v1284, 16
      %v1545 = vrot.slane %v1543, 5
      %v1546 = vsel %vm1316, %v1541, %v1545
      %v1547 = vshrl.u32 %v1284, 16
      %v1549 = vrot.slane %v1547, 4
      %v1550 = vor.u32 %v1549, %v1545
      %v1551 = vrot.slane %v1550, 4
      %v1553 = vshll.u32 %v1307, 16
      %v1555 = vrot.slane %v1553, 5
      %v1556 = vsel %vm1316, %v1551, %v1555
      %v1558 = vshrl.u32 %v1285, 16
      %v1560 = vrot.slane %v1558, 4
      %v1561 = vshll.u32 %v1285, 16
      %v1563 = vrot.slane %v1561, 5
      %v1564 = vor.u32 %v1560, %v1563
      %v1565 = vrot.slane %v1564, 4
      %v1567 = vshll.u32 %v1286, 16
      %v1569 = vrot.slane %v1567, 5
      %v1570 = vsel %vm1316, %v1565, %v1569
      %v1571 = vshrl.u32 %v1286, 16
      %v1573 = vrot.slane %v1571, 4
      %v1574 = vor.u32 %v1573, %v1569
      %v1575 = vrot.slane %v1574, 4
      %v1577 = vshll.u32 %v1308, 16
      %v1579 = vrot.slane %v1577, 5
      %v1580 = vsel %vm1316, %v1575, %v1579
      %v1582 = vshrl.u32 %v1287, 16
      %v1584 = vrot.slane %v1582, 4
      %v1585 = vshll.u32 %v1287, 16
      %v1587 = vrot.slane %v1585, 5
      %v1588 = vor.u32 %v1584, %v1587
      %v1589 = vrot.slane %v1588, 4
      %v1591 = vshll.u32 %v1288, 16
      %v1593 = vrot.slane %v1591, 5
      %v1594 = vsel %vm1316, %v1589, %v1593
      %v1595 = vshrl.u32 %v1288, 16
      %v1597 = vrot.slane %v1595, 4
      %v1598 = vor.u32 %v1597, %v1593
      %v1599 = vrot.slane %v1598, 4
      %v1601 = vshll.u32 %v1309, 16
      %v1603 = vrot.slane %v1601, 5
      %v1604 = vsel %vm1316, %v1599, %v1603
      %v1606 = vshrl.u32 %v1289, 16
      %v1608 = vrot.slane %v1606, 4
      %v1609 = vshll.u32 %v1289, 16
      %v1611 = vrot.slane %v1609, 5
      %v1612 = vor.u32 %v1608, %v1611
      %v1613 = vrot.slane %v1612, 4
      %v1615 = vshll.u32 %v1290, 16
      %v1617 = vrot.slane %v1615, 5
      %v1618 = vsel %vm1316, %v1613, %v1617
      %v1619 = vshrl.u32 %v1290, 16
      %v1621 = vrot.slane %v1619, 4
      %v1622 = vor.u32 %v1621, %v1617
      %v1623 = vrot.slane %v1622, 4
      %v1625 = vshll.u32 %v1310, 16
      %v1627 = vrot.slane %v1625, 5
      %v1628 = vsel %vm1316, %v1623, %v1627
      %v1630 = vshrl.u32 %v1291, 16
      %v1632 = vrot.slane %v1630, 4
      %v1633 = vshll.u32 %v1291, 16
      %v1635 = vrot.slane %v1633, 5
      %v1636 = vor.u32 %v1632, %v1635
      %v1637 = vrot.slane %v1636, 4
      %v1639 = vshll.u32 %v1292, 16
      %v1641 = vrot.slane %v1639, 5
      %v1642 = vsel %vm1316, %v1637, %v1641
      %v1643 = vshrl.u32 %v1292, 16
      %v1645 = vrot.slane %v1643, 4
      %v1646 = vor.u32 %v1645, %v1641
      %v1647 = vrot.slane %v1646, 4
      %v1649 = vshll.u32 %v1311, 16
      %v1651 = vrot.slane %v1649, 5
      %v1652 = vsel %vm1316, %v1647, %v1651
      %v1654 = vshrl.u32 %v1293, 16
      %v1656 = vrot.slane %v1654, 4
      %v1657 = vshll.u32 %v1293, 16
      %v1659 = vrot.slane %v1657, 5
      %v1660 = vor.u32 %v1656, %v1659
      %v1661 = vrot.slane %v1660, 4
      %v1663 = vshll.u32 %v1294, 16
      %v1665 = vrot.slane %v1663, 5
      %v1666 = vsel %vm1316, %v1661, %v1665
      %v1667 = vshrl.u32 %v1294, 16
      %v1669 = vrot.slane %v1667, 4
      %v1670 = vor.u32 %v1669, %v1665
      %v1671 = vrot.slane %v1670, 4
      %v1673 = vshll.u32 %v1312, 16
      %v1675 = vrot.slane %v1673, 5
      %v1676 = vsel %vm1316, %v1671, %v1675
      %v1678 = vshrl.u32 %v1295, 16
      %v1680 = vrot.slane %v1678, 4
      %v1681 = vshll.u32 %v1295, 16
      %v1683 = vrot.slane %v1681, 5
      %v1684 = vor.u32 %v1680, %v1683
      %v1685 = vrot.slane %v1684, 4
      %v1687 = vshll.u32 %v1296, 16
      %v1689 = vrot.slane %v1687, 5
      %v1690 = vsel %vm1316, %v1685, %v1689
      %v1691 = vshrl.u32 %v1296, 16
      %v1693 = vrot.slane %v1691, 4
      %v1694 = vor.u32 %v1693, %v1689
      %v1695 = vrot.slane %v1694, 4
      %v1697 = vshll.u32 %v1313, 16
      %v1699 = vrot.slane %v1697, 5
      %v1700 = vsel %vm1316, %v1695, %v1699
      %s1701 = scalar_lea.vmem %s2, 4
      %v1702 = vld [vmem:[%s1701] sm:$0xf]
      %v1703 = vunpack.c.l.b16 %v1330
      %v1704 = vunpack.c.l.b16 %v1340
      %v1705 = vunpack.c.l.b16 %v1354
      %v1706 = vunpack.c.l.b16 %v1364
      %v1707 = vunpack.c.l.b16 %v1378
      %v1708 = vunpack.c.l.b16 %v1388
      %v1709 = vunpack.c.l.b16 %v1402
      %v1710 = vunpack.c.l.b16 %v1412
      %v1711 = vunpack.c.l.b16 %v1426
      %v1712 = vunpack.c.l.b16 %v1436
      %v1713 = vunpack.c.l.b16 %v1450
      %v1714 = vunpack.c.l.b16 %v1460
      %v1715 = vunpack.c.l.b16 %v1474
      %v1716 = vunpack.c.l.b16 %v1484
      %v1717 = vunpack.c.l.b16 %v1498
      %v1718 = vunpack.c.l.b16 %v1508
      %v1719 = vunpack.c.l.b16 %v1522
      %v1720 = vunpack.c.l.b16 %v1532
      %v1721 = vunpack.c.l.b16 %v1546
      %v1722 = vunpack.c.l.b16 %v1556
      %v1723 = vunpack.c.l.b16 %v1570
      %v1724 = vunpack.c.l.b16 %v1580
      %v1725 = vunpack.c.l.b16 %v1594
      %v1726 = vunpack.c.l.b16 %v1604
      %v1727 = vunpack.c.l.b16 %v1618
      %v1728 = vunpack.c.l.b16 %v1628
      %v1729 = vunpack.c.l.b16 %v1642
      %v1730 = vunpack.c.l.b16 %v1652
      %v1731 = vunpack.c.l.b16 %v1666
      %v1732 = vunpack.c.l.b16 %v1676
      %v1733 = vunpack.c.l.b16 %v1690
      %v1734 = vunpack.c.l.b16 %v1700
      %v1735 = vpack.c.b16 %v1704, %v1703
      %v1736 = vpack.c.b16 %v1706, %v1705
      %v1737 = vpack.c.b16 %v1708, %v1707
      %v1738 = vpack.c.b16 %v1710, %v1709
      %v1739 = vpack.c.b16 %v1712, %v1711
      %v1740 = vpack.c.b16 %v1714, %v1713
      %v1741 = vpack.c.b16 %v1716, %v1715
      %v1742 = vpack.c.b16 %v1718, %v1717
      %v1743 = vpack.c.b16 %v1720, %v1719
      %v1744 = vpack.c.b16 %v1722, %v1721
      %v1745 = vpack.c.b16 %v1724, %v1723
      %v1746 = vpack.c.b16 %v1726, %v1725
      %v1747 = vpack.c.b16 %v1728, %v1727
      %v1748 = vpack.c.b16 %v1730, %v1729
      %v1749 = vpack.c.b16 %v1732, %v1731
      %v1750 = vpack.c.b16 %v1734, %v1733
      %vm1751 = vcmask 64512
      %v1753 = vsel %vm1751, %v1735, 0
      %v1756 = vsel %vm1751, %v1736, 0
      %v1759 = vsel %vm1751, %v1737, 0
      %v1762 = vsel %vm1751, %v1738, 0
      %v1765 = vsel %vm1751, %v1739, 0
      %v1768 = vsel %vm1751, %v1740, 0
      %v1771 = vsel %vm1751, %v1741, 0
      %v1774 = vsel %vm1751, %v1742, 0
      %v1777 = vsel %vm1751, %v1743, 0
      %v1780 = vsel %vm1751, %v1744, 0
      %v1783 = vsel %vm1751, %v1745, 0
      %v1786 = vsel %vm1751, %v1746, 0
      %v1789 = vsel %vm1751, %v1747, 0
      %v1792 = vsel %vm1751, %v1748, 0
      %v1795 = vsel %vm1751, %v1749, 0
      %v1798 = vsel %vm1751, %v1750, 0
      %vm1800 = vcmask 1043456
      %v1802 = vsel %vm1800, %v1702, 0
      %1804 = vmatprep.subr.bf16.mxu0 0
      %1805 = vmatpush1.bf16.msra.mxu0 %v1802
      %1806 = vmatprep.subr.bf16.mxu0 0
      %1807 = vmatpush1.bf16.msra.mxu0 0
      %1808 = vmatprep.subr.bf16.mxu0 0
      %1809 = vmatpush1.bf16.msra.mxu0 0
      %1810 = vmatprep.subr.bf16.mxu0 0
      %1811 = vmatpush1.bf16.msra.mxu0 0
      %1812 = vmatprep.subr.bf16.mxu0 0
      %1813 = vmatpush1.bf16.msra.mxu0 0
      %1814 = vmatprep.subr.bf16.mxu0 0
      %1815 = vmatpush1.bf16.msra.mxu0 0
      %1816 = vmatprep.subr.bf16.mxu0 0
      %1817 = vmatpush1.bf16.msra.mxu0 0
      %1818 = vmatprep.subr.bf16.mxu0 0
      %1819 = vmatpush1.bf16.msra.mxu0 0
      %1820 = vmatprep.subr.bf16.mxu0 0
      %1821 = vmatpush1.bf16.msra.mxu0 0
      %1822 = vmatprep.subr.bf16.mxu0 0
      %1823 = vmatpush1.bf16.msra.mxu0 0
      %1824 = vmatprep.subr.bf16.mxu0 0
      %1825 = vmatpush1.bf16.msra.mxu0 0
      %1826 = vmatprep.subr.bf16.mxu0 0
      %1827 = vmatpush1.bf16.msra.mxu0 0
      %1828 = vmatprep.subr.bf16.mxu0 0
      %1829 = vmatpush1.bf16.msra.mxu0 0
      %1830 = vmatprep.subr.bf16.mxu0 0
      %1831 = vmatpush1.bf16.msra.mxu0 0
      %1832 = vmatprep.subr.bf16.mxu0 0
      %1833 = vmatpush1.bf16.msra.mxu0 0
      %1834 = vmatprep.subr.bf16.mxu0 0
      %1835 = vmatpush1.bf16.msra.mxu0 0
      %1836 = vmatprep.mubr.bf16.mxu0 0
      %1837 = vmatmul.mubr.bf16.gmra.mrb[0].mxu0 %v1753
      %v1838 = vpop.f32.mrb[0].mxu0
      %v1839 = vadd.f32 0.0, %v1838
      %v1840 = vpop.f32.mrb[0].mxu0
      %v1841 = vpop.f32.mrb[0].mxu0
      %v1842 = vadd.f32 0.0, %v1841
      %v1843 = vpop.f32.mrb[0].mxu0
      %1844 = vmatprep.mubr.bf16.mxu0 0
      %1845 = vmatmul.mubr.bf16.gmra.mrb[0].mxu0 %v1756
      %v1846 = vpop.f32.mrb[0].mxu0
      %v1847 = vadd.f32 0.0, %v1846
      %v1848 = vpop.f32.mrb[0].mxu0
      %v1849 = vpop.f32.mrb[0].mxu0
      %v1850 = vadd.f32 0.0, %v1849
      %v1851 = vpop.f32.mrb[0].mxu0
      %1852 = vmatprep.mubr.bf16.mxu0 0
      %1853 = vmatmul.mubr.bf16.gmra.mrb[0].mxu0 %v1759
      %v1854 = vpop.f32.mrb[0].mxu0
      %v1855 = vadd.f32 0.0, %v1854
      %v1856 = vpop.f32.mrb[0].mxu0
      %v1857 = vpop.f32.mrb[0].mxu0
      %v1858 = vadd.f32 0.0, %v1857
      %v1859 = vpop.f32.mrb[0].mxu0
      %1860 = vmatprep.mubr.bf16.mxu0 0
      %1861 = vmatmul.mubr.bf16.gmra.mrb[0].mxu0 %v1762
      %v1862 = vpop.f32.mrb[0].mxu0
      %v1863 = vadd.f32 0.0, %v1862
      %v1864 = vpop.f32.mrb[0].mxu0
      %v1865 = vpop.f32.mrb[0].mxu0
      %v1866 = vadd.f32 0.0, %v1865
      %v1867 = vpop.f32.mrb[0].mxu0
      %1868 = vmatprep.mubr.bf16.mxu0 0
      %1869 = vmatmul.mubr.bf16.gmra.mrb[0].mxu0 %v1765
      %v1870 = vpop.f32.mrb[0].mxu0
      %v1871 = vadd.f32 0.0, %v1870
      %v1872 = vpop.f32.mrb[0].mxu0
      %v1873 = vpop.f32.mrb[0].mxu0
      %v1874 = vadd.f32 0.0, %v1873
      %v1875 = vpop.f32.mrb[0].mxu0
      %1876 = vmatprep.mubr.bf16.mxu0 0
      %1877 = vmatmul.mubr.bf16.gmra.mrb[0].mxu0 %v1768
      %v1878 = vpop.f32.mrb[0].mxu0
      %v1879 = vadd.f32 0.0, %v1878
      %v1880 = vpop.f32.mrb[0].mxu0
      %v1881 = vpop.f32.mrb[0].mxu0
      %v1882 = vadd.f32 0.0, %v1881
      %v1883 = vpop.f32.mrb[0].mxu0
      %1884 = vmatprep.mubr.bf16.mxu0 0
      %1885 = vmatmul.mubr.bf16.gmra.mrb[0].mxu0 %v1771
      %v1886 = vpop.f32.mrb[0].mxu0
      %v1887 = vadd.f32 0.0, %v1886
      %v1888 = vpop.f32.mrb[0].mxu0
      %v1889 = vpop.f32.mrb[0].mxu0
      %v1890 = vadd.f32 0.0, %v1889
      %v1891 = vpop.f32.mrb[0].mxu0
      %1892 = vmatprep.mubr.bf16.mxu0 0
      %1893 = vmatmul.mubr.bf16.gmra.mrb[0].mxu0 %v1774
      %v1894 = vpop.f32.mrb[0].mxu0
      %v1895 = vadd.f32 0.0, %v1894
      %v1896 = vpop.f32.mrb[0].mxu0
      %v1897 = vpop.f32.mrb[0].mxu0
      %v1898 = vadd.f32 0.0, %v1897
      %v1899 = vpop.f32.mrb[0].mxu0
      %1900 = vmatprep.mubr.bf16.mxu0 0
      %1901 = vmatmul.mubr.bf16.gmra.mrb[0].mxu0 %v1777
      %v1902 = vpop.f32.mrb[0].mxu0
      %v1903 = vadd.f32 0.0, %v1902
      %v1904 = vpop.f32.mrb[0].mxu0
      %v1905 = vpop.f32.mrb[0].mxu0
      %v1906 = vadd.f32 0.0, %v1905
      %v1907 = vpop.f32.mrb[0].mxu0
      %1908 = vmatprep.mubr.bf16.mxu0 0
      %1909 = vmatmul.mubr.bf16.gmra.mrb[0].mxu0 %v1780
      %v1910 = vpop.f32.mrb[0].mxu0
      %v1911 = vadd.f32 0.0, %v1910
      %v1912 = vpop.f32.mrb[0].mxu0
      %v1913 = vpop.f32.mrb[0].mxu0
      %v1914 = vadd.f32 0.0, %v1913
      %v1915 = vpop.f32.mrb[0].mxu0
      %1916 = vmatprep.mubr.bf16.mxu0 0
      %1917 = vmatmul.mubr.bf16.gmra.mrb[0].mxu0 %v1783
      %v1918 = vpop.f32.mrb[0].mxu0
      %v1919 = vadd.f32 0.0, %v1918
      %v1920 = vpop.f32.mrb[0].mxu0
      %v1921 = vpop.f32.mrb[0].mxu0
      %v1922 = vadd.f32 0.0, %v1921
      %v1923 = vpop.f32.mrb[0].mxu0
      %1924 = vmatprep.mubr.bf16.mxu0 0
      %1925 = vmatmul.mubr.bf16.gmra.mrb[0].mxu0 %v1786
      %v1926 = vpop.f32.mrb[0].mxu0
      %v1927 = vadd.f32 0.0, %v1926
      %v1928 = vpop.f32.mrb[0].mxu0
      %v1929 = vpop.f32.mrb[0].mxu0
      %v1930 = vadd.f32 0.0, %v1929
      %v1931 = vpop.f32.mrb[0].mxu0
      %1932 = vmatprep.mubr.bf16.mxu0 0
      %1933 = vmatmul.mubr.bf16.gmra.mrb[0].mxu0 %v1789
      %v1934 = vpop.f32.mrb[0].mxu0
      %v1935 = vadd.f32 0.0, %v1934
      %v1936 = vpop.f32.mrb[0].mxu0
      %v1937 = vpop.f32.mrb[0].mxu0
      %v1938 = vadd.f32 0.0, %v1937
      %v1939 = vpop.f32.mrb[0].mxu0
      %1940 = vmatprep.mubr.bf16.mxu0 0
      %1941 = vmatmul.mubr.bf16.gmra.mrb[0].mxu0 %v1792
      %v1942 = vpop.f32.mrb[0].mxu0
      %v1943 = vadd.f32 0.0, %v1942
      %v1944 = vpop.f32.mrb[0].mxu0
      %v1945 = vpop.f32.mrb[0].mxu0
      %v1946 = vadd.f32 0.0, %v1945
      %v1947 = vpop.f32.mrb[0].mxu0
      %1948 = vmatprep.mubr.bf16.mxu0 0
      %1949 = vmatmul.mubr.bf16.gmra.mrb[0].mxu0 %v1795
      %v1950 = vpop.f32.mrb[0].mxu0
      %v1951 = vadd.f32 0.0, %v1950
      %v1952 = vpop.f32.mrb[0].mxu0
      %v1953 = vpop.f32.mrb[0].mxu0
      %v1954 = vadd.f32 0.0, %v1953
      %v1955 = vpop.f32.mrb[0].mxu0
      %1956 = vmatprep.mubr.bf16.mxu0 0
      %1957 = vmatmul.mubr.bf16.gmra.mrb[0].mxu0 %v1798
      %v1958 = vpop.f32.mrb[0].mxu0
      %v1959 = vadd.f32 0.0, %v1958
      %v1960 = vpop.f32.mrb[0].mxu0
      %v1961 = vpop.f32.mrb[0].mxu0
      %v1962 = vadd.f32 0.0, %v1961
      %v1963 = vpop.f32.mrb[0].mxu0
      %1964 = vdwg.mxu0
      %v1997 = vunpack.c.l.b16 %v1265
      %v1998 = vunpack.c.l.b16 %v1266
      %v1999 = vunpack.c.l.b16 %v1267
      %v2000 = vunpack.c.l.b16 %v1268
      %v2001 = vunpack.c.l.b16 %v1269
      %v2002 = vunpack.c.l.b16 %v1270
      %v2003 = vunpack.c.l.b16 %v1271
      %v2004 = vunpack.c.l.b16 %v1272
      %v2005 = vunpack.c.l.b16 %v1273
      %v2006 = vunpack.c.l.b16 %v1274
      %v2007 = vunpack.c.l.b16 %v1275
      %v2008 = vunpack.c.l.b16 %v1276
      %v2009 = vunpack.c.l.b16 %v1277
      %v2010 = vunpack.c.l.b16 %v1278
      %v2011 = vunpack.c.l.b16 %v1279
      %v2012 = vunpack.c.l.b16 %v1280
      %v2013 = vunpack.c.l.b16 %v1281
      %v2014 = vunpack.c.l.b16 %v1282
      %v2015 = vunpack.c.l.b16 %v1283
      %v2016 = vunpack.c.l.b16 %v1284
      %v2017 = vunpack.c.l.b16 %v1285
      %v2018 = vunpack.c.l.b16 %v1286
      %v2019 = vunpack.c.l.b16 %v1287
      %v2020 = vunpack.c.l.b16 %v1288
      %v2021 = vunpack.c.l.b16 %v1289
      %v2022 = vunpack.c.l.b16 %v1290
      %v2023 = vunpack.c.l.b16 %v1291
      %v2024 = vunpack.c.l.b16 %v1292
      %v2025 = vunpack.c.l.b16 %v1293
      %v2026 = vunpack.c.l.b16 %v1294
      %v2027 = vunpack.c.l.b16 %v1295
      %v2028 = vunpack.c.l.b16 %v1296
      %v2029 = vpack.c.b16 %v1998, %v1997
      %v2030 = vpack.c.b16 %v2000, %v1999
      %v2031 = vpack.c.b16 %v2002, %v2001
      %v2032 = vpack.c.b16 %v2004, %v2003
      %v2033 = vpack.c.b16 %v2006, %v2005
      %v2034 = vpack.c.b16 %v2008, %v2007
      %v2035 = vpack.c.b16 %v2010, %v2009
      %v2036 = vpack.c.b16 %v2012, %v2011
      %v2037 = vpack.c.b16 %v2014, %v2013
      %v2038 = vpack.c.b16 %v2016, %v2015
      %v2039 = vpack.c.b16 %v2018, %v2017
      %v2040 = vpack.c.b16 %v2020, %v2019
      %v2041 = vpack.c.b16 %v2022, %v2021
      %v2042 = vpack.c.b16 %v2024, %v2023
      %v2043 = vpack.c.b16 %v2026, %v2025
      %v2044 = vpack.c.b16 %v2028, %v2027
      %v2046 = vsel %vm1751, %v2029, 0
      %v2049 = vsel %vm1751, %v2030, 0
      %v2052 = vsel %vm1751, %v2031, 0
      %v2055 = vsel %vm1751, %v2032, 0
      %v2058 = vsel %vm1751, %v2033, 0
      %v2061 = vsel %vm1751, %v2034, 0
      %v2064 = vsel %vm1751, %v2035, 0
      %v2067 = vsel %vm1751, %v2036, 0
      %v2070 = vsel %vm1751, %v2037, 0
      %v2073 = vsel %vm1751, %v2038, 0
      %v2076 = vsel %vm1751, %v2039, 0
      %v2079 = vsel %vm1751, %v2040, 0
      %v2082 = vsel %vm1751, %v2041, 0
      %v2085 = vsel %vm1751, %v2042, 0
      %v2088 = vsel %vm1751, %v2043, 0
      %v2091 = vsel %vm1751, %v2044, 0
      %v2094 = vsel %vm1800, %v1297, 0
      %2096 = vmatprep.subr.bf16.mxu0 0
      %2097 = vmatpush1.bf16.msra.mxu0 %v2094
      %2098 = vmatprep.subr.bf16.mxu0 0
      %2099 = vmatpush1.bf16.msra.mxu0 0
      %2100 = vmatprep.subr.bf16.mxu0 0
      %2101 = vmatpush1.bf16.msra.mxu0 0
      %2102 = vmatprep.subr.bf16.mxu0 0
      %2103 = vmatpush1.bf16.msra.mxu0 0
      %2104 = vmatprep.subr.bf16.mxu0 0
      %2105 = vmatpush1.bf16.msra.mxu0 0
      %2106 = vmatprep.subr.bf16.mxu0 0
      %2107 = vmatpush1.bf16.msra.mxu0 0
      %2108 = vmatprep.subr.bf16.mxu0 0
      %2109 = vmatpush1.bf16.msra.mxu0 0
      %2110 = vmatprep.subr.bf16.mxu0 0
      %2111 = vmatpush1.bf16.msra.mxu0 0
      %2112 = vmatprep.subr.bf16.mxu0 0
      %2113 = vmatpush1.bf16.msra.mxu0 0
      %2114 = vmatprep.subr.bf16.mxu0 0
      %2115 = vmatpush1.bf16.msra.mxu0 0
      %2116 = vmatprep.subr.bf16.mxu0 0
      %2117 = vmatpush1.bf16.msra.mxu0 0
      %2118 = vmatprep.subr.bf16.mxu0 0
      %2119 = vmatpush1.bf16.msra.mxu0 0
      %2120 = vmatprep.subr.bf16.mxu0 0
      %2121 = vmatpush1.bf16.msra.mxu0 0
      %2122 = vmatprep.subr.bf16.mxu0 0
      %2123 = vmatpush1.bf16.msra.mxu0 0
      %2124 = vmatprep.subr.bf16.mxu0 0
      %2125 = vmatpush1.bf16.msra.mxu0 0
      %2126 = vmatprep.subr.bf16.mxu0 0
      %2127 = vmatpush1.bf16.msra.mxu0 0
      %2128 = vmatprep.mubr.bf16.mxu0 0
      %2129 = vmatmul.mubr.bf16.gmra.mrb[0].mxu0 %v2046
      %v2130 = vpop.f32.mrb[0].mxu0
      %v2131 = vadd.f32 %v1839, %v2130
      %v2132 = vpop.f32.mrb[0].mxu0
      %v2133 = vpop.f32.mrb[0].mxu0
      %v2134 = vadd.f32 %v1842, %v2133
      %v2135 = vpop.f32.mrb[0].mxu0
      %2136 = vmatprep.mubr.bf16.mxu0 0
      %2137 = vmatmul.mubr.bf16.gmra.mrb[0].mxu0 %v2049
      %v2138 = vpop.f32.mrb[0].mxu0
      %v2139 = vadd.f32 %v1847, %v2138
      %v2140 = vpop.f32.mrb[0].mxu0
      %v2141 = vpop.f32.mrb[0].mxu0
      %v2142 = vadd.f32 %v1850, %v2141
      %v2143 = vpop.f32.mrb[0].mxu0
      %2144 = vmatprep.mubr.bf16.mxu0 0
      %2145 = vmatmul.mubr.bf16.gmra.mrb[0].mxu0 %v2052
      %v2146 = vpop.f32.mrb[0].mxu0
      %v2147 = vadd.f32 %v1855, %v2146
      %v2148 = vpop.f32.mrb[0].mxu0
      %v2149 = vpop.f32.mrb[0].mxu0
      %v2150 = vadd.f32 %v1858, %v2149
      %v2151 = vpop.f32.mrb[0].mxu0
      %2152 = vmatprep.mubr.bf16.mxu0 0
      %2153 = vmatmul.mubr.bf16.gmra.mrb[0].mxu0 %v2055
      %v2154 = vpop.f32.mrb[0].mxu0
      %v2155 = vadd.f32 %v1863, %v2154
      %v2156 = vpop.f32.mrb[0].mxu0
      %v2157 = vpop.f32.mrb[0].mxu0
      %v2158 = vadd.f32 %v1866, %v2157
      %v2159 = vpop.f32.mrb[0].mxu0
      %2160 = vmatprep.mubr.bf16.mxu0 0
      %2161 = vmatmul.mubr.bf16.gmra.mrb[0].mxu0 %v2058
      %v2162 = vpop.f32.mrb[0].mxu0
      %v2163 = vadd.f32 %v1871, %v2162
      %v2164 = vpop.f32.mrb[0].mxu0
      %v2165 = vpop.f32.mrb[0].mxu0
      %v2166 = vadd.f32 %v1874, %v2165
      %v2167 = vpop.f32.mrb[0].mxu0
      %2168 = vmatprep.mubr.bf16.mxu0 0
      %2169 = vmatmul.mubr.bf16.gmra.mrb[0].mxu0 %v2061
      %v2170 = vpop.f32.mrb[0].mxu0
      %v2171 = vadd.f32 %v1879, %v2170
      %v2172 = vpop.f32.mrb[0].mxu0
      %v2173 = vpop.f32.mrb[0].mxu0
      %v2174 = vadd.f32 %v1882, %v2173
      %v2175 = vpop.f32.mrb[0].mxu0
      %2176 = vmatprep.mubr.bf16.mxu0 0
      %2177 = vmatmul.mubr.bf16.gmra.mrb[0].mxu0 %v2064
      %v2178 = vpop.f32.mrb[0].mxu0
      %v2179 = vadd.f32 %v1887, %v2178
      %v2180 = vpop.f32.mrb[0].mxu0
      %v2181 = vpop.f32.mrb[0].mxu0
      %v2182 = vadd.f32 %v1890, %v2181
      %v2183 = vpop.f32.mrb[0].mxu0
      %2184 = vmatprep.mubr.bf16.mxu0 0
      %2185 = vmatmul.mubr.bf16.gmra.mrb[0].mxu0 %v2067
      %v2186 = vpop.f32.mrb[0].mxu0
      %v2187 = vadd.f32 %v1895, %v2186
      %v2188 = vpop.f32.mrb[0].mxu0
      %v2189 = vpop.f32.mrb[0].mxu0
      %v2190 = vadd.f32 %v1898, %v2189
      %v2191 = vpop.f32.mrb[0].mxu0
      %2192 = vmatprep.mubr.bf16.mxu0 0
      %2193 = vmatmul.mubr.bf16.gmra.mrb[0].mxu0 %v2070
      %v2194 = vpop.f32.mrb[0].mxu0
      %v2195 = vadd.f32 %v1903, %v2194
      %v2196 = vpop.f32.mrb[0].mxu0
      %v2197 = vpop.f32.mrb[0].mxu0
      %v2198 = vadd.f32 %v1906, %v2197
      %v2199 = vpop.f32.mrb[0].mxu0
      %2200 = vmatprep.mubr.bf16.mxu0 0
      %2201 = vmatmul.mubr.bf16.gmra.mrb[0].mxu0 %v2073
      %v2202 = vpop.f32.mrb[0].mxu0
      %v2203 = vadd.f32 %v1911, %v2202
      %v2204 = vpop.f32.mrb[0].mxu0
      %v2205 = vpop.f32.mrb[0].mxu0
      %v2206 = vadd.f32 %v1914, %v2205
      %v2207 = vpop.f32.mrb[0].mxu0
      %2208 = vmatprep.mubr.bf16.mxu0 0
      %2209 = vmatmul.mubr.bf16.gmra.mrb[0].mxu0 %v2076
      %v2210 = vpop.f32.mrb[0].mxu0
      %v2211 = vadd.f32 %v1919, %v2210
      %v2212 = vpop.f32.mrb[0].mxu0
      %v2213 = vpop.f32.mrb[0].mxu0
      %v2214 = vadd.f32 %v1922, %v2213
      %v2215 = vpop.f32.mrb[0].mxu0
      %2216 = vmatprep.mubr.bf16.mxu0 0
      %2217 = vmatmul.mubr.bf16.gmra.mrb[0].mxu0 %v2079
      %v2218 = vpop.f32.mrb[0].mxu0
      %v2219 = vadd.f32 %v1927, %v2218
      %v2220 = vpop.f32.mrb[0].mxu0
      %v2221 = vpop.f32.mrb[0].mxu0
      %v2222 = vadd.f32 %v1930, %v2221
      %v2223 = vpop.f32.mrb[0].mxu0
      %2224 = vmatprep.mubr.bf16.mxu0 0
      %2225 = vmatmul.mubr.bf16.gmra.mrb[0].mxu0 %v2082
      %v2226 = vpop.f32.mrb[0].mxu0
      %v2227 = vadd.f32 %v1935, %v2226
      %v2228 = vpop.f32.mrb[0].mxu0
      %v2229 = vpop.f32.mrb[0].mxu0
      %v2230 = vadd.f32 %v1938, %v2229
      %v2231 = vpop.f32.mrb[0].mxu0
      %2232 = vmatprep.mubr.bf16.mxu0 0
      %2233 = vmatmul.mubr.bf16.gmra.mrb[0].mxu0 %v2085
      %v2234 = vpop.f32.mrb[0].mxu0
      %v2235 = vadd.f32 %v1943, %v2234
      %v2236 = vpop.f32.mrb[0].mxu0
      %v2237 = vpop.f32.mrb[0].mxu0
      %v2238 = vadd.f32 %v1946, %v2237
      %v2239 = vpop.f32.mrb[0].mxu0
      %2240 = vmatprep.mubr.bf16.mxu0 0
      %2241 = vmatmul.mubr.bf16.gmra.mrb[0].mxu0 %v2088
      %v2242 = vpop.f32.mrb[0].mxu0
      %v2243 = vadd.f32 %v1951, %v2242
      %v2244 = vpop.f32.mrb[0].mxu0
      %v2245 = vpop.f32.mrb[0].mxu0
      %v2246 = vadd.f32 %v1954, %v2245
      %v2247 = vpop.f32.mrb[0].mxu0
      %2248 = vmatprep.mubr.bf16.mxu0 0
      %2249 = vmatmul.mubr.bf16.gmra.mrb[0].mxu0 %v2091
      %v2250 = vpop.f32.mrb[0].mxu0
      %v2251 = vadd.f32 %v1959, %v2250
      %v2252 = vpop.f32.mrb[0].mxu0
      %v2253 = vpop.f32.mrb[0].mxu0
      %v2254 = vadd.f32 %v1962, %v2253
      %v2255 = vpop.f32.mrb[0].mxu0
      %2256 = vdwg.mxu0
      %v2257 = vld [vmem:[#allocation2] sm:$0xe]
      %v2258 = vld [vmem:[#allocation2 + $0xc] sm:$0xe]
      %v2259 = vld [vmem:[#allocation2 + $0x18] sm:$0xe]
      %v2260 = vld [vmem:[#allocation2 + $0x24] sm:$0xe]
      %v2261 = vld [vmem:[#allocation2 + $0x30] sm:$0xe]
      %v2262 = vld [vmem:[#allocation2 + $0x3c] sm:$0xe]
      %v2263 = vld [vmem:[#allocation2 + $0x48] sm:$0xe]
      %v2264 = vld [vmem:[#allocation2 + $0x54] sm:$0xe]
      %v2265 = vld [vmem:[#allocation2 + $0x60] sm:$0xe]
      %v2266 = vld [vmem:[#allocation2 + $0x6c] sm:$0xe]
      %v2267 = vld [vmem:[#allocation2 + $0x78] sm:$0xe]
      %v2268 = vld [vmem:[#allocation2 + $0x84] sm:$0xe]
      %v2269 = vld [vmem:[#allocation2 + $0x90] sm:$0xe]
      %v2270 = vld [vmem:[#allocation2 + $0x9c] sm:$0xe]
      %v2271 = vld [vmem:[#allocation2 + $0xa8] sm:$0xe]
      %v2272 = vld [vmem:[#allocation2 + $0xb4] sm:$0xe]
      %vm2305 = vcmask 1042432
      %vm2306 = vcmask 1046532
      %vm2307 = vmor %vm2305, %vm2306
      %v2308 = vrot.slane %v2257, 5
      %v2309 = vrot.slane %v2308, 4
      %v2310 = vrot.slane %v1266, 5
      %v2311 = vsel %vm2307, %v2309, %v2310
      %v2312 = vrot.slane %v2310, 4
      %v2313 = vrot.slane %v1298, 5
      %v2314 = vsel %vm2307, %v2312, %v2313
      %v2315 = vrot.slane %v2258, 5
      %v2316 = vrot.slane %v2315, 4
      %v2317 = vrot.slane %v1268, 5
      %v2318 = vsel %vm2307, %v2316, %v2317
      %v2319 = vrot.slane %v2317, 4
      %v2320 = vrot.slane %v1299, 5
      %v2321 = vsel %vm2307, %v2319, %v2320
      %v2322 = vrot.slane %v2259, 5
      %v2323 = vrot.slane %v2322, 4
      %v2324 = vrot.slane %v1270, 5
      %v2325 = vsel %vm2307, %v2323, %v2324
      %v2326 = vrot.slane %v2324, 4
      %v2327 = vrot.slane %v1300, 5
      %v2328 = vsel %vm2307, %v2326, %v2327
      %v2329 = vrot.slane %v2260, 5
      %v2330 = vrot.slane %v2329, 4
      %v2331 = vrot.slane %v1272, 5
      %v2332 = vsel %vm2307, %v2330, %v2331
      %v2333 = vrot.slane %v2331, 4
      %v2334 = vrot.slane %v1301, 5
      %v2335 = vsel %vm2307, %v2333, %v2334
      %v2336 = vrot.slane %v2261, 5
      %v2337 = vrot.slane %v2336, 4
      %v2338 = vrot.slane %v1274, 5
      %v2339 = vsel %vm2307, %v2337, %v2338
      %v2340 = vrot.slane %v2338, 4
      %v2341 = vrot.slane %v1302, 5
      %v2342 = vsel %vm2307, %v2340, %v2341
      %v2343 = vrot.slane %v2262, 5
      %v2344 = vrot.slane %v2343, 4
      %v2345 = vrot.slane %v1276, 5
      %v2346 = vsel %vm2307, %v2344, %v2345
      %v2347 = vrot.slane %v2345, 4
      %v2348 = vrot.slane %v1303, 5
      %v2349 = vsel %vm2307, %v2347, %v2348
      %v2350 = vrot.slane %v2263, 5
      %v2351 = vrot.slane %v2350, 4
      %v2352 = vrot.slane %v1278, 5
      %v2353 = vsel %vm2307, %v2351, %v2352
      %v2354 = vrot.slane %v2352, 4
      %v2355 = vrot.slane %v1304, 5
      %v2356 = vsel %vm2307, %v2354, %v2355
      %v2357 = vrot.slane %v2264, 5
      %v2358 = vrot.slane %v2357, 4
      %v2359 = vrot.slane %v1280, 5
      %v2360 = vsel %vm2307, %v2358, %v2359
      %v2361 = vrot.slane %v2359, 4
      %v2362 = vrot.slane %v1305, 5
      %v2363 = vsel %vm2307, %v2361, %v2362
      %v2364 = vrot.slane %v2265, 5
      %v2365 = vrot.slane %v2364, 4
      %v2366 = vrot.slane %v1282, 5
      %v2367 = vsel %vm2307, %v2365, %v2366
      %v2368 = vrot.slane %v2366, 4
      %v2369 = vrot.slane %v1306, 5
      %v2370 = vsel %vm2307, %v2368, %v2369
      %v2371 = vrot.slane %v2266, 5
      %v2372 = vrot.slane %v2371, 4
      %v2373 = vrot.slane %v1284, 5
      %v2374 = vsel %vm2307, %v2372, %v2373
      %v2375 = vrot.slane %v2373, 4
      %v2376 = vrot.slane %v1307, 5
      %v2377 = vsel %vm2307, %v2375, %v2376
      %v2378 = vrot.slane %v2267, 5
      %v2379 = vrot.slane %v2378, 4
      %v2380 = vrot.slane %v1286, 5
      %v2381 = vsel %vm2307, %v2379, %v2380
      %v2382 = vrot.slane %v2380, 4
      %v2383 = vrot.slane %v1308, 5
      %v2384 = vsel %vm2307, %v2382, %v2383
      %v2385 = vrot.slane %v2268, 5
      %v2386 = vrot.slane %v2385, 4
      %v2387 = vrot.slane %v1288, 5
      %v2388 = vsel %vm2307, %v2386, %v2387
      %v2389 = vrot.slane %v2387, 4
      %v2390 = vrot.slane %v1309, 5
      %v2391 = vsel %vm2307, %v2389, %v2390
      %v2392 = vrot.slane %v2269, 5
      %v2393 = vrot.slane %v2392, 4
      %v2394 = vrot.slane %v1290, 5
      %v2395 = vsel %vm2307, %v2393, %v2394
      %v2396 = vrot.slane %v2394, 4
      %v2397 = vrot.slane %v1310, 5
      %v2398 = vsel %vm2307, %v2396, %v2397
      %v2399 = vrot.slane %v2270, 5
      %v2400 = vrot.slane %v2399, 4
      %v2401 = vrot.slane %v1292, 5
      %v2402 = vsel %vm2307, %v2400, %v2401
      %v2403 = vrot.slane %v2401, 4
      %v2404 = vrot.slane %v1311, 5
      %v2405 = vsel %vm2307, %v2403, %v2404
      %v2406 = vrot.slane %v2271, 5
      %v2407 = vrot.slane %v2406, 4
      %v2408 = vrot.slane %v1294, 5
      %v2409 = vsel %vm2307, %v2407, %v2408
      %v2410 = vrot.slane %v2408, 4
      %v2411 = vrot.slane %v1312, 5
      %v2412 = vsel %vm2307, %v2410, %v2411
      %v2413 = vrot.slane %v2272, 5
      %v2414 = vrot.slane %v2413, 4
      %v2415 = vrot.slane %v1296, 5
      %v2416 = vsel %vm2307, %v2414, %v2415
      %v2417 = vrot.slane %v2415, 4
      %v2418 = vrot.slane %v1313, 5
      %v2419 = vsel %vm2307, %v2417, %v2418
      %s2420 = scalar_lea.vmem %s2, 8
      %v2421 = vld [vmem:[%s2420] sm:$0xf]
      %v2422 = vunpack.c.l.b16 %v2311
      %v2423 = vunpack.c.l.b16 %v2314
      %v2424 = vunpack.c.l.b16 %v2318
      %v2425 = vunpack.c.l.b16 %v2321
      %v2426 = vunpack.c.l.b16 %v2325
      %v2427 = vunpack.c.l.b16 %v2328
      %v2428 = vunpack.c.l.b16 %v2332
      %v2429 = vunpack.c.l.b16 %v2335
      %v2430 = vunpack.c.l.b16 %v2339
      %v2431 = vunpack.c.l.b16 %v2342
      %v2432 = vunpack.c.l.b16 %v2346
      %v2433 = vunpack.c.l.b16 %v2349
      %v2434 = vunpack.c.l.b16 %v2353
      %v2435 = vunpack.c.l.b16 %v2356
      %v2436 = vunpack.c.l.b16 %v2360
      %v2437 = vunpack.c.l.b16 %v2363
      %v2438 = vunpack.c.l.b16 %v2367
      %v2439 = vunpack.c.l.b16 %v2370
      %v2440 = vunpack.c.l.b16 %v2374
      %v2441 = vunpack.c.l.b16 %v2377
      %v2442 = vunpack.c.l.b16 %v2381
      %v2443 = vunpack.c.l.b16 %v2384
      %v2444 = vunpack.c.l.b16 %v2388
      %v2445 = vunpack.c.l.b16 %v2391
      %v2446 = vunpack.c.l.b16 %v2395
      %v2447 = vunpack.c.l.b16 %v2398
      %v2448 = vunpack.c.l.b16 %v2402
      %v2449 = vunpack.c.l.b16 %v2405
      %v2450 = vunpack.c.l.b16 %v2409
      %v2451 = vunpack.c.l.b16 %v2412
      %v2452 = vunpack.c.l.b16 %v2416
      %v2453 = vunpack.c.l.b16 %v2419
      %v2454 = vpack.c.b16 %v2423, %v2422
      %v2455 = vpack.c.b16 %v2425, %v2424
      %v2456 = vpack.c.b16 %v2427, %v2426
      %v2457 = vpack.c.b16 %v2429, %v2428
      %v2458 = vpack.c.b16 %v2431, %v2430
      %v2459 = vpack.c.b16 %v2433, %v2432
      %v2460 = vpack.c.b16 %v2435, %v2434
      %v2461 = vpack.c.b16 %v2437, %v2436
      %v2462 = vpack.c.b16 %v2439, %v2438
      %v2463 = vpack.c.b16 %v2441, %v2440
      %v2464 = vpack.c.b16 %v2443, %v2442
      %v2465 = vpack.c.b16 %v2445, %v2444
      %v2466 = vpack.c.b16 %v2447, %v2446
      %v2467 = vpack.c.b16 %v2449, %v2448
      %v2468 = vpack.c.b16 %v2451, %v2450
      %v2469 = vpack.c.b16 %v2453, %v2452
      %v2471 = vsel %vm1751, %v2454, 0
      %v2474 = vsel %vm1751, %v2455, 0
      %v2477 = vsel %vm1751, %v2456, 0
      %v2480 = vsel %vm1751, %v2457, 0
      %v2483 = vsel %vm1751, %v2458, 0
      %v2486 = vsel %vm1751, %v2459, 0
      %v2489 = vsel %vm1751, %v2460, 0
      %v2492 = vsel %vm1751, %v2461, 0
      %v2495 = vsel %vm1751, %v2462, 0
      %v2498 = vsel %vm1751, %v2463, 0
      %v2501 = vsel %vm1751, %v2464, 0
      %v2504 = vsel %vm1751, %v2465, 0
      %v2507 = vsel %vm1751, %v2466, 0
      %v2510 = vsel %vm1751, %v2467, 0
      %v2513 = vsel %vm1751, %v2468, 0
      %v2516 = vsel %vm1751, %v2469, 0
      %v2519 = vsel %vm1800, %v2421, 0
      %2521 = vmatprep.subr.bf16.mxu0 0
      %2522 = vmatpush1.bf16.msra.mxu0 %v2519
      %2523 = vmatprep.subr.bf16.mxu0 0
      %2524 = vmatpush1.bf16.msra.mxu0 0
      %2525 = vmatprep.subr.bf16.mxu0 0
      %2526 = vmatpush1.bf16.msra.mxu0 0
      %2527 = vmatprep.subr.bf16.mxu0 0
      %2528 = vmatpush1.bf16.msra.mxu0 0
      %2529 = vmatprep.subr.bf16.mxu0 0
      %2530 = vmatpush1.bf16.msra.mxu0 0
      %2531 = vmatprep.subr.bf16.mxu0 0
      %2532 = vmatpush1.bf16.msra.mxu0 0
      %2533 = vmatprep.subr.bf16.mxu0 0
      %2534 = vmatpush1.bf16.msra.mxu0 0
      %2535 = vmatprep.subr.bf16.mxu0 0
      %2536 = vmatpush1.bf16.msra.mxu0 0
      %2537 = vmatprep.subr.bf16.mxu0 0
      %2538 = vmatpush1.bf16.msra.mxu0 0
      %2539 = vmatprep.subr.bf16.mxu0 0
      %2540 = vmatpush1.bf16.msra.mxu0 0
      %2541 = vmatprep.subr.bf16.mxu0 0
      %2542 = vmatpush1.bf16.msra.mxu0 0
      %2543 = vmatprep.subr.bf16.mxu0 0
      %2544 = vmatpush1.bf16.msra.mxu0 0
      %2545 = vmatprep.subr.bf16.mxu0 0
      %2546 = vmatpush1.bf16.msra.mxu0 0
      %2547 = vmatprep.subr.bf16.mxu0 0
      %2548 = vmatpush1.bf16.msra.mxu0 0
      %2549 = vmatprep.subr.bf16.mxu0 0
      %2550 = vmatpush1.bf16.msra.mxu0 0
      %2551 = vmatprep.subr.bf16.mxu0 0
      %2552 = vmatpush1.bf16.msra.mxu0 0
      %2553 = vmatprep.mubr.bf16.mxu0 0
      %2554 = vmatmul.mubr.bf16.gmra.mrb[0].mxu0 %v2471
      %v2555 = vpop.f32.mrb[0].mxu0
      %v2556 = vadd.f32 0.0, %v2555
      %v2557 = vpop.f32.mrb[0].mxu0
      %v2558 = vpop.f32.mrb[0].mxu0
      %v2559 = vadd.f32 0.0, %v2558
      %v2560 = vpop.f32.mrb[0].mxu0
      %2561 = vmatprep.mubr.bf16.mxu0 0
      %2562 = vmatmul.mubr.bf16.gmra.mrb[0].mxu0 %v2474
      %v2563 = vpop.f32.mrb[0].mxu0
      %v2564 = vadd.f32 0.0, %v2563
      %v2565 = vpop.f32.mrb[0].mxu0
      %v2566 = vpop.f32.mrb[0].mxu0
      %v2567 = vadd.f32 0.0, %v2566
      %v2568 = vpop.f32.mrb[0].mxu0
      %2569 = vmatprep.mubr.bf16.mxu0 0
      %2570 = vmatmul.mubr.bf16.gmra.mrb[0].mxu0 %v2477
      %v2571 = vpop.f32.mrb[0].mxu0
      %v2572 = vadd.f32 0.0, %v2571
      %v2573 = vpop.f32.mrb[0].mxu0
      %v2574 = vpop.f32.mrb[0].mxu0
      %v2575 = vadd.f32 0.0, %v2574
      %v2576 = vpop.f32.mrb[0].mxu0
      %2577 = vmatprep.mubr.bf16.mxu0 0
      %2578 = vmatmul.mubr.bf16.gmra.mrb[0].mxu0 %v2480
      %v2579 = vpop.f32.mrb[0].mxu0
      %v2580 = vadd.f32 0.0, %v2579
      %v2581 = vpop.f32.mrb[0].mxu0
      %v2582 = vpop.f32.mrb[0].mxu0
      %v2583 = vadd.f32 0.0, %v2582
      %v2584 = vpop.f32.mrb[0].mxu0
      %2585 = vmatprep.mubr.bf16.mxu0 0
      %2586 = vmatmul.mubr.bf16.gmra.mrb[0].mxu0 %v2483
      %v2587 = vpop.f32.mrb[0].mxu0
      %v2588 = vadd.f32 0.0, %v2587
      %v2589 = vpop.f32.mrb[0].mxu0
      %v2590 = vpop.f32.mrb[0].mxu0
      %v2591 = vadd.f32 0.0, %v2590
      %v2592 = vpop.f32.mrb[0].mxu0
      %2593 = vmatprep.mubr.bf16.mxu0 0
      %2594 = vmatmul.mubr.bf16.gmra.mrb[0].mxu0 %v2486
      %v2595 = vpop.f32.mrb[0].mxu0
      %v2596 = vadd.f32 0.0, %v2595
      %v2597 = vpop.f32.mrb[0].mxu0
      %v2598 = vpop.f32.mrb[0].mxu0
      %v2599 = vadd.f32 0.0, %v2598
      %v2600 = vpop.f32.mrb[0].mxu0
      %2601 = vmatprep.mubr.bf16.mxu0 0
      %2602 = vmatmul.mubr.bf16.gmra.mrb[0].mxu0 %v2489
      %v2603 = vpop.f32.mrb[0].mxu0
      %v2604 = vadd.f32 0.0, %v2603
      %v2605 = vpop.f32.mrb[0].mxu0
      %v2606 = vpop.f32.mrb[0].mxu0
      %v2607 = vadd.f32 0.0, %v2606
      %v2608 = vpop.f32.mrb[0].mxu0
      %2609 = vmatprep.mubr.bf16.mxu0 0
      %2610 = vmatmul.mubr.bf16.gmra.mrb[0].mxu0 %v2492
      %v2611 = vpop.f32.mrb[0].mxu0
      %v2612 = vadd.f32 0.0, %v2611
      %v2613 = vpop.f32.mrb[0].mxu0
      %v2614 = vpop.f32.mrb[0].mxu0
      %v2615 = vadd.f32 0.0, %v2614
      %v2616 = vpop.f32.mrb[0].mxu0
      %2617 = vmatprep.mubr.bf16.mxu0 0
      %2618 = vmatmul.mubr.bf16.gmra.mrb[0].mxu0 %v2495
      %v2619 = vpop.f32.mrb[0].mxu0
      %v2620 = vadd.f32 0.0, %v2619
      %v2621 = vpop.f32.mrb[0].mxu0
      %v2622 = vpop.f32.mrb[0].mxu0
      %v2623 = vadd.f32 0.0, %v2622
      %v2624 = vpop.f32.mrb[0].mxu0
      %2625 = vmatprep.mubr.bf16.mxu0 0
      %2626 = vmatmul.mubr.bf16.gmra.mrb[0].mxu0 %v2498
      %v2627 = vpop.f32.mrb[0].mxu0
      %v2628 = vadd.f32 0.0, %v2627
      %v2629 = vpop.f32.mrb[0].mxu0
      %v2630 = vpop.f32.mrb[0].mxu0
      %v2631 = vadd.f32 0.0, %v2630
      %v2632 = vpop.f32.mrb[0].mxu0
      %2633 = vmatprep.mubr.bf16.mxu0 0
      %2634 = vmatmul.mubr.bf16.gmra.mrb[0].mxu0 %v2501
      %v2635 = vpop.f32.mrb[0].mxu0
      %v2636 = vadd.f32 0.0, %v2635
      %v2637 = vpop.f32.mrb[0].mxu0
      %v2638 = vpop.f32.mrb[0].mxu0
      %v2639 = vadd.f32 0.0, %v2638
      %v2640 = vpop.f32.mrb[0].mxu0
      %2641 = vmatprep.mubr.bf16.mxu0 0
      %2642 = vmatmul.mubr.bf16.gmra.mrb[0].mxu0 %v2504
      %v2643 = vpop.f32.mrb[0].mxu0
      %v2644 = vadd.f32 0.0, %v2643
      %v2645 = vpop.f32.mrb[0].mxu0
      %v2646 = vpop.f32.mrb[0].mxu0
      %v2647 = vadd.f32 0.0, %v2646
      %v2648 = vpop.f32.mrb[0].mxu0
      %2649 = vmatprep.mubr.bf16.mxu0 0
      %2650 = vmatmul.mubr.bf16.gmra.mrb[0].mxu0 %v2507
      %v2651 = vpop.f32.mrb[0].mxu0
      %v2652 = vadd.f32 0.0, %v2651
      %v2653 = vpop.f32.mrb[0].mxu0
      %v2654 = vpop.f32.mrb[0].mxu0
      %v2655 = vadd.f32 0.0, %v2654
      %v2656 = vpop.f32.mrb[0].mxu0
      %2657 = vmatprep.mubr.bf16.mxu0 0
      %2658 = vmatmul.mubr.bf16.gmra.mrb[0].mxu0 %v2510
      %v2659 = vpop.f32.mrb[0].mxu0
      %v2660 = vadd.f32 0.0, %v2659
      %v2661 = vpop.f32.mrb[0].mxu0
      %v2662 = vpop.f32.mrb[0].mxu0
      %v2663 = vadd.f32 0.0, %v2662
      %v2664 = vpop.f32.mrb[0].mxu0
      %2665 = vmatprep.mubr.bf16.mxu0 0
      %2666 = vmatmul.mubr.bf16.gmra.mrb[0].mxu0 %v2513
      %v2667 = vpop.f32.mrb[0].mxu0
      %v2668 = vadd.f32 0.0, %v2667
      %v2669 = vpop.f32.mrb[0].mxu0
      %v2670 = vpop.f32.mrb[0].mxu0
      %v2671 = vadd.f32 0.0, %v2670
      %v2672 = vpop.f32.mrb[0].mxu0
      %2673 = vmatprep.mubr.bf16.mxu0 0
      %2674 = vmatmul.mubr.bf16.gmra.mrb[0].mxu0 %v2516
      %v2675 = vpop.f32.mrb[0].mxu0
      %v2676 = vadd.f32 0.0, %v2675
      %v2677 = vpop.f32.mrb[0].mxu0
      %v2678 = vpop.f32.mrb[0].mxu0
      %v2679 = vadd.f32 0.0, %v2678
      %v2680 = vpop.f32.mrb[0].mxu0
      %2681 = vdwg.mxu0
      %v2682 = vadd.f32 %v2131, %v2556
      %v2683 = vadd.f32 %v2134, %v2559
      %v2684 = vadd.f32 %v2139, %v2564
      %v2685 = vadd.f32 %v2142, %v2567
      %v2686 = vadd.f32 %v2147, %v2572
      %v2687 = vadd.f32 %v2150, %v2575
      %v2688 = vadd.f32 %v2155, %v2580
      %v2689 = vadd.f32 %v2158, %v2583
      %v2690 = vadd.f32 %v2163, %v2588
      %v2691 = vadd.f32 %v2166, %v2591
      %v2692 = vadd.f32 %v2171, %v2596
      %v2693 = vadd.f32 %v2174, %v2599
      %v2694 = vadd.f32 %v2179, %v2604
      %v2695 = vadd.f32 %v2182, %v2607
      %v2696 = vadd.f32 %v2187, %v2612
      %v2697 = vadd.f32 %v2190, %v2615
      %v2698 = vadd.f32 %v2195, %v2620
      %v2699 = vadd.f32 %v2198, %v2623
      %v2700 = vadd.f32 %v2203, %v2628
      %v2701 = vadd.f32 %v2206, %v2631
      %v2702 = vadd.f32 %v2211, %v2636
      %v2703 = vadd.f32 %v2214, %v2639
      %v2704 = vadd.f32 %v2219, %v2644
      %v2705 = vadd.f32 %v2222, %v2647
      %v2706 = vadd.f32 %v2227, %v2652
      %v2707 = vadd.f32 %v2230, %v2655
      %v2708 = vadd.f32 %v2235, %v2660
      %v2709 = vadd.f32 %v2238, %v2663
      %v2710 = vadd.f32 %v2243, %v2668
      %v2711 = vadd.f32 %v2246, %v2671
      %v2712 = vadd.f32 %v2251, %v2676
      %v2713 = vadd.f32 %v2254, %v2679
      %v2714 = vld [vmem:[%s1147] sm:$0xf]
      %v2715 = vld [vmem:[%s1147 + $0x4] sm:$0xf]
      %v2716 = vld [vmem:[%s1147 + $0xc] sm:$0xf]
      %v2717 = vld [vmem:[%s1147 + $0x10] sm:$0xf]
      %v2718 = vld [vmem:[%s1147 + $0x18] sm:$0xf]
      %v2719 = vld [vmem:[%s1147 + $0x1c] sm:$0xf]
      %v2720 = vld [vmem:[%s1147 + $0x24] sm:$0xf]
      %v2721 = vld [vmem:[%s1147 + $0x28] sm:$0xf]
      %v2722 = vld [vmem:[%s1147 + $0x30] sm:$0xf]
      %v2723 = vld [vmem:[%s1147 + $0x34] sm:$0xf]
      %v2724 = vld [vmem:[%s1147 + $0x3c] sm:$0xf]
      %v2725 = vld [vmem:[%s1147 + $0x40] sm:$0xf]
      %v2726 = vld [vmem:[%s1147 + $0x48] sm:$0xf]
      %v2727 = vld [vmem:[%s1147 + $0x4c] sm:$0xf]
      %v2728 = vld [vmem:[%s1147 + $0x54] sm:$0xf]
      %v2729 = vld [vmem:[%s1147 + $0x58] sm:$0xf]
      %v2730 = vld [vmem:[%s1147 + $0x60] sm:$0xf]
      %v2731 = vld [vmem:[%s1147 + $0x64] sm:$0xf]
      %v2732 = vld [vmem:[%s1147 + $0x6c] sm:$0xf]
      %v2733 = vld [vmem:[%s1147 + $0x70] sm:$0xf]
      %v2734 = vld [vmem:[%s1147 + $0x78] sm:$0xf]
      %v2735 = vld [vmem:[%s1147 + $0x7c] sm:$0xf]
      %v2736 = vld [vmem:[%s1147 + $0x84] sm:$0xf]
      %v2737 = vld [vmem:[%s1147 + $0x88] sm:$0xf]
      %v2738 = vld [vmem:[%s1147 + $0x90] sm:$0xf]
      %v2739 = vld [vmem:[%s1147 + $0x94] sm:$0xf]
      %v2740 = vld [vmem:[%s1147 + $0x9c] sm:$0xf]
      %v2741 = vld [vmem:[%s1147 + $0xa0] sm:$0xf]
      %v2742 = vld [vmem:[%s1147 + $0xa8] sm:$0xf]
      %v2743 = vld [vmem:[%s1147 + $0xac] sm:$0xf]
      %v2744 = vld [vmem:[%s1147 + $0xb4] sm:$0xf]
      %v2745 = vld [vmem:[%s1147 + $0xb8] sm:$0xf]
      %s2746 = scalar_lea.vmem %s2, 12
      %v2747 = vld [vmem:[%s2746] sm:$0xf]
      %v2780 = vunpack.c.l.b16 %v2714
      %v2781 = vunpack.c.l.b16 %v2715
      %v2782 = vunpack.c.l.b16 %v2716
      %v2783 = vunpack.c.l.b16 %v2717
      %v2784 = vunpack.c.l.b16 %v2718
      %v2785 = vunpack.c.l.b16 %v2719
      %v2786 = vunpack.c.l.b16 %v2720
      %v2787 = vunpack.c.l.b16 %v2721
      %v2788 = vunpack.c.l.b16 %v2722
      %v2789 = vunpack.c.l.b16 %v2723
      %v2790 = vunpack.c.l.b16 %v2724
      %v2791 = vunpack.c.l.b16 %v2725
      %v2792 = vunpack.c.l.b16 %v2726
      %v2793 = vunpack.c.l.b16 %v2727
      %v2794 = vunpack.c.l.b16 %v2728
      %v2795 = vunpack.c.l.b16 %v2729
      %v2796 = vunpack.c.l.b16 %v2730
      %v2797 = vunpack.c.l.b16 %v2731
      %v2798 = vunpack.c.l.b16 %v2732
      %v2799 = vunpack.c.l.b16 %v2733
      %v2800 = vunpack.c.l.b16 %v2734
      %v2801 = vunpack.c.l.b16 %v2735
      %v2802 = vunpack.c.l.b16 %v2736
      %v2803 = vunpack.c.l.b16 %v2737
      %v2804 = vunpack.c.l.b16 %v2738
      %v2805 = vunpack.c.l.b16 %v2739
      %v2806 = vunpack.c.l.b16 %v2740
      %v2807 = vunpack.c.l.b16 %v2741
      %v2808 = vunpack.c.l.b16 %v2742
      %v2809 = vunpack.c.l.b16 %v2743
      %v2810 = vunpack.c.l.b16 %v2744
      %v2811 = vunpack.c.l.b16 %v2745
      %v2812 = vpack.c.b16 %v2781, %v2780
      %v2813 = vpack.c.b16 %v2783, %v2782
      %v2814 = vpack.c.b16 %v2785, %v2784
      %v2815 = vpack.c.b16 %v2787, %v2786
      %v2816 = vpack.c.b16 %v2789, %v2788
      %v2817 = vpack.c.b16 %v2791, %v2790
      %v2818 = vpack.c.b16 %v2793, %v2792
      %v2819 = vpack.c.b16 %v2795, %v2794
      %v2820 = vpack.c.b16 %v2797, %v2796
      %v2821 = vpack.c.b16 %v2799, %v2798
      %v2822 = vpack.c.b16 %v2801, %v2800
      %v2823 = vpack.c.b16 %v2803, %v2802
      %v2824 = vpack.c.b16 %v2805, %v2804
      %v2825 = vpack.c.b16 %v2807, %v2806
      %v2826 = vpack.c.b16 %v2809, %v2808
      %v2827 = vpack.c.b16 %v2811, %v2810
      %v2829 = vsel %vm1751, %v2812, 0
      %v2832 = vsel %vm1751, %v2813, 0
      %v2835 = vsel %vm1751, %v2814, 0
      %v2838 = vsel %vm1751, %v2815, 0
      %v2841 = vsel %vm1751, %v2816, 0
      %v2844 = vsel %vm1751, %v2817, 0
      %v2847 = vsel %vm1751, %v2818, 0
      %v2850 = vsel %vm1751, %v2819, 0
      %v2853 = vsel %vm1751, %v2820, 0
      %v2856 = vsel %vm1751, %v2821, 0
      %v2859 = vsel %vm1751, %v2822, 0
      %v2862 = vsel %vm1751, %v2823, 0
      %v2865 = vsel %vm1751, %v2824, 0
      %v2868 = vsel %vm1751, %v2825, 0
      %v2871 = vsel %vm1751, %v2826, 0
      %v2874 = vsel %vm1751, %v2827, 0
      %v2877 = vsel %vm1800, %v2747, 0
      %2879 = vmatprep.subr.bf16.mxu0 0
      %2880 = vmatpush1.bf16.msra.mxu0 %v2877
      %2881 = vmatprep.subr.bf16.mxu0 0
      %2882 = vmatpush1.bf16.msra.mxu0 0
      %2883 = vmatprep.subr.bf16.mxu0 0
      %2884 = vmatpush1.bf16.msra.mxu0 0
      %2885 = vmatprep.subr.bf16.mxu0 0
      %2886 = vmatpush1.bf16.msra.mxu0 0
      %2887 = vmatprep.subr.bf16.mxu0 0
      %2888 = vmatpush1.bf16.msra.mxu0 0
      %2889 = vmatprep.subr.bf16.mxu0 0
      %2890 = vmatpush1.bf16.msra.mxu0 0
      %2891 = vmatprep.subr.bf16.mxu0 0
      %2892 = vmatpush1.bf16.msra.mxu0 0
      %2893 = vmatprep.subr.bf16.mxu0 0
      %2894 = vmatpush1.bf16.msra.mxu0 0
      %2895 = vmatprep.subr.bf16.mxu0 0
      %2896 = vmatpush1.bf16.msra.mxu0 0
      %2897 = vmatprep.subr.bf16.mxu0 0
      %2898 = vmatpush1.bf16.msra.mxu0 0
      %2899 = vmatprep.subr.bf16.mxu0 0
      %2900 = vmatpush1.bf16.msra.mxu0 0
      %2901 = vmatprep.subr.bf16.mxu0 0
      %2902 = vmatpush1.bf16.msra.mxu0 0
      %2903 = vmatprep.subr.bf16.mxu0 0
      %2904 = vmatpush1.bf16.msra.mxu0 0
      %2905 = vmatprep.subr.bf16.mxu0 0
      %2906 = vmatpush1.bf16.msra.mxu0 0
      %2907 = vmatprep.subr.bf16.mxu0 0
      %2908 = vmatpush1.bf16.msra.mxu0 0
      %2909 = vmatprep.subr.bf16.mxu0 0
      %2910 = vmatpush1.bf16.msra.mxu0 0
      %2911 = vmatprep.mubr.bf16.mxu0 0
      %2912 = vmatmul.mubr.bf16.gmra.mrb[0].mxu0 %v2829
      %v2913 = vpop.f32.mrb[0].mxu0
      %v2914 = vadd.f32 0.0, %v2913
      %v2915 = vpop.f32.mrb[0].mxu0
      %v2916 = vpop.f32.mrb[0].mxu0
      %v2917 = vadd.f32 0.0, %v2916
      %v2918 = vpop.f32.mrb[0].mxu0
      %2919 = vmatprep.mubr.bf16.mxu0 0
      %2920 = vmatmul.mubr.bf16.gmra.mrb[0].mxu0 %v2832
      %v2921 = vpop.f32.mrb[0].mxu0
      %v2922 = vadd.f32 0.0, %v2921
      %v2923 = vpop.f32.mrb[0].mxu0
      %v2924 = vpop.f32.mrb[0].mxu0
      %v2925 = vadd.f32 0.0, %v2924
      %v2926 = vpop.f32.mrb[0].mxu0
      %2927 = vmatprep.mubr.bf16.mxu0 0
      %2928 = vmatmul.mubr.bf16.gmra.mrb[0].mxu0 %v2835
      %v2929 = vpop.f32.mrb[0].mxu0
      %v2930 = vadd.f32 0.0, %v2929
      %v2931 = vpop.f32.mrb[0].mxu0
      %v2932 = vpop.f32.mrb[0].mxu0
      %v2933 = vadd.f32 0.0, %v2932
      %v2934 = vpop.f32.mrb[0].mxu0
      %2935 = vmatprep.mubr.bf16.mxu0 0
      %2936 = vmatmul.mubr.bf16.gmra.mrb[0].mxu0 %v2838
      %v2937 = vpop.f32.mrb[0].mxu0
      %v2938 = vadd.f32 0.0, %v2937
      %v2939 = vpop.f32.mrb[0].mxu0
      %v2940 = vpop.f32.mrb[0].mxu0
      %v2941 = vadd.f32 0.0, %v2940
      %v2942 = vpop.f32.mrb[0].mxu0
      %2943 = vmatprep.mubr.bf16.mxu0 0
      %2944 = vmatmul.mubr.bf16.gmra.mrb[0].mxu0 %v2841
      %v2945 = vpop.f32.mrb[0].mxu0
      %v2946 = vadd.f32 0.0, %v2945
      %v2947 = vpop.f32.mrb[0].mxu0
      %v2948 = vpop.f32.mrb[0].mxu0
      %v2949 = vadd.f32 0.0, %v2948
      %v2950 = vpop.f32.mrb[0].mxu0
      %2951 = vmatprep.mubr.bf16.mxu0 0
      %2952 = vmatmul.mubr.bf16.gmra.mrb[0].mxu0 %v2844
      %v2953 = vpop.f32.mrb[0].mxu0
      %v2954 = vadd.f32 0.0, %v2953
      %v2955 = vpop.f32.mrb[0].mxu0
      %v2956 = vpop.f32.mrb[0].mxu0
      %v2957 = vadd.f32 0.0, %v2956
      %v2958 = vpop.f32.mrb[0].mxu0
      %2959 = vmatprep.mubr.bf16.mxu0 0
      %2960 = vmatmul.mubr.bf16.gmra.mrb[0].mxu0 %v2847
      %v2961 = vpop.f32.mrb[0].mxu0
      %v2962 = vadd.f32 0.0, %v2961
      %v2963 = vpop.f32.mrb[0].mxu0
      %v2964 = vpop.f32.mrb[0].mxu0
      %v2965 = vadd.f32 0.0, %v2964
      %v2966 = vpop.f32.mrb[0].mxu0
      %2967 = vmatprep.mubr.bf16.mxu0 0
      %2968 = vmatmul.mubr.bf16.gmra.mrb[0].mxu0 %v2850
      %v2969 = vpop.f32.mrb[0].mxu0
      %v2970 = vadd.f32 0.0, %v2969
      %v2971 = vpop.f32.mrb[0].mxu0
      %v2972 = vpop.f32.mrb[0].mxu0
      %v2973 = vadd.f32 0.0, %v2972
      %v2974 = vpop.f32.mrb[0].mxu0
      %2975 = vmatprep.mubr.bf16.mxu0 0
      %2976 = vmatmul.mubr.bf16.gmra.mrb[0].mxu0 %v2853
      %v2977 = vpop.f32.mrb[0].mxu0
      %v2978 = vadd.f32 0.0, %v2977
      %v2979 = vpop.f32.mrb[0].mxu0
      %v2980 = vpop.f32.mrb[0].mxu0
      %v2981 = vadd.f32 0.0, %v2980
      %v2982 = vpop.f32.mrb[0].mxu0
      %2983 = vmatprep.mubr.bf16.mxu0 0
      %2984 = vmatmul.mubr.bf16.gmra.mrb[0].mxu0 %v2856
      %v2985 = vpop.f32.mrb[0].mxu0
      %v2986 = vadd.f32 0.0, %v2985
      %v2987 = vpop.f32.mrb[0].mxu0
      %v2988 = vpop.f32.mrb[0].mxu0
      %v2989 = vadd.f32 0.0, %v2988
      %v2990 = vpop.f32.mrb[0].mxu0
      %2991 = vmatprep.mubr.bf16.mxu0 0
      %2992 = vmatmul.mubr.bf16.gmra.mrb[0].mxu0 %v2859
      %v2993 = vpop.f32.mrb[0].mxu0
      %v2994 = vadd.f32 0.0, %v2993
      %v2995 = vpop.f32.mrb[0].mxu0
      %v2996 = vpop.f32.mrb[0].mxu0
      %v2997 = vadd.f32 0.0, %v2996
      %v2998 = vpop.f32.mrb[0].mxu0
      %2999 = vmatprep.mubr.bf16.mxu0 0
      %3000 = vmatmul.mubr.bf16.gmra.mrb[0].mxu0 %v2862
      %v3001 = vpop.f32.mrb[0].mxu0
      %v3002 = vadd.f32 0.0, %v3001
      %v3003 = vpop.f32.mrb[0].mxu0
      %v3004 = vpop.f32.mrb[0].mxu0
      %v3005 = vadd.f32 0.0, %v3004
      %v3006 = vpop.f32.mrb[0].mxu0
      %3007 = vmatprep.mubr.bf16.mxu0 0
      %3008 = vmatmul.mubr.bf16.gmra.mrb[0].mxu0 %v2865
      %v3009 = vpop.f32.mrb[0].mxu0
      %v3010 = vadd.f32 0.0, %v3009
      %v3011 = vpop.f32.mrb[0].mxu0
      %v3012 = vpop.f32.mrb[0].mxu0
      %v3013 = vadd.f32 0.0, %v3012
      %v3014 = vpop.f32.mrb[0].mxu0
      %3015 = vmatprep.mubr.bf16.mxu0 0
      %3016 = vmatmul.mubr.bf16.gmra.mrb[0].mxu0 %v2868
      %v3017 = vpop.f32.mrb[0].mxu0
      %v3018 = vadd.f32 0.0, %v3017
      %v3019 = vpop.f32.mrb[0].mxu0
      %v3020 = vpop.f32.mrb[0].mxu0
      %v3021 = vadd.f32 0.0, %v3020
      %v3022 = vpop.f32.mrb[0].mxu0
      %3023 = vmatprep.mubr.bf16.mxu0 0
      %3024 = vmatmul.mubr.bf16.gmra.mrb[0].mxu0 %v2871
      %v3025 = vpop.f32.mrb[0].mxu0
      %v3026 = vadd.f32 0.0, %v3025
      %v3027 = vpop.f32.mrb[0].mxu0
      %v3028 = vpop.f32.mrb[0].mxu0
      %v3029 = vadd.f32 0.0, %v3028
      %v3030 = vpop.f32.mrb[0].mxu0
      %3031 = vmatprep.mubr.bf16.mxu0 0
      %3032 = vmatmul.mubr.bf16.gmra.mrb[0].mxu0 %v2874
      %v3033 = vpop.f32.mrb[0].mxu0
      %v3034 = vadd.f32 0.0, %v3033
      %v3035 = vpop.f32.mrb[0].mxu0
      %v3036 = vpop.f32.mrb[0].mxu0
      %v3037 = vadd.f32 0.0, %v3036
      %v3038 = vpop.f32.mrb[0].mxu0
      %3039 = vdwg.mxu0
      %v3040 = vadd.f32 %v2682, %v2914
      %v3041 = vadd.f32 %v2683, %v2917
      %v3042 = vadd.f32 %v2684, %v2922
      %v3043 = vadd.f32 %v2685, %v2925
      %v3044 = vadd.f32 %v2686, %v2930
      %v3045 = vadd.f32 %v2687, %v2933
      %v3046 = vadd.f32 %v2688, %v2938
      %v3047 = vadd.f32 %v2689, %v2941
      %v3048 = vadd.f32 %v2690, %v2946
      %v3049 = vadd.f32 %v2691, %v2949
      %v3050 = vadd.f32 %v2692, %v2954
      %v3051 = vadd.f32 %v2693, %v2957
      %v3052 = vadd.f32 %v2694, %v2962
      %v3053 = vadd.f32 %v2695, %v2965
      %v3054 = vadd.f32 %v2696, %v2970
      %v3055 = vadd.f32 %v2697, %v2973
      %v3056 = vadd.f32 %v2698, %v2978
      %v3057 = vadd.f32 %v2699, %v2981
      %v3058 = vadd.f32 %v2700, %v2986
      %v3059 = vadd.f32 %v2701, %v2989
      %v3060 = vadd.f32 %v2702, %v2994
      %v3061 = vadd.f32 %v2703, %v2997
      %v3062 = vadd.f32 %v2704, %v3002
      %v3063 = vadd.f32 %v2705, %v3005
      %v3064 = vadd.f32 %v2706, %v3010
      %v3065 = vadd.f32 %v2707, %v3013
      %v3066 = vadd.f32 %v2708, %v3018
      %v3067 = vadd.f32 %v2709, %v3021
      %v3068 = vadd.f32 %v2710, %v3026
      %v3069 = vadd.f32 %v2711, %v3029
      %v3070 = vadd.f32 %v2712, %v3034
      %v3071 = vadd.f32 %v2713, %v3037
      %v3072 = vld [vmem:[%s1147] sm:$0xf]
      %v3073 = vld [vmem:[%s1147 + $0x4] sm:$0xf]
      %v3074 = vld [vmem:[%s1147 + $0x8] sm:$0x1]
      %v3075 = vld [vmem:[%s1147 + $0xc] sm:$0xf]
      %v3076 = vld [vmem:[%s1147 + $0x10] sm:$0xf]
      %v3077 = vld [vmem:[%s1147 + $0x14] sm:$0x1]
      %v3078 = vld [vmem:[%s1147 + $0x18] sm:$0xf]
      %v3079 = vld [vmem:[%s1147 + $0x1c] sm:$0xf]
      %v3080 = vld [vmem:[%s1147 + $0x20] sm:$0x1]
      %v3081 = vld [vmem:[%s1147 + $0x24] sm:$0xf]
      %v3082 = vld [vmem:[%s1147 + $0x28] sm:$0xf]
      %v3083 = vld [vmem:[%s1147 + $0x2c] sm:$0x1]
      %v3084 = vld [vmem:[%s1147 + $0x30] sm:$0xf]
      %v3085 = vld [vmem:[%s1147 + $0x34] sm:$0xf]
      %v3086 = vld [vmem:[%s1147 + $0x38] sm:$0x1]
      %v3087 = vld [vmem:[%s1147 + $0x3c] sm:$0xf]
      %v3088 = vld [vmem:[%s1147 + $0x40] sm:$0xf]
      %v3089 = vld [vmem:[%s1147 + $0x44] sm:$0x1]
      %v3090 = vld [vmem:[%s1147 + $0x48] sm:$0xf]
      %v3091 = vld [vmem:[%s1147 + $0x4c] sm:$0xf]
      %v3092 = vld [vmem:[%s1147 + $0x50] sm:$0x1]
      %v3093 = vld [vmem:[%s1147 + $0x54] sm:$0xf]
      %v3094 = vld [vmem:[%s1147 + $0x58] sm:$0xf]
      %v3095 = vld [vmem:[%s1147 + $0x5c] sm:$0x1]
      %v3096 = vld [vmem:[%s1147 + $0x60] sm:$0xf]
      %v3097 = vld [vmem:[%s1147 + $0x64] sm:$0xf]
      %v3098 = vld [vmem:[%s1147 + $0x68] sm:$0x1]
      %v3099 = vld [vmem:[%s1147 + $0x6c] sm:$0xf]
      %v3100 = vld [vmem:[%s1147 + $0x70] sm:$0xf]
      %v3101 = vld [vmem:[%s1147 + $0x74] sm:$0x1]
      %v3102 = vld [vmem:[%s1147 + $0x78] sm:$0xf]
      %v3103 = vld [vmem:[%s1147 + $0x7c] sm:$0xf]
      %v3104 = vld [vmem:[%s1147 + $0x80] sm:$0x1]
      %v3105 = vld [vmem:[%s1147 + $0x84] sm:$0xf]
      %v3106 = vld [vmem:[%s1147 + $0x88] sm:$0xf]
      %v3107 = vld [vmem:[%s1147 + $0x8c] sm:$0x1]
      %v3108 = vld [vmem:[%s1147 + $0x90] sm:$0xf]
      %v3109 = vld [vmem:[%s1147 + $0x94] sm:$0xf]
      %v3110 = vld [vmem:[%s1147 + $0x98] sm:$0x1]
      %v3111 = vld [vmem:[%s1147 + $0x9c] sm:$0xf]
      %v3112 = vld [vmem:[%s1147 + $0xa0] sm:$0xf]
      %v3113 = vld [vmem:[%s1147 + $0xa4] sm:$0x1]
      %v3114 = vld [vmem:[%s1147 + $0xa8] sm:$0xf]
      %v3115 = vld [vmem:[%s1147 + $0xac] sm:$0xf]
      %v3116 = vld [vmem:[%s1147 + $0xb0] sm:$0x1]
      %v3117 = vld [vmem:[%s1147 + $0xb4] sm:$0xf]
      %v3118 = vld [vmem:[%s1147 + $0xb8] sm:$0xf]
      %v3119 = vld [vmem:[%s1147 + $0xbc] sm:$0x1]
      %v3121 = vshrl.u32 %v3072, 16
      %v3123 = vrot.slane %v3121, 4
      %v3124 = vshll.u32 %v3072, 16
      %v3126 = vrot.slane %v3124, 5
      %v3127 = vor.u32 %v3123, %v3126
      %v3128 = vrot.slane %v3127, 4
      %v3130 = vshll.u32 %v3073, 16
      %v3132 = vrot.slane %v3130, 5
      %v3133 = vsel %vm1316, %v3128, %v3132
      %v3134 = vshrl.u32 %v3073, 16
      %v3136 = vrot.slane %v3134, 4
      %v3137 = vor.u32 %v3136, %v3132
      %v3138 = vrot.slane %v3137, 4
      %v3140 = vshll.u32 %v3074, 16
      %v3142 = vrot.slane %v3140, 5
      %v3143 = vsel %vm1316, %v3138, %v3142
      %v3145 = vshrl.u32 %v3075, 16
      %v3147 = vrot.slane %v3145, 4
      %v3148 = vshll.u32 %v3075, 16
      %v3150 = vrot.slane %v3148, 5
      %v3151 = vor.u32 %v3147, %v3150
      %v3152 = vrot.slane %v3151, 4
      %v3154 = vshll.u32 %v3076, 16
      %v3156 = vrot.slane %v3154, 5
      %v3157 = vsel %vm1316, %v3152, %v3156
      %v3158 = vshrl.u32 %v3076, 16
      %v3160 = vrot.slane %v3158, 4
      %v3161 = vor.u32 %v3160, %v3156
      %v3162 = vrot.slane %v3161, 4
      %v3164 = vshll.u32 %v3077, 16
      %v3166 = vrot.slane %v3164, 5
      %v3167 = vsel %vm1316, %v3162, %v3166
      %v3169 = vshrl.u32 %v3078, 16
      %v3171 = vrot.slane %v3169, 4
      %v3172 = vshll.u32 %v3078, 16
      %v3174 = vrot.slane %v3172, 5
      %v3175 = vor.u32 %v3171, %v3174
      %v3176 = vrot.slane %v3175, 4
      %v3178 = vshll.u32 %v3079, 16
      %v3180 = vrot.slane %v3178, 5
      %v3181 = vsel %vm1316, %v3176, %v3180
      %v3182 = vshrl.u32 %v3079, 16
      %v3184 = vrot.slane %v3182, 4
      %v3185 = vor.u32 %v3184, %v3180
      %v3186 = vrot.slane %v3185, 4
      %v3188 = vshll.u32 %v3080, 16
      %v3190 = vrot.slane %v3188, 5
      %v3191 = vsel %vm1316, %v3186, %v3190
      %v3193 = vshrl.u32 %v3081, 16
      %v3195 = vrot.slane %v3193, 4
      %v3196 = vshll.u32 %v3081, 16
      %v3198 = vrot.slane %v3196, 5
      %v3199 = vor.u32 %v3195, %v3198
      %v3200 = vrot.slane %v3199, 4
      %v3202 = vshll.u32 %v3082, 16
      %v3204 = vrot.slane %v3202, 5
      %v3205 = vsel %vm1316, %v3200, %v3204
      %v3206 = vshrl.u32 %v3082, 16
      %v3208 = vrot.slane %v3206, 4
      %v3209 = vor.u32 %v3208, %v3204
      %v3210 = vrot.slane %v3209, 4
      %v3212 = vshll.u32 %v3083, 16
      %v3214 = vrot.slane %v3212, 5
      %v3215 = vsel %vm1316, %v3210, %v3214
      %v3217 = vshrl.u32 %v3084, 16
      %v3219 = vrot.slane %v3217, 4
      %v3220 = vshll.u32 %v3084, 16
      %v3222 = vrot.slane %v3220, 5
      %v3223 = vor.u32 %v3219, %v3222
      %v3224 = vrot.slane %v3223, 4
      %v3226 = vshll.u32 %v3085, 16
      %v3228 = vrot.slane %v3226, 5
      %v3229 = vsel %vm1316, %v3224, %v3228
      %v3230 = vshrl.u32 %v3085, 16
      %v3232 = vrot.slane %v3230, 4
      %v3233 = vor.u32 %v3232, %v3228
      %v3234 = vrot.slane %v3233, 4
      %v3236 = vshll.u32 %v3086, 16
      %v3238 = vrot.slane %v3236, 5
      %v3239 = vsel %vm1316, %v3234, %v3238
      %v3241 = vshrl.u32 %v3087, 16
      %v3243 = vrot.slane %v3241, 4
      %v3244 = vshll.u32 %v3087, 16
      %v3246 = vrot.slane %v3244, 5
      %v3247 = vor.u32 %v3243, %v3246
      %v3248 = vrot.slane %v3247, 4
      %v3250 = vshll.u32 %v3088, 16
      %v3252 = vrot.slane %v3250, 5
      %v3253 = vsel %vm1316, %v3248, %v3252
      %v3254 = vshrl.u32 %v3088, 16
      %v3256 = vrot.slane %v3254, 4
      %v3257 = vor.u32 %v3256, %v3252
      %v3258 = vrot.slane %v3257, 4
      %v3260 = vshll.u32 %v3089, 16
      %v3262 = vrot.slane %v3260, 5
      %v3263 = vsel %vm1316, %v3258, %v3262
      %v3265 = vshrl.u32 %v3090, 16
      %v3267 = vrot.slane %v3265, 4
      %v3268 = vshll.u32 %v3090, 16
      %v3270 = vrot.slane %v3268, 5
      %v3271 = vor.u32 %v3267, %v3270
      %v3272 = vrot.slane %v3271, 4
      %v3274 = vshll.u32 %v3091, 16
      %v3276 = vrot.slane %v3274, 5
      %v3277 = vsel %vm1316, %v3272, %v3276
      %v3278 = vshrl.u32 %v3091, 16
      %v3280 = vrot.slane %v3278, 4
      %v3281 = vor.u32 %v3280, %v3276
      %v3282 = vrot.slane %v3281, 4
      %v3284 = vshll.u32 %v3092, 16
      %v3286 = vrot.slane %v3284, 5
      %v3287 = vsel %vm1316, %v3282, %v3286
      %v3289 = vshrl.u32 %v3093, 16
      %v3291 = vrot.slane %v3289, 4
      %v3292 = vshll.u32 %v3093, 16
      %v3294 = vrot.slane %v3292, 5
      %v3295 = vor.u32 %v3291, %v3294
      %v3296 = vrot.slane %v3295, 4
      %v3298 = vshll.u32 %v3094, 16
      %v3300 = vrot.slane %v3298, 5
      %v3301 = vsel %vm1316, %v3296, %v3300
      %v3302 = vshrl.u32 %v3094, 16
      %v3304 = vrot.slane %v3302, 4
      %v3305 = vor.u32 %v3304, %v3300
      %v3306 = vrot.slane %v3305, 4
      %v3308 = vshll.u32 %v3095, 16
      %v3310 = vrot.slane %v3308, 5
      %v3311 = vsel %vm1316, %v3306, %v3310
      %v3313 = vshrl.u32 %v3096, 16
      %v3315 = vrot.slane %v3313, 4
      %v3316 = vshll.u32 %v3096, 16
      %v3318 = vrot.slane %v3316, 5
      %v3319 = vor.u32 %v3315, %v3318
      %v3320 = vrot.slane %v3319, 4
      %v3322 = vshll.u32 %v3097, 16
      %v3324 = vrot.slane %v3322, 5
      %v3325 = vsel %vm1316, %v3320, %v3324
      %v3326 = vshrl.u32 %v3097, 16
      %v3328 = vrot.slane %v3326, 4
      %v3329 = vor.u32 %v3328, %v3324
      %v3330 = vrot.slane %v3329, 4
      %v3332 = vshll.u32 %v3098, 16
      %v3334 = vrot.slane %v3332, 5
      %v3335 = vsel %vm1316, %v3330, %v3334
      %v3337 = vshrl.u32 %v3099, 16
      %v3339 = vrot.slane %v3337, 4
      %v3340 = vshll.u32 %v3099, 16
      %v3342 = vrot.slane %v3340, 5
      %v3343 = vor.u32 %v3339, %v3342
      %v3344 = vrot.slane %v3343, 4
      %v3346 = vshll.u32 %v3100, 16
      %v3348 = vrot.slane %v3346, 5
      %v3349 = vsel %vm1316, %v3344, %v3348
      %v3350 = vshrl.u32 %v3100, 16
      %v3352 = vrot.slane %v3350, 4
      %v3353 = vor.u32 %v3352, %v3348
      %v3354 = vrot.slane %v3353, 4
      %v3356 = vshll.u32 %v3101, 16
      %v3358 = vrot.slane %v3356, 5
      %v3359 = vsel %vm1316, %v3354, %v3358
      %v3361 = vshrl.u32 %v3102, 16
      %v3363 = vrot.slane %v3361, 4
      %v3364 = vshll.u32 %v3102, 16
      %v3366 = vrot.slane %v3364, 5
      %v3367 = vor.u32 %v3363, %v3366
      %v3368 = vrot.slane %v3367, 4
      %v3370 = vshll.u32 %v3103, 16
      %v3372 = vrot.slane %v3370, 5
      %v3373 = vsel %vm1316, %v3368, %v3372
      %v3374 = vshrl.u32 %v3103, 16
      %v3376 = vrot.slane %v3374, 4
      %v3377 = vor.u32 %v3376, %v3372
      %v3378 = vrot.slane %v3377, 4
      %v3380 = vshll.u32 %v3104, 16
      %v3382 = vrot.slane %v3380, 5
      %v3383 = vsel %vm1316, %v3378, %v3382
      %v3385 = vshrl.u32 %v3105, 16
      %v3387 = vrot.slane %v3385, 4
      %v3388 = vshll.u32 %v3105, 16
      %v3390 = vrot.slane %v3388, 5
      %v3391 = vor.u32 %v3387, %v3390
      %v3392 = vrot.slane %v3391, 4
      %v3394 = vshll.u32 %v3106, 16
      %v3396 = vrot.slane %v3394, 5
      %v3397 = vsel %vm1316, %v3392, %v3396
      %v3398 = vshrl.u32 %v3106, 16
      %v3400 = vrot.slane %v3398, 4
      %v3401 = vor.u32 %v3400, %v3396
      %v3402 = vrot.slane %v3401, 4
      %v3404 = vshll.u32 %v3107, 16
      %v3406 = vrot.slane %v3404, 5
      %v3407 = vsel %vm1316, %v3402, %v3406
      %v3409 = vshrl.u32 %v3108, 16
      %v3411 = vrot.slane %v3409, 4
      %v3412 = vshll.u32 %v3108, 16
      %v3414 = vrot.slane %v3412, 5
      %v3415 = vor.u32 %v3411, %v3414
      %v3416 = vrot.slane %v3415, 4
      %v3418 = vshll.u32 %v3109, 16
      %v3420 = vrot.slane %v3418, 5
      %v3421 = vsel %vm1316, %v3416, %v3420
      %v3422 = vshrl.u32 %v3109, 16
      %v3424 = vrot.slane %v3422, 4
      %v3425 = vor.u32 %v3424, %v3420
      %v3426 = vrot.slane %v3425, 4
      %v3428 = vshll.u32 %v3110, 16
      %v3430 = vrot.slane %v3428, 5
      %v3431 = vsel %vm1316, %v3426, %v3430
      %v3433 = vshrl.u32 %v3111, 16
      %v3435 = vrot.slane %v3433, 4
      %v3436 = vshll.u32 %v3111, 16
      %v3438 = vrot.slane %v3436, 5
      %v3439 = vor.u32 %v3435, %v3438
      %v3440 = vrot.slane %v3439, 4
      %v3442 = vshll.u32 %v3112, 16
      %v3444 = vrot.slane %v3442, 5
      %v3445 = vsel %vm1316, %v3440, %v3444
      %v3446 = vshrl.u32 %v3112, 16
      %v3448 = vrot.slane %v3446, 4
      %v3449 = vor.u32 %v3448, %v3444
      %v3450 = vrot.slane %v3449, 4
      %v3452 = vshll.u32 %v3113, 16
      %v3454 = vrot.slane %v3452, 5
      %v3455 = vsel %vm1316, %v3450, %v3454
      %v3457 = vshrl.u32 %v3114, 16
      %v3459 = vrot.slane %v3457, 4
      %v3460 = vshll.u32 %v3114, 16
      %v3462 = vrot.slane %v3460, 5
      %v3463 = vor.u32 %v3459, %v3462
      %v3464 = vrot.slane %v3463, 4
      %v3466 = vshll.u32 %v3115, 16
      %v3468 = vrot.slane %v3466, 5
      %v3469 = vsel %vm1316, %v3464, %v3468
      %v3470 = vshrl.u32 %v3115, 16
      %v3472 = vrot.slane %v3470, 4
      %v3473 = vor.u32 %v3472, %v3468
      %v3474 = vrot.slane %v3473, 4
      %v3476 = vshll.u32 %v3116, 16
      %v3478 = vrot.slane %v3476, 5
      %v3479 = vsel %vm1316, %v3474, %v3478
      %v3481 = vshrl.u32 %v3117, 16
      %v3483 = vrot.slane %v3481, 4
      %v3484 = vshll.u32 %v3117, 16
      %v3486 = vrot.slane %v3484, 5
      %v3487 = vor.u32 %v3483, %v3486
      %v3488 = vrot.slane %v3487, 4
      %v3490 = vshll.u32 %v3118, 16
      %v3492 = vrot.slane %v3490, 5
      %v3493 = vsel %vm1316, %v3488, %v3492
      %v3494 = vshrl.u32 %v3118, 16
      %v3496 = vrot.slane %v3494, 4
      %v3497 = vor.u32 %v3496, %v3492
      %v3498 = vrot.slane %v3497, 4
      %v3500 = vshll.u32 %v3119, 16
      %v3502 = vrot.slane %v3500, 5
      %v3503 = vsel %vm1316, %v3498, %v3502
      %s3504 = scalar_lea.vmem %s2, 16
      %v3505 = vld [vmem:[%s3504] sm:$0xf]
      %v3506 = vunpack.c.l.b16 %v3133
      %v3507 = vunpack.c.l.b16 %v3143
      %v3508 = vunpack.c.l.b16 %v3157
      %v3509 = vunpack.c.l.b16 %v3167
      %v3510 = vunpack.c.l.b16 %v3181
      %v3511 = vunpack.c.l.b16 %v3191
      %v3512 = vunpack.c.l.b16 %v3205
      %v3513 = vunpack.c.l.b16 %v3215
      %v3514 = vunpack.c.l.b16 %v3229
      %v3515 = vunpack.c.l.b16 %v3239
      %v3516 = vunpack.c.l.b16 %v3253
      %v3517 = vunpack.c.l.b16 %v3263
      %v3518 = vunpack.c.l.b16 %v3277
      %v3519 = vunpack.c.l.b16 %v3287
      %v3520 = vunpack.c.l.b16 %v3301
      %v3521 = vunpack.c.l.b16 %v3311
      %v3522 = vunpack.c.l.b16 %v3325
      %v3523 = vunpack.c.l.b16 %v3335
      %v3524 = vunpack.c.l.b16 %v3349
      %v3525 = vunpack.c.l.b16 %v3359
      %v3526 = vunpack.c.l.b16 %v3373
      %v3527 = vunpack.c.l.b16 %v3383
      %v3528 = vunpack.c.l.b16 %v3397
      %v3529 = vunpack.c.l.b16 %v3407
      %v3530 = vunpack.c.l.b16 %v3421
      %v3531 = vunpack.c.l.b16 %v3431
      %v3532 = vunpack.c.l.b16 %v3445
      %v3533 = vunpack.c.l.b16 %v3455
      %v3534 = vunpack.c.l.b16 %v3469
      %v3535 = vunpack.c.l.b16 %v3479
      %v3536 = vunpack.c.l.b16 %v3493
      %v3537 = vunpack.c.l.b16 %v3503
      %v3538 = vpack.c.b16 %v3507, %v3506
      %v3539 = vpack.c.b16 %v3509, %v3508
      %v3540 = vpack.c.b16 %v3511, %v3510
      %v3541 = vpack.c.b16 %v3513, %v3512
      %v3542 = vpack.c.b16 %v3515, %v3514
      %v3543 = vpack.c.b16 %v3517, %v3516
      %v3544 = vpack.c.b16 %v3519, %v3518
      %v3545 = vpack.c.b16 %v3521, %v3520
      %v3546 = vpack.c.b16 %v3523, %v3522
      %v3547 = vpack.c.b16 %v3525, %v3524
      %v3548 = vpack.c.b16 %v3527, %v3526
      %v3549 = vpack.c.b16 %v3529, %v3528
      %v3550 = vpack.c.b16 %v3531, %v3530
      %v3551 = vpack.c.b16 %v3533, %v3532
      %v3552 = vpack.c.b16 %v3535, %v3534
      %v3553 = vpack.c.b16 %v3537, %v3536
      %v3555 = vsel %vm1751, %v3538, 0
      %v3558 = vsel %vm1751, %v3539, 0
      %v3561 = vsel %vm1751, %v3540, 0
      %v3564 = vsel %vm1751, %v3541, 0
      %v3567 = vsel %vm1751, %v3542, 0
      %v3570 = vsel %vm1751, %v3543, 0
      %v3573 = vsel %vm1751, %v3544, 0
      %v3576 = vsel %vm1751, %v3545, 0
      %v3579 = vsel %vm1751, %v3546, 0
      %v3582 = vsel %vm1751, %v3547, 0
      %v3585 = vsel %vm1751, %v3548, 0
      %v3588 = vsel %vm1751, %v3549, 0
      %v3591 = vsel %vm1751, %v3550, 0
      %v3594 = vsel %vm1751, %v3551, 0
      %v3597 = vsel %vm1751, %v3552, 0
      %v3600 = vsel %vm1751, %v3553, 0
      %v3603 = vsel %vm1800, %v3505, 0
      %3605 = vmatprep.subr.bf16.mxu0 0
      %3606 = vmatpush1.bf16.msra.mxu0 %v3603
      %3607 = vmatprep.subr.bf16.mxu0 0
      %3608 = vmatpush1.bf16.msra.mxu0 0
      %3609 = vmatprep.subr.bf16.mxu0 0
      %3610 = vmatpush1.bf16.msra.mxu0 0
      %3611 = vmatprep.subr.bf16.mxu0 0
      %3612 = vmatpush1.bf16.msra.mxu0 0
      %3613 = vmatprep.subr.bf16.mxu0 0
      %3614 = vmatpush1.bf16.msra.mxu0 0
      %3615 = vmatprep.subr.bf16.mxu0 0
      %3616 = vmatpush1.bf16.msra.mxu0 0
      %3617 = vmatprep.subr.bf16.mxu0 0
      %3618 = vmatpush1.bf16.msra.mxu0 0
      %3619 = vmatprep.subr.bf16.mxu0 0
      %3620 = vmatpush1.bf16.msra.mxu0 0
      %3621 = vmatprep.subr.bf16.mxu0 0
      %3622 = vmatpush1.bf16.msra.mxu0 0
      %3623 = vmatprep.subr.bf16.mxu0 0
      %3624 = vmatpush1.bf16.msra.mxu0 0
      %3625 = vmatprep.subr.bf16.mxu0 0
      %3626 = vmatpush1.bf16.msra.mxu0 0
      %3627 = vmatprep.subr.bf16.mxu0 0
      %3628 = vmatpush1.bf16.msra.mxu0 0
      %3629 = vmatprep.subr.bf16.mxu0 0
      %3630 = vmatpush1.bf16.msra.mxu0 0
      %3631 = vmatprep.subr.bf16.mxu0 0
      %3632 = vmatpush1.bf16.msra.mxu0 0
      %3633 = vmatprep.subr.bf16.mxu0 0
      %3634 = vmatpush1.bf16.msra.mxu0 0
      %3635 = vmatprep.subr.bf16.mxu0 0
      %3636 = vmatpush1.bf16.msra.mxu0 0
      %3637 = vmatprep.mubr.bf16.mxu0 0
      %3638 = vmatmul.mubr.bf16.gmra.mrb[0].mxu0 %v3555
      %v3639 = vpop.f32.mrb[0].mxu0
      %v3640 = vadd.f32 0.0, %v3639
      %v3641 = vpop.f32.mrb[0].mxu0
      %v3642 = vpop.f32.mrb[0].mxu0
      %v3643 = vadd.f32 0.0, %v3642
      %v3644 = vpop.f32.mrb[0].mxu0
      %3645 = vmatprep.mubr.bf16.mxu0 0
      %3646 = vmatmul.mubr.bf16.gmra.mrb[0].mxu0 %v3558
      %v3647 = vpop.f32.mrb[0].mxu0
      %v3648 = vadd.f32 0.0, %v3647
      %v3649 = vpop.f32.mrb[0].mxu0
      %v3650 = vpop.f32.mrb[0].mxu0
      %v3651 = vadd.f32 0.0, %v3650
      %v3652 = vpop.f32.mrb[0].mxu0
      %3653 = vmatprep.mubr.bf16.mxu0 0
      %3654 = vmatmul.mubr.bf16.gmra.mrb[0].mxu0 %v3561
      %v3655 = vpop.f32.mrb[0].mxu0
      %v3656 = vadd.f32 0.0, %v3655
      %v3657 = vpop.f32.mrb[0].mxu0
      %v3658 = vpop.f32.mrb[0].mxu0
      %v3659 = vadd.f32 0.0, %v3658
      %v3660 = vpop.f32.mrb[0].mxu0
      %3661 = vmatprep.mubr.bf16.mxu0 0
      %3662 = vmatmul.mubr.bf16.gmra.mrb[0].mxu0 %v3564
      %v3663 = vpop.f32.mrb[0].mxu0
      %v3664 = vadd.f32 0.0, %v3663
      %v3665 = vpop.f32.mrb[0].mxu0
      %v3666 = vpop.f32.mrb[0].mxu0
      %v3667 = vadd.f32 0.0, %v3666
      %v3668 = vpop.f32.mrb[0].mxu0
      %3669 = vmatprep.mubr.bf16.mxu0 0
      %3670 = vmatmul.mubr.bf16.gmra.mrb[0].mxu0 %v3567
      %v3671 = vpop.f32.mrb[0].mxu0
      %v3672 = vadd.f32 0.0, %v3671
      %v3673 = vpop.f32.mrb[0].mxu0
      %v3674 = vpop.f32.mrb[0].mxu0
      %v3675 = vadd.f32 0.0, %v3674
      %v3676 = vpop.f32.mrb[0].mxu0
      %3677 = vmatprep.mubr.bf16.mxu0 0
      %3678 = vmatmul.mubr.bf16.gmra.mrb[0].mxu0 %v3570
      %v3679 = vpop.f32.mrb[0].mxu0
      %v3680 = vadd.f32 0.0, %v3679
      %v3681 = vpop.f32.mrb[0].mxu0
      %v3682 = vpop.f32.mrb[0].mxu0
      %v3683 = vadd.f32 0.0, %v3682
      %v3684 = vpop.f32.mrb[0].mxu0
      %3685 = vmatprep.mubr.bf16.mxu0 0
      %3686 = vmatmul.mubr.bf16.gmra.mrb[0].mxu0 %v3573
      %v3687 = vpop.f32.mrb[0].mxu0
      %v3688 = vadd.f32 0.0, %v3687
      %v3689 = vpop.f32.mrb[0].mxu0
      %v3690 = vpop.f32.mrb[0].mxu0
      %v3691 = vadd.f32 0.0, %v3690
      %v3692 = vpop.f32.mrb[0].mxu0
      %3693 = vmatprep.mubr.bf16.mxu0 0
      %3694 = vmatmul.mubr.bf16.gmra.mrb[0].mxu0 %v3576
      %v3695 = vpop.f32.mrb[0].mxu0
      %v3696 = vadd.f32 0.0, %v3695
      %v3697 = vpop.f32.mrb[0].mxu0
      %v3698 = vpop.f32.mrb[0].mxu0
      %v3699 = vadd.f32 0.0, %v3698
      %v3700 = vpop.f32.mrb[0].mxu0
      %3701 = vmatprep.mubr.bf16.mxu0 0
      %3702 = vmatmul.mubr.bf16.gmra.mrb[0].mxu0 %v3579
      %v3703 = vpop.f32.mrb[0].mxu0
      %v3704 = vadd.f32 0.0, %v3703
      %v3705 = vpop.f32.mrb[0].mxu0
      %v3706 = vpop.f32.mrb[0].mxu0
      %v3707 = vadd.f32 0.0, %v3706
      %v3708 = vpop.f32.mrb[0].mxu0
      %3709 = vmatprep.mubr.bf16.mxu0 0
      %3710 = vmatmul.mubr.bf16.gmra.mrb[0].mxu0 %v3582
      %v3711 = vpop.f32.mrb[0].mxu0
      %v3712 = vadd.f32 0.0, %v3711
      %v3713 = vpop.f32.mrb[0].mxu0
      %v3714 = vpop.f32.mrb[0].mxu0
      %v3715 = vadd.f32 0.0, %v3714
      %v3716 = vpop.f32.mrb[0].mxu0
      %3717 = vmatprep.mubr.bf16.mxu0 0
      %3718 = vmatmul.mubr.bf16.gmra.mrb[0].mxu0 %v3585
      %v3719 = vpop.f32.mrb[0].mxu0
      %v3720 = vadd.f32 0.0, %v3719
      %v3721 = vpop.f32.mrb[0].mxu0
      %v3722 = vpop.f32.mrb[0].mxu0
      %v3723 = vadd.f32 0.0, %v3722
      %v3724 = vpop.f32.mrb[0].mxu0
      %3725 = vmatprep.mubr.bf16.mxu0 0
      %3726 = vmatmul.mubr.bf16.gmra.mrb[0].mxu0 %v3588
      %v3727 = vpop.f32.mrb[0].mxu0
      %v3728 = vadd.f32 0.0, %v3727
      %v3729 = vpop.f32.mrb[0].mxu0
      %v3730 = vpop.f32.mrb[0].mxu0
      %v3731 = vadd.f32 0.0, %v3730
      %v3732 = vpop.f32.mrb[0].mxu0
      %3733 = vmatprep.mubr.bf16.mxu0 0
      %3734 = vmatmul.mubr.bf16.gmra.mrb[0].mxu0 %v3591
      %v3735 = vpop.f32.mrb[0].mxu0
      %v3736 = vadd.f32 0.0, %v3735
      %v3737 = vpop.f32.mrb[0].mxu0
      %v3738 = vpop.f32.mrb[0].mxu0
      %v3739 = vadd.f32 0.0, %v3738
      %v3740 = vpop.f32.mrb[0].mxu0
      %3741 = vmatprep.mubr.bf16.mxu0 0
      %3742 = vmatmul.mubr.bf16.gmra.mrb[0].mxu0 %v3594
      %v3743 = vpop.f32.mrb[0].mxu0
      %v3744 = vadd.f32 0.0, %v3743
      %v3745 = vpop.f32.mrb[0].mxu0
      %v3746 = vpop.f32.mrb[0].mxu0
      %v3747 = vadd.f32 0.0, %v3746
      %v3748 = vpop.f32.mrb[0].mxu0
      %3749 = vmatprep.mubr.bf16.mxu0 0
      %3750 = vmatmul.mubr.bf16.gmra.mrb[0].mxu0 %v3597
      %v3751 = vpop.f32.mrb[0].mxu0
      %v3752 = vadd.f32 0.0, %v3751
      %v3753 = vpop.f32.mrb[0].mxu0
      %v3754 = vpop.f32.mrb[0].mxu0
      %v3755 = vadd.f32 0.0, %v3754
      %v3756 = vpop.f32.mrb[0].mxu0
      %3757 = vmatprep.mubr.bf16.mxu0 0
      %3758 = vmatmul.mubr.bf16.gmra.mrb[0].mxu0 %v3600
      %v3759 = vpop.f32.mrb[0].mxu0
      %v3760 = vadd.f32 0.0, %v3759
      %v3761 = vpop.f32.mrb[0].mxu0
      %v3762 = vpop.f32.mrb[0].mxu0
      %v3763 = vadd.f32 0.0, %v3762
      %v3764 = vpop.f32.mrb[0].mxu0
      %3765 = vdwg.mxu0
      %v3766 = vadd.f32 %v3040, %v3640
      %v3767 = vadd.f32 %v3041, %v3643
      %v3768 = vadd.f32 %v3042, %v3648
      %v3769 = vadd.f32 %v3043, %v3651
      %v3770 = vadd.f32 %v3044, %v3656
      %v3771 = vadd.f32 %v3045, %v3659
      %v3772 = vadd.f32 %v3046, %v3664
      %v3773 = vadd.f32 %v3047, %v3667
      %v3774 = vadd.f32 %v3048, %v3672
      %v3775 = vadd.f32 %v3049, %v3675
      %v3776 = vadd.f32 %v3050, %v3680
      %v3777 = vadd.f32 %v3051, %v3683
      %v3778 = vadd.f32 %v3052, %v3688
      %v3779 = vadd.f32 %v3053, %v3691
      %v3780 = vadd.f32 %v3054, %v3696
      %v3781 = vadd.f32 %v3055, %v3699
      %v3782 = vadd.f32 %v3056, %v3704
      %v3783 = vadd.f32 %v3057, %v3707
      %v3784 = vadd.f32 %v3058, %v3712
      %v3785 = vadd.f32 %v3059, %v3715
      %v3786 = vadd.f32 %v3060, %v3720
      %v3787 = vadd.f32 %v3061, %v3723
      %v3788 = vadd.f32 %v3062, %v3728
      %v3789 = vadd.f32 %v3063, %v3731
      %v3790 = vadd.f32 %v3064, %v3736
      %v3791 = vadd.f32 %v3065, %v3739
      %v3792 = vadd.f32 %v3066, %v3744
      %v3793 = vadd.f32 %v3067, %v3747
      %v3794 = vadd.f32 %v3068, %v3752
      %v3795 = vadd.f32 %v3069, %v3755
      %v3796 = vadd.f32 %v3070, %v3760
      %v3797 = vadd.f32 %v3071, %v3763
      %v3798 = vld [vmem:[%s1147] sm:$0xe]
      %v3799 = vld [vmem:[%s1147 + $0xc] sm:$0xe]
      %v3800 = vld [vmem:[%s1147 + $0x18] sm:$0xe]
      %v3801 = vld [vmem:[%s1147 + $0x24] sm:$0xe]
      %v3802 = vld [vmem:[%s1147 + $0x30] sm:$0xe]
      %v3803 = vld [vmem:[%s1147 + $0x3c] sm:$0xe]
      %v3804 = vld [vmem:[%s1147 + $0x48] sm:$0xe]
      %v3805 = vld [vmem:[%s1147 + $0x54] sm:$0xe]
      %v3806 = vld [vmem:[%s1147 + $0x60] sm:$0xe]
      %v3807 = vld [vmem:[%s1147 + $0x6c] sm:$0xe]
      %v3808 = vld [vmem:[%s1147 + $0x78] sm:$0xe]
      %v3809 = vld [vmem:[%s1147 + $0x84] sm:$0xe]
      %v3810 = vld [vmem:[%s1147 + $0x90] sm:$0xe]
      %v3811 = vld [vmem:[%s1147 + $0x9c] sm:$0xe]
      %v3812 = vld [vmem:[%s1147 + $0xa8] sm:$0xe]
      %v3813 = vld [vmem:[%s1147 + $0xb4] sm:$0xe]
      %v3862 = vrot.slane %v3798, 5
      %v3863 = vrot.slane %v3862, 4
      %v3864 = vrot.slane %v3073, 5
      %v3865 = vsel %vm2307, %v3863, %v3864
      %v3866 = vrot.slane %v3864, 4
      %v3867 = vrot.slane %v3074, 5
      %v3868 = vsel %vm2307, %v3866, %v3867
      %v3869 = vrot.slane %v3799, 5
      %v3870 = vrot.slane %v3869, 4
      %v3871 = vrot.slane %v3076, 5
      %v3872 = vsel %vm2307, %v3870, %v3871
      %v3873 = vrot.slane %v3871, 4
      %v3874 = vrot.slane %v3077, 5
      %v3875 = vsel %vm2307, %v3873, %v3874
      %v3876 = vrot.slane %v3800, 5
      %v3877 = vrot.slane %v3876, 4
      %v3878 = vrot.slane %v3079, 5
      %v3879 = vsel %vm2307, %v3877, %v3878
      %v3880 = vrot.slane %v3878, 4
      %v3881 = vrot.slane %v3080, 5
      %v3882 = vsel %vm2307, %v3880, %v3881
      %v3883 = vrot.slane %v3801, 5
      %v3884 = vrot.slane %v3883, 4
      %v3885 = vrot.slane %v3082, 5
      %v3886 = vsel %vm2307, %v3884, %v3885
      %v3887 = vrot.slane %v3885, 4
      %v3888 = vrot.slane %v3083, 5
      %v3889 = vsel %vm2307, %v3887, %v3888
      %v3890 = vrot.slane %v3802, 5
      %v3891 = vrot.slane %v3890, 4
      %v3892 = vrot.slane %v3085, 5
      %v3893 = vsel %vm2307, %v3891, %v3892
      %v3894 = vrot.slane %v3892, 4
      %v3895 = vrot.slane %v3086, 5
      %v3896 = vsel %vm2307, %v3894, %v3895
      %v3897 = vrot.slane %v3803, 5
      %v3898 = vrot.slane %v3897, 4
      %v3899 = vrot.slane %v3088, 5
      %v3900 = vsel %vm2307, %v3898, %v3899
      %v3901 = vrot.slane %v3899, 4
      %v3902 = vrot.slane %v3089, 5
      %v3903 = vsel %vm2307, %v3901, %v3902
      %v3904 = vrot.slane %v3804, 5
      %v3905 = vrot.slane %v3904, 4
      %v3906 = vrot.slane %v3091, 5
      %v3907 = vsel %vm2307, %v3905, %v3906
      %v3908 = vrot.slane %v3906, 4
      %v3909 = vrot.slane %v3092, 5
      %v3910 = vsel %vm2307, %v3908, %v3909
      %v3911 = vrot.slane %v3805, 5
      %v3912 = vrot.slane %v3911, 4
      %v3913 = vrot.slane %v3094, 5
      %v3914 = vsel %vm2307, %v3912, %v3913
      %v3915 = vrot.slane %v3913, 4
      %v3916 = vrot.slane %v3095, 5
      %v3917 = vsel %vm2307, %v3915, %v3916
      %v3918 = vrot.slane %v3806, 5
      %v3919 = vrot.slane %v3918, 4
      %v3920 = vrot.slane %v3097, 5
      %v3921 = vsel %vm2307, %v3919, %v3920
      %v3922 = vrot.slane %v3920, 4
      %v3923 = vrot.slane %v3098, 5
      %v3924 = vsel %vm2307, %v3922, %v3923
      %v3925 = vrot.slane %v3807, 5
      %v3926 = vrot.slane %v3925, 4
      %v3927 = vrot.slane %v3100, 5
      %v3928 = vsel %vm2307, %v3926, %v3927
      %v3929 = vrot.slane %v3927, 4
      %v3930 = vrot.slane %v3101, 5
      %v3931 = vsel %vm2307, %v3929, %v3930
      %v3932 = vrot.slane %v3808, 5
      %v3933 = vrot.slane %v3932, 4
      %v3934 = vrot.slane %v3103, 5
      %v3935 = vsel %vm2307, %v3933, %v3934
      %v3936 = vrot.slane %v3934, 4
      %v3937 = vrot.slane %v3104, 5
      %v3938 = vsel %vm2307, %v3936, %v3937
      %v3939 = vrot.slane %v3809, 5
      %v3940 = vrot.slane %v3939, 4
      %v3941 = vrot.slane %v3106, 5
      %v3942 = vsel %vm2307, %v3940, %v3941
      %v3943 = vrot.slane %v3941, 4
      %v3944 = vrot.slane %v3107, 5
      %v3945 = vsel %vm2307, %v3943, %v3944
      %v3946 = vrot.slane %v3810, 5
      %v3947 = vrot.slane %v3946, 4
      %v3948 = vrot.slane %v3109, 5
      %v3949 = vsel %vm2307, %v3947, %v3948
      %v3950 = vrot.slane %v3948, 4
      %v3951 = vrot.slane %v3110, 5
      %v3952 = vsel %vm2307, %v3950, %v3951
      %v3953 = vrot.slane %v3811, 5
      %v3954 = vrot.slane %v3953, 4
      %v3955 = vrot.slane %v3112, 5
      %v3956 = vsel %vm2307, %v3954, %v3955
      %v3957 = vrot.slane %v3955, 4
      %v3958 = vrot.slane %v3113, 5
      %v3959 = vsel %vm2307, %v3957, %v3958
      %v3960 = vrot.slane %v3812, 5
      %v3961 = vrot.slane %v3960, 4
      %v3962 = vrot.slane %v3115, 5
      %v3963 = vsel %vm2307, %v3961, %v3962
      %v3964 = vrot.slane %v3962, 4
      %v3965 = vrot.slane %v3116, 5
      %v3966 = vsel %vm2307, %v3964, %v3965
      %v3967 = vrot.slane %v3813, 5
      %v3968 = vrot.slane %v3967, 4
      %v3969 = vrot.slane %v3118, 5
      %v3970 = vsel %vm2307, %v3968, %v3969
      %v3971 = vrot.slane %v3969, 4
      %v3972 = vrot.slane %v3119, 5
      %v3973 = vsel %vm2307, %v3971, %v3972
      %s3974 = scalar_lea.vmem %s2, 20
      %v3975 = vld [vmem:[%s3974] sm:$0xf]
      %v3976 = vunpack.c.l.b16 %v3865
      %v3977 = vunpack.c.l.b16 %v3868
      %v3978 = vunpack.c.l.b16 %v3872
      %v3979 = vunpack.c.l.b16 %v3875
      %v3980 = vunpack.c.l.b16 %v3879
      %v3981 = vunpack.c.l.b16 %v3882
      %v3982 = vunpack.c.l.b16 %v3886
      %v3983 = vunpack.c.l.b16 %v3889
      %v3984 = vunpack.c.l.b16 %v3893
      %v3985 = vunpack.c.l.b16 %v3896
      %v3986 = vunpack.c.l.b16 %v3900
      %v3987 = vunpack.c.l.b16 %v3903
      %v3988 = vunpack.c.l.b16 %v3907
      %v3989 = vunpack.c.l.b16 %v3910
      %v3990 = vunpack.c.l.b16 %v3914
      %v3991 = vunpack.c.l.b16 %v3917
      %v3992 = vunpack.c.l.b16 %v3921
      %v3993 = vunpack.c.l.b16 %v3924
      %v3994 = vunpack.c.l.b16 %v3928
      %v3995 = vunpack.c.l.b16 %v3931
      %v3996 = vunpack.c.l.b16 %v3935
      %v3997 = vunpack.c.l.b16 %v3938
      %v3998 = vunpack.c.l.b16 %v3942
      %v3999 = vunpack.c.l.b16 %v3945
      %v4000 = vunpack.c.l.b16 %v3949
      %v4001 = vunpack.c.l.b16 %v3952
      %v4002 = vunpack.c.l.b16 %v3956
      %v4003 = vunpack.c.l.b16 %v3959
      %v4004 = vunpack.c.l.b16 %v3963
      %v4005 = vunpack.c.l.b16 %v3966
      %v4006 = vunpack.c.l.b16 %v3970
      %v4007 = vunpack.c.l.b16 %v3973
      %v4008 = vpack.c.b16 %v3977, %v3976
      %v4009 = vpack.c.b16 %v3979, %v3978
      %v4010 = vpack.c.b16 %v3981, %v3980
      %v4011 = vpack.c.b16 %v3983, %v3982
      %v4012 = vpack.c.b16 %v3985, %v3984
      %v4013 = vpack.c.b16 %v3987, %v3986
      %v4014 = vpack.c.b16 %v3989, %v3988
      %v4015 = vpack.c.b16 %v3991, %v3990
      %v4016 = vpack.c.b16 %v3993, %v3992
      %v4017 = vpack.c.b16 %v3995, %v3994
      %v4018 = vpack.c.b16 %v3997, %v3996
      %v4019 = vpack.c.b16 %v3999, %v3998
      %v4020 = vpack.c.b16 %v4001, %v4000
      %v4021 = vpack.c.b16 %v4003, %v4002
      %v4022 = vpack.c.b16 %v4005, %v4004
      %v4023 = vpack.c.b16 %v4007, %v4006
      %v4025 = vsel %vm1751, %v4008, 0
      %v4028 = vsel %vm1751, %v4009, 0
      %v4031 = vsel %vm1751, %v4010, 0
      %v4034 = vsel %vm1751, %v4011, 0
      %v4037 = vsel %vm1751, %v4012, 0
      %v4040 = vsel %vm1751, %v4013, 0
      %v4043 = vsel %vm1751, %v4014, 0
      %v4046 = vsel %vm1751, %v4015, 0
      %v4049 = vsel %vm1751, %v4016, 0
      %v4052 = vsel %vm1751, %v4017, 0
      %v4055 = vsel %vm1751, %v4018, 0
      %v4058 = vsel %vm1751, %v4019, 0
      %v4061 = vsel %vm1751, %v4020, 0
      %v4064 = vsel %vm1751, %v4021, 0
      %v4067 = vsel %vm1751, %v4022, 0
      %v4070 = vsel %vm1751, %v4023, 0
      %v4073 = vsel %vm1800, %v3975, 0
      %4075 = vmatprep.subr.bf16.mxu0 0
      %4076 = vmatpush1.bf16.msra.mxu0 %v4073
      %4077 = vmatprep.subr.bf16.mxu0 0
      %4078 = vmatpush1.bf16.msra.mxu0 0
      %4079 = vmatprep.subr.bf16.mxu0 0
      %4080 = vmatpush1.bf16.msra.mxu0 0
      %4081 = vmatprep.subr.bf16.mxu0 0
      %4082 = vmatpush1.bf16.msra.mxu0 0
      %4083 = vmatprep.subr.bf16.mxu0 0
      %4084 = vmatpush1.bf16.msra.mxu0 0
      %4085 = vmatprep.subr.bf16.mxu0 0
      %4086 = vmatpush1.bf16.msra.mxu0 0
      %4087 = vmatprep.subr.bf16.mxu0 0
      %4088 = vmatpush1.bf16.msra.mxu0 0
      %4089 = vmatprep.subr.bf16.mxu0 0
      %4090 = vmatpush1.bf16.msra.mxu0 0
      %4091 = vmatprep.subr.bf16.mxu0 0
      %4092 = vmatpush1.bf16.msra.mxu0 0
      %4093 = vmatprep.subr.bf16.mxu0 0
      %4094 = vmatpush1.bf16.msra.mxu0 0
      %4095 = vmatprep.subr.bf16.mxu0 0
      %4096 = vmatpush1.bf16.msra.mxu0 0
      %4097 = vmatprep.subr.bf16.mxu0 0
      %4098 = vmatpush1.bf16.msra.mxu0 0
      %4099 = vmatprep.subr.bf16.mxu0 0
      %4100 = vmatpush1.bf16.msra.mxu0 0
      %4101 = vmatprep.subr.bf16.mxu0 0
      %4102 = vmatpush1.bf16.msra.mxu0 0
      %4103 = vmatprep.subr.bf16.mxu0 0
      %4104 = vmatpush1.bf16.msra.mxu0 0
      %4105 = vmatprep.subr.bf16.mxu0 0
      %4106 = vmatpush1.bf16.msra.mxu0 0
      %4107 = vmatprep.mubr.bf16.mxu0 0
      %4108 = vmatmul.mubr.bf16.gmra.mrb[0].mxu0 %v4025
      %v4109 = vpop.f32.mrb[0].mxu0
      %v4110 = vadd.f32 0.0, %v4109
      %v4111 = vpop.f32.mrb[0].mxu0
      %v4112 = vpop.f32.mrb[0].mxu0
      %v4113 = vadd.f32 0.0, %v4112
      %v4114 = vpop.f32.mrb[0].mxu0
      %4115 = vmatprep.mubr.bf16.mxu0 0
      %4116 = vmatmul.mubr.bf16.gmra.mrb[0].mxu0 %v4028
      %v4117 = vpop.f32.mrb[0].mxu0
      %v4118 = vadd.f32 0.0, %v4117
      %v4119 = vpop.f32.mrb[0].mxu0
      %v4120 = vpop.f32.mrb[0].mxu0
      %v4121 = vadd.f32 0.0, %v4120
      %v4122 = vpop.f32.mrb[0].mxu0
      %4123 = vmatprep.mubr.bf16.mxu0 0
      %4124 = vmatmul.mubr.bf16.gmra.mrb[0].mxu0 %v4031
      %v4125 = vpop.f32.mrb[0].mxu0
      %v4126 = vadd.f32 0.0, %v4125
      %v4127 = vpop.f32.mrb[0].mxu0
      %v4128 = vpop.f32.mrb[0].mxu0
      %v4129 = vadd.f32 0.0, %v4128
      %v4130 = vpop.f32.mrb[0].mxu0
      %4131 = vmatprep.mubr.bf16.mxu0 0
      %4132 = vmatmul.mubr.bf16.gmra.mrb[0].mxu0 %v4034
      %v4133 = vpop.f32.mrb[0].mxu0
      %v4134 = vadd.f32 0.0, %v4133
      %v4135 = vpop.f32.mrb[0].mxu0
      %v4136 = vpop.f32.mrb[0].mxu0
      %v4137 = vadd.f32 0.0, %v4136
      %v4138 = vpop.f32.mrb[0].mxu0
      %4139 = vmatprep.mubr.bf16.mxu0 0
      %4140 = vmatmul.mubr.bf16.gmra.mrb[0].mxu0 %v4037
      %v4141 = vpop.f32.mrb[0].mxu0
      %v4142 = vadd.f32 0.0, %v4141
      %v4143 = vpop.f32.mrb[0].mxu0
      %v4144 = vpop.f32.mrb[0].mxu0
      %v4145 = vadd.f32 0.0, %v4144
      %v4146 = vpop.f32.mrb[0].mxu0
      %4147 = vmatprep.mubr.bf16.mxu0 0
      %4148 = vmatmul.mubr.bf16.gmra.mrb[0].mxu0 %v4040
      %v4149 = vpop.f32.mrb[0].mxu0
      %v4150 = vadd.f32 0.0, %v4149
      %v4151 = vpop.f32.mrb[0].mxu0
      %v4152 = vpop.f32.mrb[0].mxu0
      %v4153 = vadd.f32 0.0, %v4152
      %v4154 = vpop.f32.mrb[0].mxu0
      %4155 = vmatprep.mubr.bf16.mxu0 0
      %4156 = vmatmul.mubr.bf16.gmra.mrb[0].mxu0 %v4043
      %v4157 = vpop.f32.mrb[0].mxu0
      %v4158 = vadd.f32 0.0, %v4157
      %v4159 = vpop.f32.mrb[0].mxu0
      %v4160 = vpop.f32.mrb[0].mxu0
      %v4161 = vadd.f32 0.0, %v4160
      %v4162 = vpop.f32.mrb[0].mxu0
      %4163 = vmatprep.mubr.bf16.mxu0 0
      %4164 = vmatmul.mubr.bf16.gmra.mrb[0].mxu0 %v4046
      %v4165 = vpop.f32.mrb[0].mxu0
      %v4166 = vadd.f32 0.0, %v4165
      %v4167 = vpop.f32.mrb[0].mxu0
      %v4168 = vpop.f32.mrb[0].mxu0
      %v4169 = vadd.f32 0.0, %v4168
      %v4170 = vpop.f32.mrb[0].mxu0
      %4171 = vmatprep.mubr.bf16.mxu0 0
      %4172 = vmatmul.mubr.bf16.gmra.mrb[0].mxu0 %v4049
      %v4173 = vpop.f32.mrb[0].mxu0
      %v4174 = vadd.f32 0.0, %v4173
      %v4175 = vpop.f32.mrb[0].mxu0
      %v4176 = vpop.f32.mrb[0].mxu0
      %v4177 = vadd.f32 0.0, %v4176
      %v4178 = vpop.f32.mrb[0].mxu0
      %4179 = vmatprep.mubr.bf16.mxu0 0
      %4180 = vmatmul.mubr.bf16.gmra.mrb[0].mxu0 %v4052
      %v4181 = vpop.f32.mrb[0].mxu0
      %v4182 = vadd.f32 0.0, %v4181
      %v4183 = vpop.f32.mrb[0].mxu0
      %v4184 = vpop.f32.mrb[0].mxu0
      %v4185 = vadd.f32 0.0, %v4184
      %v4186 = vpop.f32.mrb[0].mxu0
      %4187 = vmatprep.mubr.bf16.mxu0 0
      %4188 = vmatmul.mubr.bf16.gmra.mrb[0].mxu0 %v4055
      %v4189 = vpop.f32.mrb[0].mxu0
      %v4190 = vadd.f32 0.0, %v4189
      %v4191 = vpop.f32.mrb[0].mxu0
      %v4192 = vpop.f32.mrb[0].mxu0
      %v4193 = vadd.f32 0.0, %v4192
      %v4194 = vpop.f32.mrb[0].mxu0
      %4195 = vmatprep.mubr.bf16.mxu0 0
      %4196 = vmatmul.mubr.bf16.gmra.mrb[0].mxu0 %v4058
      %v4197 = vpop.f32.mrb[0].mxu0
      %v4198 = vadd.f32 0.0, %v4197
      %v4199 = vpop.f32.mrb[0].mxu0
      %v4200 = vpop.f32.mrb[0].mxu0
      %v4201 = vadd.f32 0.0, %v4200
      %v4202 = vpop.f32.mrb[0].mxu0
      %4203 = vmatprep.mubr.bf16.mxu0 0
      %4204 = vmatmul.mubr.bf16.gmra.mrb[0].mxu0 %v4061
      %v4205 = vpop.f32.mrb[0].mxu0
      %v4206 = vadd.f32 0.0, %v4205
      %v4207 = vpop.f32.mrb[0].mxu0
      %v4208 = vpop.f32.mrb[0].mxu0
      %v4209 = vadd.f32 0.0, %v4208
      %v4210 = vpop.f32.mrb[0].mxu0
      %4211 = vmatprep.mubr.bf16.mxu0 0
      %4212 = vmatmul.mubr.bf16.gmra.mrb[0].mxu0 %v4064
      %v4213 = vpop.f32.mrb[0].mxu0
      %v4214 = vadd.f32 0.0, %v4213
      %v4215 = vpop.f32.mrb[0].mxu0
      %v4216 = vpop.f32.mrb[0].mxu0
      %v4217 = vadd.f32 0.0, %v4216
      %v4218 = vpop.f32.mrb[0].mxu0
      %4219 = vmatprep.mubr.bf16.mxu0 0
      %4220 = vmatmul.mubr.bf16.gmra.mrb[0].mxu0 %v4067
      %v4221 = vpop.f32.mrb[0].mxu0
      %v4222 = vadd.f32 0.0, %v4221
      %v4223 = vpop.f32.mrb[0].mxu0
      %v4224 = vpop.f32.mrb[0].mxu0
      %v4225 = vadd.f32 0.0, %v4224
      %v4226 = vpop.f32.mrb[0].mxu0
      %4227 = vmatprep.mubr.bf16.mxu0 0
      %4228 = vmatmul.mubr.bf16.gmra.mrb[0].mxu0 %v4070
      %v4229 = vpop.f32.mrb[0].mxu0
      %v4230 = vadd.f32 0.0, %v4229
      %v4231 = vpop.f32.mrb[0].mxu0
      %v4232 = vpop.f32.mrb[0].mxu0
      %v4233 = vadd.f32 0.0, %v4232
      %v4234 = vpop.f32.mrb[0].mxu0
      %4235 = vdwg.mxu0
      %v4236 = vadd.f32 %v3766, %v4110
      %v4237 = vadd.f32 %v3767, %v4113
      %v4238 = vadd.f32 %v3768, %v4118
      %v4239 = vadd.f32 %v3769, %v4121
      %v4240 = vadd.f32 %v3770, %v4126
      %v4241 = vadd.f32 %v3771, %v4129
      %v4242 = vadd.f32 %v3772, %v4134
      %v4243 = vadd.f32 %v3773, %v4137
      %v4244 = vadd.f32 %v3774, %v4142
      %v4245 = vadd.f32 %v3775, %v4145
      %v4246 = vadd.f32 %v3776, %v4150
      %v4247 = vadd.f32 %v3777, %v4153
      %v4248 = vadd.f32 %v3778, %v4158
      %v4249 = vadd.f32 %v3779, %v4161
      %v4250 = vadd.f32 %v3780, %v4166
      %v4251 = vadd.f32 %v3781, %v4169
      %v4252 = vadd.f32 %v3782, %v4174
      %v4253 = vadd.f32 %v3783, %v4177
      %v4254 = vadd.f32 %v3784, %v4182
      %v4255 = vadd.f32 %v3785, %v4185
      %v4256 = vadd.f32 %v3786, %v4190
      %v4257 = vadd.f32 %v3787, %v4193
      %v4258 = vadd.f32 %v3788, %v4198
      %v4259 = vadd.f32 %v3789, %v4201
      %v4260 = vadd.f32 %v3790, %v4206
      %v4261 = vadd.f32 %v3791, %v4209
      %v4262 = vadd.f32 %v3792, %v4214
      %v4263 = vadd.f32 %v3793, %v4217
      %v4264 = vadd.f32 %v3794, %v4222
      %v4265 = vadd.f32 %v3795, %v4225
      %v4266 = vadd.f32 %v3796, %v4230
      %v4267 = vadd.f32 %v3797, %v4233
      %s4268 = scalar_lea.vmem [#allocation2], 24
      %v4269 = vld [vmem:[%s4268] sm:$0xf]
      %v4270 = vld [vmem:[%s4268 + $0x4] sm:$0xf]
      %v4271 = vld [vmem:[%s4268 + $0xc] sm:$0xf]
      %v4272 = vld [vmem:[%s4268 + $0x10] sm:$0xf]
      %v4273 = vld [vmem:[%s4268 + $0x18] sm:$0xf]
      %v4274 = vld [vmem:[%s4268 + $0x1c] sm:$0xf]
      %v4275 = vld [vmem:[%s4268 + $0x24] sm:$0xf]
      %v4276 = vld [vmem:[%s4268 + $0x28] sm:$0xf]
      %v4277 = vld [vmem:[%s4268 + $0x30] sm:$0xf]
      %v4278 = vld [vmem:[%s4268 + $0x34] sm:$0xf]
      %v4279 = vld [vmem:[%s4268 + $0x3c] sm:$0xf]
      %v4280 = vld [vmem:[%s4268 + $0x40] sm:$0xf]
      %v4281 = vld [vmem:[%s4268 + $0x48] sm:$0xf]
      %v4282 = vld [vmem:[%s4268 + $0x4c] sm:$0xf]
      %v4283 = vld [vmem:[%s4268 + $0x54] sm:$0xf]
      %v4284 = vld [vmem:[%s4268 + $0x58] sm:$0xf]
      %v4285 = vld [vmem:[%s4268 + $0x60] sm:$0xf]
      %v4286 = vld [vmem:[%s4268 + $0x64] sm:$0xf]
      %v4287 = vld [vmem:[%s4268 + $0x6c] sm:$0xf]
      %v4288 = vld [vmem:[%s4268 + $0x70] sm:$0xf]
      %v4289 = vld [vmem:[%s4268 + $0x78] sm:$0xf]
      %v4290 = vld [vmem:[%s4268 + $0x7c] sm:$0xf]
      %v4291 = vld [vmem:[%s4268 + $0x84] sm:$0xf]
      %v4292 = vld [vmem:[%s4268 + $0x88] sm:$0xf]
      %v4293 = vld [vmem:[%s4268 + $0x90] sm:$0xf]
      %v4294 = vld [vmem:[%s4268 + $0x94] sm:$0xf]
      %v4295 = vld [vmem:[%s4268 + $0x9c] sm:$0xf]
      %v4296 = vld [vmem:[%s4268 + $0xa0] sm:$0xf]
      %v4297 = vld [vmem:[%s4268 + $0xa8] sm:$0xf]
      %v4298 = vld [vmem:[%s4268 + $0xac] sm:$0xf]
      %v4299 = vld [vmem:[%s4268 + $0xb4] sm:$0xf]
      %v4300 = vld [vmem:[%s4268 + $0xb8] sm:$0xf]
      %s4301 = scalar_lea.vmem %s2, 24
      %v4302 = vld [vmem:[%s4301] sm:$0xf]
      %v4335 = vunpack.c.l.b16 %v4269
      %v4336 = vunpack.c.l.b16 %v4270
      %v4337 = vunpack.c.l.b16 %v4271
      %v4338 = vunpack.c.l.b16 %v4272
      %v4339 = vunpack.c.l.b16 %v4273
      %v4340 = vunpack.c.l.b16 %v4274
      %v4341 = vunpack.c.l.b16 %v4275
      %v4342 = vunpack.c.l.b16 %v4276
      %v4343 = vunpack.c.l.b16 %v4277
      %v4344 = vunpack.c.l.b16 %v4278
      %v4345 = vunpack.c.l.b16 %v4279
      %v4346 = vunpack.c.l.b16 %v4280
      %v4347 = vunpack.c.l.b16 %v4281
      %v4348 = vunpack.c.l.b16 %v4282
      %v4349 = vunpack.c.l.b16 %v4283
      %v4350 = vunpack.c.l.b16 %v4284
      %v4351 = vunpack.c.l.b16 %v4285
      %v4352 = vunpack.c.l.b16 %v4286
      %v4353 = vunpack.c.l.b16 %v4287
      %v4354 = vunpack.c.l.b16 %v4288
      %v4355 = vunpack.c.l.b16 %v4289
      %v4356 = vunpack.c.l.b16 %v4290
      %v4357 = vunpack.c.l.b16 %v4291
      %v4358 = vunpack.c.l.b16 %v4292
      %v4359 = vunpack.c.l.b16 %v4293
      %v4360 = vunpack.c.l.b16 %v4294
      %v4361 = vunpack.c.l.b16 %v4295
      %v4362 = vunpack.c.l.b16 %v4296
      %v4363 = vunpack.c.l.b16 %v4297
      %v4364 = vunpack.c.l.b16 %v4298
      %v4365 = vunpack.c.l.b16 %v4299
      %v4366 = vunpack.c.l.b16 %v4300
      %v4367 = vpack.c.b16 %v4336, %v4335
      %v4368 = vpack.c.b16 %v4338, %v4337
      %v4369 = vpack.c.b16 %v4340, %v4339
      %v4370 = vpack.c.b16 %v4342, %v4341
      %v4371 = vpack.c.b16 %v4344, %v4343
      %v4372 = vpack.c.b16 %v4346, %v4345
      %v4373 = vpack.c.b16 %v4348, %v4347
      %v4374 = vpack.c.b16 %v4350, %v4349
      %v4375 = vpack.c.b16 %v4352, %v4351
      %v4376 = vpack.c.b16 %v4354, %v4353
      %v4377 = vpack.c.b16 %v4356, %v4355
      %v4378 = vpack.c.b16 %v4358, %v4357
      %v4379 = vpack.c.b16 %v4360, %v4359
      %v4380 = vpack.c.b16 %v4362, %v4361
      %v4381 = vpack.c.b16 %v4364, %v4363
      %v4382 = vpack.c.b16 %v4366, %v4365
      %v4384 = vsel %vm1751, %v4367, 0
      %v4387 = vsel %vm1751, %v4368, 0
      %v4390 = vsel %vm1751, %v4369, 0
      %v4393 = vsel %vm1751, %v4370, 0
      %v4396 = vsel %vm1751, %v4371, 0
      %v4399 = vsel %vm1751, %v4372, 0
      %v4402 = vsel %vm1751, %v4373, 0
      %v4405 = vsel %vm1751, %v4374, 0
      %v4408 = vsel %vm1751, %v4375, 0
      %v4411 = vsel %vm1751, %v4376, 0
      %v4414 = vsel %vm1751, %v4377, 0
      %v4417 = vsel %vm1751, %v4378, 0
      %v4420 = vsel %vm1751, %v4379, 0
      %v4423 = vsel %vm1751, %v4380, 0
      %v4426 = vsel %vm1751, %v4381, 0
      %v4429 = vsel %vm1751, %v4382, 0
      %v4432 = vsel %vm1800, %v4302, 0
      %4434 = vmatprep.subr.bf16.mxu0 0
      %4435 = vmatpush1.bf16.msra.mxu0 %v4432
      %4436 = vmatprep.subr.bf16.mxu0 0
      %4437 = vmatpush1.bf16.msra.mxu0 0
      %4438 = vmatprep.subr.bf16.mxu0 0
      %4439 = vmatpush1.bf16.msra.mxu0 0
      %4440 = vmatprep.subr.bf16.mxu0 0
      %4441 = vmatpush1.bf16.msra.mxu0 0
      %4442 = vmatprep.subr.bf16.mxu0 0
      %4443 = vmatpush1.bf16.msra.mxu0 0
      %4444 = vmatprep.subr.bf16.mxu0 0
      %4445 = vmatpush1.bf16.msra.mxu0 0
      %4446 = vmatprep.subr.bf16.mxu0 0
      %4447 = vmatpush1.bf16.msra.mxu0 0
      %4448 = vmatprep.subr.bf16.mxu0 0
      %4449 = vmatpush1.bf16.msra.mxu0 0
      %4450 = vmatprep.subr.bf16.mxu0 0
      %4451 = vmatpush1.bf16.msra.mxu0 0
      %4452 = vmatprep.subr.bf16.mxu0 0
      %4453 = vmatpush1.bf16.msra.mxu0 0
      %4454 = vmatprep.subr.bf16.mxu0 0
      %4455 = vmatpush1.bf16.msra.mxu0 0
      %4456 = vmatprep.subr.bf16.mxu0 0
      %4457 = vmatpush1.bf16.msra.mxu0 0
      %4458 = vmatprep.subr.bf16.mxu0 0
      %4459 = vmatpush1.bf16.msra.mxu0 0
      %4460 = vmatprep.subr.bf16.mxu0 0
      %4461 = vmatpush1.bf16.msra.mxu0 0
      %4462 = vmatprep.subr.bf16.mxu0 0
      %4463 = vmatpush1.bf16.msra.mxu0 0
      %4464 = vmatprep.subr.bf16.mxu0 0
      %4465 = vmatpush1.bf16.msra.mxu0 0
      %4466 = vmatprep.mubr.bf16.mxu0 0
      %4467 = vmatmul.mubr.bf16.gmra.mrb[0].mxu0 %v4384
      %v4468 = vpop.f32.mrb[0].mxu0
      %v4469 = vadd.f32 0.0, %v4468
      %v4470 = vpop.f32.mrb[0].mxu0
      %v4471 = vpop.f32.mrb[0].mxu0
      %v4472 = vadd.f32 0.0, %v4471
      %v4473 = vpop.f32.mrb[0].mxu0
      %4474 = vmatprep.mubr.bf16.mxu0 0
      %4475 = vmatmul.mubr.bf16.gmra.mrb[0].mxu0 %v4387
      %v4476 = vpop.f32.mrb[0].mxu0
      %v4477 = vadd.f32 0.0, %v4476
      %v4478 = vpop.f32.mrb[0].mxu0
      %v4479 = vpop.f32.mrb[0].mxu0
      %v4480 = vadd.f32 0.0, %v4479
      %v4481 = vpop.f32.mrb[0].mxu0
      %4482 = vmatprep.mubr.bf16.mxu0 0
      %4483 = vmatmul.mubr.bf16.gmra.mrb[0].mxu0 %v4390
      %v4484 = vpop.f32.mrb[0].mxu0
      %v4485 = vadd.f32 0.0, %v4484
      %v4486 = vpop.f32.mrb[0].mxu0
      %v4487 = vpop.f32.mrb[0].mxu0
      %v4488 = vadd.f32 0.0, %v4487
      %v4489 = vpop.f32.mrb[0].mxu0
      %4490 = vmatprep.mubr.bf16.mxu0 0
      %4491 = vmatmul.mubr.bf16.gmra.mrb[0].mxu0 %v4393
      %v4492 = vpop.f32.mrb[0].mxu0
      %v4493 = vadd.f32 0.0, %v4492
      %v4494 = vpop.f32.mrb[0].mxu0
      %v4495 = vpop.f32.mrb[0].mxu0
      %v4496 = vadd.f32 0.0, %v4495
      %v4497 = vpop.f32.mrb[0].mxu0
      %4498 = vmatprep.mubr.bf16.mxu0 0
      %4499 = vmatmul.mubr.bf16.gmra.mrb[0].mxu0 %v4396
      %v4500 = vpop.f32.mrb[0].mxu0
      %v4501 = vadd.f32 0.0, %v4500
      %v4502 = vpop.f32.mrb[0].mxu0
      %v4503 = vpop.f32.mrb[0].mxu0
      %v4504 = vadd.f32 0.0, %v4503
      %v4505 = vpop.f32.mrb[0].mxu0
      %4506 = vmatprep.mubr.bf16.mxu0 0
      %4507 = vmatmul.mubr.bf16.gmra.mrb[0].mxu0 %v4399
      %v4508 = vpop.f32.mrb[0].mxu0
      %v4509 = vadd.f32 0.0, %v4508
      %v4510 = vpop.f32.mrb[0].mxu0
      %v4511 = vpop.f32.mrb[0].mxu0
      %v4512 = vadd.f32 0.0, %v4511
      %v4513 = vpop.f32.mrb[0].mxu0
      %4514 = vmatprep.mubr.bf16.mxu0 0
      %4515 = vmatmul.mubr.bf16.gmra.mrb[0].mxu0 %v4402
      %v4516 = vpop.f32.mrb[0].mxu0
      %v4517 = vadd.f32 0.0, %v4516
      %v4518 = vpop.f32.mrb[0].mxu0
      %v4519 = vpop.f32.mrb[0].mxu0
      %v4520 = vadd.f32 0.0, %v4519
      %v4521 = vpop.f32.mrb[0].mxu0
      %4522 = vmatprep.mubr.bf16.mxu0 0
      %4523 = vmatmul.mubr.bf16.gmra.mrb[0].mxu0 %v4405
      %v4524 = vpop.f32.mrb[0].mxu0
      %v4525 = vadd.f32 0.0, %v4524
      %v4526 = vpop.f32.mrb[0].mxu0
      %v4527 = vpop.f32.mrb[0].mxu0
      %v4528 = vadd.f32 0.0, %v4527
      %v4529 = vpop.f32.mrb[0].mxu0
      %4530 = vmatprep.mubr.bf16.mxu0 0
      %4531 = vmatmul.mubr.bf16.gmra.mrb[0].mxu0 %v4408
      %v4532 = vpop.f32.mrb[0].mxu0
      %v4533 = vadd.f32 0.0, %v4532
      %v4534 = vpop.f32.mrb[0].mxu0
      %v4535 = vpop.f32.mrb[0].mxu0
      %v4536 = vadd.f32 0.0, %v4535
      %v4537 = vpop.f32.mrb[0].mxu0
      %4538 = vmatprep.mubr.bf16.mxu0 0
      %4539 = vmatmul.mubr.bf16.gmra.mrb[0].mxu0 %v4411
      %v4540 = vpop.f32.mrb[0].mxu0
      %v4541 = vadd.f32 0.0, %v4540
      %v4542 = vpop.f32.mrb[0].mxu0
      %v4543 = vpop.f32.mrb[0].mxu0
      %v4544 = vadd.f32 0.0, %v4543
      %v4545 = vpop.f32.mrb[0].mxu0
      %4546 = vmatprep.mubr.bf16.mxu0 0
      %4547 = vmatmul.mubr.bf16.gmra.mrb[0].mxu0 %v4414
      %v4548 = vpop.f32.mrb[0].mxu0
      %v4549 = vadd.f32 0.0, %v4548
      %v4550 = vpop.f32.mrb[0].mxu0
      %v4551 = vpop.f32.mrb[0].mxu0
      %v4552 = vadd.f32 0.0, %v4551
      %v4553 = vpop.f32.mrb[0].mxu0
      %4554 = vmatprep.mubr.bf16.mxu0 0
      %4555 = vmatmul.mubr.bf16.gmra.mrb[0].mxu0 %v4417
      %v4556 = vpop.f32.mrb[0].mxu0
      %v4557 = vadd.f32 0.0, %v4556
      %v4558 = vpop.f32.mrb[0].mxu0
      %v4559 = vpop.f32.mrb[0].mxu0
      %v4560 = vadd.f32 0.0, %v4559
      %v4561 = vpop.f32.mrb[0].mxu0
      %4562 = vmatprep.mubr.bf16.mxu0 0
      %4563 = vmatmul.mubr.bf16.gmra.mrb[0].mxu0 %v4420
      %v4564 = vpop.f32.mrb[0].mxu0
      %v4565 = vadd.f32 0.0, %v4564
      %v4566 = vpop.f32.mrb[0].mxu0
      %v4567 = vpop.f32.mrb[0].mxu0
      %v4568 = vadd.f32 0.0, %v4567
      %v4569 = vpop.f32.mrb[0].mxu0
      %4570 = vmatprep.mubr.bf16.mxu0 0
      %4571 = vmatmul.mubr.bf16.gmra.mrb[0].mxu0 %v4423
      %v4572 = vpop.f32.mrb[0].mxu0
      %v4573 = vadd.f32 0.0, %v4572
      %v4574 = vpop.f32.mrb[0].mxu0
      %v4575 = vpop.f32.mrb[0].mxu0
      %v4576 = vadd.f32 0.0, %v4575
      %v4577 = vpop.f32.mrb[0].mxu0
      %4578 = vmatprep.mubr.bf16.mxu0 0
      %4579 = vmatmul.mubr.bf16.gmra.mrb[0].mxu0 %v4426
      %v4580 = vpop.f32.mrb[0].mxu0
      %v4581 = vadd.f32 0.0, %v4580
      %v4582 = vpop.f32.mrb[0].mxu0
      %v4583 = vpop.f32.mrb[0].mxu0
      %v4584 = vadd.f32 0.0, %v4583
      %v4585 = vpop.f32.mrb[0].mxu0
      %4586 = vmatprep.mubr.bf16.mxu0 0
      %4587 = vmatmul.mubr.bf16.gmra.mrb[0].mxu0 %v4429
      %v4588 = vpop.f32.mrb[0].mxu0
      %v4589 = vadd.f32 0.0, %v4588
      %v4590 = vpop.f32.mrb[0].mxu0
      %v4591 = vpop.f32.mrb[0].mxu0
      %v4592 = vadd.f32 0.0, %v4591
      %v4593 = vpop.f32.mrb[0].mxu0
      %4594 = vdwg.mxu0
      %v4595 = vadd.f32 %v4236, %v4469
      %v4596 = vadd.f32 %v4237, %v4472
      %v4597 = vadd.f32 %v4238, %v4477
      %v4598 = vadd.f32 %v4239, %v4480
      %v4599 = vadd.f32 %v4240, %v4485
      %v4600 = vadd.f32 %v4241, %v4488
      %v4601 = vadd.f32 %v4242, %v4493
      %v4602 = vadd.f32 %v4243, %v4496
      %v4603 = vadd.f32 %v4244, %v4501
      %v4604 = vadd.f32 %v4245, %v4504
      %v4605 = vadd.f32 %v4246, %v4509
      %v4606 = vadd.f32 %v4247, %v4512
      %v4607 = vadd.f32 %v4248, %v4517
      %v4608 = vadd.f32 %v4249, %v4520
      %v4609 = vadd.f32 %v4250, %v4525
      %v4610 = vadd.f32 %v4251, %v4528
      %v4611 = vadd.f32 %v4252, %v4533
      %v4612 = vadd.f32 %v4253, %v4536
      %v4613 = vadd.f32 %v4254, %v4541
      %v4614 = vadd.f32 %v4255, %v4544
      %v4615 = vadd.f32 %v4256, %v4549
      %v4616 = vadd.f32 %v4257, %v4552
      %v4617 = vadd.f32 %v4258, %v4557
      %v4618 = vadd.f32 %v4259, %v4560
      %v4619 = vadd.f32 %v4260, %v4565
      %v4620 = vadd.f32 %v4261, %v4568
      %v4621 = vadd.f32 %v4262, %v4573
      %v4622 = vadd.f32 %v4263, %v4576
      %v4623 = vadd.f32 %v4264, %v4581
      %v4624 = vadd.f32 %v4265, %v4584
      %v4625 = vadd.f32 %v4266, %v4589
      %v4626 = vadd.f32 %v4267, %v4592
      %v4627 = vld [vmem:[%s4268] sm:$0xf]
      %v4628 = vld [vmem:[%s4268 + $0x4] sm:$0xf]
      %v4629 = vld [vmem:[%s4268 + $0x8] sm:$0x1]
      %v4630 = vld [vmem:[%s4268 + $0xc] sm:$0xf]
      %v4631 = vld [vmem:[%s4268 + $0x10] sm:$0xf]
      %v4632 = vld [vmem:[%s4268 + $0x14] sm:$0x1]
      %v4633 = vld [vmem:[%s4268 + $0x18] sm:$0xf]
      %v4634 = vld [vmem:[%s4268 + $0x1c] sm:$0xf]
      %v4635 = vld [vmem:[%s4268 + $0x20] sm:$0x1]
      %v4636 = vld [vmem:[%s4268 + $0x24] sm:$0xf]
      %v4637 = vld [vmem:[%s4268 + $0x28] sm:$0xf]
      %v4638 = vld [vmem:[%s4268 + $0x2c] sm:$0x1]
      %v4639 = vld [vmem:[%s4268 + $0x30] sm:$0xf]
      %v4640 = vld [vmem:[%s4268 + $0x34] sm:$0xf]
      %v4641 = vld [vmem:[%s4268 + $0x38] sm:$0x1]
      %v4642 = vld [vmem:[%s4268 + $0x3c] sm:$0xf]
      %v4643 = vld [vmem:[%s4268 + $0x40] sm:$0xf]
      %v4644 = vld [vmem:[%s4268 + $0x44] sm:$0x1]
      %v4645 = vld [vmem:[%s4268 + $0x48] sm:$0xf]
      %v4646 = vld [vmem:[%s4268 + $0x4c] sm:$0xf]
      %v4647 = vld [vmem:[%s4268 + $0x50] sm:$0x1]
      %v4648 = vld [vmem:[%s4268 + $0x54] sm:$0xf]
      %v4649 = vld [vmem:[%s4268 + $0x58] sm:$0xf]
      %v4650 = vld [vmem:[%s4268 + $0x5c] sm:$0x1]
      %v4651 = vld [vmem:[%s4268 + $0x60] sm:$0xf]
      %v4652 = vld [vmem:[%s4268 + $0x64] sm:$0xf]
      %v4653 = vld [vmem:[%s4268 + $0x68] sm:$0x1]
      %v4654 = vld [vmem:[%s4268 + $0x6c] sm:$0xf]
      %v4655 = vld [vmem:[%s4268 + $0x70] sm:$0xf]
      %v4656 = vld [vmem:[%s4268 + $0x74] sm:$0x1]
      %v4657 = vld [vmem:[%s4268 + $0x78] sm:$0xf]
      %v4658 = vld [vmem:[%s4268 + $0x7c] sm:$0xf]
      %v4659 = vld [vmem:[%s4268 + $0x80] sm:$0x1]
      %v4660 = vld [vmem:[%s4268 + $0x84] sm:$0xf]
      %v4661 = vld [vmem:[%s4268 + $0x88] sm:$0xf]
      %v4662 = vld [vmem:[%s4268 + $0x8c] sm:$0x1]
      %v4663 = vld [vmem:[%s4268 + $0x90] sm:$0xf]
      %v4664 = vld [vmem:[%s4268 + $0x94] sm:$0xf]
      %v4665 = vld [vmem:[%s4268 + $0x98] sm:$0x1]
      %v4666 = vld [vmem:[%s4268 + $0x9c] sm:$0xf]
      %v4667 = vld [vmem:[%s4268 + $0xa0] sm:$0xf]
      %v4668 = vld [vmem:[%s4268 + $0xa4] sm:$0x1]
      %v4669 = vld [vmem:[%s4268 + $0xa8] sm:$0xf]
      %v4670 = vld [vmem:[%s4268 + $0xac] sm:$0xf]
      %v4671 = vld [vmem:[%s4268 + $0xb0] sm:$0x1]
      %v4672 = vld [vmem:[%s4268 + $0xb4] sm:$0xf]
      %v4673 = vld [vmem:[%s4268 + $0xb8] sm:$0xf]
      %v4674 = vld [vmem:[%s4268 + $0xbc] sm:$0x1]
      %v4676 = vshrl.u32 %v4627, 16
      %v4678 = vrot.slane %v4676, 4
      %v4679 = vshll.u32 %v4627, 16
      %v4681 = vrot.slane %v4679, 5
      %v4682 = vor.u32 %v4678, %v4681
      %v4683 = vrot.slane %v4682, 4
      %v4685 = vshll.u32 %v4628, 16
      %v4687 = vrot.slane %v4685, 5
      %v4688 = vsel %vm1316, %v4683, %v4687
      %v4689 = vshrl.u32 %v4628, 16
      %v4691 = vrot.slane %v4689, 4
      %v4692 = vor.u32 %v4691, %v4687
      %v4693 = vrot.slane %v4692, 4
      %v4695 = vshll.u32 %v4629, 16
      %v4697 = vrot.slane %v4695, 5
      %v4698 = vsel %vm1316, %v4693, %v4697
      %v4700 = vshrl.u32 %v4630, 16
      %v4702 = vrot.slane %v4700, 4
      %v4703 = vshll.u32 %v4630, 16
      %v4705 = vrot.slane %v4703, 5
      %v4706 = vor.u32 %v4702, %v4705
      %v4707 = vrot.slane %v4706, 4
      %v4709 = vshll.u32 %v4631, 16
      %v4711 = vrot.slane %v4709, 5
      %v4712 = vsel %vm1316, %v4707, %v4711
      %v4713 = vshrl.u32 %v4631, 16
      %v4715 = vrot.slane %v4713, 4
      %v4716 = vor.u32 %v4715, %v4711
      %v4717 = vrot.slane %v4716, 4
      %v4719 = vshll.u32 %v4632, 16
      %v4721 = vrot.slane %v4719, 5
      %v4722 = vsel %vm1316, %v4717, %v4721
      %v4724 = vshrl.u32 %v4633, 16
      %v4726 = vrot.slane %v4724, 4
      %v4727 = vshll.u32 %v4633, 16
      %v4729 = vrot.slane %v4727, 5
      %v4730 = vor.u32 %v4726, %v4729
      %v4731 = vrot.slane %v4730, 4
      %v4733 = vshll.u32 %v4634, 16
      %v4735 = vrot.slane %v4733, 5
      %v4736 = vsel %vm1316, %v4731, %v4735
      %v4737 = vshrl.u32 %v4634, 16
      %v4739 = vrot.slane %v4737, 4
      %v4740 = vor.u32 %v4739, %v4735
      %v4741 = vrot.slane %v4740, 4
      %v4743 = vshll.u32 %v4635, 16
      %v4745 = vrot.slane %v4743, 5
      %v4746 = vsel %vm1316, %v4741, %v4745
      %v4748 = vshrl.u32 %v4636, 16
      %v4750 = vrot.slane %v4748, 4
      %v4751 = vshll.u32 %v4636, 16
      %v4753 = vrot.slane %v4751, 5
      %v4754 = vor.u32 %v4750, %v4753
      %v4755 = vrot.slane %v4754, 4
      %v4757 = vshll.u32 %v4637, 16
      %v4759 = vrot.slane %v4757, 5
      %v4760 = vsel %vm1316, %v4755, %v4759
      %v4761 = vshrl.u32 %v4637, 16
      %v4763 = vrot.slane %v4761, 4
      %v4764 = vor.u32 %v4763, %v4759
      %v4765 = vrot.slane %v4764, 4
      %v4767 = vshll.u32 %v4638, 16
      %v4769 = vrot.slane %v4767, 5
      %v4770 = vsel %vm1316, %v4765, %v4769
      %v4772 = vshrl.u32 %v4639, 16
      %v4774 = vrot.slane %v4772, 4
      %v4775 = vshll.u32 %v4639, 16
      %v4777 = vrot.slane %v4775, 5
      %v4778 = vor.u32 %v4774, %v4777
      %v4779 = vrot.slane %v4778, 4
      %v4781 = vshll.u32 %v4640, 16
      %v4783 = vrot.slane %v4781, 5
      %v4784 = vsel %vm1316, %v4779, %v4783
      %v4785 = vshrl.u32 %v4640, 16
      %v4787 = vrot.slane %v4785, 4
      %v4788 = vor.u32 %v4787, %v4783
      %v4789 = vrot.slane %v4788, 4
      %v4791 = vshll.u32 %v4641, 16
      %v4793 = vrot.slane %v4791, 5
      %v4794 = vsel %vm1316, %v4789, %v4793
      %v4796 = vshrl.u32 %v4642, 16
      %v4798 = vrot.slane %v4796, 4
      %v4799 = vshll.u32 %v4642, 16
      %v4801 = vrot.slane %v4799, 5
      %v4802 = vor.u32 %v4798, %v4801
      %v4803 = vrot.slane %v4802, 4
      %v4805 = vshll.u32 %v4643, 16
      %v4807 = vrot.slane %v4805, 5
      %v4808 = vsel %vm1316, %v4803, %v4807
      %v4809 = vshrl.u32 %v4643, 16
      %v4811 = vrot.slane %v4809, 4
      %v4812 = vor.u32 %v4811, %v4807
      %v4813 = vrot.slane %v4812, 4
      %v4815 = vshll.u32 %v4644, 16
      %v4817 = vrot.slane %v4815, 5
      %v4818 = vsel %vm1316, %v4813, %v4817
      %v4820 = vshrl.u32 %v4645, 16
      %v4822 = vrot.slane %v4820, 4
      %v4823 = vshll.u32 %v4645, 16
      %v4825 = vrot.slane %v4823, 5
      %v4826 = vor.u32 %v4822, %v4825
      %v4827 = vrot.slane %v4826, 4
      %v4829 = vshll.u32 %v4646, 16
      %v4831 = vrot.slane %v4829, 5
      %v4832 = vsel %vm1316, %v4827, %v4831
      %v4833 = vshrl.u32 %v4646, 16
      %v4835 = vrot.slane %v4833, 4
      %v4836 = vor.u32 %v4835, %v4831
      %v4837 = vrot.slane %v4836, 4
      %v4839 = vshll.u32 %v4647, 16
      %v4841 = vrot.slane %v4839, 5
      %v4842 = vsel %vm1316, %v4837, %v4841
      %v4844 = vshrl.u32 %v4648, 16
      %v4846 = vrot.slane %v4844, 4
      %v4847 = vshll.u32 %v4648, 16
      %v4849 = vrot.slane %v4847, 5
      %v4850 = vor.u32 %v4846, %v4849
      %v4851 = vrot.slane %v4850, 4
      %v4853 = vshll.u32 %v4649, 16
      %v4855 = vrot.slane %v4853, 5
      %v4856 = vsel %vm1316, %v4851, %v4855
      %v4857 = vshrl.u32 %v4649, 16
      %v4859 = vrot.slane %v4857, 4
      %v4860 = vor.u32 %v4859, %v4855
      %v4861 = vrot.slane %v4860, 4
      %v4863 = vshll.u32 %v4650, 16
      %v4865 = vrot.slane %v4863, 5
      %v4866 = vsel %vm1316, %v4861, %v4865
      %v4868 = vshrl.u32 %v4651, 16
      %v4870 = vrot.slane %v4868, 4
      %v4871 = vshll.u32 %v4651, 16
      %v4873 = vrot.slane %v4871, 5
      %v4874 = vor.u32 %v4870, %v4873
      %v4875 = vrot.slane %v4874, 4
      %v4877 = vshll.u32 %v4652, 16
      %v4879 = vrot.slane %v4877, 5
      %v4880 = vsel %vm1316, %v4875, %v4879
      %v4881 = vshrl.u32 %v4652, 16
      %v4883 = vrot.slane %v4881, 4
      %v4884 = vor.u32 %v4883, %v4879
      %v4885 = vrot.slane %v4884, 4
      %v4887 = vshll.u32 %v4653, 16
      %v4889 = vrot.slane %v4887, 5
      %v4890 = vsel %vm1316, %v4885, %v4889
      %v4892 = vshrl.u32 %v4654, 16
      %v4894 = vrot.slane %v4892, 4
      %v4895 = vshll.u32 %v4654, 16
      %v4897 = vrot.slane %v4895, 5
      %v4898 = vor.u32 %v4894, %v4897
      %v4899 = vrot.slane %v4898, 4
      %v4901 = vshll.u32 %v4655, 16
      %v4903 = vrot.slane %v4901, 5
      %v4904 = vsel %vm1316, %v4899, %v4903
      %v4905 = vshrl.u32 %v4655, 16
      %v4907 = vrot.slane %v4905, 4
      %v4908 = vor.u32 %v4907, %v4903
      %v4909 = vrot.slane %v4908, 4
      %v4911 = vshll.u32 %v4656, 16
      %v4913 = vrot.slane %v4911, 5
      %v4914 = vsel %vm1316, %v4909, %v4913
      %v4916 = vshrl.u32 %v4657, 16
      %v4918 = vrot.slane %v4916, 4
      %v4919 = vshll.u32 %v4657, 16
      %v4921 = vrot.slane %v4919, 5
      %v4922 = vor.u32 %v4918, %v4921
      %v4923 = vrot.slane %v4922, 4
      %v4925 = vshll.u32 %v4658, 16
      %v4927 = vrot.slane %v4925, 5
      %v4928 = vsel %vm1316, %v4923, %v4927
      %v4929 = vshrl.u32 %v4658, 16
      %v4931 = vrot.slane %v4929, 4
      %v4932 = vor.u32 %v4931, %v4927
      %v4933 = vrot.slane %v4932, 4
      %v4935 = vshll.u32 %v4659, 16
      %v4937 = vrot.slane %v4935, 5
      %v4938 = vsel %vm1316, %v4933, %v4937
      %v4940 = vshrl.u32 %v4660, 16
      %v4942 = vrot.slane %v4940, 4
      %v4943 = vshll.u32 %v4660, 16
      %v4945 = vrot.slane %v4943, 5
      %v4946 = vor.u32 %v4942, %v4945
      %v4947 = vrot.slane %v4946, 4
      %v4949 = vshll.u32 %v4661, 16
      %v4951 = vrot.slane %v4949, 5
      %v4952 = vsel %vm1316, %v4947, %v4951
      %v4953 = vshrl.u32 %v4661, 16
      %v4955 = vrot.slane %v4953, 4
      %v4956 = vor.u32 %v4955, %v4951
      %v4957 = vrot.slane %v4956, 4
      %v4959 = vshll.u32 %v4662, 16
      %v4961 = vrot.slane %v4959, 5
      %v4962 = vsel %vm1316, %v4957, %v4961
      %v4964 = vshrl.u32 %v4663, 16
      %v4966 = vrot.slane %v4964, 4
      %v4967 = vshll.u32 %v4663, 16
      %v4969 = vrot.slane %v4967, 5
      %v4970 = vor.u32 %v4966, %v4969
      %v4971 = vrot.slane %v4970, 4
      %v4973 = vshll.u32 %v4664, 16
      %v4975 = vrot.slane %v4973, 5
      %v4976 = vsel %vm1316, %v4971, %v4975
      %v4977 = vshrl.u32 %v4664, 16
      %v4979 = vrot.slane %v4977, 4
      %v4980 = vor.u32 %v4979, %v4975
      %v4981 = vrot.slane %v4980, 4
      %v4983 = vshll.u32 %v4665, 16
      %v4985 = vrot.slane %v4983, 5
      %v4986 = vsel %vm1316, %v4981, %v4985
      %v4988 = vshrl.u32 %v4666, 16
      %v4990 = vrot.slane %v4988, 4
      %v4991 = vshll.u32 %v4666, 16
      %v4993 = vrot.slane %v4991, 5
      %v4994 = vor.u32 %v4990, %v4993
      %v4995 = vrot.slane %v4994, 4
      %v4997 = vshll.u32 %v4667, 16
      %v4999 = vrot.slane %v4997, 5
      %v5000 = vsel %vm1316, %v4995, %v4999
      %v5001 = vshrl.u32 %v4667, 16
      %v5003 = vrot.slane %v5001, 4
      %v5004 = vor.u32 %v5003, %v4999
      %v5005 = vrot.slane %v5004, 4
      %v5007 = vshll.u32 %v4668, 16
      %v5009 = vrot.slane %v5007, 5
      %v5010 = vsel %vm1316, %v5005, %v5009
      %v5012 = vshrl.u32 %v4669, 16
      %v5014 = vrot.slane %v5012, 4
      %v5015 = vshll.u32 %v4669, 16
      %v5017 = vrot.slane %v5015, 5
      %v5018 = vor.u32 %v5014, %v5017
      %v5019 = vrot.slane %v5018, 4
      %v5021 = vshll.u32 %v4670, 16
      %v5023 = vrot.slane %v5021, 5
      %v5024 = vsel %vm1316, %v5019, %v5023
      %v5025 = vshrl.u32 %v4670, 16
      %v5027 = vrot.slane %v5025, 4
      %v5028 = vor.u32 %v5027, %v5023
      %v5029 = vrot.slane %v5028, 4
      %v5031 = vshll.u32 %v4671, 16
      %v5033 = vrot.slane %v5031, 5
      %v5034 = vsel %vm1316, %v5029, %v5033
      %v5036 = vshrl.u32 %v4672, 16
      %v5038 = vrot.slane %v5036, 4
      %v5039 = vshll.u32 %v4672, 16
      %v5041 = vrot.slane %v5039, 5
      %v5042 = vor.u32 %v5038, %v5041
      %v5043 = vrot.slane %v5042, 4
      %v5045 = vshll.u32 %v4673, 16
      %v5047 = vrot.slane %v5045, 5
      %v5048 = vsel %vm1316, %v5043, %v5047
      %v5049 = vshrl.u32 %v4673, 16
      %v5051 = vrot.slane %v5049, 4
      %v5052 = vor.u32 %v5051, %v5047
      %v5053 = vrot.slane %v5052, 4
      %v5055 = vshll.u32 %v4674, 16
      %v5057 = vrot.slane %v5055, 5
      %v5058 = vsel %vm1316, %v5053, %v5057
      %s5059 = scalar_lea.vmem %s2, 28
      %v5060 = vld [vmem:[%s5059] sm:$0xf]
      %v5061 = vunpack.c.l.b16 %v4688
      %v5062 = vunpack.c.l.b16 %v4698
      %v5063 = vunpack.c.l.b16 %v4712
      %v5064 = vunpack.c.l.b16 %v4722
      %v5065 = vunpack.c.l.b16 %v4736
      %v5066 = vunpack.c.l.b16 %v4746
      %v5067 = vunpack.c.l.b16 %v4760
      %v5068 = vunpack.c.l.b16 %v4770
      %v5069 = vunpack.c.l.b16 %v4784
      %v5070 = vunpack.c.l.b16 %v4794
      %v5071 = vunpack.c.l.b16 %v4808
      %v5072 = vunpack.c.l.b16 %v4818
      %v5073 = vunpack.c.l.b16 %v4832
      %v5074 = vunpack.c.l.b16 %v4842
      %v5075 = vunpack.c.l.b16 %v4856
      %v5076 = vunpack.c.l.b16 %v4866
      %v5077 = vunpack.c.l.b16 %v4880
      %v5078 = vunpack.c.l.b16 %v4890
      %v5079 = vunpack.c.l.b16 %v4904
      %v5080 = vunpack.c.l.b16 %v4914
      %v5081 = vunpack.c.l.b16 %v4928
      %v5082 = vunpack.c.l.b16 %v4938
      %v5083 = vunpack.c.l.b16 %v4952
      %v5084 = vunpack.c.l.b16 %v4962
      %v5085 = vunpack.c.l.b16 %v4976
      %v5086 = vunpack.c.l.b16 %v4986
      %v5087 = vunpack.c.l.b16 %v5000
      %v5088 = vunpack.c.l.b16 %v5010
      %v5089 = vunpack.c.l.b16 %v5024
      %v5090 = vunpack.c.l.b16 %v5034
      %v5091 = vunpack.c.l.b16 %v5048
      %v5092 = vunpack.c.l.b16 %v5058
      %v5093 = vpack.c.b16 %v5062, %v5061
      %v5094 = vpack.c.b16 %v5064, %v5063
      %v5095 = vpack.c.b16 %v5066, %v5065
      %v5096 = vpack.c.b16 %v5068, %v5067
      %v5097 = vpack.c.b16 %v5070, %v5069
      %v5098 = vpack.c.b16 %v5072, %v5071
      %v5099 = vpack.c.b16 %v5074, %v5073
      %v5100 = vpack.c.b16 %v5076, %v5075
      %v5101 = vpack.c.b16 %v5078, %v5077
      %v5102 = vpack.c.b16 %v5080, %v5079
      %v5103 = vpack.c.b16 %v5082, %v5081
      %v5104 = vpack.c.b16 %v5084, %v5083
      %v5105 = vpack.c.b16 %v5086, %v5085
      %v5106 = vpack.c.b16 %v5088, %v5087
      %v5107 = vpack.c.b16 %v5090, %v5089
      %v5108 = vpack.c.b16 %v5092, %v5091
      %v5110 = vsel %vm1751, %v5093, 0
      %v5113 = vsel %vm1751, %v5094, 0
      %v5116 = vsel %vm1751, %v5095, 0
      %v5119 = vsel %vm1751, %v5096, 0
      %v5122 = vsel %vm1751, %v5097, 0
      %v5125 = vsel %vm1751, %v5098, 0
      %v5128 = vsel %vm1751, %v5099, 0
      %v5131 = vsel %vm1751, %v5100, 0
      %v5134 = vsel %vm1751, %v5101, 0
      %v5137 = vsel %vm1751, %v5102, 0
      %v5140 = vsel %vm1751, %v5103, 0
      %v5143 = vsel %vm1751, %v5104, 0
      %v5146 = vsel %vm1751, %v5105, 0
      %v5149 = vsel %vm1751, %v5106, 0
      %v5152 = vsel %vm1751, %v5107, 0
      %v5155 = vsel %vm1751, %v5108, 0
      %v5158 = vsel %vm1800, %v5060, 0
      %5160 = vmatprep.subr.bf16.mxu0 0
      %5161 = vmatpush1.bf16.msra.mxu0 %v5158
      %5162 = vmatprep.subr.bf16.mxu0 0
      %5163 = vmatpush1.bf16.msra.mxu0 0
      %5164 = vmatprep.subr.bf16.mxu0 0
      %5165 = vmatpush1.bf16.msra.mxu0 0
      %5166 = vmatprep.subr.bf16.mxu0 0
      %5167 = vmatpush1.bf16.msra.mxu0 0
      %5168 = vmatprep.subr.bf16.mxu0 0
      %5169 = vmatpush1.bf16.msra.mxu0 0
      %5170 = vmatprep.subr.bf16.mxu0 0
      %5171 = vmatpush1.bf16.msra.mxu0 0
      %5172 = vmatprep.subr.bf16.mxu0 0
      %5173 = vmatpush1.bf16.msra.mxu0 0
      %5174 = vmatprep.subr.bf16.mxu0 0
      %5175 = vmatpush1.bf16.msra.mxu0 0
      %5176 = vmatprep.subr.bf16.mxu0 0
      %5177 = vmatpush1.bf16.msra.mxu0 0
      %5178 = vmatprep.subr.bf16.mxu0 0
      %5179 = vmatpush1.bf16.msra.mxu0 0
      %5180 = vmatprep.subr.bf16.mxu0 0
      %5181 = vmatpush1.bf16.msra.mxu0 0
      %5182 = vmatprep.subr.bf16.mxu0 0
      %5183 = vmatpush1.bf16.msra.mxu0 0
      %5184 = vmatprep.subr.bf16.mxu0 0
      %5185 = vmatpush1.bf16.msra.mxu0 0
      %5186 = vmatprep.subr.bf16.mxu0 0
      %5187 = vmatpush1.bf16.msra.mxu0 0
      %5188 = vmatprep.subr.bf16.mxu0 0
      %5189 = vmatpush1.bf16.msra.mxu0 0
      %5190 = vmatprep.subr.bf16.mxu0 0
      %5191 = vmatpush1.bf16.msra.mxu0 0
      %5192 = vmatprep.mubr.bf16.mxu0 0
      %5193 = vmatmul.mubr.bf16.gmra.mrb[0].mxu0 %v5110
      %v5194 = vpop.f32.mrb[0].mxu0
      %v5195 = vadd.f32 0.0, %v5194
      %v5196 = vpop.f32.mrb[0].mxu0
      %v5197 = vpop.f32.mrb[0].mxu0
      %v5198 = vadd.f32 0.0, %v5197
      %v5199 = vpop.f32.mrb[0].mxu0
      %5200 = vmatprep.mubr.bf16.mxu0 0
      %5201 = vmatmul.mubr.bf16.gmra.mrb[0].mxu0 %v5113
      %v5202 = vpop.f32.mrb[0].mxu0
      %v5203 = vadd.f32 0.0, %v5202
      %v5204 = vpop.f32.mrb[0].mxu0
      %v5205 = vpop.f32.mrb[0].mxu0
      %v5206 = vadd.f32 0.0, %v5205
      %v5207 = vpop.f32.mrb[0].mxu0
      %5208 = vmatprep.mubr.bf16.mxu0 0
      %5209 = vmatmul.mubr.bf16.gmra.mrb[0].mxu0 %v5116
      %v5210 = vpop.f32.mrb[0].mxu0
      %v5211 = vadd.f32 0.0, %v5210
      %v5212 = vpop.f32.mrb[0].mxu0
      %v5213 = vpop.f32.mrb[0].mxu0
      %v5214 = vadd.f32 0.0, %v5213
      %v5215 = vpop.f32.mrb[0].mxu0
      %5216 = vmatprep.mubr.bf16.mxu0 0
      %5217 = vmatmul.mubr.bf16.gmra.mrb[0].mxu0 %v5119
      %v5218 = vpop.f32.mrb[0].mxu0
      %v5219 = vadd.f32 0.0, %v5218
      %v5220 = vpop.f32.mrb[0].mxu0
      %v5221 = vpop.f32.mrb[0].mxu0
      %v5222 = vadd.f32 0.0, %v5221
      %v5223 = vpop.f32.mrb[0].mxu0
      %5224 = vmatprep.mubr.bf16.mxu0 0
      %5225 = vmatmul.mubr.bf16.gmra.mrb[0].mxu0 %v5122
      %v5226 = vpop.f32.mrb[0].mxu0
      %v5227 = vadd.f32 0.0, %v5226
      %v5228 = vpop.f32.mrb[0].mxu0
      %v5229 = vpop.f32.mrb[0].mxu0
      %v5230 = vadd.f32 0.0, %v5229
      %v5231 = vpop.f32.mrb[0].mxu0
      %5232 = vmatprep.mubr.bf16.mxu0 0
      %5233 = vmatmul.mubr.bf16.gmra.mrb[0].mxu0 %v5125
      %v5234 = vpop.f32.mrb[0].mxu0
      %v5235 = vadd.f32 0.0, %v5234
      %v5236 = vpop.f32.mrb[0].mxu0
      %v5237 = vpop.f32.mrb[0].mxu0
      %v5238 = vadd.f32 0.0, %v5237
      %v5239 = vpop.f32.mrb[0].mxu0
      %5240 = vmatprep.mubr.bf16.mxu0 0
      %5241 = vmatmul.mubr.bf16.gmra.mrb[0].mxu0 %v5128
      %v5242 = vpop.f32.mrb[0].mxu0
      %v5243 = vadd.f32 0.0, %v5242
      %v5244 = vpop.f32.mrb[0].mxu0
      %v5245 = vpop.f32.mrb[0].mxu0
      %v5246 = vadd.f32 0.0, %v5245
      %v5247 = vpop.f32.mrb[0].mxu0
      %5248 = vmatprep.mubr.bf16.mxu0 0
      %5249 = vmatmul.mubr.bf16.gmra.mrb[0].mxu0 %v5131
      %v5250 = vpop.f32.mrb[0].mxu0
      %v5251 = vadd.f32 0.0, %v5250
      %v5252 = vpop.f32.mrb[0].mxu0
      %v5253 = vpop.f32.mrb[0].mxu0
      %v5254 = vadd.f32 0.0, %v5253
      %v5255 = vpop.f32.mrb[0].mxu0
      %5256 = vmatprep.mubr.bf16.mxu0 0
      %5257 = vmatmul.mubr.bf16.gmra.mrb[0].mxu0 %v5134
      %v5258 = vpop.f32.mrb[0].mxu0
      %v5259 = vadd.f32 0.0, %v5258
      %v5260 = vpop.f32.mrb[0].mxu0
      %v5261 = vpop.f32.mrb[0].mxu0
      %v5262 = vadd.f32 0.0, %v5261
      %v5263 = vpop.f32.mrb[0].mxu0
      %5264 = vmatprep.mubr.bf16.mxu0 0
      %5265 = vmatmul.mubr.bf16.gmra.mrb[0].mxu0 %v5137
      %v5266 = vpop.f32.mrb[0].mxu0
      %v5267 = vadd.f32 0.0, %v5266
      %v5268 = vpop.f32.mrb[0].mxu0
      %v5269 = vpop.f32.mrb[0].mxu0
      %v5270 = vadd.f32 0.0, %v5269
      %v5271 = vpop.f32.mrb[0].mxu0
      %5272 = vmatprep.mubr.bf16.mxu0 0
      %5273 = vmatmul.mubr.bf16.gmra.mrb[0].mxu0 %v5140
      %v5274 = vpop.f32.mrb[0].mxu0
      %v5275 = vadd.f32 0.0, %v5274
      %v5276 = vpop.f32.mrb[0].mxu0
      %v5277 = vpop.f32.mrb[0].mxu0
      %v5278 = vadd.f32 0.0, %v5277
      %v5279 = vpop.f32.mrb[0].mxu0
      %5280 = vmatprep.mubr.bf16.mxu0 0
      %5281 = vmatmul.mubr.bf16.gmra.mrb[0].mxu0 %v5143
      %v5282 = vpop.f32.mrb[0].mxu0
      %v5283 = vadd.f32 0.0, %v5282
      %v5284 = vpop.f32.mrb[0].mxu0
      %v5285 = vpop.f32.mrb[0].mxu0
      %v5286 = vadd.f32 0.0, %v5285
      %v5287 = vpop.f32.mrb[0].mxu0
      %5288 = vmatprep.mubr.bf16.mxu0 0
      %5289 = vmatmul.mubr.bf16.gmra.mrb[0].mxu0 %v5146
      %v5290 = vpop.f32.mrb[0].mxu0
      %v5291 = vadd.f32 0.0, %v5290
      %v5292 = vpop.f32.mrb[0].mxu0
      %v5293 = vpop.f32.mrb[0].mxu0
      %v5294 = vadd.f32 0.0, %v5293
      %v5295 = vpop.f32.mrb[0].mxu0
      %5296 = vmatprep.mubr.bf16.mxu0 0
      %5297 = vmatmul.mubr.bf16.gmra.mrb[0].mxu0 %v5149
      %v5298 = vpop.f32.mrb[0].mxu0
      %v5299 = vadd.f32 0.0, %v5298
      %v5300 = vpop.f32.mrb[0].mxu0
      %v5301 = vpop.f32.mrb[0].mxu0
      %v5302 = vadd.f32 0.0, %v5301
      %v5303 = vpop.f32.mrb[0].mxu0
      %5304 = vmatprep.mubr.bf16.mxu0 0
      %5305 = vmatmul.mubr.bf16.gmra.mrb[0].mxu0 %v5152
      %v5306 = vpop.f32.mrb[0].mxu0
      %v5307 = vadd.f32 0.0, %v5306
      %v5308 = vpop.f32.mrb[0].mxu0
      %v5309 = vpop.f32.mrb[0].mxu0
      %v5310 = vadd.f32 0.0, %v5309
      %v5311 = vpop.f32.mrb[0].mxu0
      %5312 = vmatprep.mubr.bf16.mxu0 0
      %5313 = vmatmul.mubr.bf16.gmra.mrb[0].mxu0 %v5155
      %v5314 = vpop.f32.mrb[0].mxu0
      %v5315 = vadd.f32 0.0, %v5314
      %v5316 = vpop.f32.mrb[0].mxu0
      %v5317 = vpop.f32.mrb[0].mxu0
      %v5318 = vadd.f32 0.0, %v5317
      %v5319 = vpop.f32.mrb[0].mxu0
      %5320 = vdwg.mxu0
      %v5321 = vadd.f32 %v4595, %v5195
      %v5322 = vadd.f32 %v4596, %v5198
      %v5323 = vadd.f32 %v4597, %v5203
      %v5324 = vadd.f32 %v4598, %v5206
      %v5325 = vadd.f32 %v4599, %v5211
      %v5326 = vadd.f32 %v4600, %v5214
      %v5327 = vadd.f32 %v4601, %v5219
      %v5328 = vadd.f32 %v4602, %v5222
      %v5329 = vadd.f32 %v4603, %v5227
      %v5330 = vadd.f32 %v4604, %v5230
      %v5331 = vadd.f32 %v4605, %v5235
      %v5332 = vadd.f32 %v4606, %v5238
      %v5333 = vadd.f32 %v4607, %v5243
      %v5334 = vadd.f32 %v4608, %v5246
      %v5335 = vadd.f32 %v4609, %v5251
      %v5336 = vadd.f32 %v4610, %v5254
      %v5337 = vadd.f32 %v4611, %v5259
      %v5338 = vadd.f32 %v4612, %v5262
      %v5339 = vadd.f32 %v4613, %v5267
      %v5340 = vadd.f32 %v4614, %v5270
      %v5341 = vadd.f32 %v4615, %v5275
      %v5342 = vadd.f32 %v4616, %v5278
      %v5343 = vadd.f32 %v4617, %v5283
      %v5344 = vadd.f32 %v4618, %v5286
      %v5345 = vadd.f32 %v4619, %v5291
      %v5346 = vadd.f32 %v4620, %v5294
      %v5347 = vadd.f32 %v4621, %v5299
      %v5348 = vadd.f32 %v4622, %v5302
      %v5349 = vadd.f32 %v4623, %v5307
      %v5350 = vadd.f32 %v4624, %v5310
      %v5351 = vadd.f32 %v4625, %v5315
      %v5352 = vadd.f32 %v4626, %v5318
      %v5353 = vld [vmem:[%s4268] sm:$0xe]
      %v5354 = vld [vmem:[%s4268 + $0xc] sm:$0xe]
      %v5355 = vld [vmem:[%s4268 + $0x18] sm:$0xe]
      %v5356 = vld [vmem:[%s4268 + $0x24] sm:$0xe]
      %v5357 = vld [vmem:[%s4268 + $0x30] sm:$0xe]
      %v5358 = vld [vmem:[%s4268 + $0x3c] sm:$0xe]
      %v5359 = vld [vmem:[%s4268 + $0x48] sm:$0xe]
      %v5360 = vld [vmem:[%s4268 + $0x54] sm:$0xe]
      %v5361 = vld [vmem:[%s4268 + $0x60] sm:$0xe]
      %v5362 = vld [vmem:[%s4268 + $0x6c] sm:$0xe]
      %v5363 = vld [vmem:[%s4268 + $0x78] sm:$0xe]
      %v5364 = vld [vmem:[%s4268 + $0x84] sm:$0xe]
      %v5365 = vld [vmem:[%s4268 + $0x90] sm:$0xe]
      %v5366 = vld [vmem:[%s4268 + $0x9c] sm:$0xe]
      %v5367 = vld [vmem:[%s4268 + $0xa8] sm:$0xe]
      %v5368 = vld [vmem:[%s4268 + $0xb4] sm:$0xe]
      %v5417 = vrot.slane %v5353, 5
      %v5418 = vrot.slane %v5417, 4
      %v5419 = vrot.slane %v4628, 5
      %v5420 = vsel %vm2307, %v5418, %v5419
      %v5421 = vrot.slane %v5419, 4
      %v5422 = vrot.slane %v4629, 5
      %v5423 = vsel %vm2307, %v5421, %v5422
      %v5424 = vrot.slane %v5354, 5
      %v5425 = vrot.slane %v5424, 4
      %v5426 = vrot.slane %v4631, 5
      %v5427 = vsel %vm2307, %v5425, %v5426
      %v5428 = vrot.slane %v5426, 4
      %v5429 = vrot.slane %v4632, 5
      %v5430 = vsel %vm2307, %v5428, %v5429
      %v5431 = vrot.slane %v5355, 5
      %v5432 = vrot.slane %v5431, 4
      %v5433 = vrot.slane %v4634, 5
      %v5434 = vsel %vm2307, %v5432, %v5433
      %v5435 = vrot.slane %v5433, 4
      %v5436 = vrot.slane %v4635, 5
      %v5437 = vsel %vm2307, %v5435, %v5436
      %v5438 = vrot.slane %v5356, 5
      %v5439 = vrot.slane %v5438, 4
      %v5440 = vrot.slane %v4637, 5
      %v5441 = vsel %vm2307, %v5439, %v5440
      %v5442 = vrot.slane %v5440, 4
      %v5443 = vrot.slane %v4638, 5
      %v5444 = vsel %vm2307, %v5442, %v5443
      %v5445 = vrot.slane %v5357, 5
      %v5446 = vrot.slane %v5445, 4
      %v5447 = vrot.slane %v4640, 5
      %v5448 = vsel %vm2307, %v5446, %v5447
      %v5449 = vrot.slane %v5447, 4
      %v5450 = vrot.slane %v4641, 5
      %v5451 = vsel %vm2307, %v5449, %v5450
      %v5452 = vrot.slane %v5358, 5
      %v5453 = vrot.slane %v5452, 4
      %v5454 = vrot.slane %v4643, 5
      %v5455 = vsel %vm2307, %v5453, %v5454
      %v5456 = vrot.slane %v5454, 4
      %v5457 = vrot.slane %v4644, 5
      %v5458 = vsel %vm2307, %v5456, %v5457
      %v5459 = vrot.slane %v5359, 5
      %v5460 = vrot.slane %v5459, 4
      %v5461 = vrot.slane %v4646, 5
      %v5462 = vsel %vm2307, %v5460, %v5461
      %v5463 = vrot.slane %v5461, 4
      %v5464 = vrot.slane %v4647, 5
      %v5465 = vsel %vm2307, %v5463, %v5464
      %v5466 = vrot.slane %v5360, 5
      %v5467 = vrot.slane %v5466, 4
      %v5468 = vrot.slane %v4649, 5
      %v5469 = vsel %vm2307, %v5467, %v5468
      %v5470 = vrot.slane %v5468, 4
      %v5471 = vrot.slane %v4650, 5
      %v5472 = vsel %vm2307, %v5470, %v5471
      %v5473 = vrot.slane %v5361, 5
      %v5474 = vrot.slane %v5473, 4
      %v5475 = vrot.slane %v4652, 5
      %v5476 = vsel %vm2307, %v5474, %v5475
      %v5477 = vrot.slane %v5475, 4
      %v5478 = vrot.slane %v4653, 5
      %v5479 = vsel %vm2307, %v5477, %v5478
      %v5480 = vrot.slane %v5362, 5
      %v5481 = vrot.slane %v5480, 4
      %v5482 = vrot.slane %v4655, 5
      %v5483 = vsel %vm2307, %v5481, %v5482
      %v5484 = vrot.slane %v5482, 4
      %v5485 = vrot.slane %v4656, 5
      %v5486 = vsel %vm2307, %v5484, %v5485
      %v5487 = vrot.slane %v5363, 5
      %v5488 = vrot.slane %v5487, 4
      %v5489 = vrot.slane %v4658, 5
      %v5490 = vsel %vm2307, %v5488, %v5489
      %v5491 = vrot.slane %v5489, 4
      %v5492 = vrot.slane %v4659, 5
      %v5493 = vsel %vm2307, %v5491, %v5492
      %v5494 = vrot.slane %v5364, 5
      %v5495 = vrot.slane %v5494, 4
      %v5496 = vrot.slane %v4661, 5
      %v5497 = vsel %vm2307, %v5495, %v5496
      %v5498 = vrot.slane %v5496, 4
      %v5499 = vrot.slane %v4662, 5
      %v5500 = vsel %vm2307, %v5498, %v5499
      %v5501 = vrot.slane %v5365, 5
      %v5502 = vrot.slane %v5501, 4
      %v5503 = vrot.slane %v4664, 5
      %v5504 = vsel %vm2307, %v5502, %v5503
      %v5505 = vrot.slane %v5503, 4
      %v5506 = vrot.slane %v4665, 5
      %v5507 = vsel %vm2307, %v5505, %v5506
      %v5508 = vrot.slane %v5366, 5
      %v5509 = vrot.slane %v5508, 4
      %v5510 = vrot.slane %v4667, 5
      %v5511 = vsel %vm2307, %v5509, %v5510
      %v5512 = vrot.slane %v5510, 4
      %v5513 = vrot.slane %v4668, 5
      %v5514 = vsel %vm2307, %v5512, %v5513
      %v5515 = vrot.slane %v5367, 5
      %v5516 = vrot.slane %v5515, 4
      %v5517 = vrot.slane %v4670, 5
      %v5518 = vsel %vm2307, %v5516, %v5517
      %v5519 = vrot.slane %v5517, 4
      %v5520 = vrot.slane %v4671, 5
      %v5521 = vsel %vm2307, %v5519, %v5520
      %v5522 = vrot.slane %v5368, 5
      %v5523 = vrot.slane %v5522, 4
      %v5524 = vrot.slane %v4673, 5
      %v5525 = vsel %vm2307, %v5523, %v5524
      %v5526 = vrot.slane %v5524, 4
      %v5527 = vrot.slane %v4674, 5
      %v5528 = vsel %vm2307, %v5526, %v5527
      %s5529 = scalar_lea.vmem %s2, 32
      %v5530 = vld [vmem:[%s5529] sm:$0xf]
      %v5531 = vunpack.c.l.b16 %v5420
      %v5532 = vunpack.c.l.b16 %v5423
      %v5533 = vunpack.c.l.b16 %v5427
      %v5534 = vunpack.c.l.b16 %v5430
      %v5535 = vunpack.c.l.b16 %v5434
      %v5536 = vunpack.c.l.b16 %v5437
      %v5537 = vunpack.c.l.b16 %v5441
      %v5538 = vunpack.c.l.b16 %v5444
      %v5539 = vunpack.c.l.b16 %v5448
      %v5540 = vunpack.c.l.b16 %v5451
      %v5541 = vunpack.c.l.b16 %v5455
      %v5542 = vunpack.c.l.b16 %v5458
      %v5543 = vunpack.c.l.b16 %v5462
      %v5544 = vunpack.c.l.b16 %v5465
      %v5545 = vunpack.c.l.b16 %v5469
      %v5546 = vunpack.c.l.b16 %v5472
      %v5547 = vunpack.c.l.b16 %v5476
      %v5548 = vunpack.c.l.b16 %v5479
      %v5549 = vunpack.c.l.b16 %v5483
      %v5550 = vunpack.c.l.b16 %v5486
      %v5551 = vunpack.c.l.b16 %v5490
      %v5552 = vunpack.c.l.b16 %v5493
      %v5553 = vunpack.c.l.b16 %v5497
      %v5554 = vunpack.c.l.b16 %v5500
      %v5555 = vunpack.c.l.b16 %v5504
      %v5556 = vunpack.c.l.b16 %v5507
      %v5557 = vunpack.c.l.b16 %v5511
      %v5558 = vunpack.c.l.b16 %v5514
      %v5559 = vunpack.c.l.b16 %v5518
      %v5560 = vunpack.c.l.b16 %v5521
      %v5561 = vunpack.c.l.b16 %v5525
      %v5562 = vunpack.c.l.b16 %v5528
      %v5563 = vpack.c.b16 %v5532, %v5531
      %v5564 = vpack.c.b16 %v5534, %v5533
      %v5565 = vpack.c.b16 %v5536, %v5535
      %v5566 = vpack.c.b16 %v5538, %v5537
      %v5567 = vpack.c.b16 %v5540, %v5539
      %v5568 = vpack.c.b16 %v5542, %v5541
      %v5569 = vpack.c.b16 %v5544, %v5543
      %v5570 = vpack.c.b16 %v5546, %v5545
      %v5571 = vpack.c.b16 %v5548, %v5547
      %v5572 = vpack.c.b16 %v5550, %v5549
      %v5573 = vpack.c.b16 %v5552, %v5551
      %v5574 = vpack.c.b16 %v5554, %v5553
      %v5575 = vpack.c.b16 %v5556, %v5555
      %v5576 = vpack.c.b16 %v5558, %v5557
      %v5577 = vpack.c.b16 %v5560, %v5559
      %v5578 = vpack.c.b16 %v5562, %v5561
      %v5580 = vsel %vm1751, %v5563, 0
      %v5583 = vsel %vm1751, %v5564, 0
      %v5586 = vsel %vm1751, %v5565, 0
      %v5589 = vsel %vm1751, %v5566, 0
      %v5592 = vsel %vm1751, %v5567, 0
      %v5595 = vsel %vm1751, %v5568, 0
      %v5598 = vsel %vm1751, %v5569, 0
      %v5601 = vsel %vm1751, %v5570, 0
      %v5604 = vsel %vm1751, %v5571, 0
      %v5607 = vsel %vm1751, %v5572, 0
      %v5610 = vsel %vm1751, %v5573, 0
      %v5613 = vsel %vm1751, %v5574, 0
      %v5616 = vsel %vm1751, %v5575, 0
      %v5619 = vsel %vm1751, %v5576, 0
      %v5622 = vsel %vm1751, %v5577, 0
      %v5625 = vsel %vm1751, %v5578, 0
      %v5628 = vsel %vm1800, %v5530, 0
      %5630 = vmatprep.subr.bf16.mxu0 0
      %5631 = vmatpush1.bf16.msra.mxu0 %v5628
      %5632 = vmatprep.subr.bf16.mxu0 0
      %5633 = vmatpush1.bf16.msra.mxu0 0
      %5634 = vmatprep.subr.bf16.mxu0 0
      %5635 = vmatpush1.bf16.msra.mxu0 0
      %5636 = vmatprep.subr.bf16.mxu0 0
      %5637 = vmatpush1.bf16.msra.mxu0 0
      %5638 = vmatprep.subr.bf16.mxu0 0
      %5639 = vmatpush1.bf16.msra.mxu0 0
      %5640 = vmatprep.subr.bf16.mxu0 0
      %5641 = vmatpush1.bf16.msra.mxu0 0
      %5642 = vmatprep.subr.bf16.mxu0 0
      %5643 = vmatpush1.bf16.msra.mxu0 0
      %5644 = vmatprep.subr.bf16.mxu0 0
      %5645 = vmatpush1.bf16.msra.mxu0 0
      %5646 = vmatprep.subr.bf16.mxu0 0
      %5647 = vmatpush1.bf16.msra.mxu0 0
      %5648 = vmatprep.subr.bf16.mxu0 0
      %5649 = vmatpush1.bf16.msra.mxu0 0
      %5650 = vmatprep.subr.bf16.mxu0 0
      %5651 = vmatpush1.bf16.msra.mxu0 0
      %5652 = vmatprep.subr.bf16.mxu0 0
      %5653 = vmatpush1.bf16.msra.mxu0 0
      %5654 = vmatprep.subr.bf16.mxu0 0
      %5655 = vmatpush1.bf16.msra.mxu0 0
      %5656 = vmatprep.subr.bf16.mxu0 0
      %5657 = vmatpush1.bf16.msra.mxu0 0
      %5658 = vmatprep.subr.bf16.mxu0 0
      %5659 = vmatpush1.bf16.msra.mxu0 0
      %5660 = vmatprep.subr.bf16.mxu0 0
      %5661 = vmatpush1.bf16.msra.mxu0 0
      %5662 = vmatprep.mubr.bf16.mxu0 0
      %5663 = vmatmul.mubr.bf16.gmra.mrb[0].mxu0 %v5580
      %v5664 = vpop.f32.mrb[0].mxu0
      %v5665 = vadd.f32 0.0, %v5664
      %v5666 = vpop.f32.mrb[0].mxu0
      %v5667 = vpop.f32.mrb[0].mxu0
      %v5668 = vadd.f32 0.0, %v5667
      %v5669 = vpop.f32.mrb[0].mxu0
      %5670 = vmatprep.mubr.bf16.mxu0 0
      %5671 = vmatmul.mubr.bf16.gmra.mrb[0].mxu0 %v5583
      %v5672 = vpop.f32.mrb[0].mxu0
      %v5673 = vadd.f32 0.0, %v5672
      %v5674 = vpop.f32.mrb[0].mxu0
      %v5675 = vpop.f32.mrb[0].mxu0
      %v5676 = vadd.f32 0.0, %v5675
      %v5677 = vpop.f32.mrb[0].mxu0
      %5678 = vmatprep.mubr.bf16.mxu0 0
      %5679 = vmatmul.mubr.bf16.gmra.mrb[0].mxu0 %v5586
      %v5680 = vpop.f32.mrb[0].mxu0
      %v5681 = vadd.f32 0.0, %v5680
      %v5682 = vpop.f32.mrb[0].mxu0
      %v5683 = vpop.f32.mrb[0].mxu0
      %v5684 = vadd.f32 0.0, %v5683
      %v5685 = vpop.f32.mrb[0].mxu0
      %5686 = vmatprep.mubr.bf16.mxu0 0
      %5687 = vmatmul.mubr.bf16.gmra.mrb[0].mxu0 %v5589
      %v5688 = vpop.f32.mrb[0].mxu0
      %v5689 = vadd.f32 0.0, %v5688
      %v5690 = vpop.f32.mrb[0].mxu0
      %v5691 = vpop.f32.mrb[0].mxu0
      %v5692 = vadd.f32 0.0, %v5691
      %v5693 = vpop.f32.mrb[0].mxu0
      %5694 = vmatprep.mubr.bf16.mxu0 0
      %5695 = vmatmul.mubr.bf16.gmra.mrb[0].mxu0 %v5592
      %v5696 = vpop.f32.mrb[0].mxu0
      %v5697 = vadd.f32 0.0, %v5696
      %v5698 = vpop.f32.mrb[0].mxu0
      %v5699 = vpop.f32.mrb[0].mxu0
      %v5700 = vadd.f32 0.0, %v5699
      %v5701 = vpop.f32.mrb[0].mxu0
      %5702 = vmatprep.mubr.bf16.mxu0 0
      %5703 = vmatmul.mubr.bf16.gmra.mrb[0].mxu0 %v5595
      %v5704 = vpop.f32.mrb[0].mxu0
      %v5705 = vadd.f32 0.0, %v5704
      %v5706 = vpop.f32.mrb[0].mxu0
      %v5707 = vpop.f32.mrb[0].mxu0
      %v5708 = vadd.f32 0.0, %v5707
      %v5709 = vpop.f32.mrb[0].mxu0
      %5710 = vmatprep.mubr.bf16.mxu0 0
      %5711 = vmatmul.mubr.bf16.gmra.mrb[0].mxu0 %v5598
      %v5712 = vpop.f32.mrb[0].mxu0
      %v5713 = vadd.f32 0.0, %v5712
      %v5714 = vpop.f32.mrb[0].mxu0
      %v5715 = vpop.f32.mrb[0].mxu0
      %v5716 = vadd.f32 0.0, %v5715
      %v5717 = vpop.f32.mrb[0].mxu0
      %5718 = vmatprep.mubr.bf16.mxu0 0
      %5719 = vmatmul.mubr.bf16.gmra.mrb[0].mxu0 %v5601
      %v5720 = vpop.f32.mrb[0].mxu0
      %v5721 = vadd.f32 0.0, %v5720
      %v5722 = vpop.f32.mrb[0].mxu0
      %v5723 = vpop.f32.mrb[0].mxu0
      %v5724 = vadd.f32 0.0, %v5723
      %v5725 = vpop.f32.mrb[0].mxu0
      %5726 = vmatprep.mubr.bf16.mxu0 0
      %5727 = vmatmul.mubr.bf16.gmra.mrb[0].mxu0 %v5604
      %v5728 = vpop.f32.mrb[0].mxu0
      %v5729 = vadd.f32 0.0, %v5728
      %v5730 = vpop.f32.mrb[0].mxu0
      %v5731 = vpop.f32.mrb[0].mxu0
      %v5732 = vadd.f32 0.0, %v5731
      %v5733 = vpop.f32.mrb[0].mxu0
      %5734 = vmatprep.mubr.bf16.mxu0 0
      %5735 = vmatmul.mubr.bf16.gmra.mrb[0].mxu0 %v5607
      %v5736 = vpop.f32.mrb[0].mxu0
      %v5737 = vadd.f32 0.0, %v5736
      %v5738 = vpop.f32.mrb[0].mxu0
      %v5739 = vpop.f32.mrb[0].mxu0
      %v5740 = vadd.f32 0.0, %v5739
      %v5741 = vpop.f32.mrb[0].mxu0
      %5742 = vmatprep.mubr.bf16.mxu0 0
      %5743 = vmatmul.mubr.bf16.gmra.mrb[0].mxu0 %v5610
      %v5744 = vpop.f32.mrb[0].mxu0
      %v5745 = vadd.f32 0.0, %v5744
      %v5746 = vpop.f32.mrb[0].mxu0
      %v5747 = vpop.f32.mrb[0].mxu0
      %v5748 = vadd.f32 0.0, %v5747
      %v5749 = vpop.f32.mrb[0].mxu0
      %5750 = vmatprep.mubr.bf16.mxu0 0
      %5751 = vmatmul.mubr.bf16.gmra.mrb[0].mxu0 %v5613
      %v5752 = vpop.f32.mrb[0].mxu0
      %v5753 = vadd.f32 0.0, %v5752
      %v5754 = vpop.f32.mrb[0].mxu0
      %v5755 = vpop.f32.mrb[0].mxu0
      %v5756 = vadd.f32 0.0, %v5755
      %v5757 = vpop.f32.mrb[0].mxu0
      %5758 = vmatprep.mubr.bf16.mxu0 0
      %5759 = vmatmul.mubr.bf16.gmra.mrb[0].mxu0 %v5616
      %v5760 = vpop.f32.mrb[0].mxu0
      %v5761 = vadd.f32 0.0, %v5760
      %v5762 = vpop.f32.mrb[0].mxu0
      %v5763 = vpop.f32.mrb[0].mxu0
      %v5764 = vadd.f32 0.0, %v5763
      %v5765 = vpop.f32.mrb[0].mxu0
      %5766 = vmatprep.mubr.bf16.mxu0 0
      %5767 = vmatmul.mubr.bf16.gmra.mrb[0].mxu0 %v5619
      %v5768 = vpop.f32.mrb[0].mxu0
      %v5769 = vadd.f32 0.0, %v5768
      %v5770 = vpop.f32.mrb[0].mxu0
      %v5771 = vpop.f32.mrb[0].mxu0
      %v5772 = vadd.f32 0.0, %v5771
      %v5773 = vpop.f32.mrb[0].mxu0
      %5774 = vmatprep.mubr.bf16.mxu0 0
      %5775 = vmatmul.mubr.bf16.gmra.mrb[0].mxu0 %v5622
      %v5776 = vpop.f32.mrb[0].mxu0
      %v5777 = vadd.f32 0.0, %v5776
      %v5778 = vpop.f32.mrb[0].mxu0
      %v5779 = vpop.f32.mrb[0].mxu0
      %v5780 = vadd.f32 0.0, %v5779
      %v5781 = vpop.f32.mrb[0].mxu0
      %5782 = vmatprep.mubr.bf16.mxu0 0
      %5783 = vmatmul.mubr.bf16.gmra.mrb[0].mxu0 %v5625
      %v5784 = vpop.f32.mrb[0].mxu0
      %v5785 = vadd.f32 0.0, %v5784
      %v5786 = vpop.f32.mrb[0].mxu0
      %v5787 = vpop.f32.mrb[0].mxu0
      %v5788 = vadd.f32 0.0, %v5787
      %v5789 = vpop.f32.mrb[0].mxu0
      %5790 = vdwg.mxu0
      %v5791 = vadd.f32 %v5321, %v5665
      %v5792 = vadd.f32 %v5322, %v5668
      %v5793 = vadd.f32 %v5323, %v5673
      %v5794 = vadd.f32 %v5324, %v5676
      %v5795 = vadd.f32 %v5325, %v5681
      %v5796 = vadd.f32 %v5326, %v5684
      %v5797 = vadd.f32 %v5327, %v5689
      %v5798 = vadd.f32 %v5328, %v5692
      %v5799 = vadd.f32 %v5329, %v5697
      %v5800 = vadd.f32 %v5330, %v5700
      %v5801 = vadd.f32 %v5331, %v5705
      %v5802 = vadd.f32 %v5332, %v5708
      %v5803 = vadd.f32 %v5333, %v5713
      %v5804 = vadd.f32 %v5334, %v5716
      %v5805 = vadd.f32 %v5335, %v5721
      %v5806 = vadd.f32 %v5336, %v5724
      %v5807 = vadd.f32 %v5337, %v5729
      %v5808 = vadd.f32 %v5338, %v5732
      %v5809 = vadd.f32 %v5339, %v5737
      %v5810 = vadd.f32 %v5340, %v5740
      %v5811 = vadd.f32 %v5341, %v5745
      %v5812 = vadd.f32 %v5342, %v5748
      %v5813 = vadd.f32 %v5343, %v5753
      %v5814 = vadd.f32 %v5344, %v5756
      %v5815 = vadd.f32 %v5345, %v5761
      %v5816 = vadd.f32 %v5346, %v5764
      %v5817 = vadd.f32 %v5347, %v5769
      %v5818 = vadd.f32 %v5348, %v5772
      %v5819 = vadd.f32 %v5349, %v5777
      %v5820 = vadd.f32 %v5350, %v5780
      %v5821 = vadd.f32 %v5351, %v5785
      %v5822 = vadd.f32 %v5352, %v5788
      %v5823 = vld [vmem:[%s3] sm:$0x1]
      %v5825 = vlaneseq
      %v5826 = vshrl.u32 %v5825, 7
      %v5827 = vsub.s32 0, %v5826
      %v5828 = vrot.slane %v5823, %v5827
      %v5830 = vmul.f32 %v5791, %v5828
      %v5831 = vmul.f32 %v5792, %v5828
      %v5832 = vmul.f32 %v5793, %v5828
      %v5833 = vmul.f32 %v5794, %v5828
      %v5834 = vmul.f32 %v5795, %v5828
      %v5835 = vmul.f32 %v5796, %v5828
      %v5836 = vmul.f32 %v5797, %v5828
      %v5837 = vmul.f32 %v5798, %v5828
      %v5838 = vmul.f32 %v5799, %v5828
      %v5839 = vmul.f32 %v5800, %v5828
      %v5840 = vmul.f32 %v5801, %v5828
      %v5841 = vmul.f32 %v5802, %v5828
      %v5842 = vmul.f32 %v5803, %v5828
      %v5843 = vmul.f32 %v5804, %v5828
      %v5844 = vmul.f32 %v5805, %v5828
      %v5845 = vmul.f32 %v5806, %v5828
      %v5846 = vmul.f32 %v5807, %v5828
      %v5847 = vmul.f32 %v5808, %v5828
      %v5848 = vmul.f32 %v5809, %v5828
      %v5849 = vmul.f32 %v5810, %v5828
      %v5850 = vmul.f32 %v5811, %v5828
      %v5851 = vmul.f32 %v5812, %v5828
      %v5852 = vmul.f32 %v5813, %v5828
      %v5853 = vmul.f32 %v5814, %v5828
      %v5854 = vmul.f32 %v5815, %v5828
      %v5855 = vmul.f32 %v5816, %v5828
      %v5856 = vmul.f32 %v5817, %v5828
      %v5857 = vmul.f32 %v5818, %v5828
      %v5858 = vmul.f32 %v5819, %v5828
      %v5859 = vmul.f32 %v5820, %v5828
      %v5860 = vmul.f32 %v5821, %v5828
      %v5861 = vmul.f32 %v5822, %v5828
      %v5862 = vld [vmem:[%s4] sm:$0x1]
      %v5864 = vlaneseq
      %v5865 = vshrl.u32 %v5864, 7
      %v5866 = vsub.s32 0, %v5865
      %v5867 = vrot.slane %v5862, %v5866
      %v5869 = vadd.f32 %v5830, %v5867
      %v5870 = vadd.f32 %v5831, %v5867
      %v5871 = vadd.f32 %v5832, %v5867
      %v5872 = vadd.f32 %v5833, %v5867
      %v5873 = vadd.f32 %v5834, %v5867
      %v5874 = vadd.f32 %v5835, %v5867
      %v5875 = vadd.f32 %v5836, %v5867
      %v5876 = vadd.f32 %v5837, %v5867
      %v5877 = vadd.f32 %v5838, %v5867
      %v5878 = vadd.f32 %v5839, %v5867
      %v5879 = vadd.f32 %v5840, %v5867
      %v5880 = vadd.f32 %v5841, %v5867
      %v5881 = vadd.f32 %v5842, %v5867
      %v5882 = vadd.f32 %v5843, %v5867
      %v5883 = vadd.f32 %v5844, %v5867
      %v5884 = vadd.f32 %v5845, %v5867
      %v5885 = vadd.f32 %v5846, %v5867
      %v5886 = vadd.f32 %v5847, %v5867
      %v5887 = vadd.f32 %v5848, %v5867
      %v5888 = vadd.f32 %v5849, %v5867
      %v5889 = vadd.f32 %v5850, %v5867
      %v5890 = vadd.f32 %v5851, %v5867
      %v5891 = vadd.f32 %v5852, %v5867
      %v5892 = vadd.f32 %v5853, %v5867
      %v5893 = vadd.f32 %v5854, %v5867
      %v5894 = vadd.f32 %v5855, %v5867
      %v5895 = vadd.f32 %v5856, %v5867
      %v5896 = vadd.f32 %v5857, %v5867
      %v5897 = vadd.f32 %v5858, %v5867
      %v5898 = vadd.f32 %v5859, %v5867
      %v5899 = vadd.f32 %v5860, %v5867
      %v5900 = vadd.f32 %v5861, %v5867
      %v5901 = vmax.f32 %v5869, 0.0
      %v5902 = vmax.f32 %v5870, 0.0
      %v5903 = vmax.f32 %v5871, 0.0
      %v5904 = vmax.f32 %v5872, 0.0
      %v5905 = vmax.f32 %v5873, 0.0
      %v5906 = vmax.f32 %v5874, 0.0
      %v5907 = vmax.f32 %v5875, 0.0
      %v5908 = vmax.f32 %v5876, 0.0
      %v5909 = vmax.f32 %v5877, 0.0
      %v5910 = vmax.f32 %v5878, 0.0
      %v5911 = vmax.f32 %v5879, 0.0
      %v5912 = vmax.f32 %v5880, 0.0
      %v5913 = vmax.f32 %v5881, 0.0
      %v5914 = vmax.f32 %v5882, 0.0
      %v5915 = vmax.f32 %v5883, 0.0
      %v5916 = vmax.f32 %v5884, 0.0
      %v5917 = vmax.f32 %v5885, 0.0
      %v5918 = vmax.f32 %v5886, 0.0
      %v5919 = vmax.f32 %v5887, 0.0
      %v5920 = vmax.f32 %v5888, 0.0
      %v5921 = vmax.f32 %v5889, 0.0
      %v5922 = vmax.f32 %v5890, 0.0
      %v5923 = vmax.f32 %v5891, 0.0
      %v5924 = vmax.f32 %v5892, 0.0
      %v5925 = vmax.f32 %v5893, 0.0
      %v5926 = vmax.f32 %v5894, 0.0
      %v5927 = vmax.f32 %v5895, 0.0
      %v5928 = vmax.f32 %v5896, 0.0
      %v5929 = vmax.f32 %v5897, 0.0
      %v5930 = vmax.f32 %v5898, 0.0
      %v5931 = vmax.f32 %v5899, 0.0
      %v5932 = vmax.f32 %v5900, 0.0
      %v5933 = vpack.c.bf16 %v5902, %v5901
      %v5934 = vpack.c.bf16 %v5904, %v5903
      %v5935 = vpack.c.bf16 %v5906, %v5905
      %v5936 = vpack.c.bf16 %v5908, %v5907
      %v5937 = vpack.c.bf16 %v5910, %v5909
      %v5938 = vpack.c.bf16 %v5912, %v5911
      %v5939 = vpack.c.bf16 %v5914, %v5913
      %v5940 = vpack.c.bf16 %v5916, %v5915
      %v5941 = vpack.c.bf16 %v5918, %v5917
      %v5942 = vpack.c.bf16 %v5920, %v5919
      %v5943 = vpack.c.bf16 %v5922, %v5921
      %v5944 = vpack.c.bf16 %v5924, %v5923
      %v5945 = vpack.c.bf16 %v5926, %v5925
      %v5946 = vpack.c.bf16 %v5928, %v5927
      %v5947 = vpack.c.bf16 %v5930, %v5929
      %v5948 = vpack.c.bf16 %v5932, %v5931
      %v5965 = vunpack.c.l.b16 %v5933
      %v5966 = vunpack.c.h.b16 %v5933
      %v5967 = vunpack.c.l.b16 %v5934
      %v5968 = vunpack.c.h.b16 %v5934
      %v5969 = vunpack.c.l.b16 %v5935
      %v5970 = vunpack.c.h.b16 %v5935
      %v5971 = vunpack.c.l.b16 %v5936
      %v5972 = vunpack.c.h.b16 %v5936
      %v5973 = vunpack.c.l.b16 %v5937
      %v5974 = vunpack.c.h.b16 %v5937
      %v5975 = vunpack.c.l.b16 %v5938
      %v5976 = vunpack.c.h.b16 %v5938
      %v5977 = vunpack.c.l.b16 %v5939
      %v5978 = vunpack.c.h.b16 %v5939
      %v5979 = vunpack.c.l.b16 %v5940
      %v5980 = vunpack.c.h.b16 %v5940
      %v5981 = vunpack.c.l.b16 %v5941
      %v5982 = vunpack.c.h.b16 %v5941
      %v5983 = vunpack.c.l.b16 %v5942
      %v5984 = vunpack.c.h.b16 %v5942
      %v5985 = vunpack.c.l.b16 %v5943
      %v5986 = vunpack.c.h.b16 %v5943
      %v5987 = vunpack.c.l.b16 %v5944
      %v5988 = vunpack.c.h.b16 %v5944
      %v5989 = vunpack.c.l.b16 %v5945
      %v5990 = vunpack.c.h.b16 %v5945
      %v5991 = vunpack.c.l.b16 %v5946
      %v5992 = vunpack.c.h.b16 %v5946
      %v5993 = vunpack.c.l.b16 %v5947
      %v5994 = vunpack.c.h.b16 %v5947
      %v5995 = vunpack.c.l.b16 %v5948
      %v5996 = vunpack.c.h.b16 %v5948
      %v5997 = vpack.c.b16 %v5965, %v5965
      %v5998 = vpack.c.b16 %v5966, %v5966
      %v5999 = vpack.c.b16 %v5967, %v5967
      %v6000 = vpack.c.b16 %v5968, %v5968
      %v6001 = vpack.c.b16 %v5969, %v5969
      %v6002 = vpack.c.b16 %v5970, %v5970
      %v6003 = vpack.c.b16 %v5971, %v5971
      %v6004 = vpack.c.b16 %v5972, %v5972
      %v6005 = vpack.c.b16 %v5973, %v5973
      %v6006 = vpack.c.b16 %v5974, %v5974
      %v6007 = vpack.c.b16 %v5975, %v5975
      %v6008 = vpack.c.b16 %v5976, %v5976
      %v6009 = vpack.c.b16 %v5977, %v5977
      %v6010 = vpack.c.b16 %v5978, %v5978
      %v6011 = vpack.c.b16 %v5979, %v5979
      %v6012 = vpack.c.b16 %v5980, %v5980
      %v6013 = vpack.c.b16 %v5981, %v5981
      %v6014 = vpack.c.b16 %v5982, %v5982
      %v6015 = vpack.c.b16 %v5983, %v5983
      %v6016 = vpack.c.b16 %v5984, %v5984
      %v6017 = vpack.c.b16 %v5985, %v5985
      %v6018 = vpack.c.b16 %v5986, %v5986
      %v6019 = vpack.c.b16 %v5987, %v5987
      %v6020 = vpack.c.b16 %v5988, %v5988
      %v6021 = vpack.c.b16 %v5989, %v5989
      %v6022 = vpack.c.b16 %v5990, %v5990
      %v6023 = vpack.c.b16 %v5991, %v5991
      %v6024 = vpack.c.b16 %v5992, %v5992
      %v6025 = vpack.c.b16 %v5993, %v5993
      %v6026 = vpack.c.b16 %v5994, %v5994
      %v6027 = vpack.c.b16 %v5995, %v5995
      %v6028 = vpack.c.b16 %v5996, %v5996
      %v6030 = vshrl.u32 %v5997, 16
      %v6032 = vrot.slane %v6030, 7
      %v6033 = vshll.u32 %v5997, 16
      %v6035 = vor.u32 %v6032, %v6033
      %v6036 = vrot.slane %v6032, 4
      %v6038 = vshrl.u32 %v5998, 16
      %v6040 = vrot.slane %v6038, 7
      %v6041 = vshll.u32 %v5998, 16
      %v6043 = vor.u32 %v6040, %v6041
      %v6044 = vsel %vm826, %v6036, %v6043
      %v6045 = vrot.slane %v6040, 4
      %v6047 = vshrl.u32 %v5999, 16
      %v6049 = vrot.slane %v6047, 7
      %v6050 = vshll.u32 %v5999, 16
      %v6052 = vor.u32 %v6049, %v6050
      %v6053 = vrot.slane %v6049, 4
      %v6055 = vshrl.u32 %v6000, 16
      %v6057 = vrot.slane %v6055, 7
      %v6058 = vshll.u32 %v6000, 16
      %v6060 = vor.u32 %v6057, %v6058
      %v6061 = vsel %vm826, %v6053, %v6060
      %v6062 = vrot.slane %v6057, 4
      %v6064 = vshrl.u32 %v6001, 16
      %v6066 = vrot.slane %v6064, 7
      %v6067 = vshll.u32 %v6001, 16
      %v6069 = vor.u32 %v6066, %v6067
      %v6070 = vrot.slane %v6066, 4
      %v6072 = vshrl.u32 %v6002, 16
      %v6074 = vrot.slane %v6072, 7
      %v6075 = vshll.u32 %v6002, 16
      %v6077 = vor.u32 %v6074, %v6075
      %v6078 = vsel %vm826, %v6070, %v6077
      %v6079 = vrot.slane %v6074, 4
      %v6081 = vshrl.u32 %v6003, 16
      %v6083 = vrot.slane %v6081, 7
      %v6084 = vshll.u32 %v6003, 16
      %v6086 = vor.u32 %v6083, %v6084
      %v6087 = vrot.slane %v6083, 4
      %v6089 = vshrl.u32 %v6004, 16
      %v6091 = vrot.slane %v6089, 7
      %v6092 = vshll.u32 %v6004, 16
      %v6094 = vor.u32 %v6091, %v6092
      %v6095 = vsel %vm826, %v6087, %v6094
      %v6096 = vrot.slane %v6091, 4
      %v6098 = vshrl.u32 %v6005, 16
      %v6100 = vrot.slane %v6098, 7
      %v6101 = vshll.u32 %v6005, 16
      %v6103 = vor.u32 %v6100, %v6101
      %v6104 = vrot.slane %v6100, 4
      %v6106 = vshrl.u32 %v6006, 16
      %v6108 = vrot.slane %v6106, 7
      %v6109 = vshll.u32 %v6006, 16
      %v6111 = vor.u32 %v6108, %v6109
      %v6112 = vsel %vm826, %v6104, %v6111
      %v6113 = vrot.slane %v6108, 4
      %v6115 = vshrl.u32 %v6007, 16
      %v6117 = vrot.slane %v6115, 7
      %v6118 = vshll.u32 %v6007, 16
      %v6120 = vor.u32 %v6117, %v6118
      %v6121 = vrot.slane %v6117, 4
      %v6123 = vshrl.u32 %v6008, 16
      %v6125 = vrot.slane %v6123, 7
      %v6126 = vshll.u32 %v6008, 16
      %v6128 = vor.u32 %v6125, %v6126
      %v6129 = vsel %vm826, %v6121, %v6128
      %v6130 = vrot.slane %v6125, 4
      %v6132 = vshrl.u32 %v6009, 16
      %v6134 = vrot.slane %v6132, 7
      %v6135 = vshll.u32 %v6009, 16
      %v6137 = vor.u32 %v6134, %v6135
      %v6138 = vrot.slane %v6134, 4
      %v6140 = vshrl.u32 %v6010, 16
      %v6142 = vrot.slane %v6140, 7
      %v6143 = vshll.u32 %v6010, 16
      %v6145 = vor.u32 %v6142, %v6143
      %v6146 = vsel %vm826, %v6138, %v6145
      %v6147 = vrot.slane %v6142, 4
      %v6149 = vshrl.u32 %v6011, 16
      %v6151 = vrot.slane %v6149, 7
      %v6152 = vshll.u32 %v6011, 16
      %v6154 = vor.u32 %v6151, %v6152
      %v6155 = vrot.slane %v6151, 4
      %v6157 = vshrl.u32 %v6012, 16
      %v6159 = vrot.slane %v6157, 7
      %v6160 = vshll.u32 %v6012, 16
      %v6162 = vor.u32 %v6159, %v6160
      %v6163 = vsel %vm826, %v6155, %v6162
      %v6164 = vrot.slane %v6159, 4
      %v6166 = vshrl.u32 %v6013, 16
      %v6168 = vrot.slane %v6166, 7
      %v6169 = vshll.u32 %v6013, 16
      %v6171 = vor.u32 %v6168, %v6169
      %v6172 = vrot.slane %v6168, 4
      %v6174 = vshrl.u32 %v6014, 16
      %v6176 = vrot.slane %v6174, 7
      %v6177 = vshll.u32 %v6014, 16
      %v6179 = vor.u32 %v6176, %v6177
      %v6180 = vsel %vm826, %v6172, %v6179
      %v6181 = vrot.slane %v6176, 4
      %v6183 = vshrl.u32 %v6015, 16
      %v6185 = vrot.slane %v6183, 7
      %v6186 = vshll.u32 %v6015, 16
      %v6188 = vor.u32 %v6185, %v6186
      %v6189 = vrot.slane %v6185, 4
      %v6191 = vshrl.u32 %v6016, 16
      %v6193 = vrot.slane %v6191, 7
      %v6194 = vshll.u32 %v6016, 16
      %v6196 = vor.u32 %v6193, %v6194
      %v6197 = vsel %vm826, %v6189, %v6196
      %v6198 = vrot.slane %v6193, 4
      %v6200 = vshrl.u32 %v6017, 16
      %v6202 = vrot.slane %v6200, 7
      %v6203 = vshll.u32 %v6017, 16
      %v6205 = vor.u32 %v6202, %v6203
      %v6206 = vrot.slane %v6202, 4
      %v6208 = vshrl.u32 %v6018, 16
      %v6210 = vrot.slane %v6208, 7
      %v6211 = vshll.u32 %v6018, 16
      %v6213 = vor.u32 %v6210, %v6211
      %v6214 = vsel %vm826, %v6206, %v6213
      %v6215 = vrot.slane %v6210, 4
      %v6217 = vshrl.u32 %v6019, 16
      %v6219 = vrot.slane %v6217, 7
      %v6220 = vshll.u32 %v6019, 16
      %v6222 = vor.u32 %v6219, %v6220
      %v6223 = vrot.slane %v6219, 4
      %v6225 = vshrl.u32 %v6020, 16
      %v6227 = vrot.slane %v6225, 7
      %v6228 = vshll.u32 %v6020, 16
      %v6230 = vor.u32 %v6227, %v6228
      %v6231 = vsel %vm826, %v6223, %v6230
      %v6232 = vrot.slane %v6227, 4
      %v6234 = vshrl.u32 %v6021, 16
      %v6236 = vrot.slane %v6234, 7
      %v6237 = vshll.u32 %v6021, 16
      %v6239 = vor.u32 %v6236, %v6237
      %v6240 = vrot.slane %v6236, 4
      %v6242 = vshrl.u32 %v6022, 16
      %v6244 = vrot.slane %v6242, 7
      %v6245 = vshll.u32 %v6022, 16
      %v6247 = vor.u32 %v6244, %v6245
      %v6248 = vsel %vm826, %v6240, %v6247
      %v6249 = vrot.slane %v6244, 4
      %v6251 = vshrl.u32 %v6023, 16
      %v6253 = vrot.slane %v6251, 7
      %v6254 = vshll.u32 %v6023, 16
      %v6256 = vor.u32 %v6253, %v6254
      %v6257 = vrot.slane %v6253, 4
      %v6259 = vshrl.u32 %v6024, 16
      %v6261 = vrot.slane %v6259, 7
      %v6262 = vshll.u32 %v6024, 16
      %v6264 = vor.u32 %v6261, %v6262
      %v6265 = vsel %vm826, %v6257, %v6264
      %v6266 = vrot.slane %v6261, 4
      %v6268 = vshrl.u32 %v6025, 16
      %v6270 = vrot.slane %v6268, 7
      %v6271 = vshll.u32 %v6025, 16
      %v6273 = vor.u32 %v6270, %v6271
      %v6274 = vrot.slane %v6270, 4
      %v6276 = vshrl.u32 %v6026, 16
      %v6278 = vrot.slane %v6276, 7
      %v6279 = vshll.u32 %v6026, 16
      %v6281 = vor.u32 %v6278, %v6279
      %v6282 = vsel %vm826, %v6274, %v6281
      %v6283 = vrot.slane %v6278, 4
      %v6285 = vshrl.u32 %v6027, 16
      %v6287 = vrot.slane %v6285, 7
      %v6288 = vshll.u32 %v6027, 16
      %v6290 = vor.u32 %v6287, %v6288
      %v6291 = vrot.slane %v6287, 4
      %v6293 = vshrl.u32 %v6028, 16
      %v6295 = vrot.slane %v6293, 7
      %v6296 = vshll.u32 %v6028, 16
      %v6298 = vor.u32 %v6295, %v6296
      %v6299 = vsel %vm826, %v6291, %v6298
      %v6300 = vrot.slane %v6295, 4
      %s6349 = scalar_lea.vmem [#allocation3], 12
      %vm6350 = vcmask 27648
      %vm6351 = vmand %vm6350, %vm1149
      %v6352 = vld [vmem:[%s6349] sm:$0xf]
      %v6353 = vsel %vm6351, %v6035, %v6352
      %6354 = vst [vmem:[%s6349] sm:$0xf] %v6353
      %6355 = vst.msk [vmem:[%s6349 + $0x4] sm:$0xf] %vm383, %v6044
      %vm6356 = vcmask 24576
      %vm6357 = vmand %vm6356, %vm824
      %v6358 = vld [vmem:[%s6349 + $0x8] sm:$0x1]
      %v6359 = vsel %vm6357, %v6045, %v6358
      %6360 = vst [vmem:[%s6349 + $0x8] sm:$0x1] %v6359
      %v6361 = vld [vmem:[%s6349 + $0xc] sm:$0xf]
      %v6362 = vsel %vm6351, %v6052, %v6361
      %6363 = vst [vmem:[%s6349 + $0xc] sm:$0xf] %v6362
      %6364 = vst.msk [vmem:[%s6349 + $0x10] sm:$0xf] %vm383, %v6061
      %v6365 = vld [vmem:[%s6349 + $0x14] sm:$0x1]
      %v6366 = vsel %vm6357, %v6062, %v6365
      %6367 = vst [vmem:[%s6349 + $0x14] sm:$0x1] %v6366
      %v6368 = vld [vmem:[%s6349 + $0x18] sm:$0xf]
      %v6369 = vsel %vm6351, %v6069, %v6368
      %6370 = vst [vmem:[%s6349 + $0x18] sm:$0xf] %v6369
      %6371 = vst.msk [vmem:[%s6349 + $0x1c] sm:$0xf] %vm383, %v6078
      %v6372 = vld [vmem:[%s6349 + $0x20] sm:$0x1]
      %v6373 = vsel %vm6357, %v6079, %v6372
      %6374 = vst [vmem:[%s6349 + $0x20] sm:$0x1] %v6373
      %v6375 = vld [vmem:[%s6349 + $0x24] sm:$0xf]
      %v6376 = vsel %vm6351, %v6086, %v6375
      %6377 = vst [vmem:[%s6349 + $0x24] sm:$0xf] %v6376
      %6378 = vst.msk [vmem:[%s6349 + $0x28] sm:$0xf] %vm383, %v6095
      %v6379 = vld [vmem:[%s6349 + $0x2c] sm:$0x1]
      %v6380 = vsel %vm6357, %v6096, %v6379
      %6381 = vst [vmem:[%s6349 + $0x2c] sm:$0x1] %v6380
      %v6382 = vld [vmem:[%s6349 + $0x30] sm:$0xf]
      %v6383 = vsel %vm6351, %v6103, %v6382
      %6384 = vst [vmem:[%s6349 + $0x30] sm:$0xf] %v6383
      %6385 = vst.msk [vmem:[%s6349 + $0x34] sm:$0xf] %vm383, %v6112
      %v6386 = vld [vmem:[%s6349 + $0x38] sm:$0x1]
      %v6387 = vsel %vm6357, %v6113, %v6386
      %6388 = vst [vmem:[%s6349 + $0x38] sm:$0x1] %v6387
      %v6389 = vld [vmem:[%s6349 + $0x3c] sm:$0xf]
      %v6390 = vsel %vm6351, %v6120, %v6389
      %6391 = vst [vmem:[%s6349 + $0x3c] sm:$0xf] %v6390
      %6392 = vst.msk [vmem:[%s6349 + $0x40] sm:$0xf] %vm383, %v6129
      %v6393 = vld [vmem:[%s6349 + $0x44] sm:$0x1]
      %v6394 = vsel %vm6357, %v6130, %v6393
      %6395 = vst [vmem:[%s6349 + $0x44] sm:$0x1] %v6394
      %v6396 = vld [vmem:[%s6349 + $0x48] sm:$0xf]
      %v6397 = vsel %vm6351, %v6137, %v6396
      %6398 = vst [vmem:[%s6349 + $0x48] sm:$0xf] %v6397
      %6399 = vst.msk [vmem:[%s6349 + $0x4c] sm:$0xf] %vm383, %v6146
      %v6400 = vld [vmem:[%s6349 + $0x50] sm:$0x1]
      %v6401 = vsel %vm6357, %v6147, %v6400
      %6402 = vst [vmem:[%s6349 + $0x50] sm:$0x1] %v6401
      %v6403 = vld [vmem:[%s6349 + $0x54] sm:$0xf]
      %v6404 = vsel %vm6351, %v6154, %v6403
      %6405 = vst [vmem:[%s6349 + $0x54] sm:$0xf] %v6404
      %6406 = vst.msk [vmem:[%s6349 + $0x58] sm:$0xf] %vm383, %v6163
      %v6407 = vld [vmem:[%s6349 + $0x5c] sm:$0x1]
      %v6408 = vsel %vm6357, %v6164, %v6407
      %6409 = vst [vmem:[%s6349 + $0x5c] sm:$0x1] %v6408
      %v6410 = vld [vmem:[%s6349 + $0x60] sm:$0xf]
      %v6411 = vsel %vm6351, %v6171, %v6410
      %6412 = vst [vmem:[%s6349 + $0x60] sm:$0xf] %v6411
      %6413 = vst.msk [vmem:[%s6349 + $0x64] sm:$0xf] %vm383, %v6180
      %v6414 = vld [vmem:[%s6349 + $0x68] sm:$0x1]
      %v6415 = vsel %vm6357, %v6181, %v6414
      %6416 = vst [vmem:[%s6349 + $0x68] sm:$0x1] %v6415
      %v6417 = vld [vmem:[%s6349 + $0x6c] sm:$0xf]
      %v6418 = vsel %vm6351, %v6188, %v6417
      %6419 = vst [vmem:[%s6349 + $0x6c] sm:$0xf] %v6418
      %6420 = vst.msk [vmem:[%s6349 + $0x70] sm:$0xf] %vm383, %v6197
      %v6421 = vld [vmem:[%s6349 + $0x74] sm:$0x1]
      %v6422 = vsel %vm6357, %v6198, %v6421
      %6423 = vst [vmem:[%s6349 + $0x74] sm:$0x1] %v6422
      %v6424 = vld [vmem:[%s6349 + $0x78] sm:$0xf]
      %v6425 = vsel %vm6351, %v6205, %v6424
      %6426 = vst [vmem:[%s6349 + $0x78] sm:$0xf] %v6425
      %6427 = vst.msk [vmem:[%s6349 + $0x7c] sm:$0xf] %vm383, %v6214
      %v6428 = vld [vmem:[%s6349 + $0x80] sm:$0x1]
      %v6429 = vsel %vm6357, %v6215, %v6428
      %6430 = vst [vmem:[%s6349 + $0x80] sm:$0x1] %v6429
      %v6431 = vld [vmem:[%s6349 + $0x84] sm:$0xf]
      %v6432 = vsel %vm6351, %v6222, %v6431
      %6433 = vst [vmem:[%s6349 + $0x84] sm:$0xf] %v6432
      %6434 = vst.msk [vmem:[%s6349 + $0x88] sm:$0xf] %vm383, %v6231
      %v6435 = vld [vmem:[%s6349 + $0x8c] sm:$0x1]
      %v6436 = vsel %vm6357, %v6232, %v6435
      %6437 = vst [vmem:[%s6349 + $0x8c] sm:$0x1] %v6436
      %v6438 = vld [vmem:[%s6349 + $0x90] sm:$0xf]
      %v6439 = vsel %vm6351, %v6239, %v6438
      %6440 = vst [vmem:[%s6349 + $0x90] sm:$0xf] %v6439
      %6441 = vst.msk [vmem:[%s6349 + $0x94] sm:$0xf] %vm383, %v6248
      %v6442 = vld [vmem:[%s6349 + $0x98] sm:$0x1]
      %v6443 = vsel %vm6357, %v6249, %v6442
      %6444 = vst [vmem:[%s6349 + $0x98] sm:$0x1] %v6443
      %v6445 = vld [vmem:[%s6349 + $0x9c] sm:$0xf]
      %v6446 = vsel %vm6351, %v6256, %v6445
      %6447 = vst [vmem:[%s6349 + $0x9c] sm:$0xf] %v6446
      %6448 = vst.msk [vmem:[%s6349 + $0xa0] sm:$0xf] %vm383, %v6265
      %v6449 = vld [vmem:[%s6349 + $0xa4] sm:$0x1]
      %v6450 = vsel %vm6357, %v6266, %v6449
      %6451 = vst [vmem:[%s6349 + $0xa4] sm:$0x1] %v6450
      %v6452 = vld [vmem:[%s6349 + $0xa8] sm:$0xf]
      %v6453 = vsel %vm6351, %v6273, %v6452
      %6454 = vst [vmem:[%s6349 + $0xa8] sm:$0xf] %v6453
      %6455 = vst.msk [vmem:[%s6349 + $0xac] sm:$0xf] %vm383, %v6282
      %v6456 = vld [vmem:[%s6349 + $0xb0] sm:$0x1]
      %v6457 = vsel %vm6357, %v6283, %v6456
      %6458 = vst [vmem:[%s6349 + $0xb0] sm:$0x1] %v6457
      %v6459 = vld [vmem:[%s6349 + $0xb4] sm:$0xf]
      %v6460 = vsel %vm6351, %v6290, %v6459
      %6461 = vst [vmem:[%s6349 + $0xb4] sm:$0xf] %v6460
      %6462 = vst.msk [vmem:[%s6349 + $0xb8] sm:$0xf] %vm383, %v6299
      %v6463 = vld [vmem:[%s6349 + $0xbc] sm:$0x1]
      %v6464 = vsel %vm6357, %v6300, %v6463
      %6465 = vst [vmem:[%s6349 + $0xbc] sm:$0x1] %v6464
      %v6466 = vld [vmem:[#allocation3] sm:$0xf]
      %v6467 = vld [vmem:[#allocation3 + $0x4] sm:$0xf]
      %v6468 = vld [vmem:[#allocation3 + $0xc] sm:$0xf]
      %v6469 = vld [vmem:[#allocation3 + $0x10] sm:$0xf]
      %v6470 = vld [vmem:[#allocation3 + $0x18] sm:$0xf]
      %v6471 = vld [vmem:[#allocation3 + $0x1c] sm:$0xf]
      %v6472 = vld [vmem:[#allocation3 + $0x24] sm:$0xf]
      %v6473 = vld [vmem:[#allocation3 + $0x28] sm:$0xf]
      %v6474 = vld [vmem:[#allocation3 + $0x30] sm:$0xf]
      %v6475 = vld [vmem:[#allocation3 + $0x34] sm:$0xf]
      %v6476 = vld [vmem:[#allocation3 + $0x3c] sm:$0xf]
      %v6477 = vld [vmem:[#allocation3 + $0x40] sm:$0xf]
      %v6478 = vld [vmem:[#allocation3 + $0x48] sm:$0xf]
      %v6479 = vld [vmem:[#allocation3 + $0x4c] sm:$0xf]
      %v6480 = vld [vmem:[#allocation3 + $0x54] sm:$0xf]
      %v6481 = vld [vmem:[#allocation3 + $0x58] sm:$0xf]
      %v6482 = vld [vmem:[#allocation3 + $0x60] sm:$0xf]
      %v6483 = vld [vmem:[#allocation3 + $0x64] sm:$0xf]
      %v6484 = vld [vmem:[#allocation3 + $0x6c] sm:$0xf]
      %v6485 = vld [vmem:[#allocation3 + $0x70] sm:$0xf]
      %v6486 = vld [vmem:[#allocation3 + $0x78] sm:$0xf]
      %v6487 = vld [vmem:[#allocation3 + $0x7c] sm:$0xf]
      %v6488 = vld [vmem:[#allocation3 + $0x84] sm:$0xf]
      %v6489 = vld [vmem:[#allocation3 + $0x88] sm:$0xf]
      %v6490 = vld [vmem:[#allocation3 + $0x90] sm:$0xf]
      %v6491 = vld [vmem:[#allocation3 + $0x94] sm:$0xf]
      %v6492 = vld [vmem:[#allocation3 + $0x9c] sm:$0xf]
      %v6493 = vld [vmem:[#allocation3 + $0xa0] sm:$0xf]
      %v6494 = vld [vmem:[#allocation3 + $0xa8] sm:$0xf]
      %v6495 = vld [vmem:[#allocation3 + $0xac] sm:$0xf]
      %v6496 = vld [vmem:[#allocation3 + $0xb4] sm:$0xf]
      %v6497 = vld [vmem:[#allocation3 + $0xb8] sm:$0xf]
      %v6498 = vld [vmem:[%s5] sm:$0x3]
      %v6499 = vld [vmem:[#allocation3 + $0x8] sm:$0x1]
      %v6500 = vld [vmem:[#allocation3 + $0x14] sm:$0x1]
      %v6501 = vld [vmem:[#allocation3 + $0x20] sm:$0x1]
      %v6502 = vld [vmem:[#allocation3 + $0x2c] sm:$0x1]
      %v6503 = vld [vmem:[#allocation3 + $0x38] sm:$0x1]
      %v6504 = vld [vmem:[#allocation3 + $0x44] sm:$0x1]
      %v6505 = vld [vmem:[#allocation3 + $0x50] sm:$0x1]
      %v6506 = vld [vmem:[#allocation3 + $0x5c] sm:$0x1]
      %v6507 = vld [vmem:[#allocation3 + $0x68] sm:$0x1]
      %v6508 = vld [vmem:[#allocation3 + $0x74] sm:$0x1]
      %v6509 = vld [vmem:[#allocation3 + $0x80] sm:$0x1]
      %v6510 = vld [vmem:[#allocation3 + $0x8c] sm:$0x1]
      %v6511 = vld [vmem:[#allocation3 + $0x98] sm:$0x1]
      %v6512 = vld [vmem:[#allocation3 + $0xa4] sm:$0x1]
      %v6513 = vld [vmem:[#allocation3 + $0xb0] sm:$0x1]
      %v6514 = vld [vmem:[#allocation3 + $0xbc] sm:$0x1]
      %v6516 = vshrl.u32 %v6466, 16
      %v6518 = vrot.slane %v6516, 4
      %v6519 = vshll.u32 %v6466, 16
      %v6521 = vrot.slane %v6519, 5
      %v6522 = vor.u32 %v6518, %v6521
      %v6523 = vrot.slane %v6522, 4
      %v6525 = vshll.u32 %v6467, 16
      %v6527 = vrot.slane %v6525, 5
      %v6528 = vsel %vm1316, %v6523, %v6527
      %v6529 = vshrl.u32 %v6467, 16
      %v6531 = vrot.slane %v6529, 4
      %v6532 = vor.u32 %v6531, %v6527
      %v6533 = vrot.slane %v6532, 4
      %v6535 = vshll.u32 %v6499, 16
      %v6537 = vrot.slane %v6535, 5
      %v6538 = vsel %vm1316, %v6533, %v6537
      %v6540 = vshrl.u32 %v6468, 16
      %v6542 = vrot.slane %v6540, 4
      %v6543 = vshll.u32 %v6468, 16
      %v6545 = vrot.slane %v6543, 5
      %v6546 = vor.u32 %v6542, %v6545
      %v6547 = vrot.slane %v6546, 4
      %v6549 = vshll.u32 %v6469, 16
      %v6551 = vrot.slane %v6549, 5
      %v6552 = vsel %vm1316, %v6547, %v6551
      %v6553 = vshrl.u32 %v6469, 16
      %v6555 = vrot.slane %v6553, 4
      %v6556 = vor.u32 %v6555, %v6551
      %v6557 = vrot.slane %v6556, 4
      %v6559 = vshll.u32 %v6500, 16
      %v6561 = vrot.slane %v6559, 5
      %v6562 = vsel %vm1316, %v6557, %v6561
      %v6564 = vshrl.u32 %v6470, 16
      %v6566 = vrot.slane %v6564, 4
      %v6567 = vshll.u32 %v6470, 16
      %v6569 = vrot.slane %v6567, 5
      %v6570 = vor.u32 %v6566, %v6569
      %v6571 = vrot.slane %v6570, 4
      %v6573 = vshll.u32 %v6471, 16
      %v6575 = vrot.slane %v6573, 5
      %v6576 = vsel %vm1316, %v6571, %v6575
      %v6577 = vshrl.u32 %v6471, 16
      %v6579 = vrot.slane %v6577, 4
      %v6580 = vor.u32 %v6579, %v6575
      %v6581 = vrot.slane %v6580, 4
      %v6583 = vshll.u32 %v6501, 16
      %v6585 = vrot.slane %v6583, 5
      %v6586 = vsel %vm1316, %v6581, %v6585
      %v6588 = vshrl.u32 %v6472, 16
      %v6590 = vrot.slane %v6588, 4
      %v6591 = vshll.u32 %v6472, 16
      %v6593 = vrot.slane %v6591, 5
      %v6594 = vor.u32 %v6590, %v6593
      %v6595 = vrot.slane %v6594, 4
      %v6597 = vshll.u32 %v6473, 16
      %v6599 = vrot.slane %v6597, 5
      %v6600 = vsel %vm1316, %v6595, %v6599
      %v6601 = vshrl.u32 %v6473, 16
      %v6603 = vrot.slane %v6601, 4
      %v6604 = vor.u32 %v6603, %v6599
      %v6605 = vrot.slane %v6604, 4
      %v6607 = vshll.u32 %v6502, 16
      %v6609 = vrot.slane %v6607, 5
      %v6610 = vsel %vm1316, %v6605, %v6609
      %v6612 = vshrl.u32 %v6474, 16
      %v6614 = vrot.slane %v6612, 4
      %v6615 = vshll.u32 %v6474, 16
      %v6617 = vrot.slane %v6615, 5
      %v6618 = vor.u32 %v6614, %v6617
      %v6619 = vrot.slane %v6618, 4
      %v6621 = vshll.u32 %v6475, 16
      %v6623 = vrot.slane %v6621, 5
      %v6624 = vsel %vm1316, %v6619, %v6623
      %v6625 = vshrl.u32 %v6475, 16
      %v6627 = vrot.slane %v6625, 4
      %v6628 = vor.u32 %v6627, %v6623
      %v6629 = vrot.slane %v6628, 4
      %v6631 = vshll.u32 %v6503, 16
      %v6633 = vrot.slane %v6631, 5
      %v6634 = vsel %vm1316, %v6629, %v6633
      %v6636 = vshrl.u32 %v6476, 16
      %v6638 = vrot.slane %v6636, 4
      %v6639 = vshll.u32 %v6476, 16
      %v6641 = vrot.slane %v6639, 5
      %v6642 = vor.u32 %v6638, %v6641
      %v6643 = vrot.slane %v6642, 4
      %v6645 = vshll.u32 %v6477, 16
      %v6647 = vrot.slane %v6645, 5
      %v6648 = vsel %vm1316, %v6643, %v6647
      %v6649 = vshrl.u32 %v6477, 16
      %v6651 = vrot.slane %v6649, 4
      %v6652 = vor.u32 %v6651, %v6647
      %v6653 = vrot.slane %v6652, 4
      %v6655 = vshll.u32 %v6504, 16
      %v6657 = vrot.slane %v6655, 5
      %v6658 = vsel %vm1316, %v6653, %v6657
      %v6660 = vshrl.u32 %v6478, 16
      %v6662 = vrot.slane %v6660, 4
      %v6663 = vshll.u32 %v6478, 16
      %v6665 = vrot.slane %v6663, 5
      %v6666 = vor.u32 %v6662, %v6665
      %v6667 = vrot.slane %v6666, 4
      %v6669 = vshll.u32 %v6479, 16
      %v6671 = vrot.slane %v6669, 5
      %v6672 = vsel %vm1316, %v6667, %v6671
      %v6673 = vshrl.u32 %v6479, 16
      %v6675 = vrot.slane %v6673, 4
      %v6676 = vor.u32 %v6675, %v6671
      %v6677 = vrot.slane %v6676, 4
      %v6679 = vshll.u32 %v6505, 16
      %v6681 = vrot.slane %v6679, 5
      %v6682 = vsel %vm1316, %v6677, %v6681
      %v6684 = vshrl.u32 %v6480, 16
      %v6686 = vrot.slane %v6684, 4
      %v6687 = vshll.u32 %v6480, 16
      %v6689 = vrot.slane %v6687, 5
      %v6690 = vor.u32 %v6686, %v6689
      %v6691 = vrot.slane %v6690, 4
      %v6693 = vshll.u32 %v6481, 16
      %v6695 = vrot.slane %v6693, 5
      %v6696 = vsel %vm1316, %v6691, %v6695
      %v6697 = vshrl.u32 %v6481, 16
      %v6699 = vrot.slane %v6697, 4
      %v6700 = vor.u32 %v6699, %v6695
      %v6701 = vrot.slane %v6700, 4
      %v6703 = vshll.u32 %v6506, 16
      %v6705 = vrot.slane %v6703, 5
      %v6706 = vsel %vm1316, %v6701, %v6705
      %v6708 = vshrl.u32 %v6482, 16
      %v6710 = vrot.slane %v6708, 4
      %v6711 = vshll.u32 %v6482, 16
      %v6713 = vrot.slane %v6711, 5
      %v6714 = vor.u32 %v6710, %v6713
      %v6715 = vrot.slane %v6714, 4
      %v6717 = vshll.u32 %v6483, 16
      %v6719 = vrot.slane %v6717, 5
      %v6720 = vsel %vm1316, %v6715, %v6719
      %v6721 = vshrl.u32 %v6483, 16
      %v6723 = vrot.slane %v6721, 4
      %v6724 = vor.u32 %v6723, %v6719
      %v6725 = vrot.slane %v6724, 4
      %v6727 = vshll.u32 %v6507, 16
      %v6729 = vrot.slane %v6727, 5
      %v6730 = vsel %vm1316, %v6725, %v6729
      %v6732 = vshrl.u32 %v6484, 16
      %v6734 = vrot.slane %v6732, 4
      %v6735 = vshll.u32 %v6484, 16
      %v6737 = vrot.slane %v6735, 5
      %v6738 = vor.u32 %v6734, %v6737
      %v6739 = vrot.slane %v6738, 4
      %v6741 = vshll.u32 %v6485, 16
      %v6743 = vrot.slane %v6741, 5
      %v6744 = vsel %vm1316, %v6739, %v6743
      %v6745 = vshrl.u32 %v6485, 16
      %v6747 = vrot.slane %v6745, 4
      %v6748 = vor.u32 %v6747, %v6743
      %v6749 = vrot.slane %v6748, 4
      %v6751 = vshll.u32 %v6508, 16
      %v6753 = vrot.slane %v6751, 5
      %v6754 = vsel %vm1316, %v6749, %v6753
      %v6756 = vshrl.u32 %v6486, 16
      %v6758 = vrot.slane %v6756, 4
      %v6759 = vshll.u32 %v6486, 16
      %v6761 = vrot.slane %v6759, 5
      %v6762 = vor.u32 %v6758, %v6761
      %v6763 = vrot.slane %v6762, 4
      %v6765 = vshll.u32 %v6487, 16
      %v6767 = vrot.slane %v6765, 5
      %v6768 = vsel %vm1316, %v6763, %v6767
      %v6769 = vshrl.u32 %v6487, 16
      %v6771 = vrot.slane %v6769, 4
      %v6772 = vor.u32 %v6771, %v6767
      %v6773 = vrot.slane %v6772, 4
      %v6775 = vshll.u32 %v6509, 16
      %v6777 = vrot.slane %v6775, 5
      %v6778 = vsel %vm1316, %v6773, %v6777
      %v6780 = vshrl.u32 %v6488, 16
      %v6782 = vrot.slane %v6780, 4
      %v6783 = vshll.u32 %v6488, 16
      %v6785 = vrot.slane %v6783, 5
      %v6786 = vor.u32 %v6782, %v6785
      %v6787 = vrot.slane %v6786, 4
      %v6789 = vshll.u32 %v6489, 16
      %v6791 = vrot.slane %v6789, 5
      %v6792 = vsel %vm1316, %v6787, %v6791
      %v6793 = vshrl.u32 %v6489, 16
      %v6795 = vrot.slane %v6793, 4
      %v6796 = vor.u32 %v6795, %v6791
      %v6797 = vrot.slane %v6796, 4
      %v6799 = vshll.u32 %v6510, 16
      %v6801 = vrot.slane %v6799, 5
      %v6802 = vsel %vm1316, %v6797, %v6801
      %v6804 = vshrl.u32 %v6490, 16
      %v6806 = vrot.slane %v6804, 4
      %v6807 = vshll.u32 %v6490, 16
      %v6809 = vrot.slane %v6807, 5
      %v6810 = vor.u32 %v6806, %v6809
      %v6811 = vrot.slane %v6810, 4
      %v6813 = vshll.u32 %v6491, 16
      %v6815 = vrot.slane %v6813, 5
      %v6816 = vsel %vm1316, %v6811, %v6815
      %v6817 = vshrl.u32 %v6491, 16
      %v6819 = vrot.slane %v6817, 4
      %v6820 = vor.u32 %v6819, %v6815
      %v6821 = vrot.slane %v6820, 4
      %v6823 = vshll.u32 %v6511, 16
      %v6825 = vrot.slane %v6823, 5
      %v6826 = vsel %vm1316, %v6821, %v6825
      %v6828 = vshrl.u32 %v6492, 16
      %v6830 = vrot.slane %v6828, 4
      %v6831 = vshll.u32 %v6492, 16
      %v6833 = vrot.slane %v6831, 5
      %v6834 = vor.u32 %v6830, %v6833
      %v6835 = vrot.slane %v6834, 4
      %v6837 = vshll.u32 %v6493, 16
      %v6839 = vrot.slane %v6837, 5
      %v6840 = vsel %vm1316, %v6835, %v6839
      %v6841 = vshrl.u32 %v6493, 16
      %v6843 = vrot.slane %v6841, 4
      %v6844 = vor.u32 %v6843, %v6839
      %v6845 = vrot.slane %v6844, 4
      %v6847 = vshll.u32 %v6512, 16
      %v6849 = vrot.slane %v6847, 5
      %v6850 = vsel %vm1316, %v6845, %v6849
      %v6852 = vshrl.u32 %v6494, 16
      %v6854 = vrot.slane %v6852, 4
      %v6855 = vshll.u32 %v6494, 16
      %v6857 = vrot.slane %v6855, 5
      %v6858 = vor.u32 %v6854, %v6857
      %v6859 = vrot.slane %v6858, 4
      %v6861 = vshll.u32 %v6495, 16
      %v6863 = vrot.slane %v6861, 5
      %v6864 = vsel %vm1316, %v6859, %v6863
      %v6865 = vshrl.u32 %v6495, 16
      %v6867 = vrot.slane %v6865, 4
      %v6868 = vor.u32 %v6867, %v6863
      %v6869 = vrot.slane %v6868, 4
      %v6871 = vshll.u32 %v6513, 16
      %v6873 = vrot.slane %v6871, 5
      %v6874 = vsel %vm1316, %v6869, %v6873
      %v6876 = vshrl.u32 %v6496, 16
      %v6878 = vrot.slane %v6876, 4
      %v6879 = vshll.u32 %v6496, 16
      %v6881 = vrot.slane %v6879, 5
      %v6882 = vor.u32 %v6878, %v6881
      %v6883 = vrot.slane %v6882, 4
      %v6885 = vshll.u32 %v6497, 16
      %v6887 = vrot.slane %v6885, 5
      %v6888 = vsel %vm1316, %v6883, %v6887
      %v6889 = vshrl.u32 %v6497, 16
      %v6891 = vrot.slane %v6889, 4
      %v6892 = vor.u32 %v6891, %v6887
      %v6893 = vrot.slane %v6892, 4
      %v6895 = vshll.u32 %v6514, 16
      %v6897 = vrot.slane %v6895, 5
      %v6898 = vsel %vm1316, %v6893, %v6897
      %s6899 = scalar_lea.vmem %s5, 2
      %v6900 = vld [vmem:[%s6899] sm:$0x3]
      %v6901 = vunpack.c.l.b16 %v6528
      %v6902 = vunpack.c.l.b16 %v6538
      %v6903 = vunpack.c.l.b16 %v6552
      %v6904 = vunpack.c.l.b16 %v6562
      %v6905 = vunpack.c.l.b16 %v6576
      %v6906 = vunpack.c.l.b16 %v6586
      %v6907 = vunpack.c.l.b16 %v6600
      %v6908 = vunpack.c.l.b16 %v6610
      %v6909 = vunpack.c.l.b16 %v6624
      %v6910 = vunpack.c.l.b16 %v6634
      %v6911 = vunpack.c.l.b16 %v6648
      %v6912 = vunpack.c.l.b16 %v6658
      %v6913 = vunpack.c.l.b16 %v6672
      %v6914 = vunpack.c.l.b16 %v6682
      %v6915 = vunpack.c.l.b16 %v6696
      %v6916 = vunpack.c.l.b16 %v6706
      %v6917 = vunpack.c.l.b16 %v6720
      %v6918 = vunpack.c.l.b16 %v6730
      %v6919 = vunpack.c.l.b16 %v6744
      %v6920 = vunpack.c.l.b16 %v6754
      %v6921 = vunpack.c.l.b16 %v6768
      %v6922 = vunpack.c.l.b16 %v6778
      %v6923 = vunpack.c.l.b16 %v6792
      %v6924 = vunpack.c.l.b16 %v6802
      %v6925 = vunpack.c.l.b16 %v6816
      %v6926 = vunpack.c.l.b16 %v6826
      %v6927 = vunpack.c.l.b16 %v6840
      %v6928 = vunpack.c.l.b16 %v6850
      %v6929 = vunpack.c.l.b16 %v6864
      %v6930 = vunpack.c.l.b16 %v6874
      %v6931 = vunpack.c.l.b16 %v6888
      %v6932 = vunpack.c.l.b16 %v6898
      %v6933 = vpack.c.b16 %v6902, %v6901
      %v6934 = vpack.c.b16 %v6904, %v6903
      %v6935 = vpack.c.b16 %v6906, %v6905
      %v6936 = vpack.c.b16 %v6908, %v6907
      %v6937 = vpack.c.b16 %v6910, %v6909
      %v6938 = vpack.c.b16 %v6912, %v6911
      %v6939 = vpack.c.b16 %v6914, %v6913
      %v6940 = vpack.c.b16 %v6916, %v6915
      %v6941 = vpack.c.b16 %v6918, %v6917
      %v6942 = vpack.c.b16 %v6920, %v6919
      %v6943 = vpack.c.b16 %v6922, %v6921
      %v6944 = vpack.c.b16 %v6924, %v6923
      %v6945 = vpack.c.b16 %v6926, %v6925
      %v6946 = vpack.c.b16 %v6928, %v6927
      %v6947 = vpack.c.b16 %v6930, %v6929
      %v6948 = vpack.c.b16 %v6932, %v6931
      %v6950 = vsel %vm695, %v6933, 0
      %v6953 = vsel %vm695, %v6934, 0
      %v6956 = vsel %vm695, %v6935, 0
      %v6959 = vsel %vm695, %v6936, 0
      %v6962 = vsel %vm695, %v6937, 0
      %v6965 = vsel %vm695, %v6938, 0
      %v6968 = vsel %vm695, %v6939, 0
      %v6971 = vsel %vm695, %v6940, 0
      %v6974 = vsel %vm695, %v6941, 0
      %v6977 = vsel %vm695, %v6942, 0
      %v6980 = vsel %vm695, %v6943, 0
      %v6983 = vsel %vm695, %v6944, 0
      %v6986 = vsel %vm695, %v6945, 0
      %v6989 = vsel %vm695, %v6946, 0
      %v6992 = vsel %vm695, %v6947, 0
      %v6995 = vsel %vm695, %v6948, 0
      %vm6997 = vcmask 1041408
      %v6999 = vsel %vm6997, %v6900, 0
      %7001 = vmatprep.subr.bf16.mxu0 0
      %7002 = vmatpush1.bf16.msra.mxu0 %v6999
      %7003 = vmatprep.subr.bf16.mxu0 0
      %7004 = vmatpush1.bf16.msra.mxu0 0
      %7005 = vmatprep.subr.bf16.mxu0 0
      %7006 = vmatpush1.bf16.msra.mxu0 0
      %7007 = vmatprep.subr.bf16.mxu0 0
      %7008 = vmatpush1.bf16.msra.mxu0 0
      %7009 = vmatprep.subr.bf16.mxu0 0
      %7010 = vmatpush1.bf16.msra.mxu0 0
      %7011 = vmatprep.subr.bf16.mxu0 0
      %7012 = vmatpush1.bf16.msra.mxu0 0
      %7013 = vmatprep.subr.bf16.mxu0 0
      %7014 = vmatpush1.bf16.msra.mxu0 0
      %7015 = vmatprep.subr.bf16.mxu0 0
      %7016 = vmatpush1.bf16.msra.mxu0 0
      %7017 = vmatprep.subr.bf16.mxu0 0
      %7018 = vmatpush1.bf16.msra.mxu0 0
      %7019 = vmatprep.subr.bf16.mxu0 0
      %7020 = vmatpush1.bf16.msra.mxu0 0
      %7021 = vmatprep.subr.bf16.mxu0 0
      %7022 = vmatpush1.bf16.msra.mxu0 0
      %7023 = vmatprep.subr.bf16.mxu0 0
      %7024 = vmatpush1.bf16.msra.mxu0 0
      %7025 = vmatprep.subr.bf16.mxu0 0
      %7026 = vmatpush1.bf16.msra.mxu0 0
      %7027 = vmatprep.subr.bf16.mxu0 0
      %7028 = vmatpush1.bf16.msra.mxu0 0
      %7029 = vmatprep.subr.bf16.mxu0 0
      %7030 = vmatpush1.bf16.msra.mxu0 0
      %7031 = vmatprep.subr.bf16.mxu0 0
      %7032 = vmatpush1.bf16.msra.mxu0 0
      %7033 = vmatprep.mubr.bf16.mxu0 0
      %7034 = vmatmul.mubr.bf16.gmra.mrb[0].mxu0 %v6950
      %v7035 = vpop.f32.mrb[0].mxu0
      %v7036 = vadd.f32 0.0, %v7035
      %v7037 = vpop.f32.mrb[0].mxu0
      %v7038 = vpop.f32.mrb[0].mxu0
      %v7039 = vadd.f32 0.0, %v7038
      %v7040 = vpop.f32.mrb[0].mxu0
      %7041 = vmatprep.mubr.bf16.mxu0 0
      %7042 = vmatmul.mubr.bf16.gmra.mrb[0].mxu0 %v6953
      %v7043 = vpop.f32.mrb[0].mxu0
      %v7044 = vadd.f32 0.0, %v7043
      %v7045 = vpop.f32.mrb[0].mxu0
      %v7046 = vpop.f32.mrb[0].mxu0
      %v7047 = vadd.f32 0.0, %v7046
      %v7048 = vpop.f32.mrb[0].mxu0
      %7049 = vmatprep.mubr.bf16.mxu0 0
      %7050 = vmatmul.mubr.bf16.gmra.mrb[0].mxu0 %v6956
      %v7051 = vpop.f32.mrb[0].mxu0
      %v7052 = vadd.f32 0.0, %v7051
      %v7053 = vpop.f32.mrb[0].mxu0
      %v7054 = vpop.f32.mrb[0].mxu0
      %v7055 = vadd.f32 0.0, %v7054
      %v7056 = vpop.f32.mrb[0].mxu0
      %7057 = vmatprep.mubr.bf16.mxu0 0
      %7058 = vmatmul.mubr.bf16.gmra.mrb[0].mxu0 %v6959
      %v7059 = vpop.f32.mrb[0].mxu0
      %v7060 = vadd.f32 0.0, %v7059
      %v7061 = vpop.f32.mrb[0].mxu0
      %v7062 = vpop.f32.mrb[0].mxu0
      %v7063 = vadd.f32 0.0, %v7062
      %v7064 = vpop.f32.mrb[0].mxu0
      %7065 = vmatprep.mubr.bf16.mxu0 0
      %7066 = vmatmul.mubr.bf16.gmra.mrb[0].mxu0 %v6962
      %v7067 = vpop.f32.mrb[0].mxu0
      %v7068 = vadd.f32 0.0, %v7067
      %v7069 = vpop.f32.mrb[0].mxu0
      %v7070 = vpop.f32.mrb[0].mxu0
      %v7071 = vadd.f32 0.0, %v7070
      %v7072 = vpop.f32.mrb[0].mxu0
      %7073 = vmatprep.mubr.bf16.mxu0 0
      %7074 = vmatmul.mubr.bf16.gmra.mrb[0].mxu0 %v6965
      %v7075 = vpop.f32.mrb[0].mxu0
      %v7076 = vadd.f32 0.0, %v7075
      %v7077 = vpop.f32.mrb[0].mxu0
      %v7078 = vpop.f32.mrb[0].mxu0
      %v7079 = vadd.f32 0.0, %v7078
      %v7080 = vpop.f32.mrb[0].mxu0
      %7081 = vmatprep.mubr.bf16.mxu0 0
      %7082 = vmatmul.mubr.bf16.gmra.mrb[0].mxu0 %v6968
      %v7083 = vpop.f32.mrb[0].mxu0
      %v7084 = vadd.f32 0.0, %v7083
      %v7085 = vpop.f32.mrb[0].mxu0
      %v7086 = vpop.f32.mrb[0].mxu0
      %v7087 = vadd.f32 0.0, %v7086
      %v7088 = vpop.f32.mrb[0].mxu0
      %7089 = vmatprep.mubr.bf16.mxu0 0
      %7090 = vmatmul.mubr.bf16.gmra.mrb[0].mxu0 %v6971
      %v7091 = vpop.f32.mrb[0].mxu0
      %v7092 = vadd.f32 0.0, %v7091
      %v7093 = vpop.f32.mrb[0].mxu0
      %v7094 = vpop.f32.mrb[0].mxu0
      %v7095 = vadd.f32 0.0, %v7094
      %v7096 = vpop.f32.mrb[0].mxu0
      %7097 = vmatprep.mubr.bf16.mxu0 0
      %7098 = vmatmul.mubr.bf16.gmra.mrb[0].mxu0 %v6974
      %v7099 = vpop.f32.mrb[0].mxu0
      %v7100 = vadd.f32 0.0, %v7099
      %v7101 = vpop.f32.mrb[0].mxu0
      %v7102 = vpop.f32.mrb[0].mxu0
      %v7103 = vadd.f32 0.0, %v7102
      %v7104 = vpop.f32.mrb[0].mxu0
      %7105 = vmatprep.mubr.bf16.mxu0 0
      %7106 = vmatmul.mubr.bf16.gmra.mrb[0].mxu0 %v6977
      %v7107 = vpop.f32.mrb[0].mxu0
      %v7108 = vadd.f32 0.0, %v7107
      %v7109 = vpop.f32.mrb[0].mxu0
      %v7110 = vpop.f32.mrb[0].mxu0
      %v7111 = vadd.f32 0.0, %v7110
      %v7112 = vpop.f32.mrb[0].mxu0
      %7113 = vmatprep.mubr.bf16.mxu0 0
      %7114 = vmatmul.mubr.bf16.gmra.mrb[0].mxu0 %v6980
      %v7115 = vpop.f32.mrb[0].mxu0
      %v7116 = vadd.f32 0.0, %v7115
      %v7117 = vpop.f32.mrb[0].mxu0
      %v7118 = vpop.f32.mrb[0].mxu0
      %v7119 = vadd.f32 0.0, %v7118
      %v7120 = vpop.f32.mrb[0].mxu0
      %7121 = vmatprep.mubr.bf16.mxu0 0
      %7122 = vmatmul.mubr.bf16.gmra.mrb[0].mxu0 %v6983
      %v7123 = vpop.f32.mrb[0].mxu0
      %v7124 = vadd.f32 0.0, %v7123
      %v7125 = vpop.f32.mrb[0].mxu0
      %v7126 = vpop.f32.mrb[0].mxu0
      %v7127 = vadd.f32 0.0, %v7126
      %v7128 = vpop.f32.mrb[0].mxu0
      %7129 = vmatprep.mubr.bf16.mxu0 0
      %7130 = vmatmul.mubr.bf16.gmra.mrb[0].mxu0 %v6986
      %v7131 = vpop.f32.mrb[0].mxu0
      %v7132 = vadd.f32 0.0, %v7131
      %v7133 = vpop.f32.mrb[0].mxu0
      %v7134 = vpop.f32.mrb[0].mxu0
      %v7135 = vadd.f32 0.0, %v7134
      %v7136 = vpop.f32.mrb[0].mxu0
      %7137 = vmatprep.mubr.bf16.mxu0 0
      %7138 = vmatmul.mubr.bf16.gmra.mrb[0].mxu0 %v6989
      %v7139 = vpop.f32.mrb[0].mxu0
      %v7140 = vadd.f32 0.0, %v7139
      %v7141 = vpop.f32.mrb[0].mxu0
      %v7142 = vpop.f32.mrb[0].mxu0
      %v7143 = vadd.f32 0.0, %v7142
      %v7144 = vpop.f32.mrb[0].mxu0
      %7145 = vmatprep.mubr.bf16.mxu0 0
      %7146 = vmatmul.mubr.bf16.gmra.mrb[0].mxu0 %v6992
      %v7147 = vpop.f32.mrb[0].mxu0
      %v7148 = vadd.f32 0.0, %v7147
      %v7149 = vpop.f32.mrb[0].mxu0
      %v7150 = vpop.f32.mrb[0].mxu0
      %v7151 = vadd.f32 0.0, %v7150
      %v7152 = vpop.f32.mrb[0].mxu0
      %7153 = vmatprep.mubr.bf16.mxu0 0
      %7154 = vmatmul.mubr.bf16.gmra.mrb[0].mxu0 %v6995
      %v7155 = vpop.f32.mrb[0].mxu0
      %v7156 = vadd.f32 0.0, %v7155
      %v7157 = vpop.f32.mrb[0].mxu0
      %v7158 = vpop.f32.mrb[0].mxu0
      %v7159 = vadd.f32 0.0, %v7158
      %v7160 = vpop.f32.mrb[0].mxu0
      %7161 = vdwg.mxu0
      %v7194 = vunpack.c.l.b16 %v6466
      %v7195 = vunpack.c.l.b16 %v6467
      %v7196 = vunpack.c.l.b16 %v6468
      %v7197 = vunpack.c.l.b16 %v6469
      %v7198 = vunpack.c.l.b16 %v6470
      %v7199 = vunpack.c.l.b16 %v6471
      %v7200 = vunpack.c.l.b16 %v6472
      %v7201 = vunpack.c.l.b16 %v6473
      %v7202 = vunpack.c.l.b16 %v6474
      %v7203 = vunpack.c.l.b16 %v6475
      %v7204 = vunpack.c.l.b16 %v6476
      %v7205 = vunpack.c.l.b16 %v6477
      %v7206 = vunpack.c.l.b16 %v6478
      %v7207 = vunpack.c.l.b16 %v6479
      %v7208 = vunpack.c.l.b16 %v6480
      %v7209 = vunpack.c.l.b16 %v6481
      %v7210 = vunpack.c.l.b16 %v6482
      %v7211 = vunpack.c.l.b16 %v6483
      %v7212 = vunpack.c.l.b16 %v6484
      %v7213 = vunpack.c.l.b16 %v6485
      %v7214 = vunpack.c.l.b16 %v6486
      %v7215 = vunpack.c.l.b16 %v6487
      %v7216 = vunpack.c.l.b16 %v6488
      %v7217 = vunpack.c.l.b16 %v6489
      %v7218 = vunpack.c.l.b16 %v6490
      %v7219 = vunpack.c.l.b16 %v6491
      %v7220 = vunpack.c.l.b16 %v6492
      %v7221 = vunpack.c.l.b16 %v6493
      %v7222 = vunpack.c.l.b16 %v6494
      %v7223 = vunpack.c.l.b16 %v6495
      %v7224 = vunpack.c.l.b16 %v6496
      %v7225 = vunpack.c.l.b16 %v6497
      %v7226 = vpack.c.b16 %v7195, %v7194
      %v7227 = vpack.c.b16 %v7197, %v7196
      %v7228 = vpack.c.b16 %v7199, %v7198
      %v7229 = vpack.c.b16 %v7201, %v7200
      %v7230 = vpack.c.b16 %v7203, %v7202
      %v7231 = vpack.c.b16 %v7205, %v7204
      %v7232 = vpack.c.b16 %v7207, %v7206
      %v7233 = vpack.c.b16 %v7209, %v7208
      %v7234 = vpack.c.b16 %v7211, %v7210
      %v7235 = vpack.c.b16 %v7213, %v7212
      %v7236 = vpack.c.b16 %v7215, %v7214
      %v7237 = vpack.c.b16 %v7217, %v7216
      %v7238 = vpack.c.b16 %v7219, %v7218
      %v7239 = vpack.c.b16 %v7221, %v7220
      %v7240 = vpack.c.b16 %v7223, %v7222
      %v7241 = vpack.c.b16 %v7225, %v7224
      %v7243 = vsel %vm695, %v7226, 0
      %v7246 = vsel %vm695, %v7227, 0
      %v7249 = vsel %vm695, %v7228, 0
      %v7252 = vsel %vm695, %v7229, 0
      %v7255 = vsel %vm695, %v7230, 0
      %v7258 = vsel %vm695, %v7231, 0
      %v7261 = vsel %vm695, %v7232, 0
      %v7264 = vsel %vm695, %v7233, 0
      %v7267 = vsel %vm695, %v7234, 0
      %v7270 = vsel %vm695, %v7235, 0
      %v7273 = vsel %vm695, %v7236, 0
      %v7276 = vsel %vm695, %v7237, 0
      %v7279 = vsel %vm695, %v7238, 0
      %v7282 = vsel %vm695, %v7239, 0
      %v7285 = vsel %vm695, %v7240, 0
      %v7288 = vsel %vm695, %v7241, 0
      %v7291 = vsel %vm6997, %v6498, 0
      %7293 = vmatprep.subr.bf16.mxu0 0
      %7294 = vmatpush1.bf16.msra.mxu0 %v7291
      %7295 = vmatprep.subr.bf16.mxu0 0
      %7296 = vmatpush1.bf16.msra.mxu0 0
      %7297 = vmatprep.subr.bf16.mxu0 0
      %7298 = vmatpush1.bf16.msra.mxu0 0
      %7299 = vmatprep.subr.bf16.mxu0 0
      %7300 = vmatpush1.bf16.msra.mxu0 0
      %7301 = vmatprep.subr.bf16.mxu0 0
      %7302 = vmatpush1.bf16.msra.mxu0 0
      %7303 = vmatprep.subr.bf16.mxu0 0
      %7304 = vmatpush1.bf16.msra.mxu0 0
      %7305 = vmatprep.subr.bf16.mxu0 0
      %7306 = vmatpush1.bf16.msra.mxu0 0
      %7307 = vmatprep.subr.bf16.mxu0 0
      %7308 = vmatpush1.bf16.msra.mxu0 0
      %7309 = vmatprep.subr.bf16.mxu0 0
      %7310 = vmatpush1.bf16.msra.mxu0 0
      %7311 = vmatprep.subr.bf16.mxu0 0
      %7312 = vmatpush1.bf16.msra.mxu0 0
      %7313 = vmatprep.subr.bf16.mxu0 0
      %7314 = vmatpush1.bf16.msra.mxu0 0
      %7315 = vmatprep.subr.bf16.mxu0 0
      %7316 = vmatpush1.bf16.msra.mxu0 0
      %7317 = vmatprep.subr.bf16.mxu0 0
      %7318 = vmatpush1.bf16.msra.mxu0 0
      %7319 = vmatprep.subr.bf16.mxu0 0
      %7320 = vmatpush1.bf16.msra.mxu0 0
      %7321 = vmatprep.subr.bf16.mxu0 0
      %7322 = vmatpush1.bf16.msra.mxu0 0
      %7323 = vmatprep.subr.bf16.mxu0 0
      %7324 = vmatpush1.bf16.msra.mxu0 0
      %7325 = vmatprep.mubr.bf16.mxu0 0
      %7326 = vmatmul.mubr.bf16.gmra.mrb[0].mxu0 %v7243
      %v7327 = vpop.f32.mrb[0].mxu0
      %v7328 = vadd.f32 %v7036, %v7327
      %v7329 = vpop.f32.mrb[0].mxu0
      %v7330 = vpop.f32.mrb[0].mxu0
      %v7331 = vadd.f32 %v7039, %v7330
      %v7332 = vpop.f32.mrb[0].mxu0
      %7333 = vmatprep.mubr.bf16.mxu0 0
      %7334 = vmatmul.mubr.bf16.gmra.mrb[0].mxu0 %v7246
      %v7335 = vpop.f32.mrb[0].mxu0
      %v7336 = vadd.f32 %v7044, %v7335
      %v7337 = vpop.f32.mrb[0].mxu0
      %v7338 = vpop.f32.mrb[0].mxu0
      %v7339 = vadd.f32 %v7047, %v7338
      %v7340 = vpop.f32.mrb[0].mxu0
      %7341 = vmatprep.mubr.bf16.mxu0 0
      %7342 = vmatmul.mubr.bf16.gmra.mrb[0].mxu0 %v7249
      %v7343 = vpop.f32.mrb[0].mxu0
      %v7344 = vadd.f32 %v7052, %v7343
      %v7345 = vpop.f32.mrb[0].mxu0
      %v7346 = vpop.f32.mrb[0].mxu0
      %v7347 = vadd.f32 %v7055, %v7346
      %v7348 = vpop.f32.mrb[0].mxu0
      %7349 = vmatprep.mubr.bf16.mxu0 0
      %7350 = vmatmul.mubr.bf16.gmra.mrb[0].mxu0 %v7252
      %v7351 = vpop.f32.mrb[0].mxu0
      %v7352 = vadd.f32 %v7060, %v7351
      %v7353 = vpop.f32.mrb[0].mxu0
      %v7354 = vpop.f32.mrb[0].mxu0
      %v7355 = vadd.f32 %v7063, %v7354
      %v7356 = vpop.f32.mrb[0].mxu0
      %7357 = vmatprep.mubr.bf16.mxu0 0
      %7358 = vmatmul.mubr.bf16.gmra.mrb[0].mxu0 %v7255
      %v7359 = vpop.f32.mrb[0].mxu0
      %v7360 = vadd.f32 %v7068, %v7359
      %v7361 = vpop.f32.mrb[0].mxu0
      %v7362 = vpop.f32.mrb[0].mxu0
      %v7363 = vadd.f32 %v7071, %v7362
      %v7364 = vpop.f32.mrb[0].mxu0
      %7365 = vmatprep.mubr.bf16.mxu0 0
      %7366 = vmatmul.mubr.bf16.gmra.mrb[0].mxu0 %v7258
      %v7367 = vpop.f32.mrb[0].mxu0
      %v7368 = vadd.f32 %v7076, %v7367
      %v7369 = vpop.f32.mrb[0].mxu0
      %v7370 = vpop.f32.mrb[0].mxu0
      %v7371 = vadd.f32 %v7079, %v7370
      %v7372 = vpop.f32.mrb[0].mxu0
      %7373 = vmatprep.mubr.bf16.mxu0 0
      %7374 = vmatmul.mubr.bf16.gmra.mrb[0].mxu0 %v7261
      %v7375 = vpop.f32.mrb[0].mxu0
      %v7376 = vadd.f32 %v7084, %v7375
      %v7377 = vpop.f32.mrb[0].mxu0
      %v7378 = vpop.f32.mrb[0].mxu0
      %v7379 = vadd.f32 %v7087, %v7378
      %v7380 = vpop.f32.mrb[0].mxu0
      %7381 = vmatprep.mubr.bf16.mxu0 0
      %7382 = vmatmul.mubr.bf16.gmra.mrb[0].mxu0 %v7264
      %v7383 = vpop.f32.mrb[0].mxu0
      %v7384 = vadd.f32 %v7092, %v7383
      %v7385 = vpop.f32.mrb[0].mxu0
      %v7386 = vpop.f32.mrb[0].mxu0
      %v7387 = vadd.f32 %v7095, %v7386
      %v7388 = vpop.f32.mrb[0].mxu0
      %7389 = vmatprep.mubr.bf16.mxu0 0
      %7390 = vmatmul.mubr.bf16.gmra.mrb[0].mxu0 %v7267
      %v7391 = vpop.f32.mrb[0].mxu0
      %v7392 = vadd.f32 %v7100, %v7391
      %v7393 = vpop.f32.mrb[0].mxu0
      %v7394 = vpop.f32.mrb[0].mxu0
      %v7395 = vadd.f32 %v7103, %v7394
      %v7396 = vpop.f32.mrb[0].mxu0
      %7397 = vmatprep.mubr.bf16.mxu0 0
      %7398 = vmatmul.mubr.bf16.gmra.mrb[0].mxu0 %v7270
      %v7399 = vpop.f32.mrb[0].mxu0
      %v7400 = vadd.f32 %v7108, %v7399
      %v7401 = vpop.f32.mrb[0].mxu0
      %v7402 = vpop.f32.mrb[0].mxu0
      %v7403 = vadd.f32 %v7111, %v7402
      %v7404 = vpop.f32.mrb[0].mxu0
      %7405 = vmatprep.mubr.bf16.mxu0 0
      %7406 = vmatmul.mubr.bf16.gmra.mrb[0].mxu0 %v7273
      %v7407 = vpop.f32.mrb[0].mxu0
      %v7408 = vadd.f32 %v7116, %v7407
      %v7409 = vpop.f32.mrb[0].mxu0
      %v7410 = vpop.f32.mrb[0].mxu0
      %v7411 = vadd.f32 %v7119, %v7410
      %v7412 = vpop.f32.mrb[0].mxu0
      %7413 = vmatprep.mubr.bf16.mxu0 0
      %7414 = vmatmul.mubr.bf16.gmra.mrb[0].mxu0 %v7276
      %v7415 = vpop.f32.mrb[0].mxu0
      %v7416 = vadd.f32 %v7124, %v7415
      %v7417 = vpop.f32.mrb[0].mxu0
      %v7418 = vpop.f32.mrb[0].mxu0
      %v7419 = vadd.f32 %v7127, %v7418
      %v7420 = vpop.f32.mrb[0].mxu0
      %7421 = vmatprep.mubr.bf16.mxu0 0
      %7422 = vmatmul.mubr.bf16.gmra.mrb[0].mxu0 %v7279
      %v7423 = vpop.f32.mrb[0].mxu0
      %v7424 = vadd.f32 %v7132, %v7423
      %v7425 = vpop.f32.mrb[0].mxu0
      %v7426 = vpop.f32.mrb[0].mxu0
      %v7427 = vadd.f32 %v7135, %v7426
      %v7428 = vpop.f32.mrb[0].mxu0
      %7429 = vmatprep.mubr.bf16.mxu0 0
      %7430 = vmatmul.mubr.bf16.gmra.mrb[0].mxu0 %v7282
      %v7431 = vpop.f32.mrb[0].mxu0
      %v7432 = vadd.f32 %v7140, %v7431
      %v7433 = vpop.f32.mrb[0].mxu0
      %v7434 = vpop.f32.mrb[0].mxu0
      %v7435 = vadd.f32 %v7143, %v7434
      %v7436 = vpop.f32.mrb[0].mxu0
      %7437 = vmatprep.mubr.bf16.mxu0 0
      %7438 = vmatmul.mubr.bf16.gmra.mrb[0].mxu0 %v7285
      %v7439 = vpop.f32.mrb[0].mxu0
      %v7440 = vadd.f32 %v7148, %v7439
      %v7441 = vpop.f32.mrb[0].mxu0
      %v7442 = vpop.f32.mrb[0].mxu0
      %v7443 = vadd.f32 %v7151, %v7442
      %v7444 = vpop.f32.mrb[0].mxu0
      %7445 = vmatprep.mubr.bf16.mxu0 0
      %7446 = vmatmul.mubr.bf16.gmra.mrb[0].mxu0 %v7288
      %v7447 = vpop.f32.mrb[0].mxu0
      %v7448 = vadd.f32 %v7156, %v7447
      %v7449 = vpop.f32.mrb[0].mxu0
      %v7450 = vpop.f32.mrb[0].mxu0
      %v7451 = vadd.f32 %v7159, %v7450
      %v7452 = vpop.f32.mrb[0].mxu0
      %7453 = vdwg.mxu0
      %v7454 = vld [vmem:[#allocation3] sm:$0xe]
      %v7455 = vld [vmem:[#allocation3 + $0xc] sm:$0xe]
      %v7456 = vld [vmem:[#allocation3 + $0x18] sm:$0xe]
      %v7457 = vld [vmem:[#allocation3 + $0x24] sm:$0xe]
      %v7458 = vld [vmem:[#allocation3 + $0x30] sm:$0xe]
      %v7459 = vld [vmem:[#allocation3 + $0x3c] sm:$0xe]
      %v7460 = vld [vmem:[#allocation3 + $0x48] sm:$0xe]
      %v7461 = vld [vmem:[#allocation3 + $0x54] sm:$0xe]
      %v7462 = vld [vmem:[#allocation3 + $0x60] sm:$0xe]
      %v7463 = vld [vmem:[#allocation3 + $0x6c] sm:$0xe]
      %v7464 = vld [vmem:[#allocation3 + $0x78] sm:$0xe]
      %v7465 = vld [vmem:[#allocation3 + $0x84] sm:$0xe]
      %v7466 = vld [vmem:[#allocation3 + $0x90] sm:$0xe]
      %v7467 = vld [vmem:[#allocation3 + $0x9c] sm:$0xe]
      %v7468 = vld [vmem:[#allocation3 + $0xa8] sm:$0xe]
      %v7469 = vld [vmem:[#allocation3 + $0xb4] sm:$0xe]
      %v7502 = vrot.slane %v7454, 5
      %v7503 = vrot.slane %v7502, 4
      %v7504 = vrot.slane %v6467, 5
      %v7505 = vsel %vm2307, %v7503, %v7504
      %v7506 = vrot.slane %v7504, 4
      %v7507 = vrot.slane %v6499, 5
      %v7508 = vsel %vm2307, %v7506, %v7507
      %v7509 = vrot.slane %v7455, 5
      %v7510 = vrot.slane %v7509, 4
      %v7511 = vrot.slane %v6469, 5
      %v7512 = vsel %vm2307, %v7510, %v7511
      %v7513 = vrot.slane %v7511, 4
      %v7514 = vrot.slane %v6500, 5
      %v7515 = vsel %vm2307, %v7513, %v7514
      %v7516 = vrot.slane %v7456, 5
      %v7517 = vrot.slane %v7516, 4
      %v7518 = vrot.slane %v6471, 5
      %v7519 = vsel %vm2307, %v7517, %v7518
      %v7520 = vrot.slane %v7518, 4
      %v7521 = vrot.slane %v6501, 5
      %v7522 = vsel %vm2307, %v7520, %v7521
      %v7523 = vrot.slane %v7457, 5
      %v7524 = vrot.slane %v7523, 4
      %v7525 = vrot.slane %v6473, 5
      %v7526 = vsel %vm2307, %v7524, %v7525
      %v7527 = vrot.slane %v7525, 4
      %v7528 = vrot.slane %v6502, 5
      %v7529 = vsel %vm2307, %v7527, %v7528
      %v7530 = vrot.slane %v7458, 5
      %v7531 = vrot.slane %v7530, 4
      %v7532 = vrot.slane %v6475, 5
      %v7533 = vsel %vm2307, %v7531, %v7532
      %v7534 = vrot.slane %v7532, 4
      %v7535 = vrot.slane %v6503, 5
      %v7536 = vsel %vm2307, %v7534, %v7535
      %v7537 = vrot.slane %v7459, 5
      %v7538 = vrot.slane %v7537, 4
      %v7539 = vrot.slane %v6477, 5
      %v7540 = vsel %vm2307, %v7538, %v7539
      %v7541 = vrot.slane %v7539, 4
      %v7542 = vrot.slane %v6504, 5
      %v7543 = vsel %vm2307, %v7541, %v7542
      %v7544 = vrot.slane %v7460, 5
      %v7545 = vrot.slane %v7544, 4
      %v7546 = vrot.slane %v6479, 5
      %v7547 = vsel %vm2307, %v7545, %v7546
      %v7548 = vrot.slane %v7546, 4
      %v7549 = vrot.slane %v6505, 5
      %v7550 = vsel %vm2307, %v7548, %v7549
      %v7551 = vrot.slane %v7461, 5
      %v7552 = vrot.slane %v7551, 4
      %v7553 = vrot.slane %v6481, 5
      %v7554 = vsel %vm2307, %v7552, %v7553
      %v7555 = vrot.slane %v7553, 4
      %v7556 = vrot.slane %v6506, 5
      %v7557 = vsel %vm2307, %v7555, %v7556
      %v7558 = vrot.slane %v7462, 5
      %v7559 = vrot.slane %v7558, 4
      %v7560 = vrot.slane %v6483, 5
      %v7561 = vsel %vm2307, %v7559, %v7560
      %v7562 = vrot.slane %v7560, 4
      %v7563 = vrot.slane %v6507, 5
      %v7564 = vsel %vm2307, %v7562, %v7563
      %v7565 = vrot.slane %v7463, 5
      %v7566 = vrot.slane %v7565, 4
      %v7567 = vrot.slane %v6485, 5
      %v7568 = vsel %vm2307, %v7566, %v7567
      %v7569 = vrot.slane %v7567, 4
      %v7570 = vrot.slane %v6508, 5
      %v7571 = vsel %vm2307, %v7569, %v7570
      %v7572 = vrot.slane %v7464, 5
      %v7573 = vrot.slane %v7572, 4
      %v7574 = vrot.slane %v6487, 5
      %v7575 = vsel %vm2307, %v7573, %v7574
      %v7576 = vrot.slane %v7574, 4
      %v7577 = vrot.slane %v6509, 5
      %v7578 = vsel %vm2307, %v7576, %v7577
      %v7579 = vrot.slane %v7465, 5
      %v7580 = vrot.slane %v7579, 4
      %v7581 = vrot.slane %v6489, 5
      %v7582 = vsel %vm2307, %v7580, %v7581
      %v7583 = vrot.slane %v7581, 4
      %v7584 = vrot.slane %v6510, 5
      %v7585 = vsel %vm2307, %v7583, %v7584
      %v7586 = vrot.slane %v7466, 5
      %v7587 = vrot.slane %v7586, 4
      %v7588 = vrot.slane %v6491, 5
      %v7589 = vsel %vm2307, %v7587, %v7588
      %v7590 = vrot.slane %v7588, 4
      %v7591 = vrot.slane %v6511, 5
      %v7592 = vsel %vm2307, %v7590, %v7591
      %v7593 = vrot.slane %v7467, 5
      %v7594 = vrot.slane %v7593, 4
      %v7595 = vrot.slane %v6493, 5
      %v7596 = vsel %vm2307, %v7594, %v7595
      %v7597 = vrot.slane %v7595, 4
      %v7598 = vrot.slane %v6512, 5
      %v7599 = vsel %vm2307, %v7597, %v7598
      %v7600 = vrot.slane %v7468, 5
      %v7601 = vrot.slane %v7600, 4
      %v7602 = vrot.slane %v6495, 5
      %v7603 = vsel %vm2307, %v7601, %v7602
      %v7604 = vrot.slane %v7602, 4
      %v7605 = vrot.slane %v6513, 5
      %v7606 = vsel %vm2307, %v7604, %v7605
      %v7607 = vrot.slane %v7469, 5
      %v7608 = vrot.slane %v7607, 4
      %v7609 = vrot.slane %v6497, 5
      %v7610 = vsel %vm2307, %v7608, %v7609
      %v7611 = vrot.slane %v7609, 4
      %v7612 = vrot.slane %v6514, 5
      %v7613 = vsel %vm2307, %v7611, %v7612
      %s7614 = scalar_lea.vmem %s5, 4
      %v7615 = vld [vmem:[%s7614] sm:$0x3]
      %v7616 = vunpack.c.l.b16 %v7505
      %v7617 = vunpack.c.l.b16 %v7508
      %v7618 = vunpack.c.l.b16 %v7512
      %v7619 = vunpack.c.l.b16 %v7515
      %v7620 = vunpack.c.l.b16 %v7519
      %v7621 = vunpack.c.l.b16 %v7522
      %v7622 = vunpack.c.l.b16 %v7526
      %v7623 = vunpack.c.l.b16 %v7529
      %v7624 = vunpack.c.l.b16 %v7533
      %v7625 = vunpack.c.l.b16 %v7536
      %v7626 = vunpack.c.l.b16 %v7540
      %v7627 = vunpack.c.l.b16 %v7543
      %v7628 = vunpack.c.l.b16 %v7547
      %v7629 = vunpack.c.l.b16 %v7550
      %v7630 = vunpack.c.l.b16 %v7554
      %v7631 = vunpack.c.l.b16 %v7557
      %v7632 = vunpack.c.l.b16 %v7561
      %v7633 = vunpack.c.l.b16 %v7564
      %v7634 = vunpack.c.l.b16 %v7568
      %v7635 = vunpack.c.l.b16 %v7571
      %v7636 = vunpack.c.l.b16 %v7575
      %v7637 = vunpack.c.l.b16 %v7578
      %v7638 = vunpack.c.l.b16 %v7582
      %v7639 = vunpack.c.l.b16 %v7585
      %v7640 = vunpack.c.l.b16 %v7589
      %v7641 = vunpack.c.l.b16 %v7592
      %v7642 = vunpack.c.l.b16 %v7596
      %v7643 = vunpack.c.l.b16 %v7599
      %v7644 = vunpack.c.l.b16 %v7603
      %v7645 = vunpack.c.l.b16 %v7606
      %v7646 = vunpack.c.l.b16 %v7610
      %v7647 = vunpack.c.l.b16 %v7613
      %v7648 = vpack.c.b16 %v7617, %v7616
      %v7649 = vpack.c.b16 %v7619, %v7618
      %v7650 = vpack.c.b16 %v7621, %v7620
      %v7651 = vpack.c.b16 %v7623, %v7622
      %v7652 = vpack.c.b16 %v7625, %v7624
      %v7653 = vpack.c.b16 %v7627, %v7626
      %v7654 = vpack.c.b16 %v7629, %v7628
      %v7655 = vpack.c.b16 %v7631, %v7630
      %v7656 = vpack.c.b16 %v7633, %v7632
      %v7657 = vpack.c.b16 %v7635, %v7634
      %v7658 = vpack.c.b16 %v7637, %v7636
      %v7659 = vpack.c.b16 %v7639, %v7638
      %v7660 = vpack.c.b16 %v7641, %v7640
      %v7661 = vpack.c.b16 %v7643, %v7642
      %v7662 = vpack.c.b16 %v7645, %v7644
      %v7663 = vpack.c.b16 %v7647, %v7646
      %v7665 = vsel %vm695, %v7648, 0
      %v7668 = vsel %vm695, %v7649, 0
      %v7671 = vsel %vm695, %v7650, 0
      %v7674 = vsel %vm695, %v7651, 0
      %v7677 = vsel %vm695, %v7652, 0
      %v7680 = vsel %vm695, %v7653, 0
      %v7683 = vsel %vm695, %v7654, 0
      %v7686 = vsel %vm695, %v7655, 0
      %v7689 = vsel %vm695, %v7656, 0
      %v7692 = vsel %vm695, %v7657, 0
      %v7695 = vsel %vm695, %v7658, 0
      %v7698 = vsel %vm695, %v7659, 0
      %v7701 = vsel %vm695, %v7660, 0
      %v7704 = vsel %vm695, %v7661, 0
      %v7707 = vsel %vm695, %v7662, 0
      %v7710 = vsel %vm695, %v7663, 0
      %v7713 = vsel %vm6997, %v7615, 0
      %7715 = vmatprep.subr.bf16.mxu0 0
      %7716 = vmatpush1.bf16.msra.mxu0 %v7713
      %7717 = vmatprep.subr.bf16.mxu0 0
      %7718 = vmatpush1.bf16.msra.mxu0 0
      %7719 = vmatprep.subr.bf16.mxu0 0
      %7720 = vmatpush1.bf16.msra.mxu0 0
      %7721 = vmatprep.subr.bf16.mxu0 0
      %7722 = vmatpush1.bf16.msra.mxu0 0
      %7723 = vmatprep.subr.bf16.mxu0 0
      %7724 = vmatpush1.bf16.msra.mxu0 0
      %7725 = vmatprep.subr.bf16.mxu0 0
      %7726 = vmatpush1.bf16.msra.mxu0 0
      %7727 = vmatprep.subr.bf16.mxu0 0
      %7728 = vmatpush1.bf16.msra.mxu0 0
      %7729 = vmatprep.subr.bf16.mxu0 0
      %7730 = vmatpush1.bf16.msra.mxu0 0
      %7731 = vmatprep.subr.bf16.mxu0 0
      %7732 = vmatpush1.bf16.msra.mxu0 0
      %7733 = vmatprep.subr.bf16.mxu0 0
      %7734 = vmatpush1.bf16.msra.mxu0 0
      %7735 = vmatprep.subr.bf16.mxu0 0
      %7736 = vmatpush1.bf16.msra.mxu0 0
      %7737 = vmatprep.subr.bf16.mxu0 0
      %7738 = vmatpush1.bf16.msra.mxu0 0
      %7739 = vmatprep.subr.bf16.mxu0 0
      %7740 = vmatpush1.bf16.msra.mxu0 0
      %7741 = vmatprep.subr.bf16.mxu0 0
      %7742 = vmatpush1.bf16.msra.mxu0 0
      %7743 = vmatprep.subr.bf16.mxu0 0
      %7744 = vmatpush1.bf16.msra.mxu0 0
      %7745 = vmatprep.subr.bf16.mxu0 0
      %7746 = vmatpush1.bf16.msra.mxu0 0
      %7747 = vmatprep.mubr.bf16.mxu0 0
      %7748 = vmatmul.mubr.bf16.gmra.mrb[0].mxu0 %v7665
      %v7749 = vpop.f32.mrb[0].mxu0
      %v7750 = vadd.f32 0.0, %v7749
      %v7751 = vpop.f32.mrb[0].mxu0
      %v7752 = vpop.f32.mrb[0].mxu0
      %v7753 = vadd.f32 0.0, %v7752
      %v7754 = vpop.f32.mrb[0].mxu0
      %7755 = vmatprep.mubr.bf16.mxu0 0
      %7756 = vmatmul.mubr.bf16.gmra.mrb[0].mxu0 %v7668
      %v7757 = vpop.f32.mrb[0].mxu0
      %v7758 = vadd.f32 0.0, %v7757
      %v7759 = vpop.f32.mrb[0].mxu0
      %v7760 = vpop.f32.mrb[0].mxu0
      %v7761 = vadd.f32 0.0, %v7760
      %v7762 = vpop.f32.mrb[0].mxu0
      %7763 = vmatprep.mubr.bf16.mxu0 0
      %7764 = vmatmul.mubr.bf16.gmra.mrb[0].mxu0 %v7671
      %v7765 = vpop.f32.mrb[0].mxu0
      %v7766 = vadd.f32 0.0, %v7765
      %v7767 = vpop.f32.mrb[0].mxu0
      %v7768 = vpop.f32.mrb[0].mxu0
      %v7769 = vadd.f32 0.0, %v7768
      %v7770 = vpop.f32.mrb[0].mxu0
      %7771 = vmatprep.mubr.bf16.mxu0 0
      %7772 = vmatmul.mubr.bf16.gmra.mrb[0].mxu0 %v7674
      %v7773 = vpop.f32.mrb[0].mxu0
      %v7774 = vadd.f32 0.0, %v7773
      %v7775 = vpop.f32.mrb[0].mxu0
      %v7776 = vpop.f32.mrb[0].mxu0
      %v7777 = vadd.f32 0.0, %v7776
      %v7778 = vpop.f32.mrb[0].mxu0
      %7779 = vmatprep.mubr.bf16.mxu0 0
      %7780 = vmatmul.mubr.bf16.gmra.mrb[0].mxu0 %v7677
      %v7781 = vpop.f32.mrb[0].mxu0
      %v7782 = vadd.f32 0.0, %v7781
      %v7783 = vpop.f32.mrb[0].mxu0
      %v7784 = vpop.f32.mrb[0].mxu0
      %v7785 = vadd.f32 0.0, %v7784
      %v7786 = vpop.f32.mrb[0].mxu0
      %7787 = vmatprep.mubr.bf16.mxu0 0
      %7788 = vmatmul.mubr.bf16.gmra.mrb[0].mxu0 %v7680
      %v7789 = vpop.f32.mrb[0].mxu0
      %v7790 = vadd.f32 0.0, %v7789
      %v7791 = vpop.f32.mrb[0].mxu0
      %v7792 = vpop.f32.mrb[0].mxu0
      %v7793 = vadd.f32 0.0, %v7792
      %v7794 = vpop.f32.mrb[0].mxu0
      %7795 = vmatprep.mubr.bf16.mxu0 0
      %7796 = vmatmul.mubr.bf16.gmra.mrb[0].mxu0 %v7683
      %v7797 = vpop.f32.mrb[0].mxu0
      %v7798 = vadd.f32 0.0, %v7797
      %v7799 = vpop.f32.mrb[0].mxu0
      %v7800 = vpop.f32.mrb[0].mxu0
      %v7801 = vadd.f32 0.0, %v7800
      %v7802 = vpop.f32.mrb[0].mxu0
      %7803 = vmatprep.mubr.bf16.mxu0 0
      %7804 = vmatmul.mubr.bf16.gmra.mrb[0].mxu0 %v7686
      %v7805 = vpop.f32.mrb[0].mxu0
      %v7806 = vadd.f32 0.0, %v7805
      %v7807 = vpop.f32.mrb[0].mxu0
      %v7808 = vpop.f32.mrb[0].mxu0
      %v7809 = vadd.f32 0.0, %v7808
      %v7810 = vpop.f32.mrb[0].mxu0
      %7811 = vmatprep.mubr.bf16.mxu0 0
      %7812 = vmatmul.mubr.bf16.gmra.mrb[0].mxu0 %v7689
      %v7813 = vpop.f32.mrb[0].mxu0
      %v7814 = vadd.f32 0.0, %v7813
      %v7815 = vpop.f32.mrb[0].mxu0
      %v7816 = vpop.f32.mrb[0].mxu0
      %v7817 = vadd.f32 0.0, %v7816
      %v7818 = vpop.f32.mrb[0].mxu0
      %7819 = vmatprep.mubr.bf16.mxu0 0
      %7820 = vmatmul.mubr.bf16.gmra.mrb[0].mxu0 %v7692
      %v7821 = vpop.f32.mrb[0].mxu0
      %v7822 = vadd.f32 0.0, %v7821
      %v7823 = vpop.f32.mrb[0].mxu0
      %v7824 = vpop.f32.mrb[0].mxu0
      %v7825 = vadd.f32 0.0, %v7824
      %v7826 = vpop.f32.mrb[0].mxu0
      %7827 = vmatprep.mubr.bf16.mxu0 0
      %7828 = vmatmul.mubr.bf16.gmra.mrb[0].mxu0 %v7695
      %v7829 = vpop.f32.mrb[0].mxu0
      %v7830 = vadd.f32 0.0, %v7829
      %v7831 = vpop.f32.mrb[0].mxu0
      %v7832 = vpop.f32.mrb[0].mxu0
      %v7833 = vadd.f32 0.0, %v7832
      %v7834 = vpop.f32.mrb[0].mxu0
      %7835 = vmatprep.mubr.bf16.mxu0 0
      %7836 = vmatmul.mubr.bf16.gmra.mrb[0].mxu0 %v7698
      %v7837 = vpop.f32.mrb[0].mxu0
      %v7838 = vadd.f32 0.0, %v7837
      %v7839 = vpop.f32.mrb[0].mxu0
      %v7840 = vpop.f32.mrb[0].mxu0
      %v7841 = vadd.f32 0.0, %v7840
      %v7842 = vpop.f32.mrb[0].mxu0
      %7843 = vmatprep.mubr.bf16.mxu0 0
      %7844 = vmatmul.mubr.bf16.gmra.mrb[0].mxu0 %v7701
      %v7845 = vpop.f32.mrb[0].mxu0
      %v7846 = vadd.f32 0.0, %v7845
      %v7847 = vpop.f32.mrb[0].mxu0
      %v7848 = vpop.f32.mrb[0].mxu0
      %v7849 = vadd.f32 0.0, %v7848
      %v7850 = vpop.f32.mrb[0].mxu0
      %7851 = vmatprep.mubr.bf16.mxu0 0
      %7852 = vmatmul.mubr.bf16.gmra.mrb[0].mxu0 %v7704
      %v7853 = vpop.f32.mrb[0].mxu0
      %v7854 = vadd.f32 0.0, %v7853
      %v7855 = vpop.f32.mrb[0].mxu0
      %v7856 = vpop.f32.mrb[0].mxu0
      %v7857 = vadd.f32 0.0, %v7856
      %v7858 = vpop.f32.mrb[0].mxu0
      %7859 = vmatprep.mubr.bf16.mxu0 0
      %7860 = vmatmul.mubr.bf16.gmra.mrb[0].mxu0 %v7707
      %v7861 = vpop.f32.mrb[0].mxu0
      %v7862 = vadd.f32 0.0, %v7861
      %v7863 = vpop.f32.mrb[0].mxu0
      %v7864 = vpop.f32.mrb[0].mxu0
      %v7865 = vadd.f32 0.0, %v7864
      %v7866 = vpop.f32.mrb[0].mxu0
      %7867 = vmatprep.mubr.bf16.mxu0 0
      %7868 = vmatmul.mubr.bf16.gmra.mrb[0].mxu0 %v7710
      %v7869 = vpop.f32.mrb[0].mxu0
      %v7870 = vadd.f32 0.0, %v7869
      %v7871 = vpop.f32.mrb[0].mxu0
      %v7872 = vpop.f32.mrb[0].mxu0
      %v7873 = vadd.f32 0.0, %v7872
      %v7874 = vpop.f32.mrb[0].mxu0
      %7875 = vdwg.mxu0
      %v7876 = vadd.f32 %v7328, %v7750
      %v7877 = vadd.f32 %v7331, %v7753
      %v7878 = vadd.f32 %v7336, %v7758
      %v7879 = vadd.f32 %v7339, %v7761
      %v7880 = vadd.f32 %v7344, %v7766
      %v7881 = vadd.f32 %v7347, %v7769
      %v7882 = vadd.f32 %v7352, %v7774
      %v7883 = vadd.f32 %v7355, %v7777
      %v7884 = vadd.f32 %v7360, %v7782
      %v7885 = vadd.f32 %v7363, %v7785
      %v7886 = vadd.f32 %v7368, %v7790
      %v7887 = vadd.f32 %v7371, %v7793
      %v7888 = vadd.f32 %v7376, %v7798
      %v7889 = vadd.f32 %v7379, %v7801
      %v7890 = vadd.f32 %v7384, %v7806
      %v7891 = vadd.f32 %v7387, %v7809
      %v7892 = vadd.f32 %v7392, %v7814
      %v7893 = vadd.f32 %v7395, %v7817
      %v7894 = vadd.f32 %v7400, %v7822
      %v7895 = vadd.f32 %v7403, %v7825
      %v7896 = vadd.f32 %v7408, %v7830
      %v7897 = vadd.f32 %v7411, %v7833
      %v7898 = vadd.f32 %v7416, %v7838
      %v7899 = vadd.f32 %v7419, %v7841
      %v7900 = vadd.f32 %v7424, %v7846
      %v7901 = vadd.f32 %v7427, %v7849
      %v7902 = vadd.f32 %v7432, %v7854
      %v7903 = vadd.f32 %v7435, %v7857
      %v7904 = vadd.f32 %v7440, %v7862
      %v7905 = vadd.f32 %v7443, %v7865
      %v7906 = vadd.f32 %v7448, %v7870
      %v7907 = vadd.f32 %v7451, %v7873
      %v7908 = vld [vmem:[%s6349] sm:$0xf]
      %v7909 = vld [vmem:[%s6349 + $0x4] sm:$0xf]
      %v7910 = vld [vmem:[%s6349 + $0xc] sm:$0xf]
      %v7911 = vld [vmem:[%s6349 + $0x10] sm:$0xf]
      %v7912 = vld [vmem:[%s6349 + $0x18] sm:$0xf]
      %v7913 = vld [vmem:[%s6349 + $0x1c] sm:$0xf]
      %v7914 = vld [vmem:[%s6349 + $0x24] sm:$0xf]
      %v7915 = vld [vmem:[%s6349 + $0x28] sm:$0xf]
      %v7916 = vld [vmem:[%s6349 + $0x30] sm:$0xf]
      %v7917 = vld [vmem:[%s6349 + $0x34] sm:$0xf]
      %v7918 = vld [vmem:[%s6349 + $0x3c] sm:$0xf]
      %v7919 = vld [vmem:[%s6349 + $0x40] sm:$0xf]
      %v7920 = vld [vmem:[%s6349 + $0x48] sm:$0xf]
      %v7921 = vld [vmem:[%s6349 + $0x4c] sm:$0xf]
      %v7922 = vld [vmem:[%s6349 + $0x54] sm:$0xf]
      %v7923 = vld [vmem:[%s6349 + $0x58] sm:$0xf]
      %v7924 = vld [vmem:[%s6349 + $0x60] sm:$0xf]
      %v7925 = vld [vmem:[%s6349 + $0x64] sm:$0xf]
      %v7926 = vld [vmem:[%s6349 + $0x6c] sm:$0xf]
      %v7927 = vld [vmem:[%s6349 + $0x70] sm:$0xf]
      %v7928 = vld [vmem:[%s6349 + $0x78] sm:$0xf]
      %v7929 = vld [vmem:[%s6349 + $0x7c] sm:$0xf]
      %v7930 = vld [vmem:[%s6349 + $0x84] sm:$0xf]
      %v7931 = vld [vmem:[%s6349 + $0x88] sm:$0xf]
      %v7932 = vld [vmem:[%s6349 + $0x90] sm:$0xf]
      %v7933 = vld [vmem:[%s6349 + $0x94] sm:$0xf]
      %v7934 = vld [vmem:[%s6349 + $0x9c] sm:$0xf]
      %v7935 = vld [vmem:[%s6349 + $0xa0] sm:$0xf]
      %v7936 = vld [vmem:[%s6349 + $0xa8] sm:$0xf]
      %v7937 = vld [vmem:[%s6349 + $0xac] sm:$0xf]
      %v7938 = vld [vmem:[%s6349 + $0xb4] sm:$0xf]
      %v7939 = vld [vmem:[%s6349 + $0xb8] sm:$0xf]
      %s7940 = scalar_lea.vmem %s5, 6
      %v7941 = vld [vmem:[%s7940] sm:$0x3]
      %v7974 = vunpack.c.l.b16 %v7908
      %v7975 = vunpack.c.l.b16 %v7909
      %v7976 = vunpack.c.l.b16 %v7910
      %v7977 = vunpack.c.l.b16 %v7911
      %v7978 = vunpack.c.l.b16 %v7912
      %v7979 = vunpack.c.l.b16 %v7913
      %v7980 = vunpack.c.l.b16 %v7914
      %v7981 = vunpack.c.l.b16 %v7915
      %v7982 = vunpack.c.l.b16 %v7916
      %v7983 = vunpack.c.l.b16 %v7917
      %v7984 = vunpack.c.l.b16 %v7918
      %v7985 = vunpack.c.l.b16 %v7919
      %v7986 = vunpack.c.l.b16 %v7920
      %v7987 = vunpack.c.l.b16 %v7921
      %v7988 = vunpack.c.l.b16 %v7922
      %v7989 = vunpack.c.l.b16 %v7923
      %v7990 = vunpack.c.l.b16 %v7924
      %v7991 = vunpack.c.l.b16 %v7925
      %v7992 = vunpack.c.l.b16 %v7926
      %v7993 = vunpack.c.l.b16 %v7927
      %v7994 = vunpack.c.l.b16 %v7928
      %v7995 = vunpack.c.l.b16 %v7929
      %v7996 = vunpack.c.l.b16 %v7930
      %v7997 = vunpack.c.l.b16 %v7931
      %v7998 = vunpack.c.l.b16 %v7932
      %v7999 = vunpack.c.l.b16 %v7933
      %v8000 = vunpack.c.l.b16 %v7934
      %v8001 = vunpack.c.l.b16 %v7935
      %v8002 = vunpack.c.l.b16 %v7936
      %v8003 = vunpack.c.l.b16 %v7937
      %v8004 = vunpack.c.l.b16 %v7938
      %v8005 = vunpack.c.l.b16 %v7939
      %v8006 = vpack.c.b16 %v7975, %v7974
      %v8007 = vpack.c.b16 %v7977, %v7976
      %v8008 = vpack.c.b16 %v7979, %v7978
      %v8009 = vpack.c.b16 %v7981, %v7980
      %v8010 = vpack.c.b16 %v7983, %v7982
      %v8011 = vpack.c.b16 %v7985, %v7984
      %v8012 = vpack.c.b16 %v7987, %v7986
      %v8013 = vpack.c.b16 %v7989, %v7988
      %v8014 = vpack.c.b16 %v7991, %v7990
      %v8015 = vpack.c.b16 %v7993, %v7992
      %v8016 = vpack.c.b16 %v7995, %v7994
      %v8017 = vpack.c.b16 %v7997, %v7996
      %v8018 = vpack.c.b16 %v7999, %v7998
      %v8019 = vpack.c.b16 %v8001, %v8000
      %v8020 = vpack.c.b16 %v8003, %v8002
      %v8021 = vpack.c.b16 %v8005, %v8004
      %v8023 = vsel %vm695, %v8006, 0
      %v8026 = vsel %vm695, %v8007, 0
      %v8029 = vsel %vm695, %v8008, 0
      %v8032 = vsel %vm695, %v8009, 0
      %v8035 = vsel %vm695, %v8010, 0
      %v8038 = vsel %vm695, %v8011, 0
      %v8041 = vsel %vm695, %v8012, 0
      %v8044 = vsel %vm695, %v8013, 0
      %v8047 = vsel %vm695, %v8014, 0
      %v8050 = vsel %vm695, %v8015, 0
      %v8053 = vsel %vm695, %v8016, 0
      %v8056 = vsel %vm695, %v8017, 0
      %v8059 = vsel %vm695, %v8018, 0
      %v8062 = vsel %vm695, %v8019, 0
      %v8065 = vsel %vm695, %v8020, 0
      %v8068 = vsel %vm695, %v8021, 0
      %v8071 = vsel %vm6997, %v7941, 0
      %8073 = vmatprep.subr.bf16.mxu0 0
      %8074 = vmatpush1.bf16.msra.mxu0 %v8071
      %8075 = vmatprep.subr.bf16.mxu0 0
      %8076 = vmatpush1.bf16.msra.mxu0 0
      %8077 = vmatprep.subr.bf16.mxu0 0
      %8078 = vmatpush1.bf16.msra.mxu0 0
      %8079 = vmatprep.subr.bf16.mxu0 0
      %8080 = vmatpush1.bf16.msra.mxu0 0
      %8081 = vmatprep.subr.bf16.mxu0 0
      %8082 = vmatpush1.bf16.msra.mxu0 0
      %8083 = vmatprep.subr.bf16.mxu0 0
      %8084 = vmatpush1.bf16.msra.mxu0 0
      %8085 = vmatprep.subr.bf16.mxu0 0
      %8086 = vmatpush1.bf16.msra.mxu0 0
      %8087 = vmatprep.subr.bf16.mxu0 0
      %8088 = vmatpush1.bf16.msra.mxu0 0
      %8089 = vmatprep.subr.bf16.mxu0 0
      %8090 = vmatpush1.bf16.msra.mxu0 0
      %8091 = vmatprep.subr.bf16.mxu0 0
      %8092 = vmatpush1.bf16.msra.mxu0 0
      %8093 = vmatprep.subr.bf16.mxu0 0
      %8094 = vmatpush1.bf16.msra.mxu0 0
      %8095 = vmatprep.subr.bf16.mxu0 0
      %8096 = vmatpush1.bf16.msra.mxu0 0
      %8097 = vmatprep.subr.bf16.mxu0 0
      %8098 = vmatpush1.bf16.msra.mxu0 0
      %8099 = vmatprep.subr.bf16.mxu0 0
      %8100 = vmatpush1.bf16.msra.mxu0 0
      %8101 = vmatprep.subr.bf16.mxu0 0
      %8102 = vmatpush1.bf16.msra.mxu0 0
      %8103 = vmatprep.subr.bf16.mxu0 0
      %8104 = vmatpush1.bf16.msra.mxu0 0
      %8105 = vmatprep.mubr.bf16.mxu0 0
      %8106 = vmatmul.mubr.bf16.gmra.mrb[0].mxu0 %v8023
      %v8107 = vpop.f32.mrb[0].mxu0
      %v8108 = vadd.f32 0.0, %v8107
      %v8109 = vpop.f32.mrb[0].mxu0
      %v8110 = vpop.f32.mrb[0].mxu0
      %v8111 = vadd.f32 0.0, %v8110
      %v8112 = vpop.f32.mrb[0].mxu0
      %8113 = vmatprep.mubr.bf16.mxu0 0
      %8114 = vmatmul.mubr.bf16.gmra.mrb[0].mxu0 %v8026
      %v8115 = vpop.f32.mrb[0].mxu0
      %v8116 = vadd.f32 0.0, %v8115
      %v8117 = vpop.f32.mrb[0].mxu0
      %v8118 = vpop.f32.mrb[0].mxu0
      %v8119 = vadd.f32 0.0, %v8118
      %v8120 = vpop.f32.mrb[0].mxu0
      %8121 = vmatprep.mubr.bf16.mxu0 0
      %8122 = vmatmul.mubr.bf16.gmra.mrb[0].mxu0 %v8029
      %v8123 = vpop.f32.mrb[0].mxu0
      %v8124 = vadd.f32 0.0, %v8123
      %v8125 = vpop.f32.mrb[0].mxu0
      %v8126 = vpop.f32.mrb[0].mxu0
      %v8127 = vadd.f32 0.0, %v8126
      %v8128 = vpop.f32.mrb[0].mxu0
      %8129 = vmatprep.mubr.bf16.mxu0 0
      %8130 = vmatmul.mubr.bf16.gmra.mrb[0].mxu0 %v8032
      %v8131 = vpop.f32.mrb[0].mxu0
      %v8132 = vadd.f32 0.0, %v8131
      %v8133 = vpop.f32.mrb[0].mxu0
      %v8134 = vpop.f32.mrb[0].mxu0
      %v8135 = vadd.f32 0.0, %v8134
      %v8136 = vpop.f32.mrb[0].mxu0
      %8137 = vmatprep.mubr.bf16.mxu0 0
      %8138 = vmatmul.mubr.bf16.gmra.mrb[0].mxu0 %v8035
      %v8139 = vpop.f32.mrb[0].mxu0
      %v8140 = vadd.f32 0.0, %v8139
      %v8141 = vpop.f32.mrb[0].mxu0
      %v8142 = vpop.f32.mrb[0].mxu0
      %v8143 = vadd.f32 0.0, %v8142
      %v8144 = vpop.f32.mrb[0].mxu0
      %8145 = vmatprep.mubr.bf16.mxu0 0
      %8146 = vmatmul.mubr.bf16.gmra.mrb[0].mxu0 %v8038
      %v8147 = vpop.f32.mrb[0].mxu0
      %v8148 = vadd.f32 0.0, %v8147
      %v8149 = vpop.f32.mrb[0].mxu0
      %v8150 = vpop.f32.mrb[0].mxu0
      %v8151 = vadd.f32 0.0, %v8150
      %v8152 = vpop.f32.mrb[0].mxu0
      %8153 = vmatprep.mubr.bf16.mxu0 0
      %8154 = vmatmul.mubr.bf16.gmra.mrb[0].mxu0 %v8041
      %v8155 = vpop.f32.mrb[0].mxu0
      %v8156 = vadd.f32 0.0, %v8155
      %v8157 = vpop.f32.mrb[0].mxu0
      %v8158 = vpop.f32.mrb[0].mxu0
      %v8159 = vadd.f32 0.0, %v8158
      %v8160 = vpop.f32.mrb[0].mxu0
      %8161 = vmatprep.mubr.bf16.mxu0 0
      %8162 = vmatmul.mubr.bf16.gmra.mrb[0].mxu0 %v8044
      %v8163 = vpop.f32.mrb[0].mxu0
      %v8164 = vadd.f32 0.0, %v8163
      %v8165 = vpop.f32.mrb[0].mxu0
      %v8166 = vpop.f32.mrb[0].mxu0
      %v8167 = vadd.f32 0.0, %v8166
      %v8168 = vpop.f32.mrb[0].mxu0
      %8169 = vmatprep.mubr.bf16.mxu0 0
      %8170 = vmatmul.mubr.bf16.gmra.mrb[0].mxu0 %v8047
      %v8171 = vpop.f32.mrb[0].mxu0
      %v8172 = vadd.f32 0.0, %v8171
      %v8173 = vpop.f32.mrb[0].mxu0
      %v8174 = vpop.f32.mrb[0].mxu0
      %v8175 = vadd.f32 0.0, %v8174
      %v8176 = vpop.f32.mrb[0].mxu0
      %8177 = vmatprep.mubr.bf16.mxu0 0
      %8178 = vmatmul.mubr.bf16.gmra.mrb[0].mxu0 %v8050
      %v8179 = vpop.f32.mrb[0].mxu0
      %v8180 = vadd.f32 0.0, %v8179
      %v8181 = vpop.f32.mrb[0].mxu0
      %v8182 = vpop.f32.mrb[0].mxu0
      %v8183 = vadd.f32 0.0, %v8182
      %v8184 = vpop.f32.mrb[0].mxu0
      %8185 = vmatprep.mubr.bf16.mxu0 0
      %8186 = vmatmul.mubr.bf16.gmra.mrb[0].mxu0 %v8053
      %v8187 = vpop.f32.mrb[0].mxu0
      %v8188 = vadd.f32 0.0, %v8187
      %v8189 = vpop.f32.mrb[0].mxu0
      %v8190 = vpop.f32.mrb[0].mxu0
      %v8191 = vadd.f32 0.0, %v8190
      %v8192 = vpop.f32.mrb[0].mxu0
      %8193 = vmatprep.mubr.bf16.mxu0 0
      %8194 = vmatmul.mubr.bf16.gmra.mrb[0].mxu0 %v8056
      %v8195 = vpop.f32.mrb[0].mxu0
      %v8196 = vadd.f32 0.0, %v8195
      %v8197 = vpop.f32.mrb[0].mxu0
      %v8198 = vpop.f32.mrb[0].mxu0
      %v8199 = vadd.f32 0.0, %v8198
      %v8200 = vpop.f32.mrb[0].mxu0
      %8201 = vmatprep.mubr.bf16.mxu0 0
      %8202 = vmatmul.mubr.bf16.gmra.mrb[0].mxu0 %v8059
      %v8203 = vpop.f32.mrb[0].mxu0
      %v8204 = vadd.f32 0.0, %v8203
      %v8205 = vpop.f32.mrb[0].mxu0
      %v8206 = vpop.f32.mrb[0].mxu0
      %v8207 = vadd.f32 0.0, %v8206
      %v8208 = vpop.f32.mrb[0].mxu0
      %8209 = vmatprep.mubr.bf16.mxu0 0
      %8210 = vmatmul.mubr.bf16.gmra.mrb[0].mxu0 %v8062
      %v8211 = vpop.f32.mrb[0].mxu0
      %v8212 = vadd.f32 0.0, %v8211
      %v8213 = vpop.f32.mrb[0].mxu0
      %v8214 = vpop.f32.mrb[0].mxu0
      %v8215 = vadd.f32 0.0, %v8214
      %v8216 = vpop.f32.mrb[0].mxu0
      %8217 = vmatprep.mubr.bf16.mxu0 0
      %8218 = vmatmul.mubr.bf16.gmra.mrb[0].mxu0 %v8065
      %v8219 = vpop.f32.mrb[0].mxu0
      %v8220 = vadd.f32 0.0, %v8219
      %v8221 = vpop.f32.mrb[0].mxu0
      %v8222 = vpop.f32.mrb[0].mxu0
      %v8223 = vadd.f32 0.0, %v8222
      %v8224 = vpop.f32.mrb[0].mxu0
      %8225 = vmatprep.mubr.bf16.mxu0 0
      %8226 = vmatmul.mubr.bf16.gmra.mrb[0].mxu0 %v8068
      %v8227 = vpop.f32.mrb[0].mxu0
      %v8228 = vadd.f32 0.0, %v8227
      %v8229 = vpop.f32.mrb[0].mxu0
      %v8230 = vpop.f32.mrb[0].mxu0
      %v8231 = vadd.f32 0.0, %v8230
      %v8232 = vpop.f32.mrb[0].mxu0
      %8233 = vdwg.mxu0
      %v8234 = vadd.f32 %v7876, %v8108
      %v8235 = vadd.f32 %v7877, %v8111
      %v8236 = vadd.f32 %v7878, %v8116
      %v8237 = vadd.f32 %v7879, %v8119
      %v8238 = vadd.f32 %v7880, %v8124
      %v8239 = vadd.f32 %v7881, %v8127
      %v8240 = vadd.f32 %v7882, %v8132
      %v8241 = vadd.f32 %v7883, %v8135
      %v8242 = vadd.f32 %v7884, %v8140
      %v8243 = vadd.f32 %v7885, %v8143
      %v8244 = vadd.f32 %v7886, %v8148
      %v8245 = vadd.f32 %v7887, %v8151
      %v8246 = vadd.f32 %v7888, %v8156
      %v8247 = vadd.f32 %v7889, %v8159
      %v8248 = vadd.f32 %v7890, %v8164
      %v8249 = vadd.f32 %v7891, %v8167
      %v8250 = vadd.f32 %v7892, %v8172
      %v8251 = vadd.f32 %v7893, %v8175
      %v8252 = vadd.f32 %v7894, %v8180
      %v8253 = vadd.f32 %v7895, %v8183
      %v8254 = vadd.f32 %v7896, %v8188
      %v8255 = vadd.f32 %v7897, %v8191
      %v8256 = vadd.f32 %v7898, %v8196
      %v8257 = vadd.f32 %v7899, %v8199
      %v8258 = vadd.f32 %v7900, %v8204
      %v8259 = vadd.f32 %v7901, %v8207
      %v8260 = vadd.f32 %v7902, %v8212
      %v8261 = vadd.f32 %v7903, %v8215
      %v8262 = vadd.f32 %v7904, %v8220
      %v8263 = vadd.f32 %v7905, %v8223
      %v8264 = vadd.f32 %v7906, %v8228
      %v8265 = vadd.f32 %v7907, %v8231
      %v8266 = vld [vmem:[%s6349] sm:$0xf]
      %v8267 = vld [vmem:[%s6349 + $0x4] sm:$0xf]
      %v8268 = vld [vmem:[%s6349 + $0x8] sm:$0x1]
      %v8269 = vld [vmem:[%s6349 + $0xc] sm:$0xf]
      %v8270 = vld [vmem:[%s6349 + $0x10] sm:$0xf]
      %v8271 = vld [vmem:[%s6349 + $0x14] sm:$0x1]
      %v8272 = vld [vmem:[%s6349 + $0x18] sm:$0xf]
      %v8273 = vld [vmem:[%s6349 + $0x1c] sm:$0xf]
      %v8274 = vld [vmem:[%s6349 + $0x20] sm:$0x1]
      %v8275 = vld [vmem:[%s6349 + $0x24] sm:$0xf]
      %v8276 = vld [vmem:[%s6349 + $0x28] sm:$0xf]
      %v8277 = vld [vmem:[%s6349 + $0x2c] sm:$0x1]
      %v8278 = vld [vmem:[%s6349 + $0x30] sm:$0xf]
      %v8279 = vld [vmem:[%s6349 + $0x34] sm:$0xf]
      %v8280 = vld [vmem:[%s6349 + $0x38] sm:$0x1]
      %v8281 = vld [vmem:[%s6349 + $0x3c] sm:$0xf]
      %v8282 = vld [vmem:[%s6349 + $0x40] sm:$0xf]
      %v8283 = vld [vmem:[%s6349 + $0x44] sm:$0x1]
      %v8284 = vld [vmem:[%s6349 + $0x48] sm:$0xf]
      %v8285 = vld [vmem:[%s6349 + $0x4c] sm:$0xf]
      %v8286 = vld [vmem:[%s6349 + $0x50] sm:$0x1]
      %v8287 = vld [vmem:[%s6349 + $0x54] sm:$0xf]
      %v8288 = vld [vmem:[%s6349 + $0x58] sm:$0xf]
      %v8289 = vld [vmem:[%s6349 + $0x5c] sm:$0x1]
      %v8290 = vld [vmem:[%s6349 + $0x60] sm:$0xf]
      %v8291 = vld [vmem:[%s6349 + $0x64] sm:$0xf]
      %v8292 = vld [vmem:[%s6349 + $0x68] sm:$0x1]
      %v8293 = vld [vmem:[%s6349 + $0x6c] sm:$0xf]
      %v8294 = vld [vmem:[%s6349 + $0x70] sm:$0xf]
      %v8295 = vld [vmem:[%s6349 + $0x74] sm:$0x1]
      %v8296 = vld [vmem:[%s6349 + $0x78] sm:$0xf]
      %v8297 = vld [vmem:[%s6349 + $0x7c] sm:$0xf]
      %v8298 = vld [vmem:[%s6349 + $0x80] sm:$0x1]
      %v8299 = vld [vmem:[%s6349 + $0x84] sm:$0xf]
      %v8300 = vld [vmem:[%s6349 + $0x88] sm:$0xf]
      %v8301 = vld [vmem:[%s6349 + $0x8c] sm:$0x1]
      %v8302 = vld [vmem:[%s6349 + $0x90] sm:$0xf]
      %v8303 = vld [vmem:[%s6349 + $0x94] sm:$0xf]
      %v8304 = vld [vmem:[%s6349 + $0x98] sm:$0x1]
      %v8305 = vld [vmem:[%s6349 + $0x9c] sm:$0xf]
      %v8306 = vld [vmem:[%s6349 + $0xa0] sm:$0xf]
      %v8307 = vld [vmem:[%s6349 + $0xa4] sm:$0x1]
      %v8308 = vld [vmem:[%s6349 + $0xa8] sm:$0xf]
      %v8309 = vld [vmem:[%s6349 + $0xac] sm:$0xf]
      %v8310 = vld [vmem:[%s6349 + $0xb0] sm:$0x1]
      %v8311 = vld [vmem:[%s6349 + $0xb4] sm:$0xf]
      %v8312 = vld [vmem:[%s6349 + $0xb8] sm:$0xf]
      %v8313 = vld [vmem:[%s6349 + $0xbc] sm:$0x1]
      %v8315 = vshrl.u32 %v8266, 16
      %v8317 = vrot.slane %v8315, 4
      %v8318 = vshll.u32 %v8266, 16
      %v8320 = vrot.slane %v8318, 5
      %v8321 = vor.u32 %v8317, %v8320
      %v8322 = vrot.slane %v8321, 4
      %v8324 = vshll.u32 %v8267, 16
      %v8326 = vrot.slane %v8324, 5
      %v8327 = vsel %vm1316, %v8322, %v8326
      %v8328 = vshrl.u32 %v8267, 16
      %v8330 = vrot.slane %v8328, 4
      %v8331 = vor.u32 %v8330, %v8326
      %v8332 = vrot.slane %v8331, 4
      %v8334 = vshll.u32 %v8268, 16
      %v8336 = vrot.slane %v8334, 5
      %v8337 = vsel %vm1316, %v8332, %v8336
      %v8339 = vshrl.u32 %v8269, 16
      %v8341 = vrot.slane %v8339, 4
      %v8342 = vshll.u32 %v8269, 16
      %v8344 = vrot.slane %v8342, 5
      %v8345 = vor.u32 %v8341, %v8344
      %v8346 = vrot.slane %v8345, 4
      %v8348 = vshll.u32 %v8270, 16
      %v8350 = vrot.slane %v8348, 5
      %v8351 = vsel %vm1316, %v8346, %v8350
      %v8352 = vshrl.u32 %v8270, 16
      %v8354 = vrot.slane %v8352, 4
      %v8355 = vor.u32 %v8354, %v8350
      %v8356 = vrot.slane %v8355, 4
      %v8358 = vshll.u32 %v8271, 16
      %v8360 = vrot.slane %v8358, 5
      %v8361 = vsel %vm1316, %v8356, %v8360
      %v8363 = vshrl.u32 %v8272, 16
      %v8365 = vrot.slane %v8363, 4
      %v8366 = vshll.u32 %v8272, 16
      %v8368 = vrot.slane %v8366, 5
      %v8369 = vor.u32 %v8365, %v8368
      %v8370 = vrot.slane %v8369, 4
      %v8372 = vshll.u32 %v8273, 16
      %v8374 = vrot.slane %v8372, 5
      %v8375 = vsel %vm1316, %v8370, %v8374
      %v8376 = vshrl.u32 %v8273, 16
      %v8378 = vrot.slane %v8376, 4
      %v8379 = vor.u32 %v8378, %v8374
      %v8380 = vrot.slane %v8379, 4
      %v8382 = vshll.u32 %v8274, 16
      %v8384 = vrot.slane %v8382, 5
      %v8385 = vsel %vm1316, %v8380, %v8384
      %v8387 = vshrl.u32 %v8275, 16
      %v8389 = vrot.slane %v8387, 4
      %v8390 = vshll.u32 %v8275, 16
      %v8392 = vrot.slane %v8390, 5
      %v8393 = vor.u32 %v8389, %v8392
      %v8394 = vrot.slane %v8393, 4
      %v8396 = vshll.u32 %v8276, 16
      %v8398 = vrot.slane %v8396, 5
      %v8399 = vsel %vm1316, %v8394, %v8398
      %v8400 = vshrl.u32 %v8276, 16
      %v8402 = vrot.slane %v8400, 4
      %v8403 = vor.u32 %v8402, %v8398
      %v8404 = vrot.slane %v8403, 4
      %v8406 = vshll.u32 %v8277, 16
      %v8408 = vrot.slane %v8406, 5
      %v8409 = vsel %vm1316, %v8404, %v8408
      %v8411 = vshrl.u32 %v8278, 16
      %v8413 = vrot.slane %v8411, 4
      %v8414 = vshll.u32 %v8278, 16
      %v8416 = vrot.slane %v8414, 5
      %v8417 = vor.u32 %v8413, %v8416
      %v8418 = vrot.slane %v8417, 4
      %v8420 = vshll.u32 %v8279, 16
      %v8422 = vrot.slane %v8420, 5
      %v8423 = vsel %vm1316, %v8418, %v8422
      %v8424 = vshrl.u32 %v8279, 16
      %v8426 = vrot.slane %v8424, 4
      %v8427 = vor.u32 %v8426, %v8422
      %v8428 = vrot.slane %v8427, 4
      %v8430 = vshll.u32 %v8280, 16
      %v8432 = vrot.slane %v8430, 5
      %v8433 = vsel %vm1316, %v8428, %v8432
      %v8435 = vshrl.u32 %v8281, 16
      %v8437 = vrot.slane %v8435, 4
      %v8438 = vshll.u32 %v8281, 16
      %v8440 = vrot.slane %v8438, 5
      %v8441 = vor.u32 %v8437, %v8440
      %v8442 = vrot.slane %v8441, 4
      %v8444 = vshll.u32 %v8282, 16
      %v8446 = vrot.slane %v8444, 5
      %v8447 = vsel %vm1316, %v8442, %v8446
      %v8448 = vshrl.u32 %v8282, 16
      %v8450 = vrot.slane %v8448, 4
      %v8451 = vor.u32 %v8450, %v8446
      %v8452 = vrot.slane %v8451, 4
      %v8454 = vshll.u32 %v8283, 16
      %v8456 = vrot.slane %v8454, 5
      %v8457 = vsel %vm1316, %v8452, %v8456
      %v8459 = vshrl.u32 %v8284, 16
      %v8461 = vrot.slane %v8459, 4
      %v8462 = vshll.u32 %v8284, 16
      %v8464 = vrot.slane %v8462, 5
      %v8465 = vor.u32 %v8461, %v8464
      %v8466 = vrot.slane %v8465, 4
      %v8468 = vshll.u32 %v8285, 16
      %v8470 = vrot.slane %v8468, 5
      %v8471 = vsel %vm1316, %v8466, %v8470
      %v8472 = vshrl.u32 %v8285, 16
      %v8474 = vrot.slane %v8472, 4
      %v8475 = vor.u32 %v8474, %v8470
      %v8476 = vrot.slane %v8475, 4
      %v8478 = vshll.u32 %v8286, 16
      %v8480 = vrot.slane %v8478, 5
      %v8481 = vsel %vm1316, %v8476, %v8480
      %v8483 = vshrl.u32 %v8287, 16
      %v8485 = vrot.slane %v8483, 4
      %v8486 = vshll.u32 %v8287, 16
      %v8488 = vrot.slane %v8486, 5
      %v8489 = vor.u32 %v8485, %v8488
      %v8490 = vrot.slane %v8489, 4
      %v8492 = vshll.u32 %v8288, 16
      %v8494 = vrot.slane %v8492, 5
      %v8495 = vsel %vm1316, %v8490, %v8494
      %v8496 = vshrl.u32 %v8288, 16
      %v8498 = vrot.slane %v8496, 4
      %v8499 = vor.u32 %v8498, %v8494
      %v8500 = vrot.slane %v8499, 4
      %v8502 = vshll.u32 %v8289, 16
      %v8504 = vrot.slane %v8502, 5
      %v8505 = vsel %vm1316, %v8500, %v8504
      %v8507 = vshrl.u32 %v8290, 16
      %v8509 = vrot.slane %v8507, 4
      %v8510 = vshll.u32 %v8290, 16
      %v8512 = vrot.slane %v8510, 5
      %v8513 = vor.u32 %v8509, %v8512
      %v8514 = vrot.slane %v8513, 4
      %v8516 = vshll.u32 %v8291, 16
      %v8518 = vrot.slane %v8516, 5
      %v8519 = vsel %vm1316, %v8514, %v8518
      %v8520 = vshrl.u32 %v8291, 16
      %v8522 = vrot.slane %v8520, 4
      %v8523 = vor.u32 %v8522, %v8518
      %v8524 = vrot.slane %v8523, 4
      %v8526 = vshll.u32 %v8292, 16
      %v8528 = vrot.slane %v8526, 5
      %v8529 = vsel %vm1316, %v8524, %v8528
      %v8531 = vshrl.u32 %v8293, 16
      %v8533 = vrot.slane %v8531, 4
      %v8534 = vshll.u32 %v8293, 16
      %v8536 = vrot.slane %v8534, 5
      %v8537 = vor.u32 %v8533, %v8536
      %v8538 = vrot.slane %v8537, 4
      %v8540 = vshll.u32 %v8294, 16
      %v8542 = vrot.slane %v8540, 5
      %v8543 = vsel %vm1316, %v8538, %v8542
      %v8544 = vshrl.u32 %v8294, 16
      %v8546 = vrot.slane %v8544, 4
      %v8547 = vor.u32 %v8546, %v8542
      %v8548 = vrot.slane %v8547, 4
      %v8550 = vshll.u32 %v8295, 16
      %v8552 = vrot.slane %v8550, 5
      %v8553 = vsel %vm1316, %v8548, %v8552
      %v8555 = vshrl.u32 %v8296, 16
      %v8557 = vrot.slane %v8555, 4
      %v8558 = vshll.u32 %v8296, 16
      %v8560 = vrot.slane %v8558, 5
      %v8561 = vor.u32 %v8557, %v8560
      %v8562 = vrot.slane %v8561, 4
      %v8564 = vshll.u32 %v8297, 16
      %v8566 = vrot.slane %v8564, 5
      %v8567 = vsel %vm1316, %v8562, %v8566
      %v8568 = vshrl.u32 %v8297, 16
      %v8570 = vrot.slane %v8568, 4
      %v8571 = vor.u32 %v8570, %v8566
      %v8572 = vrot.slane %v8571, 4
      %v8574 = vshll.u32 %v8298, 16
      %v8576 = vrot.slane %v8574, 5
      %v8577 = vsel %vm1316, %v8572, %v8576
      %v8579 = vshrl.u32 %v8299, 16
      %v8581 = vrot.slane %v8579, 4
      %v8582 = vshll.u32 %v8299, 16
      %v8584 = vrot.slane %v8582, 5
      %v8585 = vor.u32 %v8581, %v8584
      %v8586 = vrot.slane %v8585, 4
      %v8588 = vshll.u32 %v8300, 16
      %v8590 = vrot.slane %v8588, 5
      %v8591 = vsel %vm1316, %v8586, %v8590
      %v8592 = vshrl.u32 %v8300, 16
      %v8594 = vrot.slane %v8592, 4
      %v8595 = vor.u32 %v8594, %v8590
      %v8596 = vrot.slane %v8595, 4
      %v8598 = vshll.u32 %v8301, 16
      %v8600 = vrot.slane %v8598, 5
      %v8601 = vsel %vm1316, %v8596, %v8600
      %v8603 = vshrl.u32 %v8302, 16
      %v8605 = vrot.slane %v8603, 4
      %v8606 = vshll.u32 %v8302, 16
      %v8608 = vrot.slane %v8606, 5
      %v8609 = vor.u32 %v8605, %v8608
      %v8610 = vrot.slane %v8609, 4
      %v8612 = vshll.u32 %v8303, 16
      %v8614 = vrot.slane %v8612, 5
      %v8615 = vsel %vm1316, %v8610, %v8614
      %v8616 = vshrl.u32 %v8303, 16
      %v8618 = vrot.slane %v8616, 4
      %v8619 = vor.u32 %v8618, %v8614
      %v8620 = vrot.slane %v8619, 4
      %v8622 = vshll.u32 %v8304, 16
      %v8624 = vrot.slane %v8622, 5
      %v8625 = vsel %vm1316, %v8620, %v8624
      %v8627 = vshrl.u32 %v8305, 16
      %v8629 = vrot.slane %v8627, 4
      %v8630 = vshll.u32 %v8305, 16
      %v8632 = vrot.slane %v8630, 5
      %v8633 = vor.u32 %v8629, %v8632
      %v8634 = vrot.slane %v8633, 4
      %v8636 = vshll.u32 %v8306, 16
      %v8638 = vrot.slane %v8636, 5
      %v8639 = vsel %vm1316, %v8634, %v8638
      %v8640 = vshrl.u32 %v8306, 16
      %v8642 = vrot.slane %v8640, 4
      %v8643 = vor.u32 %v8642, %v8638
      %v8644 = vrot.slane %v8643, 4
      %v8646 = vshll.u32 %v8307, 16
      %v8648 = vrot.slane %v8646, 5
      %v8649 = vsel %vm1316, %v8644, %v8648
      %v8651 = vshrl.u32 %v8308, 16
      %v8653 = vrot.slane %v8651, 4
      %v8654 = vshll.u32 %v8308, 16
      %v8656 = vrot.slane %v8654, 5
      %v8657 = vor.u32 %v8653, %v8656
      %v8658 = vrot.slane %v8657, 4
      %v8660 = vshll.u32 %v8309, 16
      %v8662 = vrot.slane %v8660, 5
      %v8663 = vsel %vm1316, %v8658, %v8662
      %v8664 = vshrl.u32 %v8309, 16
      %v8666 = vrot.slane %v8664, 4
      %v8667 = vor.u32 %v8666, %v8662
      %v8668 = vrot.slane %v8667, 4
      %v8670 = vshll.u32 %v8310, 16
      %v8672 = vrot.slane %v8670, 5
      %v8673 = vsel %vm1316, %v8668, %v8672
      %v8675 = vshrl.u32 %v8311, 16
      %v8677 = vrot.slane %v8675, 4
      %v8678 = vshll.u32 %v8311, 16
      %v8680 = vrot.slane %v8678, 5
      %v8681 = vor.u32 %v8677, %v8680
      %v8682 = vrot.slane %v8681, 4
      %v8684 = vshll.u32 %v8312, 16
      %v8686 = vrot.slane %v8684, 5
      %v8687 = vsel %vm1316, %v8682, %v8686
      %v8688 = vshrl.u32 %v8312, 16
      %v8690 = vrot.slane %v8688, 4
      %v8691 = vor.u32 %v8690, %v8686
      %v8692 = vrot.slane %v8691, 4
      %v8694 = vshll.u32 %v8313, 16
      %v8696 = vrot.slane %v8694, 5
      %v8697 = vsel %vm1316, %v8692, %v8696
      %s8698 = scalar_lea.vmem %s5, 8
      %v8699 = vld [vmem:[%s8698] sm:$0x3]
      %v8700 = vunpack.c.l.b16 %v8327
      %v8701 = vunpack.c.l.b16 %v8337
      %v8702 = vunpack.c.l.b16 %v8351
      %v8703 = vunpack.c.l.b16 %v8361
      %v8704 = vunpack.c.l.b16 %v8375
      %v8705 = vunpack.c.l.b16 %v8385
      %v8706 = vunpack.c.l.b16 %v8399
      %v8707 = vunpack.c.l.b16 %v8409
      %v8708 = vunpack.c.l.b16 %v8423
      %v8709 = vunpack.c.l.b16 %v8433
      %v8710 = vunpack.c.l.b16 %v8447
      %v8711 = vunpack.c.l.b16 %v8457
      %v8712 = vunpack.c.l.b16 %v8471
      %v8713 = vunpack.c.l.b16 %v8481
      %v8714 = vunpack.c.l.b16 %v8495
      %v8715 = vunpack.c.l.b16 %v8505
      %v8716 = vunpack.c.l.b16 %v8519
      %v8717 = vunpack.c.l.b16 %v8529
      %v8718 = vunpack.c.l.b16 %v8543
      %v8719 = vunpack.c.l.b16 %v8553
      %v8720 = vunpack.c.l.b16 %v8567
      %v8721 = vunpack.c.l.b16 %v8577
      %v8722 = vunpack.c.l.b16 %v8591
      %v8723 = vunpack.c.l.b16 %v8601
      %v8724 = vunpack.c.l.b16 %v8615
      %v8725 = vunpack.c.l.b16 %v8625
      %v8726 = vunpack.c.l.b16 %v8639
      %v8727 = vunpack.c.l.b16 %v8649
      %v8728 = vunpack.c.l.b16 %v8663
      %v8729 = vunpack.c.l.b16 %v8673
      %v8730 = vunpack.c.l.b16 %v8687
      %v8731 = vunpack.c.l.b16 %v8697
      %v8732 = vpack.c.b16 %v8701, %v8700
      %v8733 = vpack.c.b16 %v8703, %v8702
      %v8734 = vpack.c.b16 %v8705, %v8704
      %v8735 = vpack.c.b16 %v8707, %v8706
      %v8736 = vpack.c.b16 %v8709, %v8708
      %v8737 = vpack.c.b16 %v8711, %v8710
      %v8738 = vpack.c.b16 %v8713, %v8712
      %v8739 = vpack.c.b16 %v8715, %v8714
      %v8740 = vpack.c.b16 %v8717, %v8716
      %v8741 = vpack.c.b16 %v8719, %v8718
      %v8742 = vpack.c.b16 %v8721, %v8720
      %v8743 = vpack.c.b16 %v8723, %v8722
      %v8744 = vpack.c.b16 %v8725, %v8724
      %v8745 = vpack.c.b16 %v8727, %v8726
      %v8746 = vpack.c.b16 %v8729, %v8728
      %v8747 = vpack.c.b16 %v8731, %v8730
      %v8749 = vsel %vm695, %v8732, 0
      %v8752 = vsel %vm695, %v8733, 0
      %v8755 = vsel %vm695, %v8734, 0
      %v8758 = vsel %vm695, %v8735, 0
      %v8761 = vsel %vm695, %v8736, 0
      %v8764 = vsel %vm695, %v8737, 0
      %v8767 = vsel %vm695, %v8738, 0
      %v8770 = vsel %vm695, %v8739, 0
      %v8773 = vsel %vm695, %v8740, 0
      %v8776 = vsel %vm695, %v8741, 0
      %v8779 = vsel %vm695, %v8742, 0
      %v8782 = vsel %vm695, %v8743, 0
      %v8785 = vsel %vm695, %v8744, 0
      %v8788 = vsel %vm695, %v8745, 0
      %v8791 = vsel %vm695, %v8746, 0
      %v8794 = vsel %vm695, %v8747, 0
      %v8797 = vsel %vm6997, %v8699, 0
      %8799 = vmatprep.subr.bf16.mxu0 0
      %8800 = vmatpush1.bf16.msra.mxu0 %v8797
      %8801 = vmatprep.subr.bf16.mxu0 0
      %8802 = vmatpush1.bf16.msra.mxu0 0
      %8803 = vmatprep.subr.bf16.mxu0 0
      %8804 = vmatpush1.bf16.msra.mxu0 0
      %8805 = vmatprep.subr.bf16.mxu0 0
      %8806 = vmatpush1.bf16.msra.mxu0 0
      %8807 = vmatprep.subr.bf16.mxu0 0
      %8808 = vmatpush1.bf16.msra.mxu0 0
      %8809 = vmatprep.subr.bf16.mxu0 0
      %8810 = vmatpush1.bf16.msra.mxu0 0
      %8811 = vmatprep.subr.bf16.mxu0 0
      %8812 = vmatpush1.bf16.msra.mxu0 0
      %8813 = vmatprep.subr.bf16.mxu0 0
      %8814 = vmatpush1.bf16.msra.mxu0 0
      %8815 = vmatprep.subr.bf16.mxu0 0
      %8816 = vmatpush1.bf16.msra.mxu0 0
      %8817 = vmatprep.subr.bf16.mxu0 0
      %8818 = vmatpush1.bf16.msra.mxu0 0
      %8819 = vmatprep.subr.bf16.mxu0 0
      %8820 = vmatpush1.bf16.msra.mxu0 0
      %8821 = vmatprep.subr.bf16.mxu0 0
      %8822 = vmatpush1.bf16.msra.mxu0 0
      %8823 = vmatprep.subr.bf16.mxu0 0
      %8824 = vmatpush1.bf16.msra.mxu0 0
      %8825 = vmatprep.subr.bf16.mxu0 0
      %8826 = vmatpush1.bf16.msra.mxu0 0
      %8827 = vmatprep.subr.bf16.mxu0 0
      %8828 = vmatpush1.bf16.msra.mxu0 0
      %8829 = vmatprep.subr.bf16.mxu0 0
      %8830 = vmatpush1.bf16.msra.mxu0 0
      %8831 = vmatprep.mubr.bf16.mxu0 0
      %8832 = vmatmul.mubr.bf16.gmra.mrb[0].mxu0 %v8749
      %v8833 = vpop.f32.mrb[0].mxu0
      %v8834 = vadd.f32 0.0, %v8833
      %v8835 = vpop.f32.mrb[0].mxu0
      %v8836 = vpop.f32.mrb[0].mxu0
      %v8837 = vadd.f32 0.0, %v8836
      %v8838 = vpop.f32.mrb[0].mxu0
      %8839 = vmatprep.mubr.bf16.mxu0 0
      %8840 = vmatmul.mubr.bf16.gmra.mrb[0].mxu0 %v8752
      %v8841 = vpop.f32.mrb[0].mxu0
      %v8842 = vadd.f32 0.0, %v8841
      %v8843 = vpop.f32.mrb[0].mxu0
      %v8844 = vpop.f32.mrb[0].mxu0
      %v8845 = vadd.f32 0.0, %v8844
      %v8846 = vpop.f32.mrb[0].mxu0
      %8847 = vmatprep.mubr.bf16.mxu0 0
      %8848 = vmatmul.mubr.bf16.gmra.mrb[0].mxu0 %v8755
      %v8849 = vpop.f32.mrb[0].mxu0
      %v8850 = vadd.f32 0.0, %v8849
      %v8851 = vpop.f32.mrb[0].mxu0
      %v8852 = vpop.f32.mrb[0].mxu0
      %v8853 = vadd.f32 0.0, %v8852
      %v8854 = vpop.f32.mrb[0].mxu0
      %8855 = vmatprep.mubr.bf16.mxu0 0
      %8856 = vmatmul.mubr.bf16.gmra.mrb[0].mxu0 %v8758
      %v8857 = vpop.f32.mrb[0].mxu0
      %v8858 = vadd.f32 0.0, %v8857
      %v8859 = vpop.f32.mrb[0].mxu0
      %v8860 = vpop.f32.mrb[0].mxu0
      %v8861 = vadd.f32 0.0, %v8860
      %v8862 = vpop.f32.mrb[0].mxu0
      %8863 = vmatprep.mubr.bf16.mxu0 0
      %8864 = vmatmul.mubr.bf16.gmra.mrb[0].mxu0 %v8761
      %v8865 = vpop.f32.mrb[0].mxu0
      %v8866 = vadd.f32 0.0, %v8865
      %v8867 = vpop.f32.mrb[0].mxu0
      %v8868 = vpop.f32.mrb[0].mxu0
      %v8869 = vadd.f32 0.0, %v8868
      %v8870 = vpop.f32.mrb[0].mxu0
      %8871 = vmatprep.mubr.bf16.mxu0 0
      %8872 = vmatmul.mubr.bf16.gmra.mrb[0].mxu0 %v8764
      %v8873 = vpop.f32.mrb[0].mxu0
      %v8874 = vadd.f32 0.0, %v8873
      %v8875 = vpop.f32.mrb[0].mxu0
      %v8876 = vpop.f32.mrb[0].mxu0
      %v8877 = vadd.f32 0.0, %v8876
      %v8878 = vpop.f32.mrb[0].mxu0
      %8879 = vmatprep.mubr.bf16.mxu0 0
      %8880 = vmatmul.mubr.bf16.gmra.mrb[0].mxu0 %v8767
      %v8881 = vpop.f32.mrb[0].mxu0
      %v8882 = vadd.f32 0.0, %v8881
      %v8883 = vpop.f32.mrb[0].mxu0
      %v8884 = vpop.f32.mrb[0].mxu0
      %v8885 = vadd.f32 0.0, %v8884
      %v8886 = vpop.f32.mrb[0].mxu0
      %8887 = vmatprep.mubr.bf16.mxu0 0
      %8888 = vmatmul.mubr.bf16.gmra.mrb[0].mxu0 %v8770
      %v8889 = vpop.f32.mrb[0].mxu0
      %v8890 = vadd.f32 0.0, %v8889
      %v8891 = vpop.f32.mrb[0].mxu0
      %v8892 = vpop.f32.mrb[0].mxu0
      %v8893 = vadd.f32 0.0, %v8892
      %v8894 = vpop.f32.mrb[0].mxu0
      %8895 = vmatprep.mubr.bf16.mxu0 0
      %8896 = vmatmul.mubr.bf16.gmra.mrb[0].mxu0 %v8773
      %v8897 = vpop.f32.mrb[0].mxu0
      %v8898 = vadd.f32 0.0, %v8897
      %v8899 = vpop.f32.mrb[0].mxu0
      %v8900 = vpop.f32.mrb[0].mxu0
      %v8901 = vadd.f32 0.0, %v8900
      %v8902 = vpop.f32.mrb[0].mxu0
      %8903 = vmatprep.mubr.bf16.mxu0 0
      %8904 = vmatmul.mubr.bf16.gmra.mrb[0].mxu0 %v8776
      %v8905 = vpop.f32.mrb[0].mxu0
      %v8906 = vadd.f32 0.0, %v8905
      %v8907 = vpop.f32.mrb[0].mxu0
      %v8908 = vpop.f32.mrb[0].mxu0
      %v8909 = vadd.f32 0.0, %v8908
      %v8910 = vpop.f32.mrb[0].mxu0
      %8911 = vmatprep.mubr.bf16.mxu0 0
      %8912 = vmatmul.mubr.bf16.gmra.mrb[0].mxu0 %v8779
      %v8913 = vpop.f32.mrb[0].mxu0
      %v8914 = vadd.f32 0.0, %v8913
      %v8915 = vpop.f32.mrb[0].mxu0
      %v8916 = vpop.f32.mrb[0].mxu0
      %v8917 = vadd.f32 0.0, %v8916
      %v8918 = vpop.f32.mrb[0].mxu0
      %8919 = vmatprep.mubr.bf16.mxu0 0
      %8920 = vmatmul.mubr.bf16.gmra.mrb[0].mxu0 %v8782
      %v8921 = vpop.f32.mrb[0].mxu0
      %v8922 = vadd.f32 0.0, %v8921
      %v8923 = vpop.f32.mrb[0].mxu0
      %v8924 = vpop.f32.mrb[0].mxu0
      %v8925 = vadd.f32 0.0, %v8924
      %v8926 = vpop.f32.mrb[0].mxu0
      %8927 = vmatprep.mubr.bf16.mxu0 0
      %8928 = vmatmul.mubr.bf16.gmra.mrb[0].mxu0 %v8785
      %v8929 = vpop.f32.mrb[0].mxu0
      %v8930 = vadd.f32 0.0, %v8929
      %v8931 = vpop.f32.mrb[0].mxu0
      %v8932 = vpop.f32.mrb[0].mxu0
      %v8933 = vadd.f32 0.0, %v8932
      %v8934 = vpop.f32.mrb[0].mxu0
      %8935 = vmatprep.mubr.bf16.mxu0 0
      %8936 = vmatmul.mubr.bf16.gmra.mrb[0].mxu0 %v8788
      %v8937 = vpop.f32.mrb[0].mxu0
      %v8938 = vadd.f32 0.0, %v8937
      %v8939 = vpop.f32.mrb[0].mxu0
      %v8940 = vpop.f32.mrb[0].mxu0
      %v8941 = vadd.f32 0.0, %v8940
      %v8942 = vpop.f32.mrb[0].mxu0
      %8943 = vmatprep.mubr.bf16.mxu0 0
      %8944 = vmatmul.mubr.bf16.gmra.mrb[0].mxu0 %v8791
      %v8945 = vpop.f32.mrb[0].mxu0
      %v8946 = vadd.f32 0.0, %v8945
      %v8947 = vpop.f32.mrb[0].mxu0
      %v8948 = vpop.f32.mrb[0].mxu0
      %v8949 = vadd.f32 0.0, %v8948
      %v8950 = vpop.f32.mrb[0].mxu0
      %8951 = vmatprep.mubr.bf16.mxu0 0
      %8952 = vmatmul.mubr.bf16.gmra.mrb[0].mxu0 %v8794
      %v8953 = vpop.f32.mrb[0].mxu0
      %v8954 = vadd.f32 0.0, %v8953
      %v8955 = vpop.f32.mrb[0].mxu0
      %v8956 = vpop.f32.mrb[0].mxu0
      %v8957 = vadd.f32 0.0, %v8956
      %v8958 = vpop.f32.mrb[0].mxu0
      %8959 = vdwg.mxu0
      %v8960 = vadd.f32 %v8234, %v8834
      %v8961 = vadd.f32 %v8235, %v8837
      %v8962 = vadd.f32 %v8236, %v8842
      %v8963 = vadd.f32 %v8237, %v8845
      %v8964 = vadd.f32 %v8238, %v8850
      %v8965 = vadd.f32 %v8239, %v8853
      %v8966 = vadd.f32 %v8240, %v8858
      %v8967 = vadd.f32 %v8241, %v8861
      %v8968 = vadd.f32 %v8242, %v8866
      %v8969 = vadd.f32 %v8243, %v8869
      %v8970 = vadd.f32 %v8244, %v8874
      %v8971 = vadd.f32 %v8245, %v8877
      %v8972 = vadd.f32 %v8246, %v8882
      %v8973 = vadd.f32 %v8247, %v8885
      %v8974 = vadd.f32 %v8248, %v8890
      %v8975 = vadd.f32 %v8249, %v8893
      %v8976 = vadd.f32 %v8250, %v8898
      %v8977 = vadd.f32 %v8251, %v8901
      %v8978 = vadd.f32 %v8252, %v8906
      %v8979 = vadd.f32 %v8253, %v8909
      %v8980 = vadd.f32 %v8254, %v8914
      %v8981 = vadd.f32 %v8255, %v8917
      %v8982 = vadd.f32 %v8256, %v8922
      %v8983 = vadd.f32 %v8257, %v8925
      %v8984 = vadd.f32 %v8258, %v8930
      %v8985 = vadd.f32 %v8259, %v8933
      %v8986 = vadd.f32 %v8260, %v8938
      %v8987 = vadd.f32 %v8261, %v8941
      %v8988 = vadd.f32 %v8262, %v8946
      %v8989 = vadd.f32 %v8263, %v8949
      %v8990 = vadd.f32 %v8264, %v8954
      %v8991 = vadd.f32 %v8265, %v8957
      %v8992 = vld [vmem:[%s6349] sm:$0xe]
      %v8993 = vld [vmem:[%s6349 + $0xc] sm:$0xe]
      %v8994 = vld [vmem:[%s6349 + $0x18] sm:$0xe]
      %v8995 = vld [vmem:[%s6349 + $0x24] sm:$0xe]
      %v8996 = vld [vmem:[%s6349 + $0x30] sm:$0xe]
      %v8997 = vld [vmem:[%s6349 + $0x3c] sm:$0xe]
      %v8998 = vld [vmem:[%s6349 + $0x48] sm:$0xe]
      %v8999 = vld [vmem:[%s6349 + $0x54] sm:$0xe]
      %v9000 = vld [vmem:[%s6349 + $0x60] sm:$0xe]
      %v9001 = vld [vmem:[%s6349 + $0x6c] sm:$0xe]
      %v9002 = vld [vmem:[%s6349 + $0x78] sm:$0xe]
      %v9003 = vld [vmem:[%s6349 + $0x84] sm:$0xe]
      %v9004 = vld [vmem:[%s6349 + $0x90] sm:$0xe]
      %v9005 = vld [vmem:[%s6349 + $0x9c] sm:$0xe]
      %v9006 = vld [vmem:[%s6349 + $0xa8] sm:$0xe]
      %v9007 = vld [vmem:[%s6349 + $0xb4] sm:$0xe]
      %v9056 = vrot.slane %v8992, 5
      %v9057 = vrot.slane %v9056, 4
      %v9058 = vrot.slane %v8267, 5
      %v9059 = vsel %vm2307, %v9057, %v9058
      %v9060 = vrot.slane %v9058, 4
      %v9061 = vrot.slane %v8268, 5
      %v9062 = vsel %vm2307, %v9060, %v9061
      %v9063 = vrot.slane %v8993, 5
      %v9064 = vrot.slane %v9063, 4
      %v9065 = vrot.slane %v8270, 5
      %v9066 = vsel %vm2307, %v9064, %v9065
      %v9067 = vrot.slane %v9065, 4
      %v9068 = vrot.slane %v8271, 5
      %v9069 = vsel %vm2307, %v9067, %v9068
      %v9070 = vrot.slane %v8994, 5
      %v9071 = vrot.slane %v9070, 4
      %v9072 = vrot.slane %v8273, 5
      %v9073 = vsel %vm2307, %v9071, %v9072
      %v9074 = vrot.slane %v9072, 4
      %v9075 = vrot.slane %v8274, 5
      %v9076 = vsel %vm2307, %v9074, %v9075
      %v9077 = vrot.slane %v8995, 5
      %v9078 = vrot.slane %v9077, 4
      %v9079 = vrot.slane %v8276, 5
      %v9080 = vsel %vm2307, %v9078, %v9079
      %v9081 = vrot.slane %v9079, 4
      %v9082 = vrot.slane %v8277, 5
      %v9083 = vsel %vm2307, %v9081, %v9082
      %v9084 = vrot.slane %v8996, 5
      %v9085 = vrot.slane %v9084, 4
      %v9086 = vrot.slane %v8279, 5
      %v9087 = vsel %vm2307, %v9085, %v9086
      %v9088 = vrot.slane %v9086, 4
      %v9089 = vrot.slane %v8280, 5
      %v9090 = vsel %vm2307, %v9088, %v9089
      %v9091 = vrot.slane %v8997, 5
      %v9092 = vrot.slane %v9091, 4
      %v9093 = vrot.slane %v8282, 5
      %v9094 = vsel %vm2307, %v9092, %v9093
      %v9095 = vrot.slane %v9093, 4
      %v9096 = vrot.slane %v8283, 5
      %v9097 = vsel %vm2307, %v9095, %v9096
      %v9098 = vrot.slane %v8998, 5
      %v9099 = vrot.slane %v9098, 4
      %v9100 = vrot.slane %v8285, 5
      %v9101 = vsel %vm2307, %v9099, %v9100
      %v9102 = vrot.slane %v9100, 4
      %v9103 = vrot.slane %v8286, 5
      %v9104 = vsel %vm2307, %v9102, %v9103
      %v9105 = vrot.slane %v8999, 5
      %v9106 = vrot.slane %v9105, 4
      %v9107 = vrot.slane %v8288, 5
      %v9108 = vsel %vm2307, %v9106, %v9107
      %v9109 = vrot.slane %v9107, 4
      %v9110 = vrot.slane %v8289, 5
      %v9111 = vsel %vm2307, %v9109, %v9110
      %v9112 = vrot.slane %v9000, 5
      %v9113 = vrot.slane %v9112, 4
      %v9114 = vrot.slane %v8291, 5
      %v9115 = vsel %vm2307, %v9113, %v9114
      %v9116 = vrot.slane %v9114, 4
      %v9117 = vrot.slane %v8292, 5
      %v9118 = vsel %vm2307, %v9116, %v9117
      %v9119 = vrot.slane %v9001, 5
      %v9120 = vrot.slane %v9119, 4
      %v9121 = vrot.slane %v8294, 5
      %v9122 = vsel %vm2307, %v9120, %v9121
      %v9123 = vrot.slane %v9121, 4
      %v9124 = vrot.slane %v8295, 5
      %v9125 = vsel %vm2307, %v9123, %v9124
      %v9126 = vrot.slane %v9002, 5
      %v9127 = vrot.slane %v9126, 4
      %v9128 = vrot.slane %v8297, 5
      %v9129 = vsel %vm2307, %v9127, %v9128
      %v9130 = vrot.slane %v9128, 4
      %v9131 = vrot.slane %v8298, 5
      %v9132 = vsel %vm2307, %v9130, %v9131
      %v9133 = vrot.slane %v9003, 5
      %v9134 = vrot.slane %v9133, 4
      %v9135 = vrot.slane %v8300, 5
      %v9136 = vsel %vm2307, %v9134, %v9135
      %v9137 = vrot.slane %v9135, 4
      %v9138 = vrot.slane %v8301, 5
      %v9139 = vsel %vm2307, %v9137, %v9138
      %v9140 = vrot.slane %v9004, 5
      %v9141 = vrot.slane %v9140, 4
      %v9142 = vrot.slane %v8303, 5
      %v9143 = vsel %vm2307, %v9141, %v9142
      %v9144 = vrot.slane %v9142, 4
      %v9145 = vrot.slane %v8304, 5
      %v9146 = vsel %vm2307, %v9144, %v9145
      %v9147 = vrot.slane %v9005, 5
      %v9148 = vrot.slane %v9147, 4
      %v9149 = vrot.slane %v8306, 5
      %v9150 = vsel %vm2307, %v9148, %v9149
      %v9151 = vrot.slane %v9149, 4
      %v9152 = vrot.slane %v8307, 5
      %v9153 = vsel %vm2307, %v9151, %v9152
      %v9154 = vrot.slane %v9006, 5
      %v9155 = vrot.slane %v9154, 4
      %v9156 = vrot.slane %v8309, 5
      %v9157 = vsel %vm2307, %v9155, %v9156
      %v9158 = vrot.slane %v9156, 4
      %v9159 = vrot.slane %v8310, 5
      %v9160 = vsel %vm2307, %v9158, %v9159
      %v9161 = vrot.slane %v9007, 5
      %v9162 = vrot.slane %v9161, 4
      %v9163 = vrot.slane %v8312, 5
      %v9164 = vsel %vm2307, %v9162, %v9163
      %v9165 = vrot.slane %v9163, 4
      %v9166 = vrot.slane %v8313, 5
      %v9167 = vsel %vm2307, %v9165, %v9166
      %s9168 = scalar_lea.vmem %s5, 10
      %v9169 = vld [vmem:[%s9168] sm:$0x3]
      %v9170 = vunpack.c.l.b16 %v9059
      %v9171 = vunpack.c.l.b16 %v9062
      %v9172 = vunpack.c.l.b16 %v9066
      %v9173 = vunpack.c.l.b16 %v9069
      %v9174 = vunpack.c.l.b16 %v9073
      %v9175 = vunpack.c.l.b16 %v9076
      %v9176 = vunpack.c.l.b16 %v9080
      %v9177 = vunpack.c.l.b16 %v9083
      %v9178 = vunpack.c.l.b16 %v9087
      %v9179 = vunpack.c.l.b16 %v9090
      %v9180 = vunpack.c.l.b16 %v9094
      %v9181 = vunpack.c.l.b16 %v9097
      %v9182 = vunpack.c.l.b16 %v9101
      %v9183 = vunpack.c.l.b16 %v9104
      %v9184 = vunpack.c.l.b16 %v9108
      %v9185 = vunpack.c.l.b16 %v9111
      %v9186 = vunpack.c.l.b16 %v9115
      %v9187 = vunpack.c.l.b16 %v9118
      %v9188 = vunpack.c.l.b16 %v9122
      %v9189 = vunpack.c.l.b16 %v9125
      %v9190 = vunpack.c.l.b16 %v9129
      %v9191 = vunpack.c.l.b16 %v9132
      %v9192 = vunpack.c.l.b16 %v9136
      %v9193 = vunpack.c.l.b16 %v9139
      %v9194 = vunpack.c.l.b16 %v9143
      %v9195 = vunpack.c.l.b16 %v9146
      %v9196 = vunpack.c.l.b16 %v9150
      %v9197 = vunpack.c.l.b16 %v9153
      %v9198 = vunpack.c.l.b16 %v9157
      %v9199 = vunpack.c.l.b16 %v9160
      %v9200 = vunpack.c.l.b16 %v9164
      %v9201 = vunpack.c.l.b16 %v9167
      %v9202 = vpack.c.b16 %v9171, %v9170
      %v9203 = vpack.c.b16 %v9173, %v9172
      %v9204 = vpack.c.b16 %v9175, %v9174
      %v9205 = vpack.c.b16 %v9177, %v9176
      %v9206 = vpack.c.b16 %v9179, %v9178
      %v9207 = vpack.c.b16 %v9181, %v9180
      %v9208 = vpack.c.b16 %v9183, %v9182
      %v9209 = vpack.c.b16 %v9185, %v9184
      %v9210 = vpack.c.b16 %v9187, %v9186
      %v9211 = vpack.c.b16 %v9189, %v9188
      %v9212 = vpack.c.b16 %v9191, %v9190
      %v9213 = vpack.c.b16 %v9193, %v9192
      %v9214 = vpack.c.b16 %v9195, %v9194
      %v9215 = vpack.c.b16 %v9197, %v9196
      %v9216 = vpack.c.b16 %v9199, %v9198
      %v9217 = vpack.c.b16 %v9201, %v9200
      %v9219 = vsel %vm695, %v9202, 0
      %v9222 = vsel %vm695, %v9203, 0
      %v9225 = vsel %vm695, %v9204, 0
      %v9228 = vsel %vm695, %v9205, 0
      %v9231 = vsel %vm695, %v9206, 0
      %v9234 = vsel %vm695, %v9207, 0
      %v9237 = vsel %vm695, %v9208, 0
      %v9240 = vsel %vm695, %v9209, 0
      %v9243 = vsel %vm695, %v9210, 0
      %v9246 = vsel %vm695, %v9211, 0
      %v9249 = vsel %vm695, %v9212, 0
      %v9252 = vsel %vm695, %v9213, 0
      %v9255 = vsel %vm695, %v9214, 0
      %v9258 = vsel %vm695, %v9215, 0
      %v9261 = vsel %vm695, %v9216, 0
      %v9264 = vsel %vm695, %v9217, 0
      %v9267 = vsel %vm6997, %v9169, 0
      %9269 = vmatprep.subr.bf16.mxu0 0
      %9270 = vmatpush1.bf16.msra.mxu0 %v9267
      %9271 = vmatprep.subr.bf16.mxu0 0
      %9272 = vmatpush1.bf16.msra.mxu0 0
      %9273 = vmatprep.subr.bf16.mxu0 0
      %9274 = vmatpush1.bf16.msra.mxu0 0
      %9275 = vmatprep.subr.bf16.mxu0 0
      %9276 = vmatpush1.bf16.msra.mxu0 0
      %9277 = vmatprep.subr.bf16.mxu0 0
      %9278 = vmatpush1.bf16.msra.mxu0 0
      %9279 = vmatprep.subr.bf16.mxu0 0
      %9280 = vmatpush1.bf16.msra.mxu0 0
      %9281 = vmatprep.subr.bf16.mxu0 0
      %9282 = vmatpush1.bf16.msra.mxu0 0
      %9283 = vmatprep.subr.bf16.mxu0 0
      %9284 = vmatpush1.bf16.msra.mxu0 0
      %9285 = vmatprep.subr.bf16.mxu0 0
      %9286 = vmatpush1.bf16.msra.mxu0 0
      %9287 = vmatprep.subr.bf16.mxu0 0
      %9288 = vmatpush1.bf16.msra.mxu0 0
      %9289 = vmatprep.subr.bf16.mxu0 0
      %9290 = vmatpush1.bf16.msra.mxu0 0
      %9291 = vmatprep.subr.bf16.mxu0 0
      %9292 = vmatpush1.bf16.msra.mxu0 0
      %9293 = vmatprep.subr.bf16.mxu0 0
      %9294 = vmatpush1.bf16.msra.mxu0 0
      %9295 = vmatprep.subr.bf16.mxu0 0
      %9296 = vmatpush1.bf16.msra.mxu0 0
      %9297 = vmatprep.subr.bf16.mxu0 0
      %9298 = vmatpush1.bf16.msra.mxu0 0
      %9299 = vmatprep.subr.bf16.mxu0 0
      %9300 = vmatpush1.bf16.msra.mxu0 0
      %9301 = vmatprep.mubr.bf16.mxu0 0
      %9302 = vmatmul.mubr.bf16.gmra.mrb[0].mxu0 %v9219
      %v9303 = vpop.f32.mrb[0].mxu0
      %v9304 = vadd.f32 0.0, %v9303
      %v9305 = vpop.f32.mrb[0].mxu0
      %v9306 = vpop.f32.mrb[0].mxu0
      %v9307 = vadd.f32 0.0, %v9306
      %v9308 = vpop.f32.mrb[0].mxu0
      %9309 = vmatprep.mubr.bf16.mxu0 0
      %9310 = vmatmul.mubr.bf16.gmra.mrb[0].mxu0 %v9222
      %v9311 = vpop.f32.mrb[0].mxu0
      %v9312 = vadd.f32 0.0, %v9311
      %v9313 = vpop.f32.mrb[0].mxu0
      %v9314 = vpop.f32.mrb[0].mxu0
      %v9315 = vadd.f32 0.0, %v9314
      %v9316 = vpop.f32.mrb[0].mxu0
      %9317 = vmatprep.mubr.bf16.mxu0 0
      %9318 = vmatmul.mubr.bf16.gmra.mrb[0].mxu0 %v9225
      %v9319 = vpop.f32.mrb[0].mxu0
      %v9320 = vadd.f32 0.0, %v9319
      %v9321 = vpop.f32.mrb[0].mxu0
      %v9322 = vpop.f32.mrb[0].mxu0
      %v9323 = vadd.f32 0.0, %v9322
      %v9324 = vpop.f32.mrb[0].mxu0
      %9325 = vmatprep.mubr.bf16.mxu0 0
      %9326 = vmatmul.mubr.bf16.gmra.mrb[0].mxu0 %v9228
      %v9327 = vpop.f32.mrb[0].mxu0
      %v9328 = vadd.f32 0.0, %v9327
      %v9329 = vpop.f32.mrb[0].mxu0
      %v9330 = vpop.f32.mrb[0].mxu0
      %v9331 = vadd.f32 0.0, %v9330
      %v9332 = vpop.f32.mrb[0].mxu0
      %9333 = vmatprep.mubr.bf16.mxu0 0
      %9334 = vmatmul.mubr.bf16.gmra.mrb[0].mxu0 %v9231
      %v9335 = vpop.f32.mrb[0].mxu0
      %v9336 = vadd.f32 0.0, %v9335
      %v9337 = vpop.f32.mrb[0].mxu0
      %v9338 = vpop.f32.mrb[0].mxu0
      %v9339 = vadd.f32 0.0, %v9338
      %v9340 = vpop.f32.mrb[0].mxu0
      %9341 = vmatprep.mubr.bf16.mxu0 0
      %9342 = vmatmul.mubr.bf16.gmra.mrb[0].mxu0 %v9234
      %v9343 = vpop.f32.mrb[0].mxu0
      %v9344 = vadd.f32 0.0, %v9343
      %v9345 = vpop.f32.mrb[0].mxu0
      %v9346 = vpop.f32.mrb[0].mxu0
      %v9347 = vadd.f32 0.0, %v9346
      %v9348 = vpop.f32.mrb[0].mxu0
      %9349 = vmatprep.mubr.bf16.mxu0 0
      %9350 = vmatmul.mubr.bf16.gmra.mrb[0].mxu0 %v9237
      %v9351 = vpop.f32.mrb[0].mxu0
      %v9352 = vadd.f32 0.0, %v9351
      %v9353 = vpop.f32.mrb[0].mxu0
      %v9354 = vpop.f32.mrb[0].mxu0
      %v9355 = vadd.f32 0.0, %v9354
      %v9356 = vpop.f32.mrb[0].mxu0
      %9357 = vmatprep.mubr.bf16.mxu0 0
      %9358 = vmatmul.mubr.bf16.gmra.mrb[0].mxu0 %v9240
      %v9359 = vpop.f32.mrb[0].mxu0
      %v9360 = vadd.f32 0.0, %v9359
      %v9361 = vpop.f32.mrb[0].mxu0
      %v9362 = vpop.f32.mrb[0].mxu0
      %v9363 = vadd.f32 0.0, %v9362
      %v9364 = vpop.f32.mrb[0].mxu0
      %9365 = vmatprep.mubr.bf16.mxu0 0
      %9366 = vmatmul.mubr.bf16.gmra.mrb[0].mxu0 %v9243
      %v9367 = vpop.f32.mrb[0].mxu0
      %v9368 = vadd.f32 0.0, %v9367
      %v9369 = vpop.f32.mrb[0].mxu0
      %v9370 = vpop.f32.mrb[0].mxu0
      %v9371 = vadd.f32 0.0, %v9370
      %v9372 = vpop.f32.mrb[0].mxu0
      %9373 = vmatprep.mubr.bf16.mxu0 0
      %9374 = vmatmul.mubr.bf16.gmra.mrb[0].mxu0 %v9246
      %v9375 = vpop.f32.mrb[0].mxu0
      %v9376 = vadd.f32 0.0, %v9375
      %v9377 = vpop.f32.mrb[0].mxu0
      %v9378 = vpop.f32.mrb[0].mxu0
      %v9379 = vadd.f32 0.0, %v9378
      %v9380 = vpop.f32.mrb[0].mxu0
      %9381 = vmatprep.mubr.bf16.mxu0 0
      %9382 = vmatmul.mubr.bf16.gmra.mrb[0].mxu0 %v9249
      %v9383 = vpop.f32.mrb[0].mxu0
      %v9384 = vadd.f32 0.0, %v9383
      %v9385 = vpop.f32.mrb[0].mxu0
      %v9386 = vpop.f32.mrb[0].mxu0
      %v9387 = vadd.f32 0.0, %v9386
      %v9388 = vpop.f32.mrb[0].mxu0
      %9389 = vmatprep.mubr.bf16.mxu0 0
      %9390 = vmatmul.mubr.bf16.gmra.mrb[0].mxu0 %v9252
      %v9391 = vpop.f32.mrb[0].mxu0
      %v9392 = vadd.f32 0.0, %v9391
      %v9393 = vpop.f32.mrb[0].mxu0
      %v9394 = vpop.f32.mrb[0].mxu0
      %v9395 = vadd.f32 0.0, %v9394
      %v9396 = vpop.f32.mrb[0].mxu0
      %9397 = vmatprep.mubr.bf16.mxu0 0
      %9398 = vmatmul.mubr.bf16.gmra.mrb[0].mxu0 %v9255
      %v9399 = vpop.f32.mrb[0].mxu0
      %v9400 = vadd.f32 0.0, %v9399
      %v9401 = vpop.f32.mrb[0].mxu0
      %v9402 = vpop.f32.mrb[0].mxu0
      %v9403 = vadd.f32 0.0, %v9402
      %v9404 = vpop.f32.mrb[0].mxu0
      %9405 = vmatprep.mubr.bf16.mxu0 0
      %9406 = vmatmul.mubr.bf16.gmra.mrb[0].mxu0 %v9258
      %v9407 = vpop.f32.mrb[0].mxu0
      %v9408 = vadd.f32 0.0, %v9407
      %v9409 = vpop.f32.mrb[0].mxu0
      %v9410 = vpop.f32.mrb[0].mxu0
      %v9411 = vadd.f32 0.0, %v9410
      %v9412 = vpop.f32.mrb[0].mxu0
      %9413 = vmatprep.mubr.bf16.mxu0 0
      %9414 = vmatmul.mubr.bf16.gmra.mrb[0].mxu0 %v9261
      %v9415 = vpop.f32.mrb[0].mxu0
      %v9416 = vadd.f32 0.0, %v9415
      %v9417 = vpop.f32.mrb[0].mxu0
      %v9418 = vpop.f32.mrb[0].mxu0
      %v9419 = vadd.f32 0.0, %v9418
      %v9420 = vpop.f32.mrb[0].mxu0
      %9421 = vmatprep.mubr.bf16.mxu0 0
      %9422 = vmatmul.mubr.bf16.gmra.mrb[0].mxu0 %v9264
      %v9423 = vpop.f32.mrb[0].mxu0
      %v9424 = vadd.f32 0.0, %v9423
      %v9425 = vpop.f32.mrb[0].mxu0
      %v9426 = vpop.f32.mrb[0].mxu0
      %v9427 = vadd.f32 0.0, %v9426
      %v9428 = vpop.f32.mrb[0].mxu0
      %9429 = vdwg.mxu0
      %v9430 = vadd.f32 %v8960, %v9304
      %v9431 = vadd.f32 %v8961, %v9307
      %v9432 = vadd.f32 %v8962, %v9312
      %v9433 = vadd.f32 %v8963, %v9315
      %v9434 = vadd.f32 %v8964, %v9320
      %v9435 = vadd.f32 %v8965, %v9323
      %v9436 = vadd.f32 %v8966, %v9328
      %v9437 = vadd.f32 %v8967, %v9331
      %v9438 = vadd.f32 %v8968, %v9336
      %v9439 = vadd.f32 %v8969, %v9339
      %v9440 = vadd.f32 %v8970, %v9344
      %v9441 = vadd.f32 %v8971, %v9347
      %v9442 = vadd.f32 %v8972, %v9352
      %v9443 = vadd.f32 %v8973, %v9355
      %v9444 = vadd.f32 %v8974, %v9360
      %v9445 = vadd.f32 %v8975, %v9363
      %v9446 = vadd.f32 %v8976, %v9368
      %v9447 = vadd.f32 %v8977, %v9371
      %v9448 = vadd.f32 %v8978, %v9376
      %v9449 = vadd.f32 %v8979, %v9379
      %v9450 = vadd.f32 %v8980, %v9384
      %v9451 = vadd.f32 %v8981, %v9387
      %v9452 = vadd.f32 %v8982, %v9392
      %v9453 = vadd.f32 %v8983, %v9395
      %v9454 = vadd.f32 %v8984, %v9400
      %v9455 = vadd.f32 %v8985, %v9403
      %v9456 = vadd.f32 %v8986, %v9408
      %v9457 = vadd.f32 %v8987, %v9411
      %v9458 = vadd.f32 %v8988, %v9416
      %v9459 = vadd.f32 %v8989, %v9419
      %v9460 = vadd.f32 %v8990, %v9424
      %v9461 = vadd.f32 %v8991, %v9427
      %s9462 = scalar_lea.vmem [#allocation3], 24
      %v9463 = vld [vmem:[%s9462] sm:$0xf]
      %v9464 = vld [vmem:[%s9462 + $0x4] sm:$0xf]
      %v9465 = vld [vmem:[%s9462 + $0xc] sm:$0xf]
      %v9466 = vld [vmem:[%s9462 + $0x10] sm:$0xf]
      %v9467 = vld [vmem:[%s9462 + $0x18] sm:$0xf]
      %v9468 = vld [vmem:[%s9462 + $0x1c] sm:$0xf]
      %v9469 = vld [vmem:[%s9462 + $0x24] sm:$0xf]
      %v9470 = vld [vmem:[%s9462 + $0x28] sm:$0xf]
      %v9471 = vld [vmem:[%s9462 + $0x30] sm:$0xf]
      %v9472 = vld [vmem:[%s9462 + $0x34] sm:$0xf]
      %v9473 = vld [vmem:[%s9462 + $0x3c] sm:$0xf]
      %v9474 = vld [vmem:[%s9462 + $0x40] sm:$0xf]
      %v9475 = vld [vmem:[%s9462 + $0x48] sm:$0xf]
      %v9476 = vld [vmem:[%s9462 + $0x4c] sm:$0xf]
      %v9477 = vld [vmem:[%s9462 + $0x54] sm:$0xf]
      %v9478 = vld [vmem:[%s9462 + $0x58] sm:$0xf]
      %v9479 = vld [vmem:[%s9462 + $0x60] sm:$0xf]
      %v9480 = vld [vmem:[%s9462 + $0x64] sm:$0xf]
      %v9481 = vld [vmem:[%s9462 + $0x6c] sm:$0xf]
      %v9482 = vld [vmem:[%s9462 + $0x70] sm:$0xf]
      %v9483 = vld [vmem:[%s9462 + $0x78] sm:$0xf]
      %v9484 = vld [vmem:[%s9462 + $0x7c] sm:$0xf]
      %v9485 = vld [vmem:[%s9462 + $0x84] sm:$0xf]
      %v9486 = vld [vmem:[%s9462 + $0x88] sm:$0xf]
      %v9487 = vld [vmem:[%s9462 + $0x90] sm:$0xf]
      %v9488 = vld [vmem:[%s9462 + $0x94] sm:$0xf]
      %v9489 = vld [vmem:[%s9462 + $0x9c] sm:$0xf]
      %v9490 = vld [vmem:[%s9462 + $0xa0] sm:$0xf]
      %v9491 = vld [vmem:[%s9462 + $0xa8] sm:$0xf]
      %v9492 = vld [vmem:[%s9462 + $0xac] sm:$0xf]
      %v9493 = vld [vmem:[%s9462 + $0xb4] sm:$0xf]
      %v9494 = vld [vmem:[%s9462 + $0xb8] sm:$0xf]
      %s9495 = scalar_lea.vmem %s5, 12
      %v9496 = vld [vmem:[%s9495] sm:$0x3]
      %v9529 = vunpack.c.l.b16 %v9463
      %v9530 = vunpack.c.l.b16 %v9464
      %v9531 = vunpack.c.l.b16 %v9465
      %v9532 = vunpack.c.l.b16 %v9466
      %v9533 = vunpack.c.l.b16 %v9467
      %v9534 = vunpack.c.l.b16 %v9468
      %v9535 = vunpack.c.l.b16 %v9469
      %v9536 = vunpack.c.l.b16 %v9470
      %v9537 = vunpack.c.l.b16 %v9471
      %v9538 = vunpack.c.l.b16 %v9472
      %v9539 = vunpack.c.l.b16 %v9473
      %v9540 = vunpack.c.l.b16 %v9474
      %v9541 = vunpack.c.l.b16 %v9475
      %v9542 = vunpack.c.l.b16 %v9476
      %v9543 = vunpack.c.l.b16 %v9477
      %v9544 = vunpack.c.l.b16 %v9478
      %v9545 = vunpack.c.l.b16 %v9479
      %v9546 = vunpack.c.l.b16 %v9480
      %v9547 = vunpack.c.l.b16 %v9481
      %v9548 = vunpack.c.l.b16 %v9482
      %v9549 = vunpack.c.l.b16 %v9483
      %v9550 = vunpack.c.l.b16 %v9484
      %v9551 = vunpack.c.l.b16 %v9485
      %v9552 = vunpack.c.l.b16 %v9486
      %v9553 = vunpack.c.l.b16 %v9487
      %v9554 = vunpack.c.l.b16 %v9488
      %v9555 = vunpack.c.l.b16 %v9489
      %v9556 = vunpack.c.l.b16 %v9490
      %v9557 = vunpack.c.l.b16 %v9491
      %v9558 = vunpack.c.l.b16 %v9492
      %v9559 = vunpack.c.l.b16 %v9493
      %v9560 = vunpack.c.l.b16 %v9494
      %v9561 = vpack.c.b16 %v9530, %v9529
      %v9562 = vpack.c.b16 %v9532, %v9531
      %v9563 = vpack.c.b16 %v9534, %v9533
      %v9564 = vpack.c.b16 %v9536, %v9535
      %v9565 = vpack.c.b16 %v9538, %v9537
      %v9566 = vpack.c.b16 %v9540, %v9539
      %v9567 = vpack.c.b16 %v9542, %v9541
      %v9568 = vpack.c.b16 %v9544, %v9543
      %v9569 = vpack.c.b16 %v9546, %v9545
      %v9570 = vpack.c.b16 %v9548, %v9547
      %v9571 = vpack.c.b16 %v9550, %v9549
      %v9572 = vpack.c.b16 %v9552, %v9551
      %v9573 = vpack.c.b16 %v9554, %v9553
      %v9574 = vpack.c.b16 %v9556, %v9555
      %v9575 = vpack.c.b16 %v9558, %v9557
      %v9576 = vpack.c.b16 %v9560, %v9559
      %v9578 = vsel %vm695, %v9561, 0
      %v9581 = vsel %vm695, %v9562, 0
      %v9584 = vsel %vm695, %v9563, 0
      %v9587 = vsel %vm695, %v9564, 0
      %v9590 = vsel %vm695, %v9565, 0
      %v9593 = vsel %vm695, %v9566, 0
      %v9596 = vsel %vm695, %v9567, 0
      %v9599 = vsel %vm695, %v9568, 0
      %v9602 = vsel %vm695, %v9569, 0
      %v9605 = vsel %vm695, %v9570, 0
      %v9608 = vsel %vm695, %v9571, 0
      %v9611 = vsel %vm695, %v9572, 0
      %v9614 = vsel %vm695, %v9573, 0
      %v9617 = vsel %vm695, %v9574, 0
      %v9620 = vsel %vm695, %v9575, 0
      %v9623 = vsel %vm695, %v9576, 0
      %v9626 = vsel %vm6997, %v9496, 0
      %9628 = vmatprep.subr.bf16.mxu0 0
      %9629 = vmatpush1.bf16.msra.mxu0 %v9626
      %9630 = vmatprep.subr.bf16.mxu0 0
      %9631 = vmatpush1.bf16.msra.mxu0 0
      %9632 = vmatprep.subr.bf16.mxu0 0
      %9633 = vmatpush1.bf16.msra.mxu0 0
      %9634 = vmatprep.subr.bf16.mxu0 0
      %9635 = vmatpush1.bf16.msra.mxu0 0
      %9636 = vmatprep.subr.bf16.mxu0 0
      %9637 = vmatpush1.bf16.msra.mxu0 0
      %9638 = vmatprep.subr.bf16.mxu0 0
      %9639 = vmatpush1.bf16.msra.mxu0 0
      %9640 = vmatprep.subr.bf16.mxu0 0
      %9641 = vmatpush1.bf16.msra.mxu0 0
      %9642 = vmatprep.subr.bf16.mxu0 0
      %9643 = vmatpush1.bf16.msra.mxu0 0
      %9644 = vmatprep.subr.bf16.mxu0 0
      %9645 = vmatpush1.bf16.msra.mxu0 0
      %9646 = vmatprep.subr.bf16.mxu0 0
      %9647 = vmatpush1.bf16.msra.mxu0 0
      %9648 = vmatprep.subr.bf16.mxu0 0
      %9649 = vmatpush1.bf16.msra.mxu0 0
      %9650 = vmatprep.subr.bf16.mxu0 0
      %9651 = vmatpush1.bf16.msra.mxu0 0
      %9652 = vmatprep.subr.bf16.mxu0 0
      %9653 = vmatpush1.bf16.msra.mxu0 0
      %9654 = vmatprep.subr.bf16.mxu0 0
      %9655 = vmatpush1.bf16.msra.mxu0 0
      %9656 = vmatprep.subr.bf16.mxu0 0
      %9657 = vmatpush1.bf16.msra.mxu0 0
      %9658 = vmatprep.subr.bf16.mxu0 0
      %9659 = vmatpush1.bf16.msra.mxu0 0
      %9660 = vmatprep.mubr.bf16.mxu0 0
      %9661 = vmatmul.mubr.bf16.gmra.mrb[0].mxu0 %v9578
      %v9662 = vpop.f32.mrb[0].mxu0
      %v9663 = vadd.f32 0.0, %v9662
      %v9664 = vpop.f32.mrb[0].mxu0
      %v9665 = vpop.f32.mrb[0].mxu0
      %v9666 = vadd.f32 0.0, %v9665
      %v9667 = vpop.f32.mrb[0].mxu0
      %9668 = vmatprep.mubr.bf16.mxu0 0
      %9669 = vmatmul.mubr.bf16.gmra.mrb[0].mxu0 %v9581
      %v9670 = vpop.f32.mrb[0].mxu0
      %v9671 = vadd.f32 0.0, %v9670
      %v9672 = vpop.f32.mrb[0].mxu0
      %v9673 = vpop.f32.mrb[0].mxu0
      %v9674 = vadd.f32 0.0, %v9673
      %v9675 = vpop.f32.mrb[0].mxu0
      %9676 = vmatprep.mubr.bf16.mxu0 0
      %9677 = vmatmul.mubr.bf16.gmra.mrb[0].mxu0 %v9584
      %v9678 = vpop.f32.mrb[0].mxu0
      %v9679 = vadd.f32 0.0, %v9678
      %v9680 = vpop.f32.mrb[0].mxu0
      %v9681 = vpop.f32.mrb[0].mxu0
      %v9682 = vadd.f32 0.0, %v9681
      %v9683 = vpop.f32.mrb[0].mxu0
      %9684 = vmatprep.mubr.bf16.mxu0 0
      %9685 = vmatmul.mubr.bf16.gmra.mrb[0].mxu0 %v9587
      %v9686 = vpop.f32.mrb[0].mxu0
      %v9687 = vadd.f32 0.0, %v9686
      %v9688 = vpop.f32.mrb[0].mxu0
      %v9689 = vpop.f32.mrb[0].mxu0
      %v9690 = vadd.f32 0.0, %v9689
      %v9691 = vpop.f32.mrb[0].mxu0
      %9692 = vmatprep.mubr.bf16.mxu0 0
      %9693 = vmatmul.mubr.bf16.gmra.mrb[0].mxu0 %v9590
      %v9694 = vpop.f32.mrb[0].mxu0
      %v9695 = vadd.f32 0.0, %v9694
      %v9696 = vpop.f32.mrb[0].mxu0
      %v9697 = vpop.f32.mrb[0].mxu0
      %v9698 = vadd.f32 0.0, %v9697
      %v9699 = vpop.f32.mrb[0].mxu0
      %9700 = vmatprep.mubr.bf16.mxu0 0
      %9701 = vmatmul.mubr.bf16.gmra.mrb[0].mxu0 %v9593
      %v9702 = vpop.f32.mrb[0].mxu0
      %v9703 = vadd.f32 0.0, %v9702
      %v9704 = vpop.f32.mrb[0].mxu0
      %v9705 = vpop.f32.mrb[0].mxu0
      %v9706 = vadd.f32 0.0, %v9705
      %v9707 = vpop.f32.mrb[0].mxu0
      %9708 = vmatprep.mubr.bf16.mxu0 0
      %9709 = vmatmul.mubr.bf16.gmra.mrb[0].mxu0 %v9596
      %v9710 = vpop.f32.mrb[0].mxu0
      %v9711 = vadd.f32 0.0, %v9710
      %v9712 = vpop.f32.mrb[0].mxu0
      %v9713 = vpop.f32.mrb[0].mxu0
      %v9714 = vadd.f32 0.0, %v9713
      %v9715 = vpop.f32.mrb[0].mxu0
      %9716 = vmatprep.mubr.bf16.mxu0 0
      %9717 = vmatmul.mubr.bf16.gmra.mrb[0].mxu0 %v9599
      %v9718 = vpop.f32.mrb[0].mxu0
      %v9719 = vadd.f32 0.0, %v9718
      %v9720 = vpop.f32.mrb[0].mxu0
      %v9721 = vpop.f32.mrb[0].mxu0
      %v9722 = vadd.f32 0.0, %v9721
      %v9723 = vpop.f32.mrb[0].mxu0
      %9724 = vmatprep.mubr.bf16.mxu0 0
      %9725 = vmatmul.mubr.bf16.gmra.mrb[0].mxu0 %v9602
      %v9726 = vpop.f32.mrb[0].mxu0
      %v9727 = vadd.f32 0.0, %v9726
      %v9728 = vpop.f32.mrb[0].mxu0
      %v9729 = vpop.f32.mrb[0].mxu0
      %v9730 = vadd.f32 0.0, %v9729
      %v9731 = vpop.f32.mrb[0].mxu0
      %9732 = vmatprep.mubr.bf16.mxu0 0
      %9733 = vmatmul.mubr.bf16.gmra.mrb[0].mxu0 %v9605
      %v9734 = vpop.f32.mrb[0].mxu0
      %v9735 = vadd.f32 0.0, %v9734
      %v9736 = vpop.f32.mrb[0].mxu0
      %v9737 = vpop.f32.mrb[0].mxu0
      %v9738 = vadd.f32 0.0, %v9737
      %v9739 = vpop.f32.mrb[0].mxu0
      %9740 = vmatprep.mubr.bf16.mxu0 0
      %9741 = vmatmul.mubr.bf16.gmra.mrb[0].mxu0 %v9608
      %v9742 = vpop.f32.mrb[0].mxu0
      %v9743 = vadd.f32 0.0, %v9742
      %v9744 = vpop.f32.mrb[0].mxu0
      %v9745 = vpop.f32.mrb[0].mxu0
      %v9746 = vadd.f32 0.0, %v9745
      %v9747 = vpop.f32.mrb[0].mxu0
      %9748 = vmatprep.mubr.bf16.mxu0 0
      %9749 = vmatmul.mubr.bf16.gmra.mrb[0].mxu0 %v9611
      %v9750 = vpop.f32.mrb[0].mxu0
      %v9751 = vadd.f32 0.0, %v9750
      %v9752 = vpop.f32.mrb[0].mxu0
      %v9753 = vpop.f32.mrb[0].mxu0
      %v9754 = vadd.f32 0.0, %v9753
      %v9755 = vpop.f32.mrb[0].mxu0
      %9756 = vmatprep.mubr.bf16.mxu0 0
      %9757 = vmatmul.mubr.bf16.gmra.mrb[0].mxu0 %v9614
      %v9758 = vpop.f32.mrb[0].mxu0
      %v9759 = vadd.f32 0.0, %v9758
      %v9760 = vpop.f32.mrb[0].mxu0
      %v9761 = vpop.f32.mrb[0].mxu0
      %v9762 = vadd.f32 0.0, %v9761
      %v9763 = vpop.f32.mrb[0].mxu0
      %9764 = vmatprep.mubr.bf16.mxu0 0
      %9765 = vmatmul.mubr.bf16.gmra.mrb[0].mxu0 %v9617
      %v9766 = vpop.f32.mrb[0].mxu0
      %v9767 = vadd.f32 0.0, %v9766
      %v9768 = vpop.f32.mrb[0].mxu0
      %v9769 = vpop.f32.mrb[0].mxu0
      %v9770 = vadd.f32 0.0, %v9769
      %v9771 = vpop.f32.mrb[0].mxu0
      %9772 = vmatprep.mubr.bf16.mxu0 0
      %9773 = vmatmul.mubr.bf16.gmra.mrb[0].mxu0 %v9620
      %v9774 = vpop.f32.mrb[0].mxu0
      %v9775 = vadd.f32 0.0, %v9774
      %v9776 = vpop.f32.mrb[0].mxu0
      %v9777 = vpop.f32.mrb[0].mxu0
      %v9778 = vadd.f32 0.0, %v9777
      %v9779 = vpop.f32.mrb[0].mxu0
      %9780 = vmatprep.mubr.bf16.mxu0 0
      %9781 = vmatmul.mubr.bf16.gmra.mrb[0].mxu0 %v9623
      %v9782 = vpop.f32.mrb[0].mxu0
      %v9783 = vadd.f32 0.0, %v9782
      %v9784 = vpop.f32.mrb[0].mxu0
      %v9785 = vpop.f32.mrb[0].mxu0
      %v9786 = vadd.f32 0.0, %v9785
      %v9787 = vpop.f32.mrb[0].mxu0
      %9788 = vdwg.mxu0
      %v9789 = vadd.f32 %v9430, %v9663
      %v9790 = vadd.f32 %v9431, %v9666
      %v9791 = vadd.f32 %v9432, %v9671
      %v9792 = vadd.f32 %v9433, %v9674
      %v9793 = vadd.f32 %v9434, %v9679
      %v9794 = vadd.f32 %v9435, %v9682
      %v9795 = vadd.f32 %v9436, %v9687
      %v9796 = vadd.f32 %v9437, %v9690
      %v9797 = vadd.f32 %v9438, %v9695
      %v9798 = vadd.f32 %v9439, %v9698
      %v9799 = vadd.f32 %v9440, %v9703
      %v9800 = vadd.f32 %v9441, %v9706
      %v9801 = vadd.f32 %v9442, %v9711
      %v9802 = vadd.f32 %v9443, %v9714
      %v9803 = vadd.f32 %v9444, %v9719
      %v9804 = vadd.f32 %v9445, %v9722
      %v9805 = vadd.f32 %v9446, %v9727
      %v9806 = vadd.f32 %v9447, %v9730
      %v9807 = vadd.f32 %v9448, %v9735
      %v9808 = vadd.f32 %v9449, %v9738
      %v9809 = vadd.f32 %v9450, %v9743
      %v9810 = vadd.f32 %v9451, %v9746
      %v9811 = vadd.f32 %v9452, %v9751
      %v9812 = vadd.f32 %v9453, %v9754
      %v9813 = vadd.f32 %v9454, %v9759
      %v9814 = vadd.f32 %v9455, %v9762
      %v9815 = vadd.f32 %v9456, %v9767
      %v9816 = vadd.f32 %v9457, %v9770
      %v9817 = vadd.f32 %v9458, %v9775
      %v9818 = vadd.f32 %v9459, %v9778
      %v9819 = vadd.f32 %v9460, %v9783
      %v9820 = vadd.f32 %v9461, %v9786
      %v9821 = vld [vmem:[%s9462] sm:$0xf]
      %v9822 = vld [vmem:[%s9462 + $0x4] sm:$0xf]
      %v9823 = vld [vmem:[%s9462 + $0x8] sm:$0x1]
      %v9824 = vld [vmem:[%s9462 + $0xc] sm:$0xf]
      %v9825 = vld [vmem:[%s9462 + $0x10] sm:$0xf]
      %v9826 = vld [vmem:[%s9462 + $0x14] sm:$0x1]
      %v9827 = vld [vmem:[%s9462 + $0x18] sm:$0xf]
      %v9828 = vld [vmem:[%s9462 + $0x1c] sm:$0xf]
      %v9829 = vld [vmem:[%s9462 + $0x20] sm:$0x1]
      %v9830 = vld [vmem:[%s9462 + $0x24] sm:$0xf]
      %v9831 = vld [vmem:[%s9462 + $0x28] sm:$0xf]
      %v9832 = vld [vmem:[%s9462 + $0x2c] sm:$0x1]
      %v9833 = vld [vmem:[%s9462 + $0x30] sm:$0xf]
      %v9834 = vld [vmem:[%s9462 + $0x34] sm:$0xf]
      %v9835 = vld [vmem:[%s9462 + $0x38] sm:$0x1]
      %v9836 = vld [vmem:[%s9462 + $0x3c] sm:$0xf]
      %v9837 = vld [vmem:[%s9462 + $0x40] sm:$0xf]
      %v9838 = vld [vmem:[%s9462 + $0x44] sm:$0x1]
      %v9839 = vld [vmem:[%s9462 + $0x48] sm:$0xf]
      %v9840 = vld [vmem:[%s9462 + $0x4c] sm:$0xf]
      %v9841 = vld [vmem:[%s9462 + $0x50] sm:$0x1]
      %v9842 = vld [vmem:[%s9462 + $0x54] sm:$0xf]
      %v9843 = vld [vmem:[%s9462 + $0x58] sm:$0xf]
      %v9844 = vld [vmem:[%s9462 + $0x5c] sm:$0x1]
      %v9845 = vld [vmem:[%s9462 + $0x60] sm:$0xf]
      %v9846 = vld [vmem:[%s9462 + $0x64] sm:$0xf]
      %v9847 = vld [vmem:[%s9462 + $0x68] sm:$0x1]
      %v9848 = vld [vmem:[%s9462 + $0x6c] sm:$0xf]
      %v9849 = vld [vmem:[%s9462 + $0x70] sm:$0xf]
      %v9850 = vld [vmem:[%s9462 + $0x74] sm:$0x1]
      %v9851 = vld [vmem:[%s9462 + $0x78] sm:$0xf]
      %v9852 = vld [vmem:[%s9462 + $0x7c] sm:$0xf]
      %v9853 = vld [vmem:[%s9462 + $0x80] sm:$0x1]
      %v9854 = vld [vmem:[%s9462 + $0x84] sm:$0xf]
      %v9855 = vld [vmem:[%s9462 + $0x88] sm:$0xf]
      %v9856 = vld [vmem:[%s9462 + $0x8c] sm:$0x1]
      %v9857 = vld [vmem:[%s9462 + $0x90] sm:$0xf]
      %v9858 = vld [vmem:[%s9462 + $0x94] sm:$0xf]
      %v9859 = vld [vmem:[%s9462 + $0x98] sm:$0x1]
      %v9860 = vld [vmem:[%s9462 + $0x9c] sm:$0xf]
      %v9861 = vld [vmem:[%s9462 + $0xa0] sm:$0xf]
      %v9862 = vld [vmem:[%s9462 + $0xa4] sm:$0x1]
      %v9863 = vld [vmem:[%s9462 + $0xa8] sm:$0xf]
      %v9864 = vld [vmem:[%s9462 + $0xac] sm:$0xf]
      %v9865 = vld [vmem:[%s9462 + $0xb0] sm:$0x1]
      %v9866 = vld [vmem:[%s9462 + $0xb4] sm:$0xf]
      %v9867 = vld [vmem:[%s9462 + $0xb8] sm:$0xf]
      %v9868 = vld [vmem:[%s9462 + $0xbc] sm:$0x1]
      %v9870 = vshrl.u32 %v9821, 16
      %v9872 = vrot.slane %v9870, 4
      %v9873 = vshll.u32 %v9821, 16
      %v9875 = vrot.slane %v9873, 5
      %v9876 = vor.u32 %v9872, %v9875
      %v9877 = vrot.slane %v9876, 4
      %v9879 = vshll.u32 %v9822, 16
      %v9881 = vrot.slane %v9879, 5
      %v9882 = vsel %vm1316, %v9877, %v9881
      %v9883 = vshrl.u32 %v9822, 16
      %v9885 = vrot.slane %v9883, 4
      %v9886 = vor.u32 %v9885, %v9881
      %v9887 = vrot.slane %v9886, 4
      %v9889 = vshll.u32 %v9823, 16
      %v9891 = vrot.slane %v9889, 5
      %v9892 = vsel %vm1316, %v9887, %v9891
      %v9894 = vshrl.u32 %v9824, 16
      %v9896 = vrot.slane %v9894, 4
      %v9897 = vshll.u32 %v9824, 16
      %v9899 = vrot.slane %v9897, 5
      %v9900 = vor.u32 %v9896, %v9899
      %v9901 = vrot.slane %v9900, 4
      %v9903 = vshll.u32 %v9825, 16
      %v9905 = vrot.slane %v9903, 5
      %v9906 = vsel %vm1316, %v9901, %v9905
      %v9907 = vshrl.u32 %v9825, 16
      %v9909 = vrot.slane %v9907, 4
      %v9910 = vor.u32 %v9909, %v9905
      %v9911 = vrot.slane %v9910, 4
      %v9913 = vshll.u32 %v9826, 16
      %v9915 = vrot.slane %v9913, 5
      %v9916 = vsel %vm1316, %v9911, %v9915
      %v9918 = vshrl.u32 %v9827, 16
      %v9920 = vrot.slane %v9918, 4
      %v9921 = vshll.u32 %v9827, 16
      %v9923 = vrot.slane %v9921, 5
      %v9924 = vor.u32 %v9920, %v9923
      %v9925 = vrot.slane %v9924, 4
      %v9927 = vshll.u32 %v9828, 16
      %v9929 = vrot.slane %v9927, 5
      %v9930 = vsel %vm1316, %v9925, %v9929
      %v9931 = vshrl.u32 %v9828, 16
      %v9933 = vrot.slane %v9931, 4
      %v9934 = vor.u32 %v9933, %v9929
      %v9935 = vrot.slane %v9934, 4
      %v9937 = vshll.u32 %v9829, 16
      %v9939 = vrot.slane %v9937, 5
      %v9940 = vsel %vm1316, %v9935, %v9939
      %v9942 = vshrl.u32 %v9830, 16
      %v9944 = vrot.slane %v9942, 4
      %v9945 = vshll.u32 %v9830, 16
      %v9947 = vrot.slane %v9945, 5
      %v9948 = vor.u32 %v9944, %v9947
      %v9949 = vrot.slane %v9948, 4
      %v9951 = vshll.u32 %v9831, 16
      %v9953 = vrot.slane %v9951, 5
      %v9954 = vsel %vm1316, %v9949, %v9953
      %v9955 = vshrl.u32 %v9831, 16
      %v9957 = vrot.slane %v9955, 4
      %v9958 = vor.u32 %v9957, %v9953
      %v9959 = vrot.slane %v9958, 4
      %v9961 = vshll.u32 %v9832, 16
      %v9963 = vrot.slane %v9961, 5
      %v9964 = vsel %vm1316, %v9959, %v9963
      %v9966 = vshrl.u32 %v9833, 16
      %v9968 = vrot.slane %v9966, 4
      %v9969 = vshll.u32 %v9833, 16
      %v9971 = vrot.slane %v9969, 5
      %v9972 = vor.u32 %v9968, %v9971
      %v9973 = vrot.slane %v9972, 4
      %v9975 = vshll.u32 %v9834, 16
      %v9977 = vrot.slane %v9975, 5
      %v9978 = vsel %vm1316, %v9973, %v9977
      %v9979 = vshrl.u32 %v9834, 16
      %v9981 = vrot.slane %v9979, 4
      %v9982 = vor.u32 %v9981, %v9977
      %v9983 = vrot.slane %v9982, 4
      %v9985 = vshll.u32 %v9835, 16
      %v9987 = vrot.slane %v9985, 5
      %v9988 = vsel %vm1316, %v9983, %v9987
      %v9990 = vshrl.u32 %v9836, 16
      %v9992 = vrot.slane %v9990, 4
      %v9993 = vshll.u32 %v9836, 16
      %v9995 = vrot.slane %v9993, 5
      %v9996 = vor.u32 %v9992, %v9995
      %v9997 = vrot.slane %v9996, 4
      %v9999 = vshll.u32 %v9837, 16
      %v10001 = vrot.slane %v9999, 5
      %v10002 = vsel %vm1316, %v9997, %v10001
      %v10003 = vshrl.u32 %v9837, 16
      %v10005 = vrot.slane %v10003, 4
      %v10006 = vor.u32 %v10005, %v10001
      %v10007 = vrot.slane %v10006, 4
      %v10009 = vshll.u32 %v9838, 16
      %v10011 = vrot.slane %v10009, 5
      %v10012 = vsel %vm1316, %v10007, %v10011
      %v10014 = vshrl.u32 %v9839, 16
      %v10016 = vrot.slane %v10014, 4
      %v10017 = vshll.u32 %v9839, 16
      %v10019 = vrot.slane %v10017, 5
      %v10020 = vor.u32 %v10016, %v10019
      %v10021 = vrot.slane %v10020, 4
      %v10023 = vshll.u32 %v9840, 16
      %v10025 = vrot.slane %v10023, 5
      %v10026 = vsel %vm1316, %v10021, %v10025
      %v10027 = vshrl.u32 %v9840, 16
      %v10029 = vrot.slane %v10027, 4
      %v10030 = vor.u32 %v10029, %v10025
      %v10031 = vrot.slane %v10030, 4
      %v10033 = vshll.u32 %v9841, 16
      %v10035 = vrot.slane %v10033, 5
      %v10036 = vsel %vm1316, %v10031, %v10035
      %v10038 = vshrl.u32 %v9842, 16
      %v10040 = vrot.slane %v10038, 4
      %v10041 = vshll.u32 %v9842, 16
      %v10043 = vrot.slane %v10041, 5
      %v10044 = vor.u32 %v10040, %v10043
      %v10045 = vrot.slane %v10044, 4
      %v10047 = vshll.u32 %v9843, 16
      %v10049 = vrot.slane %v10047, 5
      %v10050 = vsel %vm1316, %v10045, %v10049
      %v10051 = vshrl.u32 %v9843, 16
      %v10053 = vrot.slane %v10051, 4
      %v10054 = vor.u32 %v10053, %v10049
      %v10055 = vrot.slane %v10054, 4
      %v10057 = vshll.u32 %v9844, 16
      %v10059 = vrot.slane %v10057, 5
      %v10060 = vsel %vm1316, %v10055, %v10059
      %v10062 = vshrl.u32 %v9845, 16
      %v10064 = vrot.slane %v10062, 4
      %v10065 = vshll.u32 %v9845, 16
      %v10067 = vrot.slane %v10065, 5
      %v10068 = vor.u32 %v10064, %v10067
      %v10069 = vrot.slane %v10068, 4
      %v10071 = vshll.u32 %v9846, 16
      %v10073 = vrot.slane %v10071, 5
      %v10074 = vsel %vm1316, %v10069, %v10073
      %v10075 = vshrl.u32 %v9846, 16
      %v10077 = vrot.slane %v10075, 4
      %v10078 = vor.u32 %v10077, %v10073
      %v10079 = vrot.slane %v10078, 4
      %v10081 = vshll.u32 %v9847, 16
      %v10083 = vrot.slane %v10081, 5
      %v10084 = vsel %vm1316, %v10079, %v10083
      %v10086 = vshrl.u32 %v9848, 16
      %v10088 = vrot.slane %v10086, 4
      %v10089 = vshll.u32 %v9848, 16
      %v10091 = vrot.slane %v10089, 5
      %v10092 = vor.u32 %v10088, %v10091
      %v10093 = vrot.slane %v10092, 4
      %v10095 = vshll.u32 %v9849, 16
      %v10097 = vrot.slane %v10095, 5
      %v10098 = vsel %vm1316, %v10093, %v10097
      %v10099 = vshrl.u32 %v9849, 16
      %v10101 = vrot.slane %v10099, 4
      %v10102 = vor.u32 %v10101, %v10097
      %v10103 = vrot.slane %v10102, 4
      %v10105 = vshll.u32 %v9850, 16
      %v10107 = vrot.slane %v10105, 5
      %v10108 = vsel %vm1316, %v10103, %v10107
      %v10110 = vshrl.u32 %v9851, 16
      %v10112 = vrot.slane %v10110, 4
      %v10113 = vshll.u32 %v9851, 16
      %v10115 = vrot.slane %v10113, 5
      %v10116 = vor.u32 %v10112, %v10115
      %v10117 = vrot.slane %v10116, 4
      %v10119 = vshll.u32 %v9852, 16
      %v10121 = vrot.slane %v10119, 5
      %v10122 = vsel %vm1316, %v10117, %v10121
      %v10123 = vshrl.u32 %v9852, 16
      %v10125 = vrot.slane %v10123, 4
      %v10126 = vor.u32 %v10125, %v10121
      %v10127 = vrot.slane %v10126, 4
      %v10129 = vshll.u32 %v9853, 16
      %v10131 = vrot.slane %v10129, 5
      %v10132 = vsel %vm1316, %v10127, %v10131
      %v10134 = vshrl.u32 %v9854, 16
      %v10136 = vrot.slane %v10134, 4
      %v10137 = vshll.u32 %v9854, 16
      %v10139 = vrot.slane %v10137, 5
      %v10140 = vor.u32 %v10136, %v10139
      %v10141 = vrot.slane %v10140, 4
      %v10143 = vshll.u32 %v9855, 16
      %v10145 = vrot.slane %v10143, 5
      %v10146 = vsel %vm1316, %v10141, %v10145
      %v10147 = vshrl.u32 %v9855, 16
      %v10149 = vrot.slane %v10147, 4
      %v10150 = vor.u32 %v10149, %v10145
      %v10151 = vrot.slane %v10150, 4
      %v10153 = vshll.u32 %v9856, 16
      %v10155 = vrot.slane %v10153, 5
      %v10156 = vsel %vm1316, %v10151, %v10155
      %v10158 = vshrl.u32 %v9857, 16
      %v10160 = vrot.slane %v10158, 4
      %v10161 = vshll.u32 %v9857, 16
      %v10163 = vrot.slane %v10161, 5
      %v10164 = vor.u32 %v10160, %v10163
      %v10165 = vrot.slane %v10164, 4
      %v10167 = vshll.u32 %v9858, 16
      %v10169 = vrot.slane %v10167, 5
      %v10170 = vsel %vm1316, %v10165, %v10169
      %v10171 = vshrl.u32 %v9858, 16
      %v10173 = vrot.slane %v10171, 4
      %v10174 = vor.u32 %v10173, %v10169
      %v10175 = vrot.slane %v10174, 4
      %v10177 = vshll.u32 %v9859, 16
      %v10179 = vrot.slane %v10177, 5
      %v10180 = vsel %vm1316, %v10175, %v10179
      %v10182 = vshrl.u32 %v9860, 16
      %v10184 = vrot.slane %v10182, 4
      %v10185 = vshll.u32 %v9860, 16
      %v10187 = vrot.slane %v10185, 5
      %v10188 = vor.u32 %v10184, %v10187
      %v10189 = vrot.slane %v10188, 4
      %v10191 = vshll.u32 %v9861, 16
      %v10193 = vrot.slane %v10191, 5
      %v10194 = vsel %vm1316, %v10189, %v10193
      %v10195 = vshrl.u32 %v9861, 16
      %v10197 = vrot.slane %v10195, 4
      %v10198 = vor.u32 %v10197, %v10193
      %v10199 = vrot.slane %v10198, 4
      %v10201 = vshll.u32 %v9862, 16
      %v10203 = vrot.slane %v10201, 5
      %v10204 = vsel %vm1316, %v10199, %v10203
      %v10206 = vshrl.u32 %v9863, 16
      %v10208 = vrot.slane %v10206, 4
      %v10209 = vshll.u32 %v9863, 16
      %v10211 = vrot.slane %v10209, 5
      %v10212 = vor.u32 %v10208, %v10211
      %v10213 = vrot.slane %v10212, 4
      %v10215 = vshll.u32 %v9864, 16
      %v10217 = vrot.slane %v10215, 5
      %v10218 = vsel %vm1316, %v10213, %v10217
      %v10219 = vshrl.u32 %v9864, 16
      %v10221 = vrot.slane %v10219, 4
      %v10222 = vor.u32 %v10221, %v10217
      %v10223 = vrot.slane %v10222, 4
      %v10225 = vshll.u32 %v9865, 16
      %v10227 = vrot.slane %v10225, 5
      %v10228 = vsel %vm1316, %v10223, %v10227
      %v10230 = vshrl.u32 %v9866, 16
      %v10232 = vrot.slane %v10230, 4
      %v10233 = vshll.u32 %v9866, 16
      %v10235 = vrot.slane %v10233, 5
      %v10236 = vor.u32 %v10232, %v10235
      %v10237 = vrot.slane %v10236, 4
      %v10239 = vshll.u32 %v9867, 16
      %v10241 = vrot.slane %v10239, 5
      %v10242 = vsel %vm1316, %v10237, %v10241
      %v10243 = vshrl.u32 %v9867, 16
      %v10245 = vrot.slane %v10243, 4
      %v10246 = vor.u32 %v10245, %v10241
      %v10247 = vrot.slane %v10246, 4
      %v10249 = vshll.u32 %v9868, 16
      %v10251 = vrot.slane %v10249, 5
      %v10252 = vsel %vm1316, %v10247, %v10251
      %s10253 = scalar_lea.vmem %s5, 14
      %v10254 = vld [vmem:[%s10253] sm:$0x3]
      %v10255 = vunpack.c.l.b16 %v9882
      %v10256 = vunpack.c.l.b16 %v9892
      %v10257 = vunpack.c.l.b16 %v9906
      %v10258 = vunpack.c.l.b16 %v9916
      %v10259 = vunpack.c.l.b16 %v9930
      %v10260 = vunpack.c.l.b16 %v9940
      %v10261 = vunpack.c.l.b16 %v9954
      %v10262 = vunpack.c.l.b16 %v9964
      %v10263 = vunpack.c.l.b16 %v9978
      %v10264 = vunpack.c.l.b16 %v9988
      %v10265 = vunpack.c.l.b16 %v10002
      %v10266 = vunpack.c.l.b16 %v10012
      %v10267 = vunpack.c.l.b16 %v10026
      %v10268 = vunpack.c.l.b16 %v10036
      %v10269 = vunpack.c.l.b16 %v10050
      %v10270 = vunpack.c.l.b16 %v10060
      %v10271 = vunpack.c.l.b16 %v10074
      %v10272 = vunpack.c.l.b16 %v10084
      %v10273 = vunpack.c.l.b16 %v10098
      %v10274 = vunpack.c.l.b16 %v10108
      %v10275 = vunpack.c.l.b16 %v10122
      %v10276 = vunpack.c.l.b16 %v10132
      %v10277 = vunpack.c.l.b16 %v10146
      %v10278 = vunpack.c.l.b16 %v10156
      %v10279 = vunpack.c.l.b16 %v10170
      %v10280 = vunpack.c.l.b16 %v10180
      %v10281 = vunpack.c.l.b16 %v10194
      %v10282 = vunpack.c.l.b16 %v10204
      %v10283 = vunpack.c.l.b16 %v10218
      %v10284 = vunpack.c.l.b16 %v10228
      %v10285 = vunpack.c.l.b16 %v10242
      %v10286 = vunpack.c.l.b16 %v10252
      %v10287 = vpack.c.b16 %v10256, %v10255
      %v10288 = vpack.c.b16 %v10258, %v10257
      %v10289 = vpack.c.b16 %v10260, %v10259
      %v10290 = vpack.c.b16 %v10262, %v10261
      %v10291 = vpack.c.b16 %v10264, %v10263
      %v10292 = vpack.c.b16 %v10266, %v10265
      %v10293 = vpack.c.b16 %v10268, %v10267
      %v10294 = vpack.c.b16 %v10270, %v10269
      %v10295 = vpack.c.b16 %v10272, %v10271
      %v10296 = vpack.c.b16 %v10274, %v10273
      %v10297 = vpack.c.b16 %v10276, %v10275
      %v10298 = vpack.c.b16 %v10278, %v10277
      %v10299 = vpack.c.b16 %v10280, %v10279
      %v10300 = vpack.c.b16 %v10282, %v10281
      %v10301 = vpack.c.b16 %v10284, %v10283
      %v10302 = vpack.c.b16 %v10286, %v10285
      %v10304 = vsel %vm695, %v10287, 0
      %v10307 = vsel %vm695, %v10288, 0
      %v10310 = vsel %vm695, %v10289, 0
      %v10313 = vsel %vm695, %v10290, 0
      %v10316 = vsel %vm695, %v10291, 0
      %v10319 = vsel %vm695, %v10292, 0
      %v10322 = vsel %vm695, %v10293, 0
      %v10325 = vsel %vm695, %v10294, 0
      %v10328 = vsel %vm695, %v10295, 0
      %v10331 = vsel %vm695, %v10296, 0
      %v10334 = vsel %vm695, %v10297, 0
      %v10337 = vsel %vm695, %v10298, 0
      %v10340 = vsel %vm695, %v10299, 0
      %v10343 = vsel %vm695, %v10300, 0
      %v10346 = vsel %vm695, %v10301, 0
      %v10349 = vsel %vm695, %v10302, 0
      %v10352 = vsel %vm6997, %v10254, 0
      %10354 = vmatprep.subr.bf16.mxu0 0
      %10355 = vmatpush1.bf16.msra.mxu0 %v10352
      %10356 = vmatprep.subr.bf16.mxu0 0
      %10357 = vmatpush1.bf16.msra.mxu0 0
      %10358 = vmatprep.subr.bf16.mxu0 0
      %10359 = vmatpush1.bf16.msra.mxu0 0
      %10360 = vmatprep.subr.bf16.mxu0 0
      %10361 = vmatpush1.bf16.msra.mxu0 0
      %10362 = vmatprep.subr.bf16.mxu0 0
      %10363 = vmatpush1.bf16.msra.mxu0 0
      %10364 = vmatprep.subr.bf16.mxu0 0
      %10365 = vmatpush1.bf16.msra.mxu0 0
      %10366 = vmatprep.subr.bf16.mxu0 0
      %10367 = vmatpush1.bf16.msra.mxu0 0
      %10368 = vmatprep.subr.bf16.mxu0 0
      %10369 = vmatpush1.bf16.msra.mxu0 0
      %10370 = vmatprep.subr.bf16.mxu0 0
      %10371 = vmatpush1.bf16.msra.mxu0 0
      %10372 = vmatprep.subr.bf16.mxu0 0
      %10373 = vmatpush1.bf16.msra.mxu0 0
      %10374 = vmatprep.subr.bf16.mxu0 0
      %10375 = vmatpush1.bf16.msra.mxu0 0
      %10376 = vmatprep.subr.bf16.mxu0 0
      %10377 = vmatpush1.bf16.msra.mxu0 0
      %10378 = vmatprep.subr.bf16.mxu0 0
      %10379 = vmatpush1.bf16.msra.mxu0 0
      %10380 = vmatprep.subr.bf16.mxu0 0
      %10381 = vmatpush1.bf16.msra.mxu0 0
      %10382 = vmatprep.subr.bf16.mxu0 0
      %10383 = vmatpush1.bf16.msra.mxu0 0
      %10384 = vmatprep.subr.bf16.mxu0 0
      %10385 = vmatpush1.bf16.msra.mxu0 0
      %10386 = vmatprep.mubr.bf16.mxu0 0
      %10387 = vmatmul.mubr.bf16.gmra.mrb[0].mxu0 %v10304
      %v10388 = vpop.f32.mrb[0].mxu0
      %v10389 = vadd.f32 0.0, %v10388
      %v10390 = vpop.f32.mrb[0].mxu0
      %v10391 = vpop.f32.mrb[0].mxu0
      %v10392 = vadd.f32 0.0, %v10391
      %v10393 = vpop.f32.mrb[0].mxu0
      %10394 = vmatprep.mubr.bf16.mxu0 0
      %10395 = vmatmul.mubr.bf16.gmra.mrb[0].mxu0 %v10307
      %v10396 = vpop.f32.mrb[0].mxu0
      %v10397 = vadd.f32 0.0, %v10396
      %v10398 = vpop.f32.mrb[0].mxu0
      %v10399 = vpop.f32.mrb[0].mxu0
      %v10400 = vadd.f32 0.0, %v10399
      %v10401 = vpop.f32.mrb[0].mxu0
      %10402 = vmatprep.mubr.bf16.mxu0 0
      %10403 = vmatmul.mubr.bf16.gmra.mrb[0].mxu0 %v10310
      %v10404 = vpop.f32.mrb[0].mxu0
      %v10405 = vadd.f32 0.0, %v10404
      %v10406 = vpop.f32.mrb[0].mxu0
      %v10407 = vpop.f32.mrb[0].mxu0
      %v10408 = vadd.f32 0.0, %v10407
      %v10409 = vpop.f32.mrb[0].mxu0
      %10410 = vmatprep.mubr.bf16.mxu0 0
      %10411 = vmatmul.mubr.bf16.gmra.mrb[0].mxu0 %v10313
      %v10412 = vpop.f32.mrb[0].mxu0
      %v10413 = vadd.f32 0.0, %v10412
      %v10414 = vpop.f32.mrb[0].mxu0
      %v10415 = vpop.f32.mrb[0].mxu0
      %v10416 = vadd.f32 0.0, %v10415
      %v10417 = vpop.f32.mrb[0].mxu0
      %10418 = vmatprep.mubr.bf16.mxu0 0
      %10419 = vmatmul.mubr.bf16.gmra.mrb[0].mxu0 %v10316
      %v10420 = vpop.f32.mrb[0].mxu0
      %v10421 = vadd.f32 0.0, %v10420
      %v10422 = vpop.f32.mrb[0].mxu0
      %v10423 = vpop.f32.mrb[0].mxu0
      %v10424 = vadd.f32 0.0, %v10423
      %v10425 = vpop.f32.mrb[0].mxu0
      %10426 = vmatprep.mubr.bf16.mxu0 0
      %10427 = vmatmul.mubr.bf16.gmra.mrb[0].mxu0 %v10319
      %v10428 = vpop.f32.mrb[0].mxu0
      %v10429 = vadd.f32 0.0, %v10428
      %v10430 = vpop.f32.mrb[0].mxu0
      %v10431 = vpop.f32.mrb[0].mxu0
      %v10432 = vadd.f32 0.0, %v10431
      %v10433 = vpop.f32.mrb[0].mxu0
      %10434 = vmatprep.mubr.bf16.mxu0 0
      %10435 = vmatmul.mubr.bf16.gmra.mrb[0].mxu0 %v10322
      %v10436 = vpop.f32.mrb[0].mxu0
      %v10437 = vadd.f32 0.0, %v10436
      %v10438 = vpop.f32.mrb[0].mxu0
      %v10439 = vpop.f32.mrb[0].mxu0
      %v10440 = vadd.f32 0.0, %v10439
      %v10441 = vpop.f32.mrb[0].mxu0
      %10442 = vmatprep.mubr.bf16.mxu0 0
      %10443 = vmatmul.mubr.bf16.gmra.mrb[0].mxu0 %v10325
      %v10444 = vpop.f32.mrb[0].mxu0
      %v10445 = vadd.f32 0.0, %v10444
      %v10446 = vpop.f32.mrb[0].mxu0
      %v10447 = vpop.f32.mrb[0].mxu0
      %v10448 = vadd.f32 0.0, %v10447
      %v10449 = vpop.f32.mrb[0].mxu0
      %10450 = vmatprep.mubr.bf16.mxu0 0
      %10451 = vmatmul.mubr.bf16.gmra.mrb[0].mxu0 %v10328
      %v10452 = vpop.f32.mrb[0].mxu0
      %v10453 = vadd.f32 0.0, %v10452
      %v10454 = vpop.f32.mrb[0].mxu0
      %v10455 = vpop.f32.mrb[0].mxu0
      %v10456 = vadd.f32 0.0, %v10455
      %v10457 = vpop.f32.mrb[0].mxu0
      %10458 = vmatprep.mubr.bf16.mxu0 0
      %10459 = vmatmul.mubr.bf16.gmra.mrb[0].mxu0 %v10331
      %v10460 = vpop.f32.mrb[0].mxu0
      %v10461 = vadd.f32 0.0, %v10460
      %v10462 = vpop.f32.mrb[0].mxu0
      %v10463 = vpop.f32.mrb[0].mxu0
      %v10464 = vadd.f32 0.0, %v10463
      %v10465 = vpop.f32.mrb[0].mxu0
      %10466 = vmatprep.mubr.bf16.mxu0 0
      %10467 = vmatmul.mubr.bf16.gmra.mrb[0].mxu0 %v10334
      %v10468 = vpop.f32.mrb[0].mxu0
      %v10469 = vadd.f32 0.0, %v10468
      %v10470 = vpop.f32.mrb[0].mxu0
      %v10471 = vpop.f32.mrb[0].mxu0
      %v10472 = vadd.f32 0.0, %v10471
      %v10473 = vpop.f32.mrb[0].mxu0
      %10474 = vmatprep.mubr.bf16.mxu0 0
      %10475 = vmatmul.mubr.bf16.gmra.mrb[0].mxu0 %v10337
      %v10476 = vpop.f32.mrb[0].mxu0
      %v10477 = vadd.f32 0.0, %v10476
      %v10478 = vpop.f32.mrb[0].mxu0
      %v10479 = vpop.f32.mrb[0].mxu0
      %v10480 = vadd.f32 0.0, %v10479
      %v10481 = vpop.f32.mrb[0].mxu0
      %10482 = vmatprep.mubr.bf16.mxu0 0
      %10483 = vmatmul.mubr.bf16.gmra.mrb[0].mxu0 %v10340
      %v10484 = vpop.f32.mrb[0].mxu0
      %v10485 = vadd.f32 0.0, %v10484
      %v10486 = vpop.f32.mrb[0].mxu0
      %v10487 = vpop.f32.mrb[0].mxu0
      %v10488 = vadd.f32 0.0, %v10487
      %v10489 = vpop.f32.mrb[0].mxu0
      %10490 = vmatprep.mubr.bf16.mxu0 0
      %10491 = vmatmul.mubr.bf16.gmra.mrb[0].mxu0 %v10343
      %v10492 = vpop.f32.mrb[0].mxu0
      %v10493 = vadd.f32 0.0, %v10492
      %v10494 = vpop.f32.mrb[0].mxu0
      %v10495 = vpop.f32.mrb[0].mxu0
      %v10496 = vadd.f32 0.0, %v10495
      %v10497 = vpop.f32.mrb[0].mxu0
      %10498 = vmatprep.mubr.bf16.mxu0 0
      %10499 = vmatmul.mubr.bf16.gmra.mrb[0].mxu0 %v10346
      %v10500 = vpop.f32.mrb[0].mxu0
      %v10501 = vadd.f32 0.0, %v10500
      %v10502 = vpop.f32.mrb[0].mxu0
      %v10503 = vpop.f32.mrb[0].mxu0
      %v10504 = vadd.f32 0.0, %v10503
      %v10505 = vpop.f32.mrb[0].mxu0
      %10506 = vmatprep.mubr.bf16.mxu0 0
      %10507 = vmatmul.mubr.bf16.gmra.mrb[0].mxu0 %v10349
      %v10508 = vpop.f32.mrb[0].mxu0
      %v10509 = vadd.f32 0.0, %v10508
      %v10510 = vpop.f32.mrb[0].mxu0
      %v10511 = vpop.f32.mrb[0].mxu0
      %v10512 = vadd.f32 0.0, %v10511
      %v10513 = vpop.f32.mrb[0].mxu0
      %10514 = vdwg.mxu0
      %v10515 = vadd.f32 %v9789, %v10389
      %v10516 = vadd.f32 %v9790, %v10392
      %v10517 = vadd.f32 %v9791, %v10397
      %v10518 = vadd.f32 %v9792, %v10400
      %v10519 = vadd.f32 %v9793, %v10405
      %v10520 = vadd.f32 %v9794, %v10408
      %v10521 = vadd.f32 %v9795, %v10413
      %v10522 = vadd.f32 %v9796, %v10416
      %v10523 = vadd.f32 %v9797, %v10421
      %v10524 = vadd.f32 %v9798, %v10424
      %v10525 = vadd.f32 %v9799, %v10429
      %v10526 = vadd.f32 %v9800, %v10432
      %v10527 = vadd.f32 %v9801, %v10437
      %v10528 = vadd.f32 %v9802, %v10440
      %v10529 = vadd.f32 %v9803, %v10445
      %v10530 = vadd.f32 %v9804, %v10448
      %v10531 = vadd.f32 %v9805, %v10453
      %v10532 = vadd.f32 %v9806, %v10456
      %v10533 = vadd.f32 %v9807, %v10461
      %v10534 = vadd.f32 %v9808, %v10464
      %v10535 = vadd.f32 %v9809, %v10469
      %v10536 = vadd.f32 %v9810, %v10472
      %v10537 = vadd.f32 %v9811, %v10477
      %v10538 = vadd.f32 %v9812, %v10480
      %v10539 = vadd.f32 %v9813, %v10485
      %v10540 = vadd.f32 %v9814, %v10488
      %v10541 = vadd.f32 %v9815, %v10493
      %v10542 = vadd.f32 %v9816, %v10496
      %v10543 = vadd.f32 %v9817, %v10501
      %v10544 = vadd.f32 %v9818, %v10504
      %v10545 = vadd.f32 %v9819, %v10509
      %v10546 = vadd.f32 %v9820, %v10512
      %v10547 = vld [vmem:[%s9462] sm:$0xe]
      %v10548 = vld [vmem:[%s9462 + $0xc] sm:$0xe]
      %v10549 = vld [vmem:[%s9462 + $0x18] sm:$0xe]
      %v10550 = vld [vmem:[%s9462 + $0x24] sm:$0xe]
      %v10551 = vld [vmem:[%s9462 + $0x30] sm:$0xe]
      %v10552 = vld [vmem:[%s9462 + $0x3c] sm:$0xe]
      %v10553 = vld [vmem:[%s9462 + $0x48] sm:$0xe]
      %v10554 = vld [vmem:[%s9462 + $0x54] sm:$0xe]
      %v10555 = vld [vmem:[%s9462 + $0x60] sm:$0xe]
      %v10556 = vld [vmem:[%s9462 + $0x6c] sm:$0xe]
      %v10557 = vld [vmem:[%s9462 + $0x78] sm:$0xe]
      %v10558 = vld [vmem:[%s9462 + $0x84] sm:$0xe]
      %v10559 = vld [vmem:[%s9462 + $0x90] sm:$0xe]
      %v10560 = vld [vmem:[%s9462 + $0x9c] sm:$0xe]
      %v10561 = vld [vmem:[%s9462 + $0xa8] sm:$0xe]
      %v10562 = vld [vmem:[%s9462 + $0xb4] sm:$0xe]
      %v10611 = vrot.slane %v10547, 5
      %v10612 = vrot.slane %v10611, 4
      %v10613 = vrot.slane %v9822, 5
      %v10614 = vsel %vm2307, %v10612, %v10613
      %v10615 = vrot.slane %v10613, 4
      %v10616 = vrot.slane %v9823, 5
      %v10617 = vsel %vm2307, %v10615, %v10616
      %v10618 = vrot.slane %v10548, 5
      %v10619 = vrot.slane %v10618, 4
      %v10620 = vrot.slane %v9825, 5
      %v10621 = vsel %vm2307, %v10619, %v10620
      %v10622 = vrot.slane %v10620, 4
      %v10623 = vrot.slane %v9826, 5
      %v10624 = vsel %vm2307, %v10622, %v10623
      %v10625 = vrot.slane %v10549, 5
      %v10626 = vrot.slane %v10625, 4
      %v10627 = vrot.slane %v9828, 5
      %v10628 = vsel %vm2307, %v10626, %v10627
      %v10629 = vrot.slane %v10627, 4
      %v10630 = vrot.slane %v9829, 5
      %v10631 = vsel %vm2307, %v10629, %v10630
      %v10632 = vrot.slane %v10550, 5
      %v10633 = vrot.slane %v10632, 4
      %v10634 = vrot.slane %v9831, 5
      %v10635 = vsel %vm2307, %v10633, %v10634
      %v10636 = vrot.slane %v10634, 4
      %v10637 = vrot.slane %v9832, 5
      %v10638 = vsel %vm2307, %v10636, %v10637
      %v10639 = vrot.slane %v10551, 5
      %v10640 = vrot.slane %v10639, 4
      %v10641 = vrot.slane %v9834, 5
      %v10642 = vsel %vm2307, %v10640, %v10641
      %v10643 = vrot.slane %v10641, 4
      %v10644 = vrot.slane %v9835, 5
      %v10645 = vsel %vm2307, %v10643, %v10644
      %v10646 = vrot.slane %v10552, 5
      %v10647 = vrot.slane %v10646, 4
      %v10648 = vrot.slane %v9837, 5
      %v10649 = vsel %vm2307, %v10647, %v10648
      %v10650 = vrot.slane %v10648, 4
      %v10651 = vrot.slane %v9838, 5
      %v10652 = vsel %vm2307, %v10650, %v10651
      %v10653 = vrot.slane %v10553, 5
      %v10654 = vrot.slane %v10653, 4
      %v10655 = vrot.slane %v9840, 5
      %v10656 = vsel %vm2307, %v10654, %v10655
      %v10657 = vrot.slane %v10655, 4
      %v10658 = vrot.slane %v9841, 5
      %v10659 = vsel %vm2307, %v10657, %v10658
      %v10660 = vrot.slane %v10554, 5
      %v10661 = vrot.slane %v10660, 4
      %v10662 = vrot.slane %v9843, 5
      %v10663 = vsel %vm2307, %v10661, %v10662
      %v10664 = vrot.slane %v10662, 4
      %v10665 = vrot.slane %v9844, 5
      %v10666 = vsel %vm2307, %v10664, %v10665
      %v10667 = vrot.slane %v10555, 5
      %v10668 = vrot.slane %v10667, 4
      %v10669 = vrot.slane %v9846, 5
      %v10670 = vsel %vm2307, %v10668, %v10669
      %v10671 = vrot.slane %v10669, 4
      %v10672 = vrot.slane %v9847, 5
      %v10673 = vsel %vm2307, %v10671, %v10672
      %v10674 = vrot.slane %v10556, 5
      %v10675 = vrot.slane %v10674, 4
      %v10676 = vrot.slane %v9849, 5
      %v10677 = vsel %vm2307, %v10675, %v10676
      %v10678 = vrot.slane %v10676, 4
      %v10679 = vrot.slane %v9850, 5
      %v10680 = vsel %vm2307, %v10678, %v10679
      %v10681 = vrot.slane %v10557, 5
      %v10682 = vrot.slane %v10681, 4
      %v10683 = vrot.slane %v9852, 5
      %v10684 = vsel %vm2307, %v10682, %v10683
      %v10685 = vrot.slane %v10683, 4
      %v10686 = vrot.slane %v9853, 5
      %v10687 = vsel %vm2307, %v10685, %v10686
      %v10688 = vrot.slane %v10558, 5
      %v10689 = vrot.slane %v10688, 4
      %v10690 = vrot.slane %v9855, 5
      %v10691 = vsel %vm2307, %v10689, %v10690
      %v10692 = vrot.slane %v10690, 4
      %v10693 = vrot.slane %v9856, 5
      %v10694 = vsel %vm2307, %v10692, %v10693
      %v10695 = vrot.slane %v10559, 5
      %v10696 = vrot.slane %v10695, 4
      %v10697 = vrot.slane %v9858, 5
      %v10698 = vsel %vm2307, %v10696, %v10697
      %v10699 = vrot.slane %v10697, 4
      %v10700 = vrot.slane %v9859, 5
      %v10701 = vsel %vm2307, %v10699, %v10700
      %v10702 = vrot.slane %v10560, 5
      %v10703 = vrot.slane %v10702, 4
      %v10704 = vrot.slane %v9861, 5
      %v10705 = vsel %vm2307, %v10703, %v10704
      %v10706 = vrot.slane %v10704, 4
      %v10707 = vrot.slane %v9862, 5
      %v10708 = vsel %vm2307, %v10706, %v10707
      %v10709 = vrot.slane %v10561, 5
      %v10710 = vrot.slane %v10709, 4
      %v10711 = vrot.slane %v9864, 5
      %v10712 = vsel %vm2307, %v10710, %v10711
      %v10713 = vrot.slane %v10711, 4
      %v10714 = vrot.slane %v9865, 5
      %v10715 = vsel %vm2307, %v10713, %v10714
      %v10716 = vrot.slane %v10562, 5
      %v10717 = vrot.slane %v10716, 4
      %v10718 = vrot.slane %v9867, 5
      %v10719 = vsel %vm2307, %v10717, %v10718
      %v10720 = vrot.slane %v10718, 4
      %v10721 = vrot.slane %v9868, 5
      %v10722 = vsel %vm2307, %v10720, %v10721
      %s10723 = scalar_lea.vmem %s5, 16
      %v10724 = vld [vmem:[%s10723] sm:$0x3]
      %v10725 = vunpack.c.l.b16 %v10614
      %v10726 = vunpack.c.l.b16 %v10617
      %v10727 = vunpack.c.l.b16 %v10621
      %v10728 = vunpack.c.l.b16 %v10624
      %v10729 = vunpack.c.l.b16 %v10628
      %v10730 = vunpack.c.l.b16 %v10631
      %v10731 = vunpack.c.l.b16 %v10635
      %v10732 = vunpack.c.l.b16 %v10638
      %v10733 = vunpack.c.l.b16 %v10642
      %v10734 = vunpack.c.l.b16 %v10645
      %v10735 = vunpack.c.l.b16 %v10649
      %v10736 = vunpack.c.l.b16 %v10652
      %v10737 = vunpack.c.l.b16 %v10656
      %v10738 = vunpack.c.l.b16 %v10659
      %v10739 = vunpack.c.l.b16 %v10663
      %v10740 = vunpack.c.l.b16 %v10666
      %v10741 = vunpack.c.l.b16 %v10670
      %v10742 = vunpack.c.l.b16 %v10673
      %v10743 = vunpack.c.l.b16 %v10677
      %v10744 = vunpack.c.l.b16 %v10680
      %v10745 = vunpack.c.l.b16 %v10684
      %v10746 = vunpack.c.l.b16 %v10687
      %v10747 = vunpack.c.l.b16 %v10691
      %v10748 = vunpack.c.l.b16 %v10694
      %v10749 = vunpack.c.l.b16 %v10698
      %v10750 = vunpack.c.l.b16 %v10701
      %v10751 = vunpack.c.l.b16 %v10705
      %v10752 = vunpack.c.l.b16 %v10708
      %v10753 = vunpack.c.l.b16 %v10712
      %v10754 = vunpack.c.l.b16 %v10715
      %v10755 = vunpack.c.l.b16 %v10719
      %v10756 = vunpack.c.l.b16 %v10722
      %v10757 = vpack.c.b16 %v10726, %v10725
      %v10758 = vpack.c.b16 %v10728, %v10727
      %v10759 = vpack.c.b16 %v10730, %v10729
      %v10760 = vpack.c.b16 %v10732, %v10731
      %v10761 = vpack.c.b16 %v10734, %v10733
      %v10762 = vpack.c.b16 %v10736, %v10735
      %v10763 = vpack.c.b16 %v10738, %v10737
      %v10764 = vpack.c.b16 %v10740, %v10739
      %v10765 = vpack.c.b16 %v10742, %v10741
      %v10766 = vpack.c.b16 %v10744, %v10743
      %v10767 = vpack.c.b16 %v10746, %v10745
      %v10768 = vpack.c.b16 %v10748, %v10747
      %v10769 = vpack.c.b16 %v10750, %v10749
      %v10770 = vpack.c.b16 %v10752, %v10751
      %v10771 = vpack.c.b16 %v10754, %v10753
      %v10772 = vpack.c.b16 %v10756, %v10755
      %v10774 = vsel %vm695, %v10757, 0
      %v10777 = vsel %vm695, %v10758, 0
      %v10780 = vsel %vm695, %v10759, 0
      %v10783 = vsel %vm695, %v10760, 0
      %v10786 = vsel %vm695, %v10761, 0
      %v10789 = vsel %vm695, %v10762, 0
      %v10792 = vsel %vm695, %v10763, 0
      %v10795 = vsel %vm695, %v10764, 0
      %v10798 = vsel %vm695, %v10765, 0
      %v10801 = vsel %vm695, %v10766, 0
      %v10804 = vsel %vm695, %v10767, 0
      %v10807 = vsel %vm695, %v10768, 0
      %v10810 = vsel %vm695, %v10769, 0
      %v10813 = vsel %vm695, %v10770, 0
      %v10816 = vsel %vm695, %v10771, 0
      %v10819 = vsel %vm695, %v10772, 0
      %v10822 = vsel %vm6997, %v10724, 0
      %10824 = vmatprep.subr.bf16.mxu0 0
      %10825 = vmatpush1.bf16.msra.mxu0 %v10822
      %10826 = vmatprep.subr.bf16.mxu0 0
      %10827 = vmatpush1.bf16.msra.mxu0 0
      %10828 = vmatprep.subr.bf16.mxu0 0
      %10829 = vmatpush1.bf16.msra.mxu0 0
      %10830 = vmatprep.subr.bf16.mxu0 0
      %10831 = vmatpush1.bf16.msra.mxu0 0
      %10832 = vmatprep.subr.bf16.mxu0 0
      %10833 = vmatpush1.bf16.msra.mxu0 0
      %10834 = vmatprep.subr.bf16.mxu0 0
      %10835 = vmatpush1.bf16.msra.mxu0 0
      %10836 = vmatprep.subr.bf16.mxu0 0
      %10837 = vmatpush1.bf16.msra.mxu0 0
      %10838 = vmatprep.subr.bf16.mxu0 0
      %10839 = vmatpush1.bf16.msra.mxu0 0
      %10840 = vmatprep.subr.bf16.mxu0 0
      %10841 = vmatpush1.bf16.msra.mxu0 0
      %10842 = vmatprep.subr.bf16.mxu0 0
      %10843 = vmatpush1.bf16.msra.mxu0 0
      %10844 = vmatprep.subr.bf16.mxu0 0
      %10845 = vmatpush1.bf16.msra.mxu0 0
      %10846 = vmatprep.subr.bf16.mxu0 0
      %10847 = vmatpush1.bf16.msra.mxu0 0
      %10848 = vmatprep.subr.bf16.mxu0 0
      %10849 = vmatpush1.bf16.msra.mxu0 0
      %10850 = vmatprep.subr.bf16.mxu0 0
      %10851 = vmatpush1.bf16.msra.mxu0 0
      %10852 = vmatprep.subr.bf16.mxu0 0
      %10853 = vmatpush1.bf16.msra.mxu0 0
      %10854 = vmatprep.subr.bf16.mxu0 0
      %10855 = vmatpush1.bf16.msra.mxu0 0
      %10856 = vmatprep.mubr.bf16.mxu0 0
      %10857 = vmatmul.mubr.bf16.gmra.mrb[0].mxu0 %v10774
      %v10858 = vpop.f32.mrb[0].mxu0
      %v10859 = vadd.f32 0.0, %v10858
      %v10860 = vpop.f32.mrb[0].mxu0
      %v10861 = vpop.f32.mrb[0].mxu0
      %v10862 = vadd.f32 0.0, %v10861
      %v10863 = vpop.f32.mrb[0].mxu0
      %10864 = vmatprep.mubr.bf16.mxu0 0
      %10865 = vmatmul.mubr.bf16.gmra.mrb[0].mxu0 %v10777
      %v10866 = vpop.f32.mrb[0].mxu0
      %v10867 = vadd.f32 0.0, %v10866
      %v10868 = vpop.f32.mrb[0].mxu0
      %v10869 = vpop.f32.mrb[0].mxu0
      %v10870 = vadd.f32 0.0, %v10869
      %v10871 = vpop.f32.mrb[0].mxu0
      %10872 = vmatprep.mubr.bf16.mxu0 0
      %10873 = vmatmul.mubr.bf16.gmra.mrb[0].mxu0 %v10780
      %v10874 = vpop.f32.mrb[0].mxu0
      %v10875 = vadd.f32 0.0, %v10874
      %v10876 = vpop.f32.mrb[0].mxu0
      %v10877 = vpop.f32.mrb[0].mxu0
      %v10878 = vadd.f32 0.0, %v10877
      %v10879 = vpop.f32.mrb[0].mxu0
      %10880 = vmatprep.mubr.bf16.mxu0 0
      %10881 = vmatmul.mubr.bf16.gmra.mrb[0].mxu0 %v10783
      %v10882 = vpop.f32.mrb[0].mxu0
      %v10883 = vadd.f32 0.0, %v10882
      %v10884 = vpop.f32.mrb[0].mxu0
      %v10885 = vpop.f32.mrb[0].mxu0
      %v10886 = vadd.f32 0.0, %v10885
      %v10887 = vpop.f32.mrb[0].mxu0
      %10888 = vmatprep.mubr.bf16.mxu0 0
      %10889 = vmatmul.mubr.bf16.gmra.mrb[0].mxu0 %v10786
      %v10890 = vpop.f32.mrb[0].mxu0
      %v10891 = vadd.f32 0.0, %v10890
      %v10892 = vpop.f32.mrb[0].mxu0
      %v10893 = vpop.f32.mrb[0].mxu0
      %v10894 = vadd.f32 0.0, %v10893
      %v10895 = vpop.f32.mrb[0].mxu0
      %10896 = vmatprep.mubr.bf16.mxu0 0
      %10897 = vmatmul.mubr.bf16.gmra.mrb[0].mxu0 %v10789
      %v10898 = vpop.f32.mrb[0].mxu0
      %v10899 = vadd.f32 0.0, %v10898
      %v10900 = vpop.f32.mrb[0].mxu0
      %v10901 = vpop.f32.mrb[0].mxu0
      %v10902 = vadd.f32 0.0, %v10901
      %v10903 = vpop.f32.mrb[0].mxu0
      %10904 = vmatprep.mubr.bf16.mxu0 0
      %10905 = vmatmul.mubr.bf16.gmra.mrb[0].mxu0 %v10792
      %v10906 = vpop.f32.mrb[0].mxu0
      %v10907 = vadd.f32 0.0, %v10906
      %v10908 = vpop.f32.mrb[0].mxu0
      %v10909 = vpop.f32.mrb[0].mxu0
      %v10910 = vadd.f32 0.0, %v10909
      %v10911 = vpop.f32.mrb[0].mxu0
      %10912 = vmatprep.mubr.bf16.mxu0 0
      %10913 = vmatmul.mubr.bf16.gmra.mrb[0].mxu0 %v10795
      %v10914 = vpop.f32.mrb[0].mxu0
      %v10915 = vadd.f32 0.0, %v10914
      %v10916 = vpop.f32.mrb[0].mxu0
      %v10917 = vpop.f32.mrb[0].mxu0
      %v10918 = vadd.f32 0.0, %v10917
      %v10919 = vpop.f32.mrb[0].mxu0
      %10920 = vmatprep.mubr.bf16.mxu0 0
      %10921 = vmatmul.mubr.bf16.gmra.mrb[0].mxu0 %v10798
      %v10922 = vpop.f32.mrb[0].mxu0
      %v10923 = vadd.f32 0.0, %v10922
      %v10924 = vpop.f32.mrb[0].mxu0
      %v10925 = vpop.f32.mrb[0].mxu0
      %v10926 = vadd.f32 0.0, %v10925
      %v10927 = vpop.f32.mrb[0].mxu0
      %10928 = vmatprep.mubr.bf16.mxu0 0
      %10929 = vmatmul.mubr.bf16.gmra.mrb[0].mxu0 %v10801
      %v10930 = vpop.f32.mrb[0].mxu0
      %v10931 = vadd.f32 0.0, %v10930
      %v10932 = vpop.f32.mrb[0].mxu0
      %v10933 = vpop.f32.mrb[0].mxu0
      %v10934 = vadd.f32 0.0, %v10933
      %v10935 = vpop.f32.mrb[0].mxu0
      %10936 = vmatprep.mubr.bf16.mxu0 0
      %10937 = vmatmul.mubr.bf16.gmra.mrb[0].mxu0 %v10804
      %v10938 = vpop.f32.mrb[0].mxu0
      %v10939 = vadd.f32 0.0, %v10938
      %v10940 = vpop.f32.mrb[0].mxu0
      %v10941 = vpop.f32.mrb[0].mxu0
      %v10942 = vadd.f32 0.0, %v10941
      %v10943 = vpop.f32.mrb[0].mxu0
      %10944 = vmatprep.mubr.bf16.mxu0 0
      %10945 = vmatmul.mubr.bf16.gmra.mrb[0].mxu0 %v10807
      %v10946 = vpop.f32.mrb[0].mxu0
      %v10947 = vadd.f32 0.0, %v10946
      %v10948 = vpop.f32.mrb[0].mxu0
      %v10949 = vpop.f32.mrb[0].mxu0
      %v10950 = vadd.f32 0.0, %v10949
      %v10951 = vpop.f32.mrb[0].mxu0
      %10952 = vmatprep.mubr.bf16.mxu0 0
      %10953 = vmatmul.mubr.bf16.gmra.mrb[0].mxu0 %v10810
      %v10954 = vpop.f32.mrb[0].mxu0
      %v10955 = vadd.f32 0.0, %v10954
      %v10956 = vpop.f32.mrb[0].mxu0
      %v10957 = vpop.f32.mrb[0].mxu0
      %v10958 = vadd.f32 0.0, %v10957
      %v10959 = vpop.f32.mrb[0].mxu0
      %10960 = vmatprep.mubr.bf16.mxu0 0
      %10961 = vmatmul.mubr.bf16.gmra.mrb[0].mxu0 %v10813
      %v10962 = vpop.f32.mrb[0].mxu0
      %v10963 = vadd.f32 0.0, %v10962
      %v10964 = vpop.f32.mrb[0].mxu0
      %v10965 = vpop.f32.mrb[0].mxu0
      %v10966 = vadd.f32 0.0, %v10965
      %v10967 = vpop.f32.mrb[0].mxu0
      %10968 = vmatprep.mubr.bf16.mxu0 0
      %10969 = vmatmul.mubr.bf16.gmra.mrb[0].mxu0 %v10816
      %v10970 = vpop.f32.mrb[0].mxu0
      %v10971 = vadd.f32 0.0, %v10970
      %v10972 = vpop.f32.mrb[0].mxu0
      %v10973 = vpop.f32.mrb[0].mxu0
      %v10974 = vadd.f32 0.0, %v10973
      %v10975 = vpop.f32.mrb[0].mxu0
      %10976 = vmatprep.mubr.bf16.mxu0 0
      %10977 = vmatmul.mubr.bf16.gmra.mrb[0].mxu0 %v10819
      %v10978 = vpop.f32.mrb[0].mxu0
      %v10979 = vadd.f32 0.0, %v10978
      %v10980 = vpop.f32.mrb[0].mxu0
      %v10981 = vpop.f32.mrb[0].mxu0
      %v10982 = vadd.f32 0.0, %v10981
      %v10983 = vpop.f32.mrb[0].mxu0
      %10984 = vdwg.mxu0
      %v10985 = vadd.f32 %v10515, %v10859
      %v10986 = vadd.f32 %v10516, %v10862
      %v10987 = vadd.f32 %v10517, %v10867
      %v10988 = vadd.f32 %v10518, %v10870
      %v10989 = vadd.f32 %v10519, %v10875
      %v10990 = vadd.f32 %v10520, %v10878
      %v10991 = vadd.f32 %v10521, %v10883
      %v10992 = vadd.f32 %v10522, %v10886
      %v10993 = vadd.f32 %v10523, %v10891
      %v10994 = vadd.f32 %v10524, %v10894
      %v10995 = vadd.f32 %v10525, %v10899
      %v10996 = vadd.f32 %v10526, %v10902
      %v10997 = vadd.f32 %v10527, %v10907
      %v10998 = vadd.f32 %v10528, %v10910
      %v10999 = vadd.f32 %v10529, %v10915
      %v11000 = vadd.f32 %v10530, %v10918
      %v11001 = vadd.f32 %v10531, %v10923
      %v11002 = vadd.f32 %v10532, %v10926
      %v11003 = vadd.f32 %v10533, %v10931
      %v11004 = vadd.f32 %v10534, %v10934
      %v11005 = vadd.f32 %v10535, %v10939
      %v11006 = vadd.f32 %v10536, %v10942
      %v11007 = vadd.f32 %v10537, %v10947
      %v11008 = vadd.f32 %v10538, %v10950
      %v11009 = vadd.f32 %v10539, %v10955
      %v11010 = vadd.f32 %v10540, %v10958
      %v11011 = vadd.f32 %v10541, %v10963
      %v11012 = vadd.f32 %v10542, %v10966
      %v11013 = vadd.f32 %v10543, %v10971
      %v11014 = vadd.f32 %v10544, %v10974
      %v11015 = vadd.f32 %v10545, %v10979
      %v11016 = vadd.f32 %v10546, %v10982
      %v11017 = vld [vmem:[%s6] sm:$0x1]
      %v11019 = vlaneseq
      %v11020 = vshrl.u32 %v11019, 7
      %v11021 = vsub.s32 0, %v11020
      %v11022 = vrot.slane %v11017, %v11021
      %v11024 = vmul.f32 %v10985, %v11022
      %v11025 = vmul.f32 %v10986, %v11022
      %v11026 = vmul.f32 %v10987, %v11022
      %v11027 = vmul.f32 %v10988, %v11022
      %v11028 = vmul.f32 %v10989, %v11022
      %v11029 = vmul.f32 %v10990, %v11022
      %v11030 = vmul.f32 %v10991, %v11022
      %v11031 = vmul.f32 %v10992, %v11022
      %v11032 = vmul.f32 %v10993, %v11022
      %v11033 = vmul.f32 %v10994, %v11022
      %v11034 = vmul.f32 %v10995, %v11022
      %v11035 = vmul.f32 %v10996, %v11022
      %v11036 = vmul.f32 %v10997, %v11022
      %v11037 = vmul.f32 %v10998, %v11022
      %v11038 = vmul.f32 %v10999, %v11022
      %v11039 = vmul.f32 %v11000, %v11022
      %v11040 = vmul.f32 %v11001, %v11022
      %v11041 = vmul.f32 %v11002, %v11022
      %v11042 = vmul.f32 %v11003, %v11022
      %v11043 = vmul.f32 %v11004, %v11022
      %v11044 = vmul.f32 %v11005, %v11022
      %v11045 = vmul.f32 %v11006, %v11022
      %v11046 = vmul.f32 %v11007, %v11022
      %v11047 = vmul.f32 %v11008, %v11022
      %v11048 = vmul.f32 %v11009, %v11022
      %v11049 = vmul.f32 %v11010, %v11022
      %v11050 = vmul.f32 %v11011, %v11022
      %v11051 = vmul.f32 %v11012, %v11022
      %v11052 = vmul.f32 %v11013, %v11022
      %v11053 = vmul.f32 %v11014, %v11022
      %v11054 = vmul.f32 %v11015, %v11022
      %v11055 = vmul.f32 %v11016, %v11022
      %v11056 = vld [vmem:[%s7] sm:$0x1]
      %v11058 = vlaneseq
      %v11059 = vshrl.u32 %v11058, 7
      %v11060 = vsub.s32 0, %v11059
      %v11061 = vrot.slane %v11056, %v11060
      %v11063 = vadd.f32 %v11024, %v11061
      %v11064 = vadd.f32 %v11025, %v11061
      %v11065 = vadd.f32 %v11026, %v11061
      %v11066 = vadd.f32 %v11027, %v11061
      %v11067 = vadd.f32 %v11028, %v11061
      %v11068 = vadd.f32 %v11029, %v11061
      %v11069 = vadd.f32 %v11030, %v11061
      %v11070 = vadd.f32 %v11031, %v11061
      %v11071 = vadd.f32 %v11032, %v11061
      %v11072 = vadd.f32 %v11033, %v11061
      %v11073 = vadd.f32 %v11034, %v11061
      %v11074 = vadd.f32 %v11035, %v11061
      %v11075 = vadd.f32 %v11036, %v11061
      %v11076 = vadd.f32 %v11037, %v11061
      %v11077 = vadd.f32 %v11038, %v11061
      %v11078 = vadd.f32 %v11039, %v11061
      %v11079 = vadd.f32 %v11040, %v11061
      %v11080 = vadd.f32 %v11041, %v11061
      %v11081 = vadd.f32 %v11042, %v11061
      %v11082 = vadd.f32 %v11043, %v11061
      %v11083 = vadd.f32 %v11044, %v11061
      %v11084 = vadd.f32 %v11045, %v11061
      %v11085 = vadd.f32 %v11046, %v11061
      %v11086 = vadd.f32 %v11047, %v11061
      %v11087 = vadd.f32 %v11048, %v11061
      %v11088 = vadd.f32 %v11049, %v11061
      %v11089 = vadd.f32 %v11050, %v11061
      %v11090 = vadd.f32 %v11051, %v11061
      %v11091 = vadd.f32 %v11052, %v11061
      %v11092 = vadd.f32 %v11053, %v11061
      %v11093 = vadd.f32 %v11054, %v11061
      %v11094 = vadd.f32 %v11055, %v11061
      %v11095 = vmax.f32 %v11063, 0.0
      %v11096 = vmax.f32 %v11064, 0.0
      %v11097 = vmax.f32 %v11065, 0.0
      %v11098 = vmax.f32 %v11066, 0.0
      %v11099 = vmax.f32 %v11067, 0.0
      %v11100 = vmax.f32 %v11068, 0.0
      %v11101 = vmax.f32 %v11069, 0.0
      %v11102 = vmax.f32 %v11070, 0.0
      %v11103 = vmax.f32 %v11071, 0.0
      %v11104 = vmax.f32 %v11072, 0.0
      %v11105 = vmax.f32 %v11073, 0.0
      %v11106 = vmax.f32 %v11074, 0.0
      %v11107 = vmax.f32 %v11075, 0.0
      %v11108 = vmax.f32 %v11076, 0.0
      %v11109 = vmax.f32 %v11077, 0.0
      %v11110 = vmax.f32 %v11078, 0.0
      %v11111 = vmax.f32 %v11079, 0.0
      %v11112 = vmax.f32 %v11080, 0.0
      %v11113 = vmax.f32 %v11081, 0.0
      %v11114 = vmax.f32 %v11082, 0.0
      %v11115 = vmax.f32 %v11083, 0.0
      %v11116 = vmax.f32 %v11084, 0.0
      %v11117 = vmax.f32 %v11085, 0.0
      %v11118 = vmax.f32 %v11086, 0.0
      %v11119 = vmax.f32 %v11087, 0.0
      %v11120 = vmax.f32 %v11088, 0.0
      %v11121 = vmax.f32 %v11089, 0.0
      %v11122 = vmax.f32 %v11090, 0.0
      %v11123 = vmax.f32 %v11091, 0.0
      %v11124 = vmax.f32 %v11092, 0.0
      %v11125 = vmax.f32 %v11093, 0.0
      %v11126 = vmax.f32 %v11094, 0.0
      %11127 = vxpose.xlu0.b32.start [1/16] %v11095, 128
      %11128 = vxpose.xlu0.b32.cont [2/16] %v11096, 128
      %11129 = vxpose.xlu0.b32.cont [3/16] %v11097, 128
      %11130 = vxpose.xlu0.b32.cont [4/16] %v11098, 128
      %11131 = vxpose.xlu0.b32.cont [5/16] %v11099, 128
      %11132 = vxpose.xlu0.b32.cont [6/16] %v11100, 128
      %11133 = vxpose.xlu0.b32.cont [7/16] %v11101, 128
      %11134 = vxpose.xlu0.b32.cont [8/16] %v11102, 128
      %11135 = vxpose.xlu0.b32.cont [9/16] %v11103, 128
      %11136 = vxpose.xlu0.b32.cont [10/16] %v11104, 128
      %11137 = vxpose.xlu0.b32.cont [11/16] %v11105, 128
      %11138 = vxpose.xlu0.b32.cont [12/16] %v11106, 128
      %11139 = vxpose.xlu0.b32.cont [13/16] %v11107, 128
      %11140 = vxpose.xlu0.b32.cont [14/16] %v11108, 128
      %11141 = vxpose.xlu0.b32.cont [15/16] %v11109, 128
      %11142 = vxpose.xlu0.b32.end [16/16] %v11110, 128
      %v11143 = vpop.trf.xlu0
      %v11144 = vpop.trf.xlu0
      %v11145 = vpop.trf.xlu0
      %v11146 = vpop.trf.xlu0
      %v11147 = vpop.trf.xlu0
      %v11148 = vpop.trf.xlu0
      %v11149 = vpop.trf.xlu0
      %v11150 = vpop.trf.xlu0
      %v11151 = vpop.trf.xlu0
      %v11152 = vpop.trf.xlu0
      %v11153 = vpop.trf.xlu0
      %v11154 = vpop.trf.xlu0
      %v11155 = vpop.trf.xlu0
      %v11156 = vpop.trf.xlu0
      %v11157 = vpop.trf.xlu0
      %v11158 = vpop.trf.xlu0
      %11159 = vxpose.xlu0.b32.start [1/16] %v11111, 128
      %11160 = vxpose.xlu0.b32.cont [2/16] %v11112, 128
      %11161 = vxpose.xlu0.b32.cont [3/16] %v11113, 128
      %11162 = vxpose.xlu0.b32.cont [4/16] %v11114, 128
      %11163 = vxpose.xlu0.b32.cont [5/16] %v11115, 128
      %11164 = vxpose.xlu0.b32.cont [6/16] %v11116, 128
      %11165 = vxpose.xlu0.b32.cont [7/16] %v11117, 128
      %11166 = vxpose.xlu0.b32.cont [8/16] %v11118, 128
      %11167 = vxpose.xlu0.b32.cont [9/16] %v11119, 128
      %11168 = vxpose.xlu0.b32.cont [10/16] %v11120, 128
      %11169 = vxpose.xlu0.b32.cont [11/16] %v11121, 128
      %11170 = vxpose.xlu0.b32.cont [12/16] %v11122, 128
      %11171 = vxpose.xlu0.b32.cont [13/16] %v11123, 128
      %11172 = vxpose.xlu0.b32.cont [14/16] %v11124, 128
      %11173 = vxpose.xlu0.b32.cont [15/16] %v11125, 128
      %11174 = vxpose.xlu0.b32.end [16/16] %v11126, 128
      %v11175 = vpop.trf.xlu0
      %v11176 = vpop.trf.xlu0
      %v11177 = vpop.trf.xlu0
      %v11178 = vpop.trf.xlu0
      %v11179 = vpop.trf.xlu0
      %v11180 = vpop.trf.xlu0
      %v11181 = vpop.trf.xlu0
      %v11182 = vpop.trf.xlu0
      %v11183 = vpop.trf.xlu0
      %v11184 = vpop.trf.xlu0
      %v11185 = vpop.trf.xlu0
      %v11186 = vpop.trf.xlu0
      %v11187 = vpop.trf.xlu0
      %v11188 = vpop.trf.xlu0
      %v11189 = vpop.trf.xlu0
      %v11190 = vpop.trf.xlu0
      %v11193 = vcombine.low %v11143, %v11175
      %11195 = vst [vmem:[%s325] sm:$0xff] %v11193
      %p11196 = scmp.lt.s32.totalorder %s19, 1
      %s11197 = scalar_select %p11196, %s19, 1
      %s11198 = smul.addr %s11197, 2
      %s11199 = smul.addr %s11198, 4
      %s11200 = scalar_lea.vmem %s8, %s11199
      // Predicated region
      $region53: #{up_forward.1} parent=51 // pred_check
        %p11201 = pneg %p215
      $region54: #{up_forward.1} parent=51 // pred_check_branch
        %11203 = sbr.rel (%p11201) target = $region56
      $region55: #{up_forward.1} parent=51 // pred_region
        _
      $region56: #{up_forward.1} parent=51 // pred_fallthru
        _
    $region52: #{up_forward.1} parent=5 // pred_fallthru
      _
    %p11204 = scmp.le.s32.totalorder 2, %s14
    // Predicated region
    $region57: #{up_forward.1} parent=5 // pred_check
      %p11205 = pneg %p11204
    $region58: #{up_forward.1} parent=5 // pred_check_branch
      %11207 = sbr.rel (%p11205) target = $region60
    $region59: #{up_forward.1} parent=5 // pred_region
      %s11208 = ssub.s32 %s14, 2
      // Predicated region
      $region61: #{up_forward.1} parent=59 // pred_check
        %p11209 = pneg %p221
      $region62: #{up_forward.1} parent=59 // pred_check_branch
        %11211 = sbr.rel (%p11209) target = $region64
      $region63: #{up_forward.1} parent=59 // pred_region
        %p11212 = scmp.lt.s32.totalorder %s20, 1
        %s11213 = scalar_select %p11212, %s20, 1
        %s11214 = smul.addr %s11213, 2
        %s11215 = smul.addr %s11214, 4
        %s11216 = scalar_lea.vmem %s8, %s11215
      $region64: #{up_forward.1} parent=59 // pred_fallthru
        _
    $region60: #{up_forward.1} parent=5 // pred_fallthru
      _
  $region6: #{up_forward.1} parent=0 // loop_footer
    %s18 = sadd.s32 1, %s14
  $region7: #{up_forward.1} parent=0 // loop_footer_branch
    %13 = sbr.rel target = $region3
  $region8: #{up_forward.1} parent=0 // loop_exit
    _

</llo_original>
